<compile_context>
chip_gen: v7x
topology: tpu7x:2x2x1
jax: 0.10.0
libtpu: 0.0.40
codegen_flags: <defaults>
</compile_context>

<pallas_src>
import functools

import jax
import jax.numpy as jnp
from jax import lax
from jax.experimental import pallas as pl
from jax.experimental.pallas import tpu as pltpu

LANE = 128  # channel padding target -> lane-dense activations / outputs


# ----------------------------------------------------------------------------
# In-kernel building blocks (everything stays 2-D in VMEM)
# ----------------------------------------------------------------------------
def _conv_in_lrelu(y_ref, w_ref, g_ref, b_ref, patch_ref, Ho, Wo, Ci4):
    """Fused Conv2d(k=4,s=2,p=1,bias=False) -> InstanceNorm2d(affine) -> LeakyReLU(0.01).

    y_ref:     ((Ho+1)*(Wo+1), Ci4) space-to-depth sample, Ci4 = 4*Cin_pad, f32
    w_ref:     (16*Cin_pad, Cp)     conv weight in im2col layout, bf16
    g_ref/b_ref: (1, Cp)            InstanceNorm gamma/beta (zero padded), f32
    patch_ref: (Ho*Wo, 16*Cin_pad)  VMEM scratch for the in-kernel im2col matrix
    Returns the activated feature map as an (Ho*Wo, Cp) f32 value.
    """
    HW = Ho * Wo
    Ws = Wo + 1
    # In-kernel im2col: 4 shifted taps of the space-to-depth input (no HBM
    # patch materialization; only small VMEM->VMEM row copies).
    for t, (dh, dw) in enumerate(((0, 0), (0, 1), (1, 0), (1, 1))):
        for oh in range(Ho):
            s = (oh + dh) * Ws + dw
            patch_ref[oh * Wo:(oh + 1) * Wo, t * Ci4:(t + 1) * Ci4] = (
                y_ref[s:s + Wo, :])

    # bf16 MXU matmul, f32 accumulation.
    y = jnp.dot(patch_ref[...].astype(jnp.bfloat16), w_ref[...],
                preferred_element_type=jnp.float32)                 # (HW, Cp) f32

    # InstanceNorm2d (per-instance stats, biased variance, eps=1e-5), one pass.
    inv_hw = 1.0 / float(HW)
    s1 = jnp.sum(y, axis=0, keepdims=True)
    s2 = jnp.sum(y * y, axis=0, keepdims=True)
    mean = s1 * inv_hw
    var = jnp.maximum(s2 * inv_hw - mean * mean, 0.0)
    h = (y - mean) * lax.rsqrt(var + 1e-5)
    h = h * g_ref[...] + b_ref[...]
    # LeakyReLU(negative_slope=0.01)
    return jnp.where(h >= 0.0, h, 0.01 * h)


def convblock_kernel(y_ref, w_ref, g_ref, b_ref, o_ref, patch_ref, *, Ho, Wo, Ci4):
    o_ref[...] = _conv_in_lrelu(y_ref, w_ref, g_ref, b_ref, patch_ref, Ho, Wo, Ci4)


def convblock_heads_kernel(y_ref, w_ref, g_ref, b_ref, wsrc_ref, wcls_ref,
                           osrc_ref, ocls_ref,
                           patch_ref, hpad_ref, spatch_ref, cflat_ref,
                           *, Ho, Wo, Ci4, Cp):
    """Last ConvBlock with both Discriminator heads fused into the epilogue."""
    HW = Ho * Wo
    Wp = Wo + 2
    h = _conv_in_lrelu(y_ref, w_ref, g_ref, b_ref, patch_ref, Ho, Wo, Ci4)

    # ---- out_src: Conv2d(C, 1, k=3, s=1, p=1, bias=False); Cout padded to LANE.
    # Zero-padded copy of h (flattened (Ho+2)*(Wo+2) rows), then in-VMEM im2col.
    hpad_ref[...] = jnp.zeros_like(hpad_ref)
    for oh in range(Ho):
        start = (oh + 1) * Wp + 1
        hpad_ref[start:start + Wo, :] = h[oh * Wo:(oh + 1) * Wo, :]
    for t in range(9):
        ih, iw = t // 3, t % 3
        for oh in range(Ho):
            src = (oh + ih) * Wp + iw
            spatch_ref[oh * Wo:(oh + 1) * Wo, t * Cp:(t + 1) * Cp] = (
                hpad_ref[src:src + Wo, :])
    osrc_ref[...] = jnp.dot(spatch_ref[...].astype(jnp.bfloat16), wsrc_ref[...],
                            preferred_element_type=jnp.float32)

    # ---- out_cls: Conv2d(C, c_dim, k=H, p=0, bias=False) == full-frame matvec.
    # TODO(synk): for large final spatial sizes replace this unrolled flatten
    #             loop with a single wide reshape/copy.
    for p in range(HW):
        cflat_ref[0:1, p * Cp:(p + 1) * Cp] = h[p:p + 1, :]
    ocls_ref[...] = jnp.dot(cflat_ref[...].astype(jnp.bfloat16), wcls_ref[...],
                            preferred_element_type=jnp.float32)


# ----------------------------------------------------------------------------
# pallas_call wrappers
# ----------------------------------------------------------------------------
def convblock_call(y, w_mat, g, b, Ho, Wo):
    """y: (N, (Ho+1)*(Wo+1), Ci4) f32; w_mat: (16*Cin_pad, Cp) bf16; g/b: (1, Cp)."""
    N, HsWs, Ci4 = y.shape
    K, Cp = w_mat.shape
    HW = Ho * Wo
    cost = pl.CostEstimate(
        flops=int(2 * N * HW * K * Cp),
        transcendentals=0,
        bytes_accessed=int(N * HsWs * Ci4 * 4 + K * Cp * 2 + 2 * Cp * 4
                           + N * HW * Cp * 4))
    kern = functools.partial(convblock_kernel, Ho=Ho, Wo=Wo, Ci4=Ci4)
    return pl.pallas_call(
        kern,
        out_shape=jax.ShapeDtypeStruct((N, HW, Cp), jnp.float32),
        grid=(N,),
        in_specs=[
            pl.BlockSpec((None, HsWs, Ci4), lambda n: (n, 0, 0)),
            pl.BlockSpec((K, Cp), lambda n: (0, 0)),
            pl.BlockSpec((1, Cp), lambda n: (0, 0)),
            pl.BlockSpec((1, Cp), lambda n: (0, 0)),
        ],
        out_specs=pl.BlockSpec((None, HW, Cp), lambda n: (n, 0, 0)),
        scratch_shapes=[pltpu.VMEM((HW, K), jnp.float32)],
        compiler_params=pltpu.CompilerParams(dimension_semantics=("parallel",)),
        cost_estimate=cost,
    )(y, w_mat, g, b)


def convblock_heads_call(y, w_mat, g, b, wsrc_mat, wcls_mat, Ho, Wo):
    """Last ConvBlock + fused out_src / out_cls heads."""
    N, HsWs, Ci4 = y.shape
    K, Cp = w_mat.shape
    HW = Ho * Wo
    cost = pl.CostEstimate(
        flops=int(2 * N * (HW * K * Cp + HW * 9 * Cp * LANE + HW * Cp * LANE)),
        transcendentals=0,
        bytes_accessed=int(N * HsWs * Ci4 * 4 + K * Cp * 2 + 9 * Cp * LANE * 2
                           + HW * Cp * LANE * 2 + N * (HW + 1) * LANE * 4))
    kern = functools.partial(convblock_heads_kernel, Ho=Ho, Wo=Wo, Ci4=Ci4, Cp=Cp)
    return pl.pallas_call(
        kern,
        out_shape=(jax.ShapeDtypeStruct((N, HW, LANE), jnp.float32),
                   jax.ShapeDtypeStruct((N, 1, LANE), jnp.float32)),
        grid=(N,),
        in_specs=[
            pl.BlockSpec((None, HsWs, Ci4), lambda n: (n, 0, 0)),
            pl.BlockSpec((K, Cp), lambda n: (0, 0)),
            pl.BlockSpec((1, Cp), lambda n: (0, 0)),
            pl.BlockSpec((1, Cp), lambda n: (0, 0)),
            pl.BlockSpec((9 * Cp, LANE), lambda n: (0, 0)),
            pl.BlockSpec((HW * Cp, LANE), lambda n: (0, 0)),
        ],
        out_specs=(pl.BlockSpec((None, HW, LANE), lambda n: (n, 0, 0)),
                   pl.BlockSpec((None, 1, LANE), lambda n: (n, 0, 0))),
        scratch_shapes=[pltpu.VMEM((HW, K), jnp.float32),
                        pltpu.VMEM(((Ho + 2) * (Wo + 2), Cp), jnp.float32),
                        pltpu.VMEM((HW, 9 * Cp), jnp.float32),
                        pltpu.VMEM((1, HW * Cp), jnp.float32)],
        compiler_params=pltpu.CompilerParams(dimension_semantics=("parallel",)),
        cost_estimate=cost,
    )(y, w_mat, g, b, wsrc_mat, wcls_mat)


# ----------------------------------------------------------------------------
# Plain-JAX glue: layout / padding transforms (cheap, no data blow-up)
# ----------------------------------------------------------------------------
def _pad_last(x, target):
    return jnp.pad(x, ((0, 0),) * (x.ndim - 1) + ((0, target - x.shape[-1]),))


def space_to_depth_pad(x):
    """(N, H, W, Cp) -> (N, (H//2+1)*(W//2+1), 4*Cp).

    y[n, a*(W//2+1)+b, (p*2+q)*Cp+c] = pad1(x)[n, 2a+p, 2b+q, c].
    Same total byte count as the input (no k*k/stride^2 patch blow-up).
    """
    N, H, W, C = x.shape
    assert H % 2 == 0 and W % 2 == 0
    xp = jnp.pad(x, ((0, 0), (1, 1), (1, 1), (0, 0)))
    Hs, Ws = (H + 2) // 2, (W + 2) // 2
    y = xp.reshape(N, Hs, 2, Ws, 2, C)
    y = jnp.transpose(y, (0, 1, 3, 2, 4, 5))
    return y.reshape(N, Hs * Ws, 4 * C)


def convblock_weight_mat(w, cin_pad, cout_pad):
    """(Cout, Cin, 4, 4) -> (16*cin_pad, cout_pad) bf16.

    K order matches the in-kernel patch layout: K = ((dh*2+dw)*4 + p*2+q)*cin_pad + cin
    with ih = 2*dh + p, iw = 2*dw + q.
    """
    cout, cin, _, _ = w.shape
    wt = jnp.transpose(w, (2, 3, 1, 0))                            # (kh, kw, cin, cout)
    wt = jnp.pad(wt, ((0, 0), (0, 0), (0, cin_pad - cin), (0, cout_pad - cout)))
    wt = wt.reshape(2, 2, 2, 2, cin_pad, cout_pad)                 # (dh, p, dw, q, ci, co)
    wt = jnp.transpose(wt, (0, 2, 1, 3, 4, 5))                     # (dh, dw, p, q, ci, co)
    return wt.reshape(16 * cin_pad, cout_pad).astype(jnp.bfloat16)


def src_weight_mat(w_src, cp):
    """(1, C, 3, 3) -> (9*cp, LANE) bf16; only column 0 is real."""
    _, c, kh, kw = w_src.shape
    wt = jnp.transpose(w_src, (2, 3, 1, 0))                        # (3, 3, c, 1)
    wt = jnp.pad(wt, ((0, 0), (0, 0), (0, cp - c), (0, LANE - 1)))
    return wt.reshape(kh * kw * cp, LANE).astype(jnp.bfloat16)


def cls_weight_mat(w_cls, cp):
    """(c_dim, C, kh, kw) -> (kh*kw*cp, LANE) bf16; first c_dim columns are real."""
    d, c, kh, kw = w_cls.shape
    wt = jnp.transpose(w_cls, (2, 3, 1, 0))                        # (kh, kw, c, d)
    wt = jnp.pad(wt, ((0, 0), (0, 0), (0, cp - c), (0, LANE - d)))
    return wt.reshape(kh * kw * cp, LANE).astype(jnp.bfloat16)


# ----------------------------------------------------------------------------
# Discriminator forward (Pallas-backed)
# ----------------------------------------------------------------------------
def discriminator_forward(x_nchw, conv_params, w_src, w_cls):
    c_dim = w_cls.shape[0]
    x = jnp.transpose(x_nchw, (0, 2, 3, 1)).astype(jnp.float32)    # NHWC
    x = _pad_last(x, LANE)                                         # channels -> 128
    N = x.shape[0]
    n_blocks = len(conv_params)

    src_p = cls_p = None
    Ho = Wo = None
    for li, (w, gamma, beta) in enumerate(conv_params):
        Ho, Wo = x.shape[1] // 2, x.shape[2] // 2
        y = space_to_depth_pad(x)                                  # (N, (Ho+1)*(Wo+1), 4*128)
        w_mat = convblock_weight_mat(w, LANE, LANE)
        g = _pad_last(gamma.reshape(1, -1).astype(jnp.float32), LANE)
        b = _pad_last(beta.reshape(1, -1).astype(jnp.float32), LANE)
        if li < n_blocks - 1:
            h = convblock_call(y, w_mat, g, b, Ho, Wo)             # (N, HW, 128) f32
            x = h.reshape(N, Ho, Wo, LANE)
        else:
            wsrc_mat = src_weight_mat(w_src, LANE)
            wcls_mat = cls_weight_mat(w_cls, LANE)
            src_p, cls_p = convblock_heads_call(y, w_mat, g, b, wsrc_mat, wcls_mat, Ho, Wo)

    out_src = src_p[:, :, 0].reshape(N, 1, Ho, Wo)                 # NCHW, Cout=1
    out_cls = cls_p[:, 0, :c_dim]                                  # (N, c_dim)
    return out_src, out_cls


# ----------------------------------------------------------------------------
# Pure-JAX reference (NCHW, lax.conv, f32) for validation
# ----------------------------------------------------------------------------
def reference_forward(x, conv_params, w_src, w_cls):
    dn = ("NCHW", "OIHW", "NCHW")
    h = x.astype(jnp.float32)
    for (w, gamma, beta) in conv_params:
        h = lax.conv_general_dilated(h, w, (2, 2), [(1, 1), (1, 1)], dimension_numbers=dn)
        mean = jnp.mean(h, axis=(2, 3), keepdims=True)
        var = jnp.mean(jnp.square(h - mean), axis=(2, 3), keepdims=True)
        h = (h - mean) * lax.rsqrt(var + 1e-5)
        h = h * gamma.reshape(1, -1, 1, 1) + beta.reshape(1, -1, 1, 1)
        h = jnp.where(h >= 0, h, 0.01 * h)
    src = lax.conv_general_dilated(h, w_src, (1, 1), [(1, 1), (1, 1)], dimension_numbers=dn)
    cls_ = lax.conv_general_dilated(h, w_cls, (1, 1), [(0, 0), (0, 0)], dimension_numbers=dn)
    return src, cls_.reshape(cls_.shape[0], cls_.shape[1])


# ----------------------------------------------------------------------------
# Deterministic parameter construction (shapes follow Discriminator.__init__)
# ----------------------------------------------------------------------------
def init_params(key, image_size, in_channels, features, c_dim, repeat_num):
    keys = jax.random.split(key, 2 * repeat_num + 4)
    conv_params = []
    cur = in_channels
    for i in range(repeat_num - 1):
        nxt = features * 2 ** i
        w = 0.1 * jax.random.normal(keys[3 * i + 0], (nxt, cur, 4, 4), jnp.float32)
        gamma = 1.0 + 0.05 * jax.random.normal(keys[3 * i + 1], (nxt,), jnp.float32)
        beta = 0.05 * jax.random.normal(keys[3 * i + 2], (nxt,), jnp.float32)
        conv_params.append((w, gamma, beta))
        cur = nxt
    ksz = image_size // 2 ** (repeat_num - 1)
    w_src = 0.1 * jax.random.normal(keys[-2], (1, cur, 3, 3), jnp.float32)
    w_cls = 0.1 * jax.random.normal(keys[-1], (c_dim, cur, ksz, ksz), jnp.float32)
    return conv_params, w_src, w_cls


if __name__ == "__main__":
    # Small config consistent with the module: image_size=16, in_channels=4,
    # features=8, c_dim=3, repeat_num=4 -> out_cls kernel_size = 16 // 8 = 2.
    IMAGE_SIZE, IN_CH, FEATURES, C_DIM, REPEAT = 16, 4, 8, 3, 4
    BATCH = 2

    key = jax.random.PRNGKey(0)
    k_x, k_p = jax.random.split(key)
    x = jax.random.normal(k_x, (BATCH, IN_CH, IMAGE_SIZE, IMAGE_SIZE), jnp.float32)
    conv_params, w_src, w_cls = init_params(k_p, IMAGE_SIZE, IN_CH, FEATURES, C_DIM, REPEAT)

    fwd = jax.jit(discriminator_forward)
    out_src, out_cls = jax.block_until_ready(fwd(x, conv_params, w_src, w_cls))

    ref_src, ref_cls = reference_forward(x, conv_params, w_src, w_cls)
    assert out_src.shape == (BATCH, 1, IMAGE_SIZE // 8, IMAGE_SIZE // 8), out_src.shape
    assert out_cls.shape == (BATCH, C_DIM), out_cls.shape
    # bf16 MXU operands with f32 accumulation -> tolerance loosened vs pure f32.
    err_src = float(jnp.max(jnp.abs(out_src - ref_src)))
    err_cls = float(jnp.max(jnp.abs(out_cls - ref_cls)))
    assert jnp.allclose(out_src, ref_src, rtol=5e-2, atol=5e-2), err_src
    assert jnp.allclose(out_cls, ref_cls, rtol=5e-2, atol=5e-2), err_cls

    print("KERNEL_OK")
</pallas_src>

<mosaic_0001>
module attributes {stable_mosaic.version = 11 : i64} {
  func.func @convblock_kernel(%arg0: i32, %arg1: memref<1x81x512xf32, #tpu.memory_space<vmem>>, %arg2: memref<2048x128xbf16, #tpu.memory_space<vmem>>, %arg3: memref<1x128xf32, #tpu.memory_space<vmem>>, %arg4: memref<1x128xf32, #tpu.memory_space<vmem>>, %arg5: memref<1x64x128xf32, #tpu.memory_space<vmem>>, %arg6: memref<64x2048xf32, #tpu.memory_space<vmem>>) attributes {dimension_semantics = [#tpu.dimension_semantics<parallel>], iteration_bounds = array<i64: 2>, scalar_prefetch = 0 : i64, scratch_operands = 1 : i64, tpu.core_type = #tpu.core_type<tc>, window_params = [{transform_indices = @transform_0, window_bounds = array<i64: 1, 81, 512>}, {pipeline_mode = #tpu.pipeline_mode<synchronous>, transform_indices = @transform_1, window_bounds = array<i64: 2048, 128>}, {pipeline_mode = #tpu.pipeline_mode<synchronous>, transform_indices = @transform_2, window_bounds = array<i64: 1, 128>}, {pipeline_mode = #tpu.pipeline_mode<synchronous>, transform_indices = @transform_3, window_bounds = array<i64: 1, 128>}, {transform_indices = @transform_4, window_bounds = array<i64: 1, 64, 128>}]} {
    %c0 = arith.constant 0 : index
    %c0_0 = arith.constant 0 : index
    %c0_1 = arith.constant 0 : index
    %0 = vector.load %arg1[%c0, %c0_0, %c0_1] : memref<1x81x512xf32, #tpu.memory_space<vmem>>, vector<1x8x512xf32>
    %1 = vector.shape_cast %0 : vector<1x8x512xf32> to vector<8x512xf32>
    %c0_2 = arith.constant 0 : index
    %c0_3 = arith.constant 0 : index
    %2 = vector.load %arg6[%c0_2, %c0_3] : memref<64x2048xf32, #tpu.memory_space<vmem>>, vector<8x512xf32>
    tpu.vector_store %arg6[%c0_2, %c0_3], %1 {strides = array<i32>} : memref<64x2048xf32, #tpu.memory_space<vmem>>, vector<8x512xf32>,
    %c0_4 = arith.constant 0 : index
    %c9 = arith.constant 9 : index
    %c0_5 = arith.constant 0 : index
    %3 = vector.load %arg1[%c0_4, %c9, %c0_5] : memref<1x81x512xf32, #tpu.memory_space<vmem>>, vector<1x8x512xf32>
    %4 = vector.shape_cast %3 : vector<1x8x512xf32> to vector<8x512xf32>
    %c8 = arith.constant 8 : index
    %c0_6 = arith.constant 0 : index
    %5 = vector.load %arg6[%c8, %c0_6] : memref<64x2048xf32, #tpu.memory_space<vmem>>, vector<8x512xf32>
    tpu.vector_store %arg6[%c8, %c0_6], %4 {strides = array<i32>} : memref<64x2048xf32, #tpu.memory_space<vmem>>, vector<8x512xf32>,
    %c0_7 = arith.constant 0 : index
    %c18 = arith.constant 18 : index
    %c0_8 = arith.constant 0 : index
    %6 = vector.load %arg1[%c0_7, %c18, %c0_8] : memref<1x81x512xf32, #tpu.memory_space<vmem>>, vector<1x8x512xf32>
    %7 = vector.shape_cast %6 : vector<1x8x512xf32> to vector<8x512xf32>
    %c16 = arith.constant 16 : index
    %c0_9 = arith.constant 0 : index
    %8 = vector.load %arg6[%c16, %c0_9] : memref<64x2048xf32, #tpu.memory_space<vmem>>, vector<8x512xf32>
    tpu.vector_store %arg6[%c16, %c0_9], %7 {strides = array<i32>} : memref<64x2048xf32, #tpu.memory_space<vmem>>, vector<8x512xf32>,
    %c0_10 = arith.constant 0 : index
    %c27 = arith.constant 27 : index
    %c0_11 = arith.constant 0 : index
    %9 = vector.load %arg1[%c0_10, %c27, %c0_11] : memref<1x81x512xf32, #tpu.memory_space<vmem>>, vector<1x8x512xf32>
    %10 = vector.shape_cast %9 : vector<1x8x512xf32> to vector<8x512xf32>
    %c24 = arith.constant 24 : index
    %c0_12 = arith.constant 0 : index
    %11 = vector.load %arg6[%c24, %c0_12] : memref<64x2048xf32, #tpu.memory_space<vmem>>, vector<8x512xf32>
    tpu.vector_store %arg6[%c24, %c0_12], %10 {strides = array<i32>} : memref<64x2048xf32, #tpu.memory_space<vmem>>, vector<8x512xf32>,
    %c0_13 = arith.constant 0 : index
    %c36 = arith.constant 36 : index
    %c0_14 = arith.constant 0 : index
    %12 = vector.load %arg1[%c0_13, %c36, %c0_14] : memref<1x81x512xf32, #tpu.memory_space<vmem>>, vector<1x8x512xf32>
    %13 = vector.shape_cast %12 : vector<1x8x512xf32> to vector<8x512xf32>
    %c32 = arith.constant 32 : index
    %c0_15 = arith.constant 0 : index
    %14 = vector.load %arg6[%c32, %c0_15] : memref<64x2048xf32, #tpu.memory_space<vmem>>, vector<8x512xf32>
    tpu.vector_store %arg6[%c32, %c0_15], %13 {strides = array<i32>} : memref<64x2048xf32, #tpu.memory_space<vmem>>, vector<8x512xf32>,
    %c0_16 = arith.constant 0 : index
    %c45 = arith.constant 45 : index
    %c0_17 = arith.constant 0 : index
    %15 = vector.load %arg1[%c0_16, %c45, %c0_17] : memref<1x81x512xf32, #tpu.memory_space<vmem>>, vector<1x8x512xf32>
    %16 = vector.shape_cast %15 : vector<1x8x512xf32> to vector<8x512xf32>
    %c40 = arith.constant 40 : index
    %c0_18 = arith.constant 0 : index
    %17 = vector.load %arg6[%c40, %c0_18] : memref<64x2048xf32, #tpu.memory_space<vmem>>, vector<8x512xf32>
    tpu.vector_store %arg6[%c40, %c0_18], %16 {strides = array<i32>} : memref<64x2048xf32, #tpu.memory_space<vmem>>, vector<8x512xf32>,
    %c0_19 = arith.constant 0 : index
    %c54 = arith.constant 54 : index
    %c0_20 = arith.constant 0 : index
    %18 = vector.load %arg1[%c0_19, %c54, %c0_20] : memref<1x81x512xf32, #tpu.memory_space<vmem>>, vector<1x8x512xf32>
    %19 = vector.shape_cast %18 : vector<1x8x512xf32> to vector<8x512xf32>
    %c48 = arith.constant 48 : index
    %c0_21 = arith.constant 0 : index
    %20 = vector.load %arg6[%c48, %c0_21] : memref<64x2048xf32, #tpu.memory_space<vmem>>, vector<8x512xf32>
    tpu.vector_store %arg6[%c48, %c0_21], %19 {strides = array<i32>} : memref<64x2048xf32, #tpu.memory_space<vmem>>, vector<8x512xf32>,
    %c0_22 = arith.constant 0 : index
    %c63 = arith.constant 63 : index
    %c0_23 = arith.constant 0 : index
    %21 = vector.load %arg1[%c0_22, %c63, %c0_23] : memref<1x81x512xf32, #tpu.memory_space<vmem>>, vector<1x8x512xf32>
    %22 = vector.shape_cast %21 : vector<1x8x512xf32> to vector<8x512xf32>
    %c56 = arith.constant 56 : index
    %c0_24 = arith.constant 0 : index
    %23 = vector.load %arg6[%c56, %c0_24] : memref<64x2048xf32, #tpu.memory_space<vmem>>, vector<8x512xf32>
    tpu.vector_store %arg6[%c56, %c0_24], %22 {strides = array<i32>} : memref<64x2048xf32, #tpu.memory_space<vmem>>, vector<8x512xf32>,
    %c0_25 = arith.constant 0 : index
    %c1 = arith.constant 1 : index
    %c0_26 = arith.constant 0 : index
    %24 = vector.load %arg1[%c0_25, %c1, %c0_26] : memref<1x81x512xf32, #tpu.memory_space<vmem>>, vector<1x8x512xf32>
    %25 = vector.shape_cast %24 : vector<1x8x512xf32> to vector<8x512xf32>
    %c0_27 = arith.constant 0 : index
    %c512 = arith.constant 512 : index
    %26 = vector.load %arg6[%c0_27, %c512] : memref<64x2048xf32, #tpu.memory_space<vmem>>, vector<8x512xf32>
    tpu.vector_store %arg6[%c0_27, %c512], %25 {strides = array<i32>} : memref<64x2048xf32, #tpu.memory_space<vmem>>, vector<8x512xf32>,
    %c0_28 = arith.constant 0 : index
    %c10 = arith.constant 10 : index
    %c0_29 = arith.constant 0 : index
    %27 = vector.load %arg1[%c0_28, %c10, %c0_29] : memref<1x81x512xf32, #tpu.memory_space<vmem>>, vector<1x8x512xf32>
    %28 = vector.shape_cast %27 : vector<1x8x512xf32> to vector<8x512xf32>
    %c8_30 = arith.constant 8 : index
    %c512_31 = arith.constant 512 : index
    %29 = vector.load %arg6[%c8_30, %c512_31] : memref<64x2048xf32, #tpu.memory_space<vmem>>, vector<8x512xf32>
    tpu.vector_store %arg6[%c8_30, %c512_31], %28 {strides = array<i32>} : memref<64x2048xf32, #tpu.memory_space<vmem>>, vector<8x512xf32>,
    %c0_32 = arith.constant 0 : index
    %c19 = arith.constant 19 : index
    %c0_33 = arith.constant 0 : index
    %30 = vector.load %arg1[%c0_32, %c19, %c0_33] : memref<1x81x512xf32, #tpu.memory_space<vmem>>, vector<1x8x512xf32>
    %31 = vector.shape_cast %30 : vector<1x8x512xf32> to vector<8x512xf32>
    %c16_34 = arith.constant 16 : index
    %c512_35 = arith.constant 512 : index
    %32 = vector.load %arg6[%c16_34, %c512_35] : memref<64x2048xf32, #tpu.memory_space<vmem>>, vector<8x512xf32>
    tpu.vector_store %arg6[%c16_34, %c512_35], %31 {strides = array<i32>} : memref<64x2048xf32, #tpu.memory_space<vmem>>, vector<8x512xf32>,
    %c0_36 = arith.constant 0 : index
    %c28 = arith.constant 28 : index
    %c0_37 = arith.constant 0 : index
    %33 = vector.load %arg1[%c0_36, %c28, %c0_37] : memref<1x81x512xf32, #tpu.memory_space<vmem>>, vector<1x8x512xf32>
    %34 = vector.shape_cast %33 : vector<1x8x512xf32> to vector<8x512xf32>
    %c24_38 = arith.constant 24 : index
    %c512_39 = arith.constant 512 : index
    %35 = vector.load %arg6[%c24_38, %c512_39] : memref<64x2048xf32, #tpu.memory_space<vmem>>, vector<8x512xf32>
    tpu.vector_store %arg6[%c24_38, %c512_39], %34 {strides = array<i32>} : memref<64x2048xf32, #tpu.memory_space<vmem>>, vector<8x512xf32>,
    %c0_40 = arith.constant 0 : index
    %c37 = arith.constant 37 : index
    %c0_41 = arith.constant 0 : index
    %36 = vector.load %arg1[%c0_40, %c37, %c0_41] : memref<1x81x512xf32, #tpu.memory_space<vmem>>, vector<1x8x512xf32>
    %37 = vector.shape_cast %36 : vector<1x8x512xf32> to vector<8x512xf32>
    %c32_42 = arith.constant 32 : index
    %c512_43 = arith.constant 512 : index
    %38 = vector.load %arg6[%c32_42, %c512_43] : memref<64x2048xf32, #tpu.memory_space<vmem>>, vector<8x512xf32>
    tpu.vector_store %arg6[%c32_42, %c512_43], %37 {strides = array<i32>} : memref<64x2048xf32, #tpu.memory_space<vmem>>, vector<8x512xf32>,
    %c0_44 = arith.constant 0 : index
    %c46 = arith.constant 46 : index
    %c0_45 = arith.constant 0 : index
    %39 = vector.load %arg1[%c0_44, %c46, %c0_45] : memref<1x81x512xf32, #tpu.memory_space<vmem>>, vector<1x8x512xf32>
    %40 = vector.shape_cast %39 : vector<1x8x512xf32> to vector<8x512xf32>
    %c40_46 = arith.constant 40 : index
    %c512_47 = arith.constant 512 : index
    %41 = vector.load %arg6[%c40_46, %c512_47] : memref<64x2048xf32, #tpu.memory_space<vmem>>, vector<8x512xf32>
    tpu.vector_store %arg6[%c40_46, %c512_47], %40 {strides = array<i32>} : memref<64x2048xf32, #tpu.memory_space<vmem>>, vector<8x512xf32>,
    %c0_48 = arith.constant 0 : index
    %c55 = arith.constant 55 : index
    %c0_49 = arith.constant 0 : index
    %42 = vector.load %arg1[%c0_48, %c55, %c0_49] : memref<1x81x512xf32, #tpu.memory_space<vmem>>, vector<1x8x512xf32>
    %43 = vector.shape_cast %42 : vector<1x8x512xf32> to vector<8x512xf32>
    %c48_50 = arith.constant 48 : index
    %c512_51 = arith.constant 512 : index
    %44 = vector.load %arg6[%c48_50, %c512_51] : memref<64x2048xf32, #tpu.memory_space<vmem>>, vector<8x512xf32>
    tpu.vector_store %arg6[%c48_50, %c512_51], %43 {strides = array<i32>} : memref<64x2048xf32, #tpu.memory_space<vmem>>, vector<8x512xf32>,
    %c0_52 = arith.constant 0 : index
    %c64 = arith.constant 64 : index
    %c0_53 = arith.constant 0 : index
    %45 = vector.load %arg1[%c0_52, %c64, %c0_53] : memref<1x81x512xf32, #tpu.memory_space<vmem>>, vector<1x8x512xf32>
    %46 = vector.shape_cast %45 : vector<1x8x512xf32> to vector<8x512xf32>
    %c56_54 = arith.constant 56 : index
    %c512_55 = arith.constant 512 : index
    %47 = vector.load %arg6[%c56_54, %c512_55] : memref<64x2048xf32, #tpu.memory_space<vmem>>, vector<8x512xf32>
    tpu.vector_store %arg6[%c56_54, %c512_55], %46 {strides = array<i32>} : memref<64x2048xf32, #tpu.memory_space<vmem>>, vector<8x512xf32>,
    %c0_56 = arith.constant 0 : index
    %c9_57 = arith.constant 9 : index
    %c0_58 = arith.constant 0 : index
    %48 = vector.load %arg1[%c0_56, %c9_57, %c0_58] : memref<1x81x512xf32, #tpu.memory_space<vmem>>, vector<1x8x512xf32>
    %49 = vector.shape_cast %48 : vector<1x8x512xf32> to vector<8x512xf32>
    %c0_59 = arith.constant 0 : index
    %c1024 = arith.constant 1024 : index
    %50 = vector.load %arg6[%c0_59, %c1024] : memref<64x2048xf32, #tpu.memory_space<vmem>>, vector<8x512xf32>
    tpu.vector_store %arg6[%c0_59, %c1024], %49 {strides = array<i32>} : memref<64x2048xf32, #tpu.memory_space<vmem>>, vector<8x512xf32>,
    %c0_60 = arith.constant 0 : index
    %c18_61 = arith.constant 18 : index
    %c0_62 = arith.constant 0 : index
    %51 = vector.load %arg1[%c0_60, %c18_61, %c0_62] : memref<1x81x512xf32, #tpu.memory_space<vmem>>, vector<1x8x512xf32>
    %52 = vector.shape_cast %51 : vector<1x8x512xf32> to vector<8x512xf32>
    %c8_63 = arith.constant 8 : index
    %c1024_64 = arith.constant 1024 : index
    %53 = vector.load %arg6[%c8_63, %c1024_64] : memref<64x2048xf32, #tpu.memory_space<vmem>>, vector<8x512xf32>
    tpu.vector_store %arg6[%c8_63, %c1024_64], %52 {strides = array<i32>} : memref<64x2048xf32, #tpu.memory_space<vmem>>, vector<8x512xf32>,
    %c0_65 = arith.constant 0 : index
    %c27_66 = arith.constant 27 : index
    %c0_67 = arith.constant 0 : index
    %54 = vector.load %arg1[%c0_65, %c27_66, %c0_67] : memref<1x81x512xf32, #tpu.memory_space<vmem>>, vector<1x8x512xf32>
    %55 = vector.shape_cast %54 : vector<1x8x512xf32> to vector<8x512xf32>
    %c16_68 = arith.constant 16 : index
    %c1024_69 = arith.constant 1024 : index
    %56 = vector.load %arg6[%c16_68, %c1024_69] : memref<64x2048xf32, #tpu.memory_space<vmem>>, vector<8x512xf32>
    tpu.vector_store %arg6[%c16_68, %c1024_69], %55 {strides = array<i32>} : memref<64x2048xf32, #tpu.memory_space<vmem>>, vector<8x512xf32>,
    %c0_70 = arith.constant 0 : index
    %c36_71 = arith.constant 36 : index
    %c0_72 = arith.constant 0 : index
    %57 = vector.load %arg1[%c0_70, %c36_71, %c0_72] : memref<1x81x512xf32, #tpu.memory_space<vmem>>, vector<1x8x512xf32>
    %58 = vector.shape_cast %57 : vector<1x8x512xf32> to vector<8x512xf32>
    %c24_73 = arith.constant 24 : index
    %c1024_74 = arith.constant 1024 : index
    %59 = vector.load %arg6[%c24_73, %c1024_74] : memref<64x2048xf32, #tpu.memory_space<vmem>>, vector<8x512xf32>
    tpu.vector_store %arg6[%c24_73, %c1024_74], %58 {strides = array<i32>} : memref<64x2048xf32, #tpu.memory_space<vmem>>, vector<8x512xf32>,
    %c0_75 = arith.constant 0 : index
    %c45_76 = arith.constant 45 : index
    %c0_77 = arith.constant 0 : index
    %60 = vector.load %arg1[%c0_75, %c45_76, %c0_77] : memref<1x81x512xf32, #tpu.memory_space<vmem>>, vector<1x8x512xf32>
    %61 = vector.shape_cast %60 : vector<1x8x512xf32> to vector<8x512xf32>
    %c32_78 = arith.constant 32 : index
    %c1024_79 = arith.constant 1024 : index
    %62 = vector.load %arg6[%c32_78, %c1024_79] : memref<64x2048xf32, #tpu.memory_space<vmem>>, vector<8x512xf32>
    tpu.vector_store %arg6[%c32_78, %c1024_79], %61 {strides = array<i32>} : memref<64x2048xf32, #tpu.memory_space<vmem>>, vector<8x512xf32>,
    %c0_80 = arith.constant 0 : index
    %c54_81 = arith.constant 54 : index
    %c0_82 = arith.constant 0 : index
    %63 = vector.load %arg1[%c0_80, %c54_81, %c0_82] : memref<1x81x512xf32, #tpu.memory_space<vmem>>, vector<1x8x512xf32>
    %64 = vector.shape_cast %63 : vector<1x8x512xf32> to vector<8x512xf32>
    %c40_83 = arith.constant 40 : index
    %c1024_84 = arith.constant 1024 : index
    %65 = vector.load %arg6[%c40_83, %c1024_84] : memref<64x2048xf32, #tpu.memory_space<vmem>>, vector<8x512xf32>
    tpu.vector_store %arg6[%c40_83, %c1024_84], %64 {strides = array<i32>} : memref<64x2048xf32, #tpu.memory_space<vmem>>, vector<8x512xf32>,
    %c0_85 = arith.constant 0 : index
    %c63_86 = arith.constant 63 : index
    %c0_87 = arith.constant 0 : index
    %66 = vector.load %arg1[%c0_85, %c63_86, %c0_87] : memref<1x81x512xf32, #tpu.memory_space<vmem>>, vector<1x8x512xf32>
    %67 = vector.shape_cast %66 : vector<1x8x512xf32> to vector<8x512xf32>
    %c48_88 = arith.constant 48 : index
    %c1024_89 = arith.constant 1024 : index
    %68 = vector.load %arg6[%c48_88, %c1024_89] : memref<64x2048xf32, #tpu.memory_space<vmem>>, vector<8x512xf32>
    tpu.vector_store %arg6[%c48_88, %c1024_89], %67 {strides = array<i32>} : memref<64x2048xf32, #tpu.memory_space<vmem>>, vector<8x512xf32>,
    %c0_90 = arith.constant 0 : index
    %c72 = arith.constant 72 : index
    %c0_91 = arith.constant 0 : index
    %69 = vector.load %arg1[%c0_90, %c72, %c0_91] : memref<1x81x512xf32, #tpu.memory_space<vmem>>, vector<1x8x512xf32>
    %70 = vector.shape_cast %69 : vector<1x8x512xf32> to vector<8x512xf32>
    %c56_92 = arith.constant 56 : index
    %c1024_93 = arith.constant 1024 : index
    %71 = vector.load %arg6[%c56_92, %c1024_93] : memref<64x2048xf32, #tpu.memory_space<vmem>>, vector<8x512xf32>
    tpu.vector_store %arg6[%c56_92, %c1024_93], %70 {strides = array<i32>} : memref<64x2048xf32, #tpu.memory_space<vmem>>, vector<8x512xf32>,
    %c0_94 = arith.constant 0 : index
    %c10_95 = arith.constant 10 : index
    %c0_96 = arith.constant 0 : index
    %72 = vector.load %arg1[%c0_94, %c10_95, %c0_96] : memref<1x81x512xf32, #tpu.memory_space<vmem>>, vector<1x8x512xf32>
    %73 = vector.shape_cast %72 : vector<1x8x512xf32> to vector<8x512xf32>
    %c0_97 = arith.constant 0 : index
    %c1536 = arith.constant 1536 : index
    %74 = vector.load %arg6[%c0_97, %c1536] : memref<64x2048xf32, #tpu.memory_space<vmem>>, vector<8x512xf32>
    tpu.vector_store %arg6[%c0_97, %c1536], %73 {strides = array<i32>} : memref<64x2048xf32, #tpu.memory_space<vmem>>, vector<8x512xf32>,
    %c0_98 = arith.constant 0 : index
    %c19_99 = arith.constant 19 : index
    %c0_100 = arith.constant 0 : index
    %75 = vector.load %arg1[%c0_98, %c19_99, %c0_100] : memref<1x81x512xf32, #tpu.memory_space<vmem>>, vector<1x8x512xf32>
    %76 = vector.shape_cast %75 : vector<1x8x512xf32> to vector<8x512xf32>
    %c8_101 = arith.constant 8 : index
    %c1536_102 = arith.constant 1536 : index
    %77 = vector.load %arg6[%c8_101, %c1536_102] : memref<64x2048xf32, #tpu.memory_space<vmem>>, vector<8x512xf32>
    tpu.vector_store %arg6[%c8_101, %c1536_102], %76 {strides = array<i32>} : memref<64x2048xf32, #tpu.memory_space<vmem>>, vector<8x512xf32>,
    %c0_103 = arith.constant 0 : index
    %c28_104 = arith.constant 28 : index
    %c0_105 = arith.constant 0 : index
    %78 = vector.load %arg1[%c0_103, %c28_104, %c0_105] : memref<1x81x512xf32, #tpu.memory_space<vmem>>, vector<1x8x512xf32>
    %79 = vector.shape_cast %78 : vector<1x8x512xf32> to vector<8x512xf32>
    %c16_106 = arith.constant 16 : index
    %c1536_107 = arith.constant 1536 : index
    %80 = vector.load %arg6[%c16_106, %c1536_107] : memref<64x2048xf32, #tpu.memory_space<vmem>>, vector<8x512xf32>
    tpu.vector_store %arg6[%c16_106, %c1536_107], %79 {strides = array<i32>} : memref<64x2048xf32, #tpu.memory_space<vmem>>, vector<8x512xf32>,
    %c0_108 = arith.constant 0 : index
    %c37_109 = arith.constant 37 : index
    %c0_110 = arith.constant 0 : index
    %81 = vector.load %arg1[%c0_108, %c37_109, %c0_110] : memref<1x81x512xf32, #tpu.memory_space<vmem>>, vector<1x8x512xf32>
    %82 = vector.shape_cast %81 : vector<1x8x512xf32> to vector<8x512xf32>
    %c24_111 = arith.constant 24 : index
    %c1536_112 = arith.constant 1536 : index
    %83 = vector.load %arg6[%c24_111, %c1536_112] : memref<64x2048xf32, #tpu.memory_space<vmem>>, vector<8x512xf32>
    tpu.vector_store %arg6[%c24_111, %c1536_112], %82 {strides = array<i32>} : memref<64x2048xf32, #tpu.memory_space<vmem>>, vector<8x512xf32>,
    %c0_113 = arith.constant 0 : index
    %c46_114 = arith.constant 46 : index
    %c0_115 = arith.constant 0 : index
    %84 = vector.load %arg1[%c0_113, %c46_114, %c0_115] : memref<1x81x512xf32, #tpu.memory_space<vmem>>, vector<1x8x512xf32>
    %85 = vector.shape_cast %84 : vector<1x8x512xf32> to vector<8x512xf32>
    %c32_116 = arith.constant 32 : index
    %c1536_117 = arith.constant 1536 : index
    %86 = vector.load %arg6[%c32_116, %c1536_117] : memref<64x2048xf32, #tpu.memory_space<vmem>>, vector<8x512xf32>
    tpu.vector_store %arg6[%c32_116, %c1536_117], %85 {strides = array<i32>} : memref<64x2048xf32, #tpu.memory_space<vmem>>, vector<8x512xf32>,
    %c0_118 = arith.constant 0 : index
    %c55_119 = arith.constant 55 : index
    %c0_120 = arith.constant 0 : index
    %87 = vector.load %arg1[%c0_118, %c55_119, %c0_120] : memref<1x81x512xf32, #tpu.memory_space<vmem>>, vector<1x8x512xf32>
    %88 = vector.shape_cast %87 : vector<1x8x512xf32> to vector<8x512xf32>
    %c40_121 = arith.constant 40 : index
    %c1536_122 = arith.constant 1536 : index
    %89 = vector.load %arg6[%c40_121, %c1536_122] : memref<64x2048xf32, #tpu.memory_space<vmem>>, vector<8x512xf32>
    tpu.vector_store %arg6[%c40_121, %c1536_122], %88 {strides = array<i32>} : memref<64x2048xf32, #tpu.memory_space<vmem>>, vector<8x512xf32>,
    %c0_123 = arith.constant 0 : index
    %c64_124 = arith.constant 64 : index
    %c0_125 = arith.constant 0 : index
    %90 = vector.load %arg1[%c0_123, %c64_124, %c0_125] : memref<1x81x512xf32, #tpu.memory_space<vmem>>, vector<1x8x512xf32>
    %91 = vector.shape_cast %90 : vector<1x8x512xf32> to vector<8x512xf32>
    %c48_126 = arith.constant 48 : index
    %c1536_127 = arith.constant 1536 : index
    %92 = vector.load %arg6[%c48_126, %c1536_127] : memref<64x2048xf32, #tpu.memory_space<vmem>>, vector<8x512xf32>
    tpu.vector_store %arg6[%c48_126, %c1536_127], %91 {strides = array<i32>} : memref<64x2048xf32, #tpu.memory_space<vmem>>, vector<8x512xf32>,
    %c0_128 = arith.constant 0 : index
    %c73 = arith.constant 73 : index
    %c0_129 = arith.constant 0 : index
    %93 = vector.load %arg1[%c0_128, %c73, %c0_129] : memref<1x81x512xf32, #tpu.memory_space<vmem>>, vector<1x8x512xf32>
    %94 = vector.shape_cast %93 : vector<1x8x512xf32> to vector<8x512xf32>
    %c56_130 = arith.constant 56 : index
    %c1536_131 = arith.constant 1536 : index
    %95 = vector.load %arg6[%c56_130, %c1536_131] : memref<64x2048xf32, #tpu.memory_space<vmem>>, vector<8x512xf32>
    tpu.vector_store %arg6[%c56_130, %c1536_131], %94 {strides = array<i32>} : memref<64x2048xf32, #tpu.memory_space<vmem>>, vector<8x512xf32>,
    %c0_132 = arith.constant 0 : index
    %c0_133 = arith.constant 0 : index
    %96 = vector.load %arg6[%c0_132, %c0_133] : memref<64x2048xf32, #tpu.memory_space<vmem>>, vector<64x2048xf32>
    %97 = arith.truncf %96 : vector<64x2048xf32> to vector<64x2048xbf16>
    %c0_134 = arith.constant 0 : index
    %c0_135 = arith.constant 0 : index
    %98 = vector.load %arg2[%c0_134, %c0_135] : memref<2048x128xbf16, #tpu.memory_space<vmem>>, vector<2048x128xbf16>
    %cst = arith.constant dense<0.000000e+00> : vector<64x128xf32>
    %99 = tpu.matmul %97, %98, %cst {dimension_numbers = #tpu.dot_dimension_numbers<[1], [0], [0], [1], [0, 0, 1, 1], [], []>} : vector<64x2048xbf16>, vector<2048x128xbf16>, vector<64x128xf32> -> vector<64x128xf32>
    %cst_136 = arith.constant dense<0.000000e+00> : vector<128xf32>
    %100 = vector.multi_reduction <add>, %99, %cst_136 [0] : vector<64x128xf32> to vector<128xf32>
    %101 = vector.shape_cast %100 : vector<128xf32> to vector<1x128xf32>
    %102 = arith.mulf %99, %99 : vector<64x128xf32>
    %cst_137 = arith.constant dense<0.000000e+00> : vector<128xf32>
    %103 = vector.multi_reduction <add>, %102, %cst_137 [0] : vector<64x128xf32> to vector<128xf32>
    %104 = vector.shape_cast %103 : vector<128xf32> to vector<1x128xf32>
    %cst_138 = arith.constant 1.562500e-02 : f32
    %105 = vector.broadcast %cst_138 : f32 to vector<1x128xf32>
    %106 = arith.mulf %101, %105 : vector<1x128xf32>
    %cst_139 = arith.constant 1.562500e-02 : f32
    %107 = vector.broadcast %cst_139 : f32 to vector<1x128xf32>
    %108 = arith.mulf %104, %107 : vector<1x128xf32>
    %109 = arith.mulf %106, %106 : vector<1x128xf32>
    %110 = arith.subf %108, %109 : vector<1x128xf32>
    %cst_140 = arith.constant 0.000000e+00 : f32
    %111 = vector.broadcast %cst_140 : f32 to vector<1x128xf32>
    %112 = arith.maximumf %110, %111 : vector<1x128xf32>
    %113 = vector.broadcast %106 : vector<1x128xf32> to vector<64x128xf32>
    %114 = arith.subf %99, %113 : vector<64x128xf32>
    %cst_141 = arith.constant 9.99999974E-6 : f32
    %115 = vector.broadcast %cst_141 : f32 to vector<1x128xf32>
    %116 = arith.addf %112, %115 : vector<1x128xf32>
    %117 = math.rsqrt %116 : vector<1x128xf32>
    %118 = vector.broadcast %117 : vector<1x128xf32> to vector<64x128xf32>
    %119 = arith.mulf %114, %118 : vector<64x128xf32>
    %c0_142 = arith.constant 0 : index
    %c0_143 = arith.constant 0 : index
    %120 = vector.load %arg3[%c0_142, %c0_143] : memref<1x128xf32, #tpu.memory_space<vmem>>, vector<1x128xf32>
    %121 = vector.broadcast %120 : vector<1x128xf32> to vector<64x128xf32>
    %122 = arith.mulf %119, %121 : vector<64x128xf32>
    %c0_144 = arith.constant 0 : index
    %c0_145 = arith.constant 0 : index
    %123 = vector.load %arg4[%c0_144, %c0_145] : memref<1x128xf32, #tpu.memory_space<vmem>>, vector<1x128xf32>
    %124 = vector.broadcast %123 : vector<1x128xf32> to vector<64x128xf32>
    %125 = arith.addf %122, %124 : vector<64x128xf32>
    %cst_146 = arith.constant 0.000000e+00 : f32
    %126 = vector.broadcast %cst_146 : f32 to vector<64x128xf32>
    %127 = arith.cmpf oge, %125, %126 : vector<64x128xf32>
    %cst_147 = arith.constant 0.00999999977 : f32
    %128 = vector.broadcast %cst_147 : f32 to vector<64x128xf32>
    %129 = arith.mulf %128, %125 : vector<64x128xf32>
    %130 = arith.select %127, %125, %129 : vector<64x128xi1>, vector<64x128xf32>
    %c0_148 = arith.constant 0 : index
    %c0_149 = arith.constant 0 : index
    %c0_150 = arith.constant 0 : index
    %131 = vector.load %arg5[%c0_148, %c0_149, %c0_150] : memref<1x64x128xf32, #tpu.memory_space<vmem>>, vector<1x64x128xf32>
    %132 = vector.shape_cast %131 : vector<1x64x128xf32> to vector<64x128xf32>
    %133 = vector.shape_cast %130 : vector<64x128xf32> to vector<1x64x128xf32>
    tpu.vector_store %arg5[%c0_148, %c0_149, %c0_150], %133 {strides = array<i32>} : memref<1x64x128xf32, #tpu.memory_space<vmem>>, vector<1x64x128xf32>,
    return
  }
  func.func @transform_0(%arg0: i32) -> (i32, i32, i32) {
    %c0_i32 = arith.constant 0 : i32
    %c0_i32_0 = arith.constant 0 : i32
    %c0_i32_1 = arith.constant 0 : i32
    return %arg0, %c0_i32, %c0_i32_0 : i32, i32, i32
  }
  func.func @transform_1(%arg0: i32) -> (i32, i32) {
    %c0_i32 = arith.constant 0 : i32
    %c0_i32_0 = arith.constant 0 : i32
    %c0_i32_1 = arith.constant 0 : i32
    return %c0_i32, %c0_i32_0 : i32, i32
  }
  func.func @transform_2(%arg0: i32) -> (i32, i32) {
    %c0_i32 = arith.constant 0 : i32
    %c0_i32_0 = arith.constant 0 : i32
    %c0_i32_1 = arith.constant 0 : i32
    return %c0_i32, %c0_i32_0 : i32, i32
  }
  func.func @transform_3(%arg0: i32) -> (i32, i32) {
    %c0_i32 = arith.constant 0 : i32
    %c0_i32_0 = arith.constant 0 : i32
    %c0_i32_1 = arith.constant 0 : i32
    return %c0_i32, %c0_i32_0 : i32, i32
  }
  func.func @transform_4(%arg0: i32) -> (i32, i32, i32) {
    %c0_i32 = arith.constant 0 : i32
    %c0_i32_0 = arith.constant 0 : i32
    %c0_i32_1 = arith.constant 0 : i32
    return %arg0, %c0_i32, %c0_i32_0 : i32, i32, i32
  }
}

module attributes {stable_mosaic.version = 11 : i64} {
  func.func @convblock_kernel(%arg0: i32, %arg1: memref<1x25x512xf32, #tpu.memory_space<vmem>>, %arg2: memref<2048x128xbf16, #tpu.memory_space<vmem>>, %arg3: memref<1x128xf32, #tpu.memory_space<vmem>>, %arg4: memref<1x128xf32, #tpu.memory_space<vmem>>, %arg5: memref<1x16x128xf32, #tpu.memory_space<vmem>>, %arg6: memref<16x2048xf32, #tpu.memory_space<vmem>>) attributes {dimension_semantics = [#tpu.dimension_semantics<parallel>], iteration_bounds = array<i64: 2>, scalar_prefetch = 0 : i64, scratch_operands = 1 : i64, tpu.core_type = #tpu.core_type<tc>, window_params = [{transform_indices = @transform_0, window_bounds = array<i64: 1, 25, 512>}, {pipeline_mode = #tpu.pipeline_mode<synchronous>, transform_indices = @transform_1, window_bounds = array<i64: 2048, 128>}, {pipeline_mode = #tpu.pipeline_mode<synchronous>, transform_indices = @transform_2, window_bounds = array<i64: 1, 128>}, {pipeline_mode = #tpu.pipeline_mode<synchronous>, transform_indices = @transform_3, window_bounds = array<i64: 1, 128>}, {transform_indices = @transform_4, window_bounds = array<i64: 1, 16, 128>}]} {
    %c0 = arith.constant 0 : index
    %c0_0 = arith.constant 0 : index
    %c0_1 = arith.constant 0 : index
    %0 = vector.load %arg1[%c0, %c0_0, %c0_1] : memref<1x25x512xf32, #tpu.memory_space<vmem>>, vector<1x4x512xf32>
    %1 = vector.shape_cast %0 : vector<1x4x512xf32> to vector<4x512xf32>
    %c0_2 = arith.constant 0 : index
    %c0_3 = arith.constant 0 : index
    %2 = vector.load %arg6[%c0_2, %c0_3] : memref<16x2048xf32, #tpu.memory_space<vmem>>, vector<4x512xf32>
    tpu.vector_store %arg6[%c0_2, %c0_3], %1 {strides = array<i32>} : memref<16x2048xf32, #tpu.memory_space<vmem>>, vector<4x512xf32>,
    %c0_4 = arith.constant 0 : index
    %c5 = arith.constant 5 : index
    %c0_5 = arith.constant 0 : index
    %3 = vector.load %arg1[%c0_4, %c5, %c0_5] : memref<1x25x512xf32, #tpu.memory_space<vmem>>, vector<1x4x512xf32>
    %4 = vector.shape_cast %3 : vector<1x4x512xf32> to vector<4x512xf32>
    %c4 = arith.constant 4 : index
    %c0_6 = arith.constant 0 : index
    %5 = vector.load %arg6[%c4, %c0_6] : memref<16x2048xf32, #tpu.memory_space<vmem>>, vector<4x512xf32>
    tpu.vector_store %arg6[%c4, %c0_6], %4 {strides = array<i32>} : memref<16x2048xf32, #tpu.memory_space<vmem>>, vector<4x512xf32>,
    %c0_7 = arith.constant 0 : index
    %c10 = arith.constant 10 : index
    %c0_8 = arith.constant 0 : index
    %6 = vector.load %arg1[%c0_7, %c10, %c0_8] : memref<1x25x512xf32, #tpu.memory_space<vmem>>, vector<1x4x512xf32>
    %7 = vector.shape_cast %6 : vector<1x4x512xf32> to vector<4x512xf32>
    %c8 = arith.constant 8 : index
    %c0_9 = arith.constant 0 : index
    %8 = vector.load %arg6[%c8, %c0_9] : memref<16x2048xf32, #tpu.memory_space<vmem>>, vector<4x512xf32>
    tpu.vector_store %arg6[%c8, %c0_9], %7 {strides = array<i32>} : memref<16x2048xf32, #tpu.memory_space<vmem>>, vector<4x512xf32>,
    %c0_10 = arith.constant 0 : index
    %c15 = arith.constant 15 : index
    %c0_11 = arith.constant 0 : index
    %9 = vector.load %arg1[%c0_10, %c15, %c0_11] : memref<1x25x512xf32, #tpu.memory_space<vmem>>, vector<1x4x512xf32>
    %10 = vector.shape_cast %9 : vector<1x4x512xf32> to vector<4x512xf32>
    %c12 = arith.constant 12 : index
    %c0_12 = arith.constant 0 : index
    %11 = vector.load %arg6[%c12, %c0_12] : memref<16x2048xf32, #tpu.memory_space<vmem>>, vector<4x512xf32>
    tpu.vector_store %arg6[%c12, %c0_12], %10 {strides = array<i32>} : memref<16x2048xf32, #tpu.memory_space<vmem>>, vector<4x512xf32>,
    %c0_13 = arith.constant 0 : index
    %c1 = arith.constant 1 : index
    %c0_14 = arith.constant 0 : index
    %12 = vector.load %arg1[%c0_13, %c1, %c0_14] : memref<1x25x512xf32, #tpu.memory_space<vmem>>, vector<1x4x512xf32>
    %13 = vector.shape_cast %12 : vector<1x4x512xf32> to vector<4x512xf32>
    %c0_15 = arith.constant 0 : index
    %c512 = arith.constant 512 : index
    %14 = vector.load %arg6[%c0_15, %c512] : memref<16x2048xf32, #tpu.memory_space<vmem>>, vector<4x512xf32>
    tpu.vector_store %arg6[%c0_15, %c512], %13 {strides = array<i32>} : memref<16x2048xf32, #tpu.memory_space<vmem>>, vector<4x512xf32>,
    %c0_16 = arith.constant 0 : index
    %c6 = arith.constant 6 : index
    %c0_17 = arith.constant 0 : index
    %15 = vector.load %arg1[%c0_16, %c6, %c0_17] : memref<1x25x512xf32, #tpu.memory_space<vmem>>, vector<1x4x512xf32>
    %16 = vector.shape_cast %15 : vector<1x4x512xf32> to vector<4x512xf32>
    %c4_18 = arith.constant 4 : index
    %c512_19 = arith.constant 512 : index
    %17 = vector.load %arg6[%c4_18, %c512_19] : memref<16x2048xf32, #tpu.memory_space<vmem>>, vector<4x512xf32>
    tpu.vector_store %arg6[%c4_18, %c512_19], %16 {strides = array<i32>} : memref<16x2048xf32, #tpu.memory_space<vmem>>, vector<4x512xf32>,
    %c0_20 = arith.constant 0 : index
    %c11 = arith.constant 11 : index
    %c0_21 = arith.constant 0 : index
    %18 = vector.load %arg1[%c0_20, %c11, %c0_21] : memref<1x25x512xf32, #tpu.memory_space<vmem>>, vector<1x4x512xf32>
    %19 = vector.shape_cast %18 : vector<1x4x512xf32> to vector<4x512xf32>
    %c8_22 = arith.constant 8 : index
    %c512_23 = arith.constant 512 : index
    %20 = vector.load %arg6[%c8_22, %c512_23] : memref<16x2048xf32, #tpu.memory_space<vmem>>, vector<4x512xf32>
    tpu.vector_store %arg6[%c8_22, %c512_23], %19 {strides = array<i32>} : memref<16x2048xf32, #tpu.memory_space<vmem>>, vector<4x512xf32>,
    %c0_24 = arith.constant 0 : index
    %c16 = arith.constant 16 : index
    %c0_25 = arith.constant 0 : index
    %21 = vector.load %arg1[%c0_24, %c16, %c0_25] : memref<1x25x512xf32, #tpu.memory_space<vmem>>, vector<1x4x512xf32>
    %22 = vector.shape_cast %21 : vector<1x4x512xf32> to vector<4x512xf32>
    %c12_26 = arith.constant 12 : index
    %c512_27 = arith.constant 512 : index
    %23 = vector.load %arg6[%c12_26, %c512_27] : memref<16x2048xf32, #tpu.memory_space<vmem>>, vector<4x512xf32>
    tpu.vector_store %arg6[%c12_26, %c512_27], %22 {strides = array<i32>} : memref<16x2048xf32, #tpu.memory_space<vmem>>, vector<4x512xf32>,
    %c0_28 = arith.constant 0 : index
    %c5_29 = arith.constant 5 : index
    %c0_30 = arith.constant 0 : index
    %24 = vector.load %arg1[%c0_28, %c5_29, %c0_30] : memref<1x25x512xf32, #tpu.memory_space<vmem>>, vector<1x4x512xf32>
    %25 = vector.shape_cast %24 : vector<1x4x512xf32> to vector<4x512xf32>
    %c0_31 = arith.constant 0 : index
    %c1024 = arith.constant 1024 : index
    %26 = vector.load %arg6[%c0_31, %c1024] : memref<16x2048xf32, #tpu.memory_space<vmem>>, vector<4x512xf32>
    tpu.vector_store %arg6[%c0_31, %c1024], %25 {strides = array<i32>} : memref<16x2048xf32, #tpu.memory_space<vmem>>, vector<4x512xf32>,
    %c0_32 = arith.constant 0 : index
    %c10_33 = arith.constant 10 : index
    %c0_34 = arith.constant 0 : index
    %27 = vector.load %arg1[%c0_32, %c10_33, %c0_34] : memref<1x25x512xf32, #tpu.memory_space<vmem>>, vector<1x4x512xf32>
    %28 = vector.shape_cast %27 : vector<1x4x512xf32> to vector<4x512xf32>
    %c4_35 = arith.constant 4 : index
    %c1024_36 = arith.constant 1024 : index
    %29 = vector.load %arg6[%c4_35, %c1024_36] : memref<16x2048xf32, #tpu.memory_space<vmem>>, vector<4x512xf32>
    tpu.vector_store %arg6[%c4_35, %c1024_36], %28 {strides = array<i32>} : memref<16x2048xf32, #tpu.memory_space<vmem>>, vector<4x512xf32>,
    %c0_37 = arith.constant 0 : index
    %c15_38 = arith.constant 15 : index
    %c0_39 = arith.constant 0 : index
    %30 = vector.load %arg1[%c0_37, %c15_38, %c0_39] : memref<1x25x512xf32, #tpu.memory_space<vmem>>, vector<1x4x512xf32>
    %31 = vector.shape_cast %30 : vector<1x4x512xf32> to vector<4x512xf32>
    %c8_40 = arith.constant 8 : index
    %c1024_41 = arith.constant 1024 : index
    %32 = vector.load %arg6[%c8_40, %c1024_41] : memref<16x2048xf32, #tpu.memory_space<vmem>>, vector<4x512xf32>
    tpu.vector_store %arg6[%c8_40, %c1024_41], %31 {strides = array<i32>} : memref<16x2048xf32, #tpu.memory_space<vmem>>, vector<4x512xf32>,
    %c0_42 = arith.constant 0 : index
    %c20 = arith.constant 20 : index
    %c0_43 = arith.constant 0 : index
    %33 = vector.load %arg1[%c0_42, %c20, %c0_43] : memref<1x25x512xf32, #tpu.memory_space<vmem>>, vector<1x4x512xf32>
    %34 = vector.shape_cast %33 : vector<1x4x512xf32> to vector<4x512xf32>
    %c12_44 = arith.constant 12 : index
    %c1024_45 = arith.constant 1024 : index
    %35 = vector.load %arg6[%c12_44, %c1024_45] : memref<16x2048xf32, #tpu.memory_space<vmem>>, vector<4x512xf32>
    tpu.vector_store %arg6[%c12_44, %c1024_45], %34 {strides = array<i32>} : memref<16x2048xf32, #tpu.memory_space<vmem>>, vector<4x512xf32>,
    %c0_46 = arith.constant 0 : index
    %c6_47 = arith.constant 6 : index
    %c0_48 = arith.constant 0 : index
    %36 = vector.load %arg1[%c0_46, %c6_47, %c0_48] : memref<1x25x512xf32, #tpu.memory_space<vmem>>, vector<1x4x512xf32>
    %37 = vector.shape_cast %36 : vector<1x4x512xf32> to vector<4x512xf32>
    %c0_49 = arith.constant 0 : index
    %c1536 = arith.constant 1536 : index
    %38 = vector.load %arg6[%c0_49, %c1536] : memref<16x2048xf32, #tpu.memory_space<vmem>>, vector<4x512xf32>
    tpu.vector_store %arg6[%c0_49, %c1536], %37 {strides = array<i32>} : memref<16x2048xf32, #tpu.memory_space<vmem>>, vector<4x512xf32>,
    %c0_50 = arith.constant 0 : index
    %c11_51 = arith.constant 11 : index
    %c0_52 = arith.constant 0 : index
    %39 = vector.load %arg1[%c0_50, %c11_51, %c0_52] : memref<1x25x512xf32, #tpu.memory_space<vmem>>, vector<1x4x512xf32>
    %40 = vector.shape_cast %39 : vector<1x4x512xf32> to vector<4x512xf32>
    %c4_53 = arith.constant 4 : index
    %c1536_54 = arith.constant 1536 : index
    %41 = vector.load %arg6[%c4_53, %c1536_54] : memref<16x2048xf32, #tpu.memory_space<vmem>>, vector<4x512xf32>
    tpu.vector_store %arg6[%c4_53, %c1536_54], %40 {strides = array<i32>} : memref<16x2048xf32, #tpu.memory_space<vmem>>, vector<4x512xf32>,
    %c0_55 = arith.constant 0 : index
    %c16_56 = arith.constant 16 : index
    %c0_57 = arith.constant 0 : index
    %42 = vector.load %arg1[%c0_55, %c16_56, %c0_57] : memref<1x25x512xf32, #tpu.memory_space<vmem>>, vector<1x4x512xf32>
    %43 = vector.shape_cast %42 : vector<1x4x512xf32> to vector<4x512xf32>
    %c8_58 = arith.constant 8 : index
    %c1536_59 = arith.constant 1536 : index
    %44 = vector.load %arg6[%c8_58, %c1536_59] : memref<16x2048xf32, #tpu.memory_space<vmem>>, vector<4x512xf32>
    tpu.vector_store %arg6[%c8_58, %c1536_59], %43 {strides = array<i32>} : memref<16x2048xf32, #tpu.memory_space<vmem>>, vector<4x512xf32>,
    %c0_60 = arith.constant 0 : index
    %c21 = arith.constant 21 : index
    %c0_61 = arith.constant 0 : index
    %45 = vector.load %arg1[%c0_60, %c21, %c0_61] : memref<1x25x512xf32, #tpu.memory_space<vmem>>, vector<1x4x512xf32>
    %46 = vector.shape_cast %45 : vector<1x4x512xf32> to vector<4x512xf32>
    %c12_62 = arith.constant 12 : index
    %c1536_63 = arith.constant 1536 : index
    %47 = vector.load %arg6[%c12_62, %c1536_63] : memref<16x2048xf32, #tpu.memory_space<vmem>>, vector<4x512xf32>
    tpu.vector_store %arg6[%c12_62, %c1536_63], %46 {strides = array<i32>} : memref<16x2048xf32, #tpu.memory_space<vmem>>, vector<4x512xf32>,
    %c0_64 = arith.constant 0 : index
    %c0_65 = arith.constant 0 : index
    %48 = vector.load %arg6[%c0_64, %c0_65] : memref<16x2048xf32, #tpu.memory_space<vmem>>, vector<16x2048xf32>
    %49 = arith.truncf %48 : vector<16x2048xf32> to vector<16x2048xbf16>
    %c0_66 = arith.constant 0 : index
    %c0_67 = arith.constant 0 : index
    %50 = vector.load %arg2[%c0_66, %c0_67] : memref<2048x128xbf16, #tpu.memory_space<vmem>>, vector<2048x128xbf16>
    %cst = arith.constant dense<0.000000e+00> : vector<16x128xf32>
    %51 = tpu.matmul %49, %50, %cst {dimension_numbers = #tpu.dot_dimension_numbers<[1], [0], [0], [1], [0, 0, 1, 1], [], []>} : vector<16x2048xbf16>, vector<2048x128xbf16>, vector<16x128xf32> -> vector<16x128xf32>
    %cst_68 = arith.constant dense<0.000000e+00> : vector<128xf32>
    %52 = vector.multi_reduction <add>, %51, %cst_68 [0] : vector<16x128xf32> to vector<128xf32>
    %53 = vector.shape_cast %52 : vector<128xf32> to vector<1x128xf32>
    %54 = arith.mulf %51, %51 : vector<16x128xf32>
    %cst_69 = arith.constant dense<0.000000e+00> : vector<128xf32>
    %55 = vector.multi_reduction <add>, %54, %cst_69 [0] : vector<16x128xf32> to vector<128xf32>
    %56 = vector.shape_cast %55 : vector<128xf32> to vector<1x128xf32>
    %cst_70 = arith.constant 6.250000e-02 : f32
    %57 = vector.broadcast %cst_70 : f32 to vector<1x128xf32>
    %58 = arith.mulf %53, %57 : vector<1x128xf32>
    %cst_71 = arith.constant 6.250000e-02 : f32
    %59 = vector.broadcast %cst_71 : f32 to vector<1x128xf32>
    %60 = arith.mulf %56, %59 : vector<1x128xf32>
    %61 = arith.mulf %58, %58 : vector<1x128xf32>
    %62 = arith.subf %60, %61 : vector<1x128xf32>
    %cst_72 = arith.constant 0.000000e+00 : f32
    %63 = vector.broadcast %cst_72 : f32 to vector<1x128xf32>
    %64 = arith.maximumf %62, %63 : vector<1x128xf32>
    %65 = vector.broadcast %58 : vector<1x128xf32> to vector<16x128xf32>
    %66 = arith.subf %51, %65 : vector<16x128xf32>
    %cst_73 = arith.constant 9.99999974E-6 : f32
    %67 = vector.broadcast %cst_73 : f32 to vector<1x128xf32>
    %68 = arith.addf %64, %67 : vector<1x128xf32>
    %69 = math.rsqrt %68 : vector<1x128xf32>
    %70 = vector.broadcast %69 : vector<1x128xf32> to vector<16x128xf32>
    %71 = arith.mulf %66, %70 : vector<16x128xf32>
    %c0_74 = arith.constant 0 : index
    %c0_75 = arith.constant 0 : index
    %72 = vector.load %arg3[%c0_74, %c0_75] : memref<1x128xf32, #tpu.memory_space<vmem>>, vector<1x128xf32>
    %73 = vector.broadcast %72 : vector<1x128xf32> to vector<16x128xf32>
    %74 = arith.mulf %71, %73 : vector<16x128xf32>
    %c0_76 = arith.constant 0 : index
    %c0_77 = arith.constant 0 : index
    %75 = vector.load %arg4[%c0_76, %c0_77] : memref<1x128xf32, #tpu.memory_space<vmem>>, vector<1x128xf32>
    %76 = vector.broadcast %75 : vector<1x128xf32> to vector<16x128xf32>
    %77 = arith.addf %74, %76 : vector<16x128xf32>
    %cst_78 = arith.constant 0.000000e+00 : f32
    %78 = vector.broadcast %cst_78 : f32 to vector<16x128xf32>
    %79 = arith.cmpf oge, %77, %78 : vector<16x128xf32>
    %cst_79 = arith.constant 0.00999999977 : f32
    %80 = vector.broadcast %cst_79 : f32 to vector<16x128xf32>
    %81 = arith.mulf %80, %77 : vector<16x128xf32>
    %82 = arith.select %79, %77, %81 : vector<16x128xi1>, vector<16x128xf32>
    %c0_80 = arith.constant 0 : index
    %c0_81 = arith.constant 0 : index
    %c0_82 = arith.constant 0 : index
    %83 = vector.load %arg5[%c0_80, %c0_81, %c0_82] : memref<1x16x128xf32, #tpu.memory_space<vmem>>, vector<1x16x128xf32>
    %84 = vector.shape_cast %83 : vector<1x16x128xf32> to vector<16x128xf32>
    %85 = vector.shape_cast %82 : vector<16x128xf32> to vector<1x16x128xf32>
    tpu.vector_store %arg5[%c0_80, %c0_81, %c0_82], %85 {strides = array<i32>} : memref<1x16x128xf32, #tpu.memory_space<vmem>>, vector<1x16x128xf32>,
    return
  }
  func.func @transform_0(%arg0: i32) -> (i32, i32, i32) {
    %c0_i32 = arith.constant 0 : i32
    %c0_i32_0 = arith.constant 0 : i32
    %c0_i32_1 = arith.constant 0 : i32
    return %arg0, %c0_i32, %c0_i32_0 : i32, i32, i32
  }
  func.func @transform_1(%arg0: i32) -> (i32, i32) {
    %c0_i32 = arith.constant 0 : i32
    %c0_i32_0 = arith.constant 0 : i32
    %c0_i32_1 = arith.constant 0 : i32
    return %c0_i32, %c0_i32_0 : i32, i32
  }
  func.func @transform_2(%arg0: i32) -> (i32, i32) {
    %c0_i32 = arith.constant 0 : i32
    %c0_i32_0 = arith.constant 0 : i32
    %c0_i32_1 = arith.constant 0 : i32
    return %c0_i32, %c0_i32_0 : i32, i32
  }
  func.func @transform_3(%arg0: i32) -> (i32, i32) {
    %c0_i32 = arith.constant 0 : i32
    %c0_i32_0 = arith.constant 0 : i32
    %c0_i32_1 = arith.constant 0 : i32
    return %c0_i32, %c0_i32_0 : i32, i32
  }
  func.func @transform_4(%arg0: i32) -> (i32, i32, i32) {
    %c0_i32 = arith.constant 0 : i32
    %c0_i32_0 = arith.constant 0 : i32
    %c0_i32_1 = arith.constant 0 : i32
    return %arg0, %c0_i32, %c0_i32_0 : i32, i32, i32
  }
}

module attributes {stable_mosaic.version = 11 : i64} {
  func.func @convblock_heads_kernel(%arg0: i32, %arg1: memref<1x9x512xf32, #tpu.memory_space<vmem>>, %arg2: memref<2048x128xbf16, #tpu.memory_space<vmem>>, %arg3: memref<1x128xf32, #tpu.memory_space<vmem>>, %arg4: memref<1x128xf32, #tpu.memory_space<vmem>>, %arg5: memref<1152x128xbf16, #tpu.memory_space<vmem>>, %arg6: memref<512x128xbf16, #tpu.memory_space<vmem>>, %arg7: memref<1x4x128xf32, #tpu.memory_space<vmem>>, %arg8: memref<1x1x128xf32, #tpu.memory_space<vmem>>, %arg9: memref<4x2048xf32, #tpu.memory_space<vmem>>, %arg10: memref<16x128xf32, #tpu.memory_space<vmem>>, %arg11: memref<4x1152xf32, #tpu.memory_space<vmem>>, %arg12: memref<1x512xf32, #tpu.memory_space<vmem>>) attributes {dimension_semantics = [#tpu.dimension_semantics<parallel>], iteration_bounds = array<i64: 2>, scalar_prefetch = 0 : i64, scratch_operands = 4 : i64, tpu.core_type = #tpu.core_type<tc>, window_params = [{transform_indices = @transform_0, window_bounds = array<i64: 1, 9, 512>}, {pipeline_mode = #tpu.pipeline_mode<synchronous>, transform_indices = @transform_1, window_bounds = array<i64: 2048, 128>}, {pipeline_mode = #tpu.pipeline_mode<synchronous>, transform_indices = @transform_2, window_bounds = array<i64: 1, 128>}, {pipeline_mode = #tpu.pipeline_mode<synchronous>, transform_indices = @transform_3, window_bounds = array<i64: 1, 128>}, {pipeline_mode = #tpu.pipeline_mode<synchronous>, transform_indices = @transform_4, window_bounds = array<i64: 1152, 128>}, {pipeline_mode = #tpu.pipeline_mode<synchronous>, transform_indices = @transform_5, window_bounds = array<i64: 512, 128>}, {transform_indices = @transform_6, window_bounds = array<i64: 1, 4, 128>}, {transform_indices = @transform_7, window_bounds = array<i64: 1, 1, 128>}]} {
    %c0 = arith.constant 0 : index
    %c0_0 = arith.constant 0 : index
    %c0_1 = arith.constant 0 : index
    %0 = vector.load %arg1[%c0, %c0_0, %c0_1] : memref<1x9x512xf32, #tpu.memory_space<vmem>>, vector<1x2x512xf32>
    %1 = vector.shape_cast %0 : vector<1x2x512xf32> to vector<2x512xf32>
    %c0_2 = arith.constant 0 : index
    %c0_3 = arith.constant 0 : index
    %2 = vector.load %arg9[%c0_2, %c0_3] : memref<4x2048xf32, #tpu.memory_space<vmem>>, vector<2x512xf32>
    tpu.vector_store %arg9[%c0_2, %c0_3], %1 {strides = array<i32>} : memref<4x2048xf32, #tpu.memory_space<vmem>>, vector<2x512xf32>,
    %c0_4 = arith.constant 0 : index
    %c3 = arith.constant 3 : index
    %c0_5 = arith.constant 0 : index
    %3 = vector.load %arg1[%c0_4, %c3, %c0_5] : memref<1x9x512xf32, #tpu.memory_space<vmem>>, vector<1x2x512xf32>
    %4 = vector.shape_cast %3 : vector<1x2x512xf32> to vector<2x512xf32>
    %c2 = arith.constant 2 : index
    %c0_6 = arith.constant 0 : index
    %5 = vector.load %arg9[%c2, %c0_6] : memref<4x2048xf32, #tpu.memory_space<vmem>>, vector<2x512xf32>
    tpu.vector_store %arg9[%c2, %c0_6], %4 {strides = array<i32>} : memref<4x2048xf32, #tpu.memory_space<vmem>>, vector<2x512xf32>,
    %c0_7 = arith.constant 0 : index
    %c1 = arith.constant 1 : index
    %c0_8 = arith.constant 0 : index
    %6 = vector.load %arg1[%c0_7, %c1, %c0_8] : memref<1x9x512xf32, #tpu.memory_space<vmem>>, vector<1x2x512xf32>
    %7 = vector.shape_cast %6 : vector<1x2x512xf32> to vector<2x512xf32>
    %c0_9 = arith.constant 0 : index
    %c512 = arith.constant 512 : index
    %8 = vector.load %arg9[%c0_9, %c512] : memref<4x2048xf32, #tpu.memory_space<vmem>>, vector<2x512xf32>
    tpu.vector_store %arg9[%c0_9, %c512], %7 {strides = array<i32>} : memref<4x2048xf32, #tpu.memory_space<vmem>>, vector<2x512xf32>,
    %c0_10 = arith.constant 0 : index
    %c4 = arith.constant 4 : index
    %c0_11 = arith.constant 0 : index
    %9 = vector.load %arg1[%c0_10, %c4, %c0_11] : memref<1x9x512xf32, #tpu.memory_space<vmem>>, vector<1x2x512xf32>
    %10 = vector.shape_cast %9 : vector<1x2x512xf32> to vector<2x512xf32>
    %c2_12 = arith.constant 2 : index
    %c512_13 = arith.constant 512 : index
    %11 = vector.load %arg9[%c2_12, %c512_13] : memref<4x2048xf32, #tpu.memory_space<vmem>>, vector<2x512xf32>
    tpu.vector_store %arg9[%c2_12, %c512_13], %10 {strides = array<i32>} : memref<4x2048xf32, #tpu.memory_space<vmem>>, vector<2x512xf32>,
    %c0_14 = arith.constant 0 : index
    %c3_15 = arith.constant 3 : index
    %c0_16 = arith.constant 0 : index
    %12 = vector.load %arg1[%c0_14, %c3_15, %c0_16] : memref<1x9x512xf32, #tpu.memory_space<vmem>>, vector<1x2x512xf32>
    %13 = vector.shape_cast %12 : vector<1x2x512xf32> to vector<2x512xf32>
    %c0_17 = arith.constant 0 : index
    %c1024 = arith.constant 1024 : index
    %14 = vector.load %arg9[%c0_17, %c1024] : memref<4x2048xf32, #tpu.memory_space<vmem>>, vector<2x512xf32>
    tpu.vector_store %arg9[%c0_17, %c1024], %13 {strides = array<i32>} : memref<4x2048xf32, #tpu.memory_space<vmem>>, vector<2x512xf32>,
    %c0_18 = arith.constant 0 : index
    %c6 = arith.constant 6 : index
    %c0_19 = arith.constant 0 : index
    %15 = vector.load %arg1[%c0_18, %c6, %c0_19] : memref<1x9x512xf32, #tpu.memory_space<vmem>>, vector<1x2x512xf32>
    %16 = vector.shape_cast %15 : vector<1x2x512xf32> to vector<2x512xf32>
    %c2_20 = arith.constant 2 : index
    %c1024_21 = arith.constant 1024 : index
    %17 = vector.load %arg9[%c2_20, %c1024_21] : memref<4x2048xf32, #tpu.memory_space<vmem>>, vector<2x512xf32>
    tpu.vector_store %arg9[%c2_20, %c1024_21], %16 {strides = array<i32>} : memref<4x2048xf32, #tpu.memory_space<vmem>>, vector<2x512xf32>,
    %c0_22 = arith.constant 0 : index
    %c4_23 = arith.constant 4 : index
    %c0_24 = arith.constant 0 : index
    %18 = vector.load %arg1[%c0_22, %c4_23, %c0_24] : memref<1x9x512xf32, #tpu.memory_space<vmem>>, vector<1x2x512xf32>
    %19 = vector.shape_cast %18 : vector<1x2x512xf32> to vector<2x512xf32>
    %c0_25 = arith.constant 0 : index
    %c1536 = arith.constant 1536 : index
    %20 = vector.load %arg9[%c0_25, %c1536] : memref<4x2048xf32, #tpu.memory_space<vmem>>, vector<2x512xf32>
    tpu.vector_store %arg9[%c0_25, %c1536], %19 {strides = array<i32>} : memref<4x2048xf32, #tpu.memory_space<vmem>>, vector<2x512xf32>,
    %c0_26 = arith.constant 0 : index
    %c7 = arith.constant 7 : index
    %c0_27 = arith.constant 0 : index
    %21 = vector.load %arg1[%c0_26, %c7, %c0_27] : memref<1x9x512xf32, #tpu.memory_space<vmem>>, vector<1x2x512xf32>
    %22 = vector.shape_cast %21 : vector<1x2x512xf32> to vector<2x512xf32>
    %c2_28 = arith.constant 2 : index
    %c1536_29 = arith.constant 1536 : index
    %23 = vector.load %arg9[%c2_28, %c1536_29] : memref<4x2048xf32, #tpu.memory_space<vmem>>, vector<2x512xf32>
    tpu.vector_store %arg9[%c2_28, %c1536_29], %22 {strides = array<i32>} : memref<4x2048xf32, #tpu.memory_space<vmem>>, vector<2x512xf32>,
    %c0_30 = arith.constant 0 : index
    %c0_31 = arith.constant 0 : index
    %24 = vector.load %arg9[%c0_30, %c0_31] : memref<4x2048xf32, #tpu.memory_space<vmem>>, vector<4x2048xf32>
    %25 = arith.truncf %24 : vector<4x2048xf32> to vector<4x2048xbf16>
    %c0_32 = arith.constant 0 : index
    %c0_33 = arith.constant 0 : index
    %26 = vector.load %arg2[%c0_32, %c0_33] : memref<2048x128xbf16, #tpu.memory_space<vmem>>, vector<2048x128xbf16>
    %cst = arith.constant dense<0.000000e+00> : vector<4x128xf32>
    %27 = tpu.matmul %25, %26, %cst {dimension_numbers = #tpu.dot_dimension_numbers<[1], [0], [0], [1], [0, 0, 1, 1], [], []>} : vector<4x2048xbf16>, vector<2048x128xbf16>, vector<4x128xf32> -> vector<4x128xf32>
    %cst_34 = arith.constant dense<0.000000e+00> : vector<128xf32>
    %28 = vector.multi_reduction <add>, %27, %cst_34 [0] : vector<4x128xf32> to vector<128xf32>
    %29 = vector.shape_cast %28 : vector<128xf32> to vector<1x128xf32>
    %30 = arith.mulf %27, %27 : vector<4x128xf32>
    %cst_35 = arith.constant dense<0.000000e+00> : vector<128xf32>
    %31 = vector.multi_reduction <add>, %30, %cst_35 [0] : vector<4x128xf32> to vector<128xf32>
    %32 = vector.shape_cast %31 : vector<128xf32> to vector<1x128xf32>
    %cst_36 = arith.constant 2.500000e-01 : f32
    %33 = vector.broadcast %cst_36 : f32 to vector<1x128xf32>
    %34 = arith.mulf %29, %33 : vector<1x128xf32>
    %cst_37 = arith.constant 2.500000e-01 : f32
    %35 = vector.broadcast %cst_37 : f32 to vector<1x128xf32>
    %36 = arith.mulf %32, %35 : vector<1x128xf32>
    %37 = arith.mulf %34, %34 : vector<1x128xf32>
    %38 = arith.subf %36, %37 : vector<1x128xf32>
    %cst_38 = arith.constant 0.000000e+00 : f32
    %39 = vector.broadcast %cst_38 : f32 to vector<1x128xf32>
    %40 = arith.maximumf %38, %39 : vector<1x128xf32>
    %41 = vector.broadcast %34 : vector<1x128xf32> to vector<4x128xf32>
    %42 = arith.subf %27, %41 : vector<4x128xf32>
    %cst_39 = arith.constant 9.99999974E-6 : f32
    %43 = vector.broadcast %cst_39 : f32 to vector<1x128xf32>
    %44 = arith.addf %40, %43 : vector<1x128xf32>
    %45 = math.rsqrt %44 : vector<1x128xf32>
    %46 = vector.broadcast %45 : vector<1x128xf32> to vector<4x128xf32>
    %47 = arith.mulf %42, %46 : vector<4x128xf32>
    %c0_40 = arith.constant 0 : index
    %c0_41 = arith.constant 0 : index
    %48 = vector.load %arg3[%c0_40, %c0_41] : memref<1x128xf32, #tpu.memory_space<vmem>>, vector<1x128xf32>
    %49 = vector.broadcast %48 : vector<1x128xf32> to vector<4x128xf32>
    %50 = arith.mulf %47, %49 : vector<4x128xf32>
    %c0_42 = arith.constant 0 : index
    %c0_43 = arith.constant 0 : index
    %51 = vector.load %arg4[%c0_42, %c0_43] : memref<1x128xf32, #tpu.memory_space<vmem>>, vector<1x128xf32>
    %52 = vector.broadcast %51 : vector<1x128xf32> to vector<4x128xf32>
    %53 = arith.addf %50, %52 : vector<4x128xf32>
    %cst_44 = arith.constant 0.000000e+00 : f32
    %54 = vector.broadcast %cst_44 : f32 to vector<4x128xf32>
    %55 = arith.cmpf oge, %53, %54 : vector<4x128xf32>
    %cst_45 = arith.constant 0.00999999977 : f32
    %56 = vector.broadcast %cst_45 : f32 to vector<4x128xf32>
    %57 = arith.mulf %56, %53 : vector<4x128xf32>
    %58 = arith.select %55, %53, %57 : vector<4x128xi1>, vector<4x128xf32>
    %cst_46 = arith.constant 0.000000e+00 : f32
    %59 = vector.broadcast %cst_46 : f32 to vector<16x128xf32>
    %c0_47 = arith.constant 0 : index
    %c0_48 = arith.constant 0 : index
    %60 = vector.load %arg10[%c0_47, %c0_48] : memref<16x128xf32, #tpu.memory_space<vmem>>, vector<16x128xf32>
    tpu.vector_store %arg10[%c0_47, %c0_48], %59 {strides = array<i32>} : memref<16x128xf32, #tpu.memory_space<vmem>>, vector<16x128xf32>,
    %61 = vector.extract_strided_slice %58 {offsets = [0, 0], sizes = [2, 128], strides = [1, 1]} : vector<4x128xf32> to vector<2x128xf32>
    %c5 = arith.constant 5 : index
    %c0_49 = arith.constant 0 : index
    %62 = vector.load %arg10[%c5, %c0_49] : memref<16x128xf32, #tpu.memory_space<vmem>>, vector<2x128xf32>
    tpu.vector_store %arg10[%c5, %c0_49], %61 {strides = array<i32>} : memref<16x128xf32, #tpu.memory_space<vmem>>, vector<2x128xf32>,
    %63 = vector.extract_strided_slice %58 {offsets = [2, 0], sizes = [2, 128], strides = [1, 1]} : vector<4x128xf32> to vector<2x128xf32>
    %c9 = arith.constant 9 : index
    %c0_50 = arith.constant 0 : index
    %64 = vector.load %arg10[%c9, %c0_50] : memref<16x128xf32, #tpu.memory_space<vmem>>, vector<2x128xf32>
    tpu.vector_store %arg10[%c9, %c0_50], %63 {strides = array<i32>} : memref<16x128xf32, #tpu.memory_space<vmem>>, vector<2x128xf32>,
    %c0_51 = arith.constant 0 : index
    %c0_52 = arith.constant 0 : index
    %65 = vector.load %arg10[%c0_51, %c0_52] : memref<16x128xf32, #tpu.memory_space<vmem>>, vector<2x128xf32>
    %c0_53 = arith.constant 0 : index
    %c0_54 = arith.constant 0 : index
    %66 = vector.load %arg11[%c0_53, %c0_54] : memref<4x1152xf32, #tpu.memory_space<vmem>>, vector<2x128xf32>
    tpu.vector_store %arg11[%c0_53, %c0_54], %65 {strides = array<i32>} : memref<4x1152xf32, #tpu.memory_space<vmem>>, vector<2x128xf32>,
    %c4_55 = arith.constant 4 : index
    %c0_56 = arith.constant 0 : index
    %67 = vector.load %arg10[%c4_55, %c0_56] : memref<16x128xf32, #tpu.memory_space<vmem>>, vector<2x128xf32>
    %c2_57 = arith.constant 2 : index
    %c0_58 = arith.constant 0 : index
    %68 = vector.load %arg11[%c2_57, %c0_58] : memref<4x1152xf32, #tpu.memory_space<vmem>>, vector<2x128xf32>
    tpu.vector_store %arg11[%c2_57, %c0_58], %67 {strides = array<i32>} : memref<4x1152xf32, #tpu.memory_space<vmem>>, vector<2x128xf32>,
    %c1_59 = arith.constant 1 : index
    %c0_60 = arith.constant 0 : index
    %69 = vector.load %arg10[%c1_59, %c0_60] : memref<16x128xf32, #tpu.memory_space<vmem>>, vector<2x128xf32>
    %c0_61 = arith.constant 0 : index
    %c128 = arith.constant 128 : index
    %70 = vector.load %arg11[%c0_61, %c128] : memref<4x1152xf32, #tpu.memory_space<vmem>>, vector<2x128xf32>
    tpu.vector_store %arg11[%c0_61, %c128], %69 {strides = array<i32>} : memref<4x1152xf32, #tpu.memory_space<vmem>>, vector<2x128xf32>,
    %c5_62 = arith.constant 5 : index
    %c0_63 = arith.constant 0 : index
    %71 = vector.load %arg10[%c5_62, %c0_63] : memref<16x128xf32, #tpu.memory_space<vmem>>, vector<2x128xf32>
    %c2_64 = arith.constant 2 : index
    %c128_65 = arith.constant 128 : index
    %72 = vector.load %arg11[%c2_64, %c128_65] : memref<4x1152xf32, #tpu.memory_space<vmem>>, vector<2x128xf32>
    tpu.vector_store %arg11[%c2_64, %c128_65], %71 {strides = array<i32>} : memref<4x1152xf32, #tpu.memory_space<vmem>>, vector<2x128xf32>,
    %c2_66 = arith.constant 2 : index
    %c0_67 = arith.constant 0 : index
    %73 = vector.load %arg10[%c2_66, %c0_67] : memref<16x128xf32, #tpu.memory_space<vmem>>, vector<2x128xf32>
    %c0_68 = arith.constant 0 : index
    %c256 = arith.constant 256 : index
    %74 = vector.load %arg11[%c0_68, %c256] : memref<4x1152xf32, #tpu.memory_space<vmem>>, vector<2x128xf32>
    tpu.vector_store %arg11[%c0_68, %c256], %73 {strides = array<i32>} : memref<4x1152xf32, #tpu.memory_space<vmem>>, vector<2x128xf32>,
    %c6_69 = arith.constant 6 : index
    %c0_70 = arith.constant 0 : index
    %75 = vector.load %arg10[%c6_69, %c0_70] : memref<16x128xf32, #tpu.memory_space<vmem>>, vector<2x128xf32>
    %c2_71 = arith.constant 2 : index
    %c256_72 = arith.constant 256 : index
    %76 = vector.load %arg11[%c2_71, %c256_72] : memref<4x1152xf32, #tpu.memory_space<vmem>>, vector<2x128xf32>
    tpu.vector_store %arg11[%c2_71, %c256_72], %75 {strides = array<i32>} : memref<4x1152xf32, #tpu.memory_space<vmem>>, vector<2x128xf32>,
    %c4_73 = arith.constant 4 : index
    %c0_74 = arith.constant 0 : index
    %77 = vector.load %arg10[%c4_73, %c0_74] : memref<16x128xf32, #tpu.memory_space<vmem>>, vector<2x128xf32>
    %c0_75 = arith.constant 0 : index
    %c384 = arith.constant 384 : index
    %78 = vector.load %arg11[%c0_75, %c384] : memref<4x1152xf32, #tpu.memory_space<vmem>>, vector<2x128xf32>
    tpu.vector_store %arg11[%c0_75, %c384], %77 {strides = array<i32>} : memref<4x1152xf32, #tpu.memory_space<vmem>>, vector<2x128xf32>,
    %c8 = arith.constant 8 : index
    %c0_76 = arith.constant 0 : index
    %79 = vector.load %arg10[%c8, %c0_76] : memref<16x128xf32, #tpu.memory_space<vmem>>, vector<2x128xf32>
    %c2_77 = arith.constant 2 : index
    %c384_78 = arith.constant 384 : index
    %80 = vector.load %arg11[%c2_77, %c384_78] : memref<4x1152xf32, #tpu.memory_space<vmem>>, vector<2x128xf32>
    tpu.vector_store %arg11[%c2_77, %c384_78], %79 {strides = array<i32>} : memref<4x1152xf32, #tpu.memory_space<vmem>>, vector<2x128xf32>,
    %c5_79 = arith.constant 5 : index
    %c0_80 = arith.constant 0 : index
    %81 = vector.load %arg10[%c5_79, %c0_80] : memref<16x128xf32, #tpu.memory_space<vmem>>, vector<2x128xf32>
    %c0_81 = arith.constant 0 : index
    %c512_82 = arith.constant 512 : index
    %82 = vector.load %arg11[%c0_81, %c512_82] : memref<4x1152xf32, #tpu.memory_space<vmem>>, vector<2x128xf32>
    tpu.vector_store %arg11[%c0_81, %c512_82], %81 {strides = array<i32>} : memref<4x1152xf32, #tpu.memory_space<vmem>>, vector<2x128xf32>,
    %c9_83 = arith.constant 9 : index
    %c0_84 = arith.constant 0 : index
    %83 = vector.load %arg10[%c9_83, %c0_84] : memref<16x128xf32, #tpu.memory_space<vmem>>, vector<2x128xf32>
    %c2_85 = arith.constant 2 : index
    %c512_86 = arith.constant 512 : index
    %84 = vector.load %arg11[%c2_85, %c512_86] : memref<4x1152xf32, #tpu.memory_space<vmem>>, vector<2x128xf32>
    tpu.vector_store %arg11[%c2_85, %c512_86], %83 {strides = array<i32>} : memref<4x1152xf32, #tpu.memory_space<vmem>>, vector<2x128xf32>,
    %c6_87 = arith.constant 6 : index
    %c0_88 = arith.constant 0 : index
    %85 = vector.load %arg10[%c6_87, %c0_88] : memref<16x128xf32, #tpu.memory_space<vmem>>, vector<2x128xf32>
    %c0_89 = arith.constant 0 : index
    %c640 = arith.constant 640 : index
    %86 = vector.load %arg11[%c0_89, %c640] : memref<4x1152xf32, #tpu.memory_space<vmem>>, vector<2x128xf32>
    tpu.vector_store %arg11[%c0_89, %c640], %85 {strides = array<i32>} : memref<4x1152xf32, #tpu.memory_space<vmem>>, vector<2x128xf32>,
    %c10 = arith.constant 10 : index
    %c0_90 = arith.constant 0 : index
    %87 = vector.load %arg10[%c10, %c0_90] : memref<16x128xf32, #tpu.memory_space<vmem>>, vector<2x128xf32>
    %c2_91 = arith.constant 2 : index
    %c640_92 = arith.constant 640 : index
    %88 = vector.load %arg11[%c2_91, %c640_92] : memref<4x1152xf32, #tpu.memory_space<vmem>>, vector<2x128xf32>
    tpu.vector_store %arg11[%c2_91, %c640_92], %87 {strides = array<i32>} : memref<4x1152xf32, #tpu.memory_space<vmem>>, vector<2x128xf32>,
    %c8_93 = arith.constant 8 : index
    %c0_94 = arith.constant 0 : index
    %89 = vector.load %arg10[%c8_93, %c0_94] : memref<16x128xf32, #tpu.memory_space<vmem>>, vector<2x128xf32>
    %c0_95 = arith.constant 0 : index
    %c768 = arith.constant 768 : index
    %90 = vector.load %arg11[%c0_95, %c768] : memref<4x1152xf32, #tpu.memory_space<vmem>>, vector<2x128xf32>
    tpu.vector_store %arg11[%c0_95, %c768], %89 {strides = array<i32>} : memref<4x1152xf32, #tpu.memory_space<vmem>>, vector<2x128xf32>,
    %c12 = arith.constant 12 : index
    %c0_96 = arith.constant 0 : index
    %91 = vector.load %arg10[%c12, %c0_96] : memref<16x128xf32, #tpu.memory_space<vmem>>, vector<2x128xf32>
    %c2_97 = arith.constant 2 : index
    %c768_98 = arith.constant 768 : index
    %92 = vector.load %arg11[%c2_97, %c768_98] : memref<4x1152xf32, #tpu.memory_space<vmem>>, vector<2x128xf32>
    tpu.vector_store %arg11[%c2_97, %c768_98], %91 {strides = array<i32>} : memref<4x1152xf32, #tpu.memory_space<vmem>>, vector<2x128xf32>,
    %c9_99 = arith.constant 9 : index
    %c0_100 = arith.constant 0 : index
    %93 = vector.load %arg10[%c9_99, %c0_100] : memref<16x128xf32, #tpu.memory_space<vmem>>, vector<2x128xf32>
    %c0_101 = arith.constant 0 : index
    %c896 = arith.constant 896 : index
    %94 = vector.load %arg11[%c0_101, %c896] : memref<4x1152xf32, #tpu.memory_space<vmem>>, vector<2x128xf32>
    tpu.vector_store %arg11[%c0_101, %c896], %93 {strides = array<i32>} : memref<4x1152xf32, #tpu.memory_space<vmem>>, vector<2x128xf32>,
    %c13 = arith.constant 13 : index
    %c0_102 = arith.constant 0 : index
    %95 = vector.load %arg10[%c13, %c0_102] : memref<16x128xf32, #tpu.memory_space<vmem>>, vector<2x128xf32>
    %c2_103 = arith.constant 2 : index
    %c896_104 = arith.constant 896 : index
    %96 = vector.load %arg11[%c2_103, %c896_104] : memref<4x1152xf32, #tpu.memory_space<vmem>>, vector<2x128xf32>
    tpu.vector_store %arg11[%c2_103, %c896_104], %95 {strides = array<i32>} : memref<4x1152xf32, #tpu.memory_space<vmem>>, vector<2x128xf32>,
    %c10_105 = arith.constant 10 : index
    %c0_106 = arith.constant 0 : index
    %97 = vector.load %arg10[%c10_105, %c0_106] : memref<16x128xf32, #tpu.memory_space<vmem>>, vector<2x128xf32>
    %c0_107 = arith.constant 0 : index
    %c1024_108 = arith.constant 1024 : index
    %98 = vector.load %arg11[%c0_107, %c1024_108] : memref<4x1152xf32, #tpu.memory_space<vmem>>, vector<2x128xf32>
    tpu.vector_store %arg11[%c0_107, %c1024_108], %97 {strides = array<i32>} : memref<4x1152xf32, #tpu.memory_space<vmem>>, vector<2x128xf32>,
    %c14 = arith.constant 14 : index
    %c0_109 = arith.constant 0 : index
    %99 = vector.load %arg10[%c14, %c0_109] : memref<16x128xf32, #tpu.memory_space<vmem>>, vector<2x128xf32>
    %c2_110 = arith.constant 2 : index
    %c1024_111 = arith.constant 1024 : index
    %100 = vector.load %arg11[%c2_110, %c1024_111] : memref<4x1152xf32, #tpu.memory_space<vmem>>, vector<2x128xf32>
    tpu.vector_store %arg11[%c2_110, %c1024_111], %99 {strides = array<i32>} : memref<4x1152xf32, #tpu.memory_space<vmem>>, vector<2x128xf32>,
    %c0_112 = arith.constant 0 : index
    %c0_113 = arith.constant 0 : index
    %101 = vector.load %arg11[%c0_112, %c0_113] : memref<4x1152xf32, #tpu.memory_space<vmem>>, vector<4x1152xf32>
    %102 = arith.truncf %101 : vector<4x1152xf32> to vector<4x1152xbf16>
    %c0_114 = arith.constant 0 : index
    %c0_115 = arith.constant 0 : index
    %103 = vector.load %arg5[%c0_114, %c0_115] : memref<1152x128xbf16, #tpu.memory_space<vmem>>, vector<1152x128xbf16>
    %cst_116 = arith.constant dense<0.000000e+00> : vector<4x128xf32>
    %104 = tpu.matmul %102, %103, %cst_116 {dimension_numbers = #tpu.dot_dimension_numbers<[1], [0], [0], [1], [0, 0, 1, 1], [], []>} : vector<4x1152xbf16>, vector<1152x128xbf16>, vector<4x128xf32> -> vector<4x128xf32>
    %c0_117 = arith.constant 0 : index
    %c0_118 = arith.constant 0 : index
    %c0_119 = arith.constant 0 : index
    %105 = vector.load %arg7[%c0_117, %c0_118, %c0_119] : memref<1x4x128xf32, #tpu.memory_space<vmem>>, vector<1x4x128xf32>
    %106 = vector.shape_cast %105 : vector<1x4x128xf32> to vector<4x128xf32>
    %107 = vector.shape_cast %104 : vector<4x128xf32> to vector<1x4x128xf32>
    tpu.vector_store %arg7[%c0_117, %c0_118, %c0_119], %107 {strides = array<i32>} : memref<1x4x128xf32, #tpu.memory_space<vmem>>, vector<1x4x128xf32>,
    %108 = vector.extract_strided_slice %58 {offsets = [0, 0], sizes = [1, 128], strides = [1, 1]} : vector<4x128xf32> to vector<1x128xf32>
    %c0_120 = arith.constant 0 : index
    %c0_121 = arith.constant 0 : index
    %109 = vector.load %arg12[%c0_120, %c0_121] : memref<1x512xf32, #tpu.memory_space<vmem>>, vector<1x128xf32>
    tpu.vector_store %arg12[%c0_120, %c0_121], %108 {strides = array<i32>} : memref<1x512xf32, #tpu.memory_space<vmem>>, vector<1x128xf32>,
    %110 = vector.extract_strided_slice %58 {offsets = [1, 0], sizes = [1, 128], strides = [1, 1]} : vector<4x128xf32> to vector<1x128xf32>
    %c0_122 = arith.constant 0 : index
    %c128_123 = arith.constant 128 : index
    %111 = vector.load %arg12[%c0_122, %c128_123] : memref<1x512xf32, #tpu.memory_space<vmem>>, vector<1x128xf32>
    tpu.vector_store %arg12[%c0_122, %c128_123], %110 {strides = array<i32>} : memref<1x512xf32, #tpu.memory_space<vmem>>, vector<1x128xf32>,
    %112 = vector.extract_strided_slice %58 {offsets = [2, 0], sizes = [1, 128], strides = [1, 1]} : vector<4x128xf32> to vector<1x128xf32>
    %c0_124 = arith.constant 0 : index
    %c256_125 = arith.constant 256 : index
    %113 = vector.load %arg12[%c0_124, %c256_125] : memref<1x512xf32, #tpu.memory_space<vmem>>, vector<1x128xf32>
    tpu.vector_store %arg12[%c0_124, %c256_125], %112 {strides = array<i32>} : memref<1x512xf32, #tpu.memory_space<vmem>>, vector<1x128xf32>,
    %114 = vector.extract_strided_slice %58 {offsets = [3, 0], sizes = [1, 128], strides = [1, 1]} : vector<4x128xf32> to vector<1x128xf32>
    %c0_126 = arith.constant 0 : index
    %c384_127 = arith.constant 384 : index
    %115 = vector.load %arg12[%c0_126, %c384_127] : memref<1x512xf32, #tpu.memory_space<vmem>>, vector<1x128xf32>
    tpu.vector_store %arg12[%c0_126, %c384_127], %114 {strides = array<i32>} : memref<1x512xf32, #tpu.memory_space<vmem>>, vector<1x128xf32>,
    %c0_128 = arith.constant 0 : index
    %c0_129 = arith.constant 0 : index
    %116 = vector.load %arg12[%c0_128, %c0_129] : memref<1x512xf32, #tpu.memory_space<vmem>>, vector<1x512xf32>
    %117 = arith.truncf %116 : vector<1x512xf32> to vector<1x512xbf16>
    %c0_130 = arith.constant 0 : index
    %c0_131 = arith.constant 0 : index
    %118 = vector.load %arg6[%c0_130, %c0_131] : memref<512x128xbf16, #tpu.memory_space<vmem>>, vector<512x128xbf16>
    %cst_132 = arith.constant dense<0.000000e+00> : vector<1x128xf32>
    %119 = tpu.matmul %117, %118, %cst_132 {dimension_numbers = #tpu.dot_dimension_numbers<[1], [0], [0], [1], [0, 0, 1, 1], [], []>} : vector<1x512xbf16>, vector<512x128xbf16>, vector<1x128xf32> -> vector<1x128xf32>
    %c0_133 = arith.constant 0 : index
    %c0_134 = arith.constant 0 : index
    %c0_135 = arith.constant 0 : index
    %120 = vector.load %arg8[%c0_133, %c0_134, %c0_135] : memref<1x1x128xf32, #tpu.memory_space<vmem>>, vector<1x1x128xf32>
    %121 = vector.shape_cast %120 : vector<1x1x128xf32> to vector<1x128xf32>
    %122 = vector.shape_cast %119 : vector<1x128xf32> to vector<1x1x128xf32>
    tpu.vector_store %arg8[%c0_133, %c0_134, %c0_135], %122 {strides = array<i32>} : memref<1x1x128xf32, #tpu.memory_space<vmem>>, vector<1x1x128xf32>,
    return
  }
  func.func @transform_0(%arg0: i32) -> (i32, i32, i32) {
    %c0_i32 = arith.constant 0 : i32
    %c0_i32_0 = arith.constant 0 : i32
    %c0_i32_1 = arith.constant 0 : i32
    return %arg0, %c0_i32, %c0_i32_0 : i32, i32, i32
  }
  func.func @transform_1(%arg0: i32) -> (i32, i32) {
    %c0_i32 = arith.constant 0 : i32
    %c0_i32_0 = arith.constant 0 : i32
    %c0_i32_1 = arith.constant 0 : i32
    return %c0_i32, %c0_i32_0 : i32, i32
  }
  func.func @transform_2(%arg0: i32) -> (i32, i32) {
    %c0_i32 = arith.constant 0 : i32
    %c0_i32_0 = arith.constant 0 : i32
    %c0_i32_1 = arith.constant 0 : i32
    return %c0_i32, %c0_i32_0 : i32, i32
  }
  func.func @transform_3(%arg0: i32) -> (i32, i32) {
    %c0_i32 = arith.constant 0 : i32
    %c0_i32_0 = arith.constant 0 : i32
    %c0_i32_1 = arith.constant 0 : i32
    return %c0_i32, %c0_i32_0 : i32, i32
  }
  func.func @transform_4(%arg0: i32) -> (i32, i32) {
    %c0_i32 = arith.constant 0 : i32
    %c0_i32_0 = arith.constant 0 : i32
    %c0_i32_1 = arith.constant 0 : i32
    return %c0_i32, %c0_i32_0 : i32, i32
  }
  func.func @transform_5(%arg0: i32) -> (i32, i32) {
    %c0_i32 = arith.constant 0 : i32
    %c0_i32_0 = arith.constant 0 : i32
    %c0_i32_1 = arith.constant 0 : i32
    return %c0_i32, %c0_i32_0 : i32, i32
  }
  func.func @transform_6(%arg0: i32) -> (i32, i32, i32) {
    %c0_i32 = arith.constant 0 : i32
    %c0_i32_0 = arith.constant 0 : i32
    %c0_i32_1 = arith.constant 0 : i32
    return %arg0, %c0_i32, %c0_i32_0 : i32, i32, i32
  }
  func.func @transform_7(%arg0: i32) -> (i32, i32, i32) {
    %c0_i32 = arith.constant 0 : i32
    %c0_i32_0 = arith.constant 0 : i32
    %c0_i32_1 = arith.constant 0 : i32
    return %arg0, %c0_i32, %c0_i32_0 : i32, i32, i32
  }
}

</mosaic_0001>

<llo_original>
// kernel: squeeze.2
$region0: #{squeeze.2}
  %s0 = inlined_call_operand.vmem [shape: f32[2,4], index: 0, kind: input, shape index: {}]
  %s1 = inlined_call_operand.hbm [shape: f32[2,1,2,2], index: 1, kind: output, shape index: {}]
  $region1: #{squeeze.2} parent=0
    #allocation0 [shape = 'u8[2048]{0}', space=vmem, size = 0x800, scoped, tag = 'operand span for operand 1']
    #allocation1 [shape = 's32[1]{0}', space=sflag, size = 0x4, scoped, tag = 'scoped memory for squeeze.2']
    #allocation2 [shape = 'u8[8192]{0}', space=vmem, size = 0x2000, scoped, tag = 'scoped mem for output reshape']
    #allocation3 [shape = 'u8[4096]{0}', space=vmem, size = 0x1000, scoped, tag = 'scoped mem for input reshape']
    %2 = vsyncpa [#allocation1], 0
    %s4 = sshllo.u32 0, 2
    %v5 = vld [vmem:[%s0] sm:%s4]
    %6 = vst [vmem:[#allocation3] sm:%s4] %v5
    %v7 = vld [vmem:[#allocation3] sm:$0x3]
    %vm8 = vcmask 15360
    %9 = vst.msk [vmem:[#allocation2] ss:$8 sm:$0x3] %vm8, %v7
    %v10 = vld [vmem:[#allocation3] sm:$0x3]
    %11 = vrot.lane.b32.xlu0 %v10, 126
    %v12 = vpop.permute.xlu0 %11
    %vm13 = vcmask 15360
    %s14 = scalar_lea.vmem [#allocation2], 1
    %15 = vst.msk [vmem:[%s14] ss:$8 sm:$0x3] %vm13, %v12
    %s17 = sshllo.u32 0, 2
    %v19 = vld [vmem:[#allocation2] sm:%s17]
    %s20 = sshllo.u32 0, 2
    %21 = vst [vmem:[#allocation0] sm:%s20] %v19
    %s22 = scalar_lea.vmem [#allocation2], 8
    %v23 = vld [vmem:[%s22] sm:%s17]
    %s24 = sshllo.u32 0, 2
    %s25 = scalar_lea.vmem [#allocation0], 2
    %26 = vst [vmem:[%s25] sm:%s24] %v23
    %s28 = ssub.s32 64, 64
    %29 = vsyncadd [#allocation1], %s28
    %s31 = sshll.u32 [#allocation0], 4
    %s32 = int_to_ptr.vmem [resolvable:$true] %s31
    %34 = dma.vmem_to_hbm [thread:$0]  %s32, 64, %s1, [#allocation1]
    %35 = dma.done [#allocation1], 64
    %36 = vsyncpa [#allocation1], 1

// kernel: discriminator_forward.4
$region0: #{discriminator_forward.4}
  #allocation0 [shape = 'u32[]', space=smem, size = 0x4, offset = 0x4, fixed_abs, tag = 'smem constant byte address 0x4 - core index']
  #allocation1 [shape = 'u32[144,128]{1,0:T(1,128)}', space=vmem, size = 0x12000, scoped, tag = 'internal scratch']
  #allocation2 [shape = 'f32[16,2048]{1,0:T(8,128)}', space=vmem, size = 0x20000, scoped, tag = 'scratch operand']
  %s0 = inlined_call_operand.vmem [shape: f32[2,25,512], index: 0, kind: input, shape index: {}]
  %s1 = inlined_call_operand.vmem [shape: bf16[2048,128], index: 1, kind: input, shape index: {}]
  %s2 = inlined_call_operand.vmem [shape: f32[1,128], index: 2, kind: input, shape index: {}]
  %s3 = inlined_call_operand.vmem [shape: f32[1,128], index: 3, kind: input, shape index: {}]
  %s4 = inlined_call_operand.vmem [shape: f32[2,16,128], index: 4, kind: output, shape index: {}]
  %s5 = sld [smem:[#allocation0]]
  $region49: #{discriminator_forward.4} parent=0
    _
  %s7 = ssub.s32 1, %s5
  %s8 = scalar_select 0, %s7, %s5
  loop: start=0, step=1, limit=4
  $region2: #{discriminator_forward.4} parent=0 // loop_pre_header
    _
  $region3: #{discriminator_forward.4} parent=0 // loop_header
    %s10 = sphi 0, %s14
    %p11 = scmp.ge.s32.totalorder %s10, 4
    %s20 = sphi 0, %s22
    %s23 = sphi 0, %s20
    %s24 = sphi 0, %s23
    %s40 = sphi 0, %s24
    %s44 = sphi 0, %s44
    %s46 = sphi 0, %s44
    %s47 = sphi 0, %s46
    %s61 = sphi 0, %s47
    %s65 = sphi 0, %s65
    %s67 = sphi 0, %s65
    %s68 = sphi 0, %s67
    %s82 = sphi 0, %s68
    %s86 = sphi 0, %s86
    %s88 = sphi 0, %s86
    %s89 = sphi 0, %s88
    %s103 = sphi 0, %s89
    %s109 = sphi 0, %s111
    %s112 = sphi 0, %s109
    %s113 = sphi 0, %s112
    %s129 = sphi 0, %s113
  $region4: #{discriminator_forward.4} parent=0 // loop_header_branch
    %13 = sbr.rel (%p11) target = $region8
  $region5: #{discriminator_forward.4} parent=0 // loop_body
    %s15 = ssub.s32 %s10, 1
    %s16 = ssub.s32 %s10, 2
    %s17 = sadd.s32 %s10, 1
    %s18 = ssub.s32 %s10, %s17
    %p19 = scmp.eq.s32.totalorder %s18, 0
    %s21 = sadd.s32 %s20, 1
    %s22 = scalar_select %p19, %s20, %s21
    %p25 = pneg %p19
    %p26 = scmp.eq.s32.totalorder %s10, 1
    %p27 = por %p25, %p26
    %p28 = scmp.ne.s32.totalorder %s20, %s23
    %p29 = scmp.eq.s32.totalorder %s10, 0
    %p30 = por %p28, %p29
    %p31 = scmp.ne.s32.totalorder %s20, %s23
    %p32 = scmp.eq.s32.totalorder %s15, 1
    %p33 = por %p31, %p32
    %p34 = scmp.ne.s32.totalorder %s23, %s24
    %p35 = scmp.eq.s32.totalorder %s15, 0
    %p36 = por %p34, %p35
    %p37 = scmp.ne.s32.totalorder %s23, %s24
    %p38 = scmp.eq.s32.totalorder %s16, 1
    %p39 = por %p37, %p38
    %p41 = scmp.ne.s32.totalorder %s24, %s40
    %p42 = scmp.eq.s32.totalorder %s16, 0
    %p43 = por %p41, %p42
    %s45 = sadd.s32 %s44, 1
    %p48 = scmp.eq.s32.totalorder %s10, 1
    %p49 = scmp.ne.s32.totalorder %s44, %s46
    %p50 = scmp.eq.s32.totalorder %s10, 0
    %p51 = por %p49, %p50
    %p52 = scmp.ne.s32.totalorder %s44, %s46
    %p53 = scmp.eq.s32.totalorder %s15, 1
    %p54 = por %p52, %p53
    %p55 = scmp.ne.s32.totalorder %s46, %s47
    %p56 = scmp.eq.s32.totalorder %s15, 0
    %p57 = por %p55, %p56
    %p58 = scmp.ne.s32.totalorder %s46, %s47
    %p59 = scmp.eq.s32.totalorder %s16, 1
    %p60 = por %p58, %p59
    %p62 = scmp.ne.s32.totalorder %s47, %s61
    %p63 = scmp.eq.s32.totalorder %s16, 0
    %p64 = por %p62, %p63
    %s66 = sadd.s32 %s65, 1
    %p69 = scmp.eq.s32.totalorder %s10, 1
    %p70 = scmp.ne.s32.totalorder %s65, %s67
    %p71 = scmp.eq.s32.totalorder %s10, 0
    %p72 = por %p70, %p71
    %p73 = scmp.ne.s32.totalorder %s65, %s67
    %p74 = scmp.eq.s32.totalorder %s15, 1
    %p75 = por %p73, %p74
    %p76 = scmp.ne.s32.totalorder %s67, %s68
    %p77 = scmp.eq.s32.totalorder %s15, 0
    %p78 = por %p76, %p77
    %p79 = scmp.ne.s32.totalorder %s67, %s68
    %p80 = scmp.eq.s32.totalorder %s16, 1
    %p81 = por %p79, %p80
    %p83 = scmp.ne.s32.totalorder %s68, %s82
    %p84 = scmp.eq.s32.totalorder %s16, 0
    %p85 = por %p83, %p84
    %s87 = sadd.s32 %s86, 1
    %p90 = scmp.eq.s32.totalorder %s10, 1
    %p91 = scmp.ne.s32.totalorder %s86, %s88
    %p92 = scmp.eq.s32.totalorder %s10, 0
    %p93 = por %p91, %p92
    %p94 = scmp.ne.s32.totalorder %s86, %s88
    %p95 = scmp.eq.s32.totalorder %s15, 1
    %p96 = por %p94, %p95
    %p97 = scmp.ne.s32.totalorder %s88, %s89
    %p98 = scmp.eq.s32.totalorder %s15, 0
    %p99 = por %p97, %p98
    %p100 = scmp.ne.s32.totalorder %s88, %s89
    %p101 = scmp.eq.s32.totalorder %s16, 1
    %p102 = por %p100, %p101
    %p104 = scmp.ne.s32.totalorder %s89, %s103
    %p105 = scmp.eq.s32.totalorder %s16, 0
    %p106 = por %p104, %p105
    %s107 = ssub.s32 %s10, %s17
    %p108 = scmp.eq.s32.totalorder %s107, 0
    %s110 = sadd.s32 %s109, 1
    %s111 = scalar_select %p108, %s109, %s110
    %p114 = pneg %p108
    %p115 = scmp.eq.s32.totalorder %s10, 1
    %p116 = por %p114, %p115
    %p117 = scmp.ne.s32.totalorder %s109, %s112
    %p118 = scmp.eq.s32.totalorder %s10, 0
    %p119 = por %p117, %p118
    %p120 = scmp.ne.s32.totalorder %s109, %s112
    %p121 = scmp.eq.s32.totalorder %s15, 1
    %p122 = por %p120, %p121
    %p123 = scmp.ne.s32.totalorder %s112, %s113
    %p124 = scmp.eq.s32.totalorder %s15, 0
    %p125 = por %p123, %p124
    %p126 = scmp.ne.s32.totalorder %s112, %s113
    %p127 = scmp.eq.s32.totalorder %s16, 1
    %p128 = por %p126, %p127
    %p130 = scmp.ne.s32.totalorder %s113, %s129
    %p131 = scmp.eq.s32.totalorder %s16, 0
    %p132 = por %p130, %p131
    %p133 = scmp.le.s32.totalorder 1, %s10
    %p134 = scmp.lt.s32.totalorder %s10, 3
    %p135 = pnand %p133, %p134
    %p136 = pneg %p135
    // Predicated region
    $region9: #{discriminator_forward.4} parent=5 // pred_check
      _
    $region10: #{discriminator_forward.4} parent=5 // pred_check_branch
      %138 = sbr.rel (%p135) target = $region12
    $region11: #{discriminator_forward.4} parent=5 // pred_region
      %s139 = ssub.s32 %s10, 1
      // Predicated region
      $region13: #{discriminator_forward.4} parent=11 // pred_check
        %p140 = pneg %p57
      $region14: #{discriminator_forward.4} parent=11 // pred_check_branch
        %142 = sbr.rel (%p140) target = $region16
      $region15: #{discriminator_forward.4} parent=11 // pred_region
        _
      $region16: #{discriminator_forward.4} parent=11 // pred_fallthru
        _
      // Predicated region
      $region17: #{discriminator_forward.4} parent=11 // pred_check
        %p143 = pneg %p78
      $region18: #{discriminator_forward.4} parent=11 // pred_check_branch
        %145 = sbr.rel (%p143) target = $region20
      $region19: #{discriminator_forward.4} parent=11 // pred_region
        _
      $region20: #{discriminator_forward.4} parent=11 // pred_fallthru
        _
      // Predicated region
      $region21: #{discriminator_forward.4} parent=11 // pred_check
        %p146 = pneg %p99
      $region22: #{discriminator_forward.4} parent=11 // pred_check_branch
        %148 = sbr.rel (%p146) target = $region24
      $region23: #{discriminator_forward.4} parent=11 // pred_region
        _
      $region24: #{discriminator_forward.4} parent=11 // pred_fallthru
        _
    $region12: #{discriminator_forward.4} parent=5 // pred_fallthru
      _
    %p149 = scmp.lt.s32.totalorder %s10, 2
    // Predicated region
    $region25: #{discriminator_forward.4} parent=5 // pred_check
      %p150 = pneg %p149
    $region26: #{discriminator_forward.4} parent=5 // pred_check_branch
      %152 = sbr.rel (%p150) target = $region28
    $region27: #{discriminator_forward.4} parent=5 // pred_region
      // Predicated region
      $region29: #{discriminator_forward.4} parent=27 // pred_check
        %p153 = pneg %p30
      $region30: #{discriminator_forward.4} parent=27 // pred_check_branch
        %155 = sbr.rel (%p153) target = $region32
      $region31: #{discriminator_forward.4} parent=27 // pred_region
        %p156 = scmp.lt.s32.totalorder %s10, 1
        %s157 = scalar_select %p156, %s10, 1
        %s158 = smul.addr %s157, 16
        %s159 = smul.addr %s158, 8
        %s160 = scalar_lea.vmem %s0, %s159
      $region32: #{discriminator_forward.4} parent=27 // pred_fallthru
        _
    $region28: #{discriminator_forward.4} parent=5 // pred_fallthru
      _
    %p161 = scmp.le.s32.totalorder 1, %s10
    %p162 = scmp.lt.s32.totalorder %s10, 3
    %p163 = pnand %p161, %p162
    %p164 = pneg %p163
    // Predicated region
    $region33: #{discriminator_forward.4} parent=5 // pred_check
      _
    $region34: #{discriminator_forward.4} parent=5 // pred_check_branch
      %166 = sbr.rel (%p163) target = $region36
    $region35: #{discriminator_forward.4} parent=5 // pred_region
      %s167 = ssub.s32 %s10, 1
      %p168 = scmp.lt.s32.totalorder %s15, 1
      %s169 = scalar_select %p168, %s15, 1
      %s170 = smul.addr %s169, 16
      %s171 = smul.addr %s170, 8
      %s172 = scalar_lea.vmem %s0, %s171
      %p173 = pneg %p36
      %p174 = pneg %p33
      %p175 = pneg %p57
      %p176 = pneg %p54
      %p177 = pneg %p78
      %p178 = pneg %p75
      %p179 = pneg %p99
      %p180 = pneg %p96
      %p181 = pneg %p125
      %p182 = pneg %p122
      %p183 = scmp.lt.s32.totalorder %s15, 1
      %s184 = scalar_select %p183, %s15, 1
      %s185 = smul.addr %s184, 2
      %s186 = smul.addr %s185, 8
      %s187 = scalar_lea.vmem %s4, %s186
      %p188 = scmp.lt.s32.totalorder %s15, 1
      %s189 = scalar_select %p188, %s15, 1
      %s190 = smul.addr %s189, 16
      %s191 = smul.addr %s190, 8
      %s192 = scalar_lea.vmem %s0, %s191
      %p193 = scmp.lt.s32.totalorder %s15, 1
      %s194 = scalar_select %p193, %s15, 1
      %s195 = smul.addr %s194, 2
      %s196 = smul.addr %s195, 8
      %s197 = scalar_lea.vmem %s4, %s196
      %v199 = vld [vmem:[%s192] sm:$0xf]
      %v200 = vld [vmem:[%s192 + $0x8] sm:$0xf]
      %v201 = vld [vmem:[%s192 + $0x10] sm:$0xf]
      %v202 = vld [vmem:[%s192 + $0x18] sm:$0xf]
      %203 = vst [vmem:[#allocation2] sm:$0xf] %v199
      %204 = vst [vmem:[#allocation2 + $0x8] sm:$0xf] %v200
      %205 = vst [vmem:[#allocation2 + $0x10] sm:$0xf] %v201
      %206 = vst [vmem:[#allocation2 + $0x18] sm:$0xf] %v202
      %v207 = vld [vmem:[%s192] sm:$0xe0]
      %v208 = vld [vmem:[%s192 + $0x8] sm:$0xe0]
      %v209 = vld [vmem:[%s192 + $0x10] sm:$0xe0]
      %v210 = vld [vmem:[%s192 + $0x18] sm:$0xe0]
      %v211 = vld [vmem:[%s192 + $0x20] sm:$0x1]
      %v212 = vld [vmem:[%s192 + $0x28] sm:$0x1]
      %v213 = vld [vmem:[%s192 + $0x30] sm:$0x1]
      %v214 = vld [vmem:[%s192 + $0x38] sm:$0x1]
      %vm223 = vcmask 1046528
      %v224 = vrot.slane %v207, 1
      %v225 = vrot.slane %v211, 1
      %v226 = vsel %vm223, %v224, %v225
      %v227 = vrot.slane %v208, 1
      %v228 = vrot.slane %v212, 1
      %v229 = vsel %vm223, %v227, %v228
      %v230 = vrot.slane %v209, 1
      %v231 = vrot.slane %v213, 1
      %v232 = vsel %vm223, %v230, %v231
      %v233 = vrot.slane %v210, 1
      %v234 = vrot.slane %v214, 1
      %v235 = vsel %vm223, %v233, %v234
      %240 = vst [vmem:[#allocation2] sm:$0xf0] %v226
      %241 = vst [vmem:[#allocation2 + $0x8] sm:$0xf0] %v229
      %242 = vst [vmem:[#allocation2 + $0x10] sm:$0xf0] %v232
      %243 = vst [vmem:[#allocation2 + $0x18] sm:$0xf0] %v235
      %v244 = vld [vmem:[%s192 + $0x20] sm:$0x3c]
      %v245 = vld [vmem:[%s192 + $0x28] sm:$0x3c]
      %v246 = vld [vmem:[%s192 + $0x30] sm:$0x3c]
      %v247 = vld [vmem:[%s192 + $0x38] sm:$0x3c]
      %v252 = vrot.slane %v244, 2
      %v253 = vrot.slane %v245, 2
      %v254 = vrot.slane %v246, 2
      %v255 = vrot.slane %v247, 2
      %260 = vst [vmem:[#allocation2 + $0x80] sm:$0xf] %v252
      %261 = vst [vmem:[#allocation2 + $0x88] sm:$0xf] %v253
      %262 = vst [vmem:[#allocation2 + $0x90] sm:$0xf] %v254
      %263 = vst [vmem:[#allocation2 + $0x98] sm:$0xf] %v255
      %v264 = vld [vmem:[%s192 + $0x20] sm:$0x80]
      %v265 = vld [vmem:[%s192 + $0x28] sm:$0x80]
      %v266 = vld [vmem:[%s192 + $0x30] sm:$0x80]
      %v267 = vld [vmem:[%s192 + $0x38] sm:$0x80]
      %v268 = vld [vmem:[%s192 + $0x40] sm:$0x7]
      %v269 = vld [vmem:[%s192 + $0x48] sm:$0x7]
      %v270 = vld [vmem:[%s192 + $0x50] sm:$0x7]
      %v271 = vld [vmem:[%s192 + $0x58] sm:$0x7]
      %vm280 = vcmask 1044480
      %v281 = vrot.slane %v264, 3
      %v282 = vrot.slane %v268, 3
      %v283 = vsel %vm280, %v281, %v282
      %v284 = vrot.slane %v265, 3
      %v285 = vrot.slane %v269, 3
      %v286 = vsel %vm280, %v284, %v285
      %v287 = vrot.slane %v266, 3
      %v288 = vrot.slane %v270, 3
      %v289 = vsel %vm280, %v287, %v288
      %v290 = vrot.slane %v267, 3
      %v291 = vrot.slane %v271, 3
      %v292 = vsel %vm280, %v290, %v291
      %297 = vst [vmem:[#allocation2 + $0x80] sm:$0xf0] %v283
      %298 = vst [vmem:[#allocation2 + $0x88] sm:$0xf0] %v286
      %299 = vst [vmem:[#allocation2 + $0x90] sm:$0xf0] %v289
      %300 = vst [vmem:[#allocation2 + $0x98] sm:$0xf0] %v292
      %v301 = vld [vmem:[%s192] sm:$0x1e]
      %v302 = vld [vmem:[%s192 + $0x8] sm:$0x1e]
      %v303 = vld [vmem:[%s192 + $0x10] sm:$0x1e]
      %v304 = vld [vmem:[%s192 + $0x18] sm:$0x1e]
      %v309 = vrot.slane %v301, 1
      %v310 = vrot.slane %v302, 1
      %v311 = vrot.slane %v303, 1
      %v312 = vrot.slane %v304, 1
      %317 = vst [vmem:[#allocation2 + $0x20] sm:$0xf] %v309
      %318 = vst [vmem:[#allocation2 + $0x28] sm:$0xf] %v310
      %319 = vst [vmem:[#allocation2 + $0x30] sm:$0xf] %v311
      %320 = vst [vmem:[#allocation2 + $0x38] sm:$0xf] %v312
      %v321 = vld [vmem:[%s192] sm:$0xc0]
      %v322 = vld [vmem:[%s192 + $0x8] sm:$0xc0]
      %v323 = vld [vmem:[%s192 + $0x10] sm:$0xc0]
      %v324 = vld [vmem:[%s192 + $0x18] sm:$0xc0]
      %v325 = vld [vmem:[%s192 + $0x20] sm:$0x3]
      %v326 = vld [vmem:[%s192 + $0x28] sm:$0x3]
      %v327 = vld [vmem:[%s192 + $0x30] sm:$0x3]
      %v328 = vld [vmem:[%s192 + $0x38] sm:$0x3]
      %vm337 = vcmask 1045504
      %v338 = vrot.slane %v321, 2
      %v339 = vrot.slane %v325, 2
      %v340 = vsel %vm337, %v338, %v339
      %v341 = vrot.slane %v322, 2
      %v342 = vrot.slane %v326, 2
      %v343 = vsel %vm337, %v341, %v342
      %v344 = vrot.slane %v323, 2
      %v345 = vrot.slane %v327, 2
      %v346 = vsel %vm337, %v344, %v345
      %v347 = vrot.slane %v324, 2
      %v348 = vrot.slane %v328, 2
      %v349 = vsel %vm337, %v347, %v348
      %354 = vst [vmem:[#allocation2 + $0x20] sm:$0xf0] %v340
      %355 = vst [vmem:[#allocation2 + $0x28] sm:$0xf0] %v343
      %356 = vst [vmem:[#allocation2 + $0x30] sm:$0xf0] %v346
      %357 = vst [vmem:[#allocation2 + $0x38] sm:$0xf0] %v349
      %v358 = vld [vmem:[%s192 + $0x20] sm:$0x78]
      %v359 = vld [vmem:[%s192 + $0x28] sm:$0x78]
      %v360 = vld [vmem:[%s192 + $0x30] sm:$0x78]
      %v361 = vld [vmem:[%s192 + $0x38] sm:$0x78]
      %v366 = vrot.slane %v358, 3
      %v367 = vrot.slane %v359, 3
      %v368 = vrot.slane %v360, 3
      %v369 = vrot.slane %v361, 3
      %374 = vst [vmem:[#allocation2 + $0xa0] sm:$0xf] %v366
      %375 = vst [vmem:[#allocation2 + $0xa8] sm:$0xf] %v367
      %376 = vst [vmem:[#allocation2 + $0xb0] sm:$0xf] %v368
      %377 = vst [vmem:[#allocation2 + $0xb8] sm:$0xf] %v369
      %v378 = vld [vmem:[%s192 + $0x40] sm:$0xf]
      %v379 = vld [vmem:[%s192 + $0x48] sm:$0xf]
      %v380 = vld [vmem:[%s192 + $0x50] sm:$0xf]
      %v381 = vld [vmem:[%s192 + $0x58] sm:$0xf]
      %v386 = vrot.slane %v378, 4
      %v387 = vrot.slane %v379, 4
      %v388 = vrot.slane %v380, 4
      %v389 = vrot.slane %v381, 4
      %394 = vst [vmem:[#allocation2 + $0xa0] sm:$0xf0] %v386
      %395 = vst [vmem:[#allocation2 + $0xa8] sm:$0xf0] %v387
      %396 = vst [vmem:[#allocation2 + $0xb0] sm:$0xf0] %v388
      %397 = vst [vmem:[#allocation2 + $0xb8] sm:$0xf0] %v389
      %v398 = vld [vmem:[%s192] sm:$0xe0]
      %v399 = vld [vmem:[%s192 + $0x8] sm:$0xe0]
      %v400 = vld [vmem:[%s192 + $0x10] sm:$0xe0]
      %v401 = vld [vmem:[%s192 + $0x18] sm:$0xe0]
      %v402 = vld [vmem:[%s192 + $0x20] sm:$0x1]
      %v403 = vld [vmem:[%s192 + $0x28] sm:$0x1]
      %v404 = vld [vmem:[%s192 + $0x30] sm:$0x1]
      %v405 = vld [vmem:[%s192 + $0x38] sm:$0x1]
      %vm414 = vcmask 1042432
      %v415 = vrot.slane %v398, 5
      %v416 = vrot.slane %v402, 5
      %v417 = vsel %vm414, %v415, %v416
      %v418 = vrot.slane %v399, 5
      %v419 = vrot.slane %v403, 5
      %v420 = vsel %vm414, %v418, %v419
      %v421 = vrot.slane %v400, 5
      %v422 = vrot.slane %v404, 5
      %v423 = vsel %vm414, %v421, %v422
      %v424 = vrot.slane %v401, 5
      %v425 = vrot.slane %v405, 5
      %v426 = vsel %vm414, %v424, %v425
      %431 = vst [vmem:[#allocation2 + $0x40] sm:$0xf] %v417
      %432 = vst [vmem:[#allocation2 + $0x48] sm:$0xf] %v420
      %433 = vst [vmem:[#allocation2 + $0x50] sm:$0xf] %v423
      %434 = vst [vmem:[#allocation2 + $0x58] sm:$0xf] %v426
      %v435 = vld [vmem:[%s192 + $0x20] sm:$0x3c]
      %v436 = vld [vmem:[%s192 + $0x28] sm:$0x3c]
      %v437 = vld [vmem:[%s192 + $0x30] sm:$0x3c]
      %v438 = vld [vmem:[%s192 + $0x38] sm:$0x3c]
      %v443 = vrot.slane %v435, 6
      %v444 = vrot.slane %v436, 6
      %v445 = vrot.slane %v437, 6
      %v446 = vrot.slane %v438, 6
      %451 = vst [vmem:[#allocation2 + $0x40] sm:$0xf0] %v443
      %452 = vst [vmem:[#allocation2 + $0x48] sm:$0xf0] %v444
      %453 = vst [vmem:[#allocation2 + $0x50] sm:$0xf0] %v445
      %454 = vst [vmem:[#allocation2 + $0x58] sm:$0xf0] %v446
      %v455 = vld [vmem:[%s192 + $0x20] sm:$0x80]
      %v456 = vld [vmem:[%s192 + $0x28] sm:$0x80]
      %v457 = vld [vmem:[%s192 + $0x30] sm:$0x80]
      %v458 = vld [vmem:[%s192 + $0x38] sm:$0x80]
      %v459 = vld [vmem:[%s192 + $0x40] sm:$0x7]
      %v460 = vld [vmem:[%s192 + $0x48] sm:$0x7]
      %v461 = vld [vmem:[%s192 + $0x50] sm:$0x7]
      %v462 = vld [vmem:[%s192 + $0x58] sm:$0x7]
      %vm471 = vcmask 1040384
      %v472 = vrot.slane %v455, 7
      %v473 = vrot.slane %v459, 7
      %v474 = vsel %vm471, %v472, %v473
      %v475 = vrot.slane %v456, 7
      %v476 = vrot.slane %v460, 7
      %v477 = vsel %vm471, %v475, %v476
      %v478 = vrot.slane %v457, 7
      %v479 = vrot.slane %v461, 7
      %v480 = vsel %vm471, %v478, %v479
      %v481 = vrot.slane %v458, 7
      %v482 = vrot.slane %v462, 7
      %v483 = vsel %vm471, %v481, %v482
      %488 = vst [vmem:[#allocation2 + $0xc0] sm:$0xf] %v474
      %489 = vst [vmem:[#allocation2 + $0xc8] sm:$0xf] %v477
      %490 = vst [vmem:[#allocation2 + $0xd0] sm:$0xf] %v480
      %491 = vst [vmem:[#allocation2 + $0xd8] sm:$0xf] %v483
      %v492 = vld [vmem:[%s192 + $0x40] sm:$0xf0]
      %v493 = vld [vmem:[%s192 + $0x48] sm:$0xf0]
      %v494 = vld [vmem:[%s192 + $0x50] sm:$0xf0]
      %v495 = vld [vmem:[%s192 + $0x58] sm:$0xf0]
      %496 = vst [vmem:[#allocation2 + $0xc0] sm:$0xf0] %v492
      %497 = vst [vmem:[#allocation2 + $0xc8] sm:$0xf0] %v493
      %498 = vst [vmem:[#allocation2 + $0xd0] sm:$0xf0] %v494
      %499 = vst [vmem:[#allocation2 + $0xd8] sm:$0xf0] %v495
      %v500 = vld [vmem:[%s192] sm:$0xc0]
      %v501 = vld [vmem:[%s192 + $0x8] sm:$0xc0]
      %v502 = vld [vmem:[%s192 + $0x10] sm:$0xc0]
      %v503 = vld [vmem:[%s192 + $0x18] sm:$0xc0]
      %v504 = vld [vmem:[%s192 + $0x20] sm:$0x3]
      %v505 = vld [vmem:[%s192 + $0x28] sm:$0x3]
      %v506 = vld [vmem:[%s192 + $0x30] sm:$0x3]
      %v507 = vld [vmem:[%s192 + $0x38] sm:$0x3]
      %vm516 = vcmask 1041408
      %v517 = vrot.slane %v500, 6
      %v518 = vrot.slane %v504, 6
      %v519 = vsel %vm516, %v517, %v518
      %v520 = vrot.slane %v501, 6
      %v521 = vrot.slane %v505, 6
      %v522 = vsel %vm516, %v520, %v521
      %v523 = vrot.slane %v502, 6
      %v524 = vrot.slane %v506, 6
      %v525 = vsel %vm516, %v523, %v524
      %v526 = vrot.slane %v503, 6
      %v527 = vrot.slane %v507, 6
      %v528 = vsel %vm516, %v526, %v527
      %533 = vst [vmem:[#allocation2 + $0x60] sm:$0xf] %v519
      %534 = vst [vmem:[#allocation2 + $0x68] sm:$0xf] %v522
      %535 = vst [vmem:[#allocation2 + $0x70] sm:$0xf] %v525
      %536 = vst [vmem:[#allocation2 + $0x78] sm:$0xf] %v528
      %v537 = vld [vmem:[%s192 + $0x20] sm:$0x78]
      %v538 = vld [vmem:[%s192 + $0x28] sm:$0x78]
      %v539 = vld [vmem:[%s192 + $0x30] sm:$0x78]
      %v540 = vld [vmem:[%s192 + $0x38] sm:$0x78]
      %v545 = vrot.slane %v537, 7
      %v546 = vrot.slane %v538, 7
      %v547 = vrot.slane %v539, 7
      %v548 = vrot.slane %v540, 7
      %553 = vst [vmem:[#allocation2 + $0x60] sm:$0xf0] %v545
      %554 = vst [vmem:[#allocation2 + $0x68] sm:$0xf0] %v546
      %555 = vst [vmem:[#allocation2 + $0x70] sm:$0xf0] %v547
      %556 = vst [vmem:[#allocation2 + $0x78] sm:$0xf0] %v548
      %v557 = vld [vmem:[%s192 + $0x40] sm:$0xf]
      %v558 = vld [vmem:[%s192 + $0x48] sm:$0xf]
      %v559 = vld [vmem:[%s192 + $0x50] sm:$0xf]
      %v560 = vld [vmem:[%s192 + $0x58] sm:$0xf]
      %561 = vst [vmem:[#allocation2 + $0xe0] sm:$0xf] %v557
      %562 = vst [vmem:[#allocation2 + $0xe8] sm:$0xf] %v558
      %563 = vst [vmem:[#allocation2 + $0xf0] sm:$0xf] %v559
      %564 = vst [vmem:[#allocation2 + $0xf8] sm:$0xf] %v560
      %v565 = vld [vmem:[%s192 + $0x40] sm:$0xe0]
      %v566 = vld [vmem:[%s192 + $0x48] sm:$0xe0]
      %v567 = vld [vmem:[%s192 + $0x50] sm:$0xe0]
      %v568 = vld [vmem:[%s192 + $0x58] sm:$0xe0]
      %v569 = vld [vmem:[%s192 + $0x60] sm:$0x1]
      %v570 = vld [vmem:[%s192 + $0x68] sm:$0x1]
      %v571 = vld [vmem:[%s192 + $0x70] sm:$0x1]
      %v572 = vld [vmem:[%s192 + $0x78] sm:$0x1]
      %v581 = vrot.slane %v565, 1
      %v582 = vrot.slane %v569, 1
      %v583 = vsel %vm223, %v581, %v582
      %v584 = vrot.slane %v566, 1
      %v585 = vrot.slane %v570, 1
      %v586 = vsel %vm223, %v584, %v585
      %v587 = vrot.slane %v567, 1
      %v588 = vrot.slane %v571, 1
      %v589 = vsel %vm223, %v587, %v588
      %v590 = vrot.slane %v568, 1
      %v591 = vrot.slane %v572, 1
      %v592 = vsel %vm223, %v590, %v591
      %597 = vst [vmem:[#allocation2 + $0xe0] sm:$0xf0] %v583
      %598 = vst [vmem:[#allocation2 + $0xe8] sm:$0xf0] %v586
      %599 = vst [vmem:[#allocation2 + $0xf0] sm:$0xf0] %v589
      %600 = vst [vmem:[#allocation2 + $0xf8] sm:$0xf0] %v592
      %v601 = vld [vmem:[#allocation2] sm:$0xff]
      %v602 = vld [vmem:[#allocation2 + $0x8] sm:$0xff]
      %v603 = vld [vmem:[#allocation2 + $0x10] sm:$0xff]
      %v604 = vld [vmem:[#allocation2 + $0x18] sm:$0xff]
      %v605 = vld [vmem:[#allocation2 + $0x20] sm:$0xff]
      %v606 = vld [vmem:[#allocation2 + $0x28] sm:$0xff]
      %v607 = vld [vmem:[#allocation2 + $0x30] sm:$0xff]
      %v608 = vld [vmem:[#allocation2 + $0x38] sm:$0xff]
      %v609 = vld [vmem:[#allocation2 + $0x40] sm:$0xff]
      %v610 = vld [vmem:[#allocation2 + $0x48] sm:$0xff]
      %v611 = vld [vmem:[#allocation2 + $0x50] sm:$0xff]
      %v612 = vld [vmem:[#allocation2 + $0x58] sm:$0xff]
      %v613 = vld [vmem:[#allocation2 + $0x60] sm:$0xff]
      %v614 = vld [vmem:[#allocation2 + $0x68] sm:$0xff]
      %v615 = vld [vmem:[#allocation2 + $0x70] sm:$0xff]
      %v616 = vld [vmem:[#allocation2 + $0x78] sm:$0xff]
      %v617 = vld [vmem:[#allocation2 + $0x80] sm:$0xff]
      %v618 = vld [vmem:[#allocation2 + $0x88] sm:$0xff]
      %v619 = vld [vmem:[#allocation2 + $0x90] sm:$0xff]
      %v620 = vld [vmem:[#allocation2 + $0x98] sm:$0xff]
      %v621 = vld [vmem:[#allocation2 + $0xa0] sm:$0xff]
      %v622 = vld [vmem:[#allocation2 + $0xa8] sm:$0xff]
      %v623 = vld [vmem:[#allocation2 + $0xb0] sm:$0xff]
      %v624 = vld [vmem:[#allocation2 + $0xb8] sm:$0xff]
      %v625 = vld [vmem:[#allocation2 + $0xc0] sm:$0xff]
      %v626 = vld [vmem:[#allocation2 + $0xc8] sm:$0xff]
      %v627 = vld [vmem:[#allocation2 + $0xd0] sm:$0xff]
      %v628 = vld [vmem:[#allocation2 + $0xd8] sm:$0xff]
      %v629 = vld [vmem:[#allocation2 + $0xe0] sm:$0xff]
      %v630 = vld [vmem:[#allocation2 + $0xe8] sm:$0xff]
      %v631 = vld [vmem:[#allocation2 + $0xf0] sm:$0xff]
      %v632 = vld [vmem:[#allocation2 + $0xf8] sm:$0xff]
      %v633 = vpack.c.bf16 %v617, %v601
      %v634 = vpack.c.bf16 %v618, %v602
      %v635 = vpack.c.bf16 %v619, %v603
      %v636 = vpack.c.bf16 %v620, %v604
      %v637 = vpack.c.bf16 %v621, %v605
      %v638 = vpack.c.bf16 %v622, %v606
      %v639 = vpack.c.bf16 %v623, %v607
      %v640 = vpack.c.bf16 %v624, %v608
      %v641 = vpack.c.bf16 %v625, %v609
      %v642 = vpack.c.bf16 %v626, %v610
      %v643 = vpack.c.bf16 %v627, %v611
      %v644 = vpack.c.bf16 %v628, %v612
      %v645 = vpack.c.bf16 %v629, %v613
      %v646 = vpack.c.bf16 %v630, %v614
      %v647 = vpack.c.bf16 %v631, %v615
      %v648 = vpack.c.bf16 %v632, %v616
      %v649 = vld [vmem:[%s1] sm:$0xf]
      %v650 = vld [vmem:[%s1 + $0x4] sm:$0xf]
      %v651 = vld [vmem:[%s1 + $0x8] sm:$0xf]
      %v652 = vld [vmem:[%s1 + $0xc] sm:$0xf]
      %v653 = vld [vmem:[%s1 + $0x10] sm:$0xf]
      %v654 = vld [vmem:[%s1 + $0x14] sm:$0xf]
      %v655 = vld [vmem:[%s1 + $0x18] sm:$0xf]
      %v656 = vld [vmem:[%s1 + $0x1c] sm:$0xf]
      %v657 = vld [vmem:[%s1 + $0x20] sm:$0xf]
      %v658 = vld [vmem:[%s1 + $0x24] sm:$0xf]
      %v659 = vld [vmem:[%s1 + $0x28] sm:$0xf]
      %v660 = vld [vmem:[%s1 + $0x2c] sm:$0xf]
      %v661 = vld [vmem:[%s1 + $0x30] sm:$0xf]
      %v662 = vld [vmem:[%s1 + $0x34] sm:$0xf]
      %v663 = vld [vmem:[%s1 + $0x38] sm:$0xf]
      %v664 = vld [vmem:[%s1 + $0x3c] sm:$0xf]
      %v665 = vld [vmem:[%s1 + $0x40] sm:$0xf]
      %v666 = vld [vmem:[%s1 + $0x44] sm:$0xf]
      %v667 = vld [vmem:[%s1 + $0x48] sm:$0xf]
      %v668 = vld [vmem:[%s1 + $0x4c] sm:$0xf]
      %v669 = vld [vmem:[%s1 + $0x50] sm:$0xf]
      %v670 = vld [vmem:[%s1 + $0x54] sm:$0xf]
      %v671 = vld [vmem:[%s1 + $0x58] sm:$0xf]
      %v672 = vld [vmem:[%s1 + $0x5c] sm:$0xf]
      %v673 = vld [vmem:[%s1 + $0x60] sm:$0xf]
      %v674 = vld [vmem:[%s1 + $0x64] sm:$0xf]
      %v675 = vld [vmem:[%s1 + $0x68] sm:$0xf]
      %v676 = vld [vmem:[%s1 + $0x6c] sm:$0xf]
      %v677 = vld [vmem:[%s1 + $0x70] sm:$0xf]
      %v678 = vld [vmem:[%s1 + $0x74] sm:$0xf]
      %v679 = vld [vmem:[%s1 + $0x78] sm:$0xf]
      %v680 = vld [vmem:[%s1 + $0x7c] sm:$0xf]
      %v681 = vld [vmem:[%s1 + $0x80] sm:$0xf]
      %v682 = vld [vmem:[%s1 + $0x84] sm:$0xf]
      %v683 = vld [vmem:[%s1 + $0x88] sm:$0xf]
      %v684 = vld [vmem:[%s1 + $0x8c] sm:$0xf]
      %v685 = vld [vmem:[%s1 + $0x90] sm:$0xf]
      %v686 = vld [vmem:[%s1 + $0x94] sm:$0xf]
      %v687 = vld [vmem:[%s1 + $0x98] sm:$0xf]
      %v688 = vld [vmem:[%s1 + $0x9c] sm:$0xf]
      %v689 = vld [vmem:[%s1 + $0xa0] sm:$0xf]
      %v690 = vld [vmem:[%s1 + $0xa4] sm:$0xf]
      %v691 = vld [vmem:[%s1 + $0xa8] sm:$0xf]
      %v692 = vld [vmem:[%s1 + $0xac] sm:$0xf]
      %v693 = vld [vmem:[%s1 + $0xb0] sm:$0xf]
      %v694 = vld [vmem:[%s1 + $0xb4] sm:$0xf]
      %v695 = vld [vmem:[%s1 + $0xb8] sm:$0xf]
      %v696 = vld [vmem:[%s1 + $0xbc] sm:$0xf]
      %v697 = vld [vmem:[%s1 + $0xc0] sm:$0xf]
      %v698 = vld [vmem:[%s1 + $0xc4] sm:$0xf]
      %v699 = vld [vmem:[%s1 + $0xc8] sm:$0xf]
      %v700 = vld [vmem:[%s1 + $0xcc] sm:$0xf]
      %v701 = vld [vmem:[%s1 + $0xd0] sm:$0xf]
      %v702 = vld [vmem:[%s1 + $0xd4] sm:$0xf]
      %v703 = vld [vmem:[%s1 + $0xd8] sm:$0xf]
      %v704 = vld [vmem:[%s1 + $0xdc] sm:$0xf]
      %v705 = vld [vmem:[%s1 + $0xe0] sm:$0xf]
      %v706 = vld [vmem:[%s1 + $0xe4] sm:$0xf]
      %v707 = vld [vmem:[%s1 + $0xe8] sm:$0xf]
      %v708 = vld [vmem:[%s1 + $0xec] sm:$0xf]
      %v709 = vld [vmem:[%s1 + $0xf0] sm:$0xf]
      %v710 = vld [vmem:[%s1 + $0xf4] sm:$0xf]
      %v711 = vld [vmem:[%s1 + $0xf8] sm:$0xf]
      %v712 = vld [vmem:[%s1 + $0xfc] sm:$0xf]
      %v713 = vld [vmem:[%s1 + $0x100] sm:$0xf]
      %v714 = vld [vmem:[%s1 + $0x104] sm:$0xf]
      %v715 = vld [vmem:[%s1 + $0x108] sm:$0xf]
      %v716 = vld [vmem:[%s1 + $0x10c] sm:$0xf]
      %v717 = vld [vmem:[%s1 + $0x110] sm:$0xf]
      %v718 = vld [vmem:[%s1 + $0x114] sm:$0xf]
      %v719 = vld [vmem:[%s1 + $0x118] sm:$0xf]
      %v720 = vld [vmem:[%s1 + $0x11c] sm:$0xf]
      %v721 = vld [vmem:[%s1 + $0x120] sm:$0xf]
      %v722 = vld [vmem:[%s1 + $0x124] sm:$0xf]
      %v723 = vld [vmem:[%s1 + $0x128] sm:$0xf]
      %v724 = vld [vmem:[%s1 + $0x12c] sm:$0xf]
      %v725 = vld [vmem:[%s1 + $0x130] sm:$0xf]
      %v726 = vld [vmem:[%s1 + $0x134] sm:$0xf]
      %v727 = vld [vmem:[%s1 + $0x138] sm:$0xf]
      %v728 = vld [vmem:[%s1 + $0x13c] sm:$0xf]
      %v729 = vld [vmem:[%s1 + $0x140] sm:$0xf]
      %v730 = vld [vmem:[%s1 + $0x144] sm:$0xf]
      %v731 = vld [vmem:[%s1 + $0x148] sm:$0xf]
      %v732 = vld [vmem:[%s1 + $0x14c] sm:$0xf]
      %v733 = vld [vmem:[%s1 + $0x150] sm:$0xf]
      %v734 = vld [vmem:[%s1 + $0x154] sm:$0xf]
      %v735 = vld [vmem:[%s1 + $0x158] sm:$0xf]
      %v736 = vld [vmem:[%s1 + $0x15c] sm:$0xf]
      %v737 = vld [vmem:[%s1 + $0x160] sm:$0xf]
      %v738 = vld [vmem:[%s1 + $0x164] sm:$0xf]
      %v739 = vld [vmem:[%s1 + $0x168] sm:$0xf]
      %v740 = vld [vmem:[%s1 + $0x16c] sm:$0xf]
      %v741 = vld [vmem:[%s1 + $0x170] sm:$0xf]
      %v742 = vld [vmem:[%s1 + $0x174] sm:$0xf]
      %v743 = vld [vmem:[%s1 + $0x178] sm:$0xf]
      %v744 = vld [vmem:[%s1 + $0x17c] sm:$0xf]
      %v745 = vld [vmem:[%s1 + $0x180] sm:$0xf]
      %v746 = vld [vmem:[%s1 + $0x184] sm:$0xf]
      %v747 = vld [vmem:[%s1 + $0x188] sm:$0xf]
      %v748 = vld [vmem:[%s1 + $0x18c] sm:$0xf]
      %v749 = vld [vmem:[%s1 + $0x190] sm:$0xf]
      %v750 = vld [vmem:[%s1 + $0x194] sm:$0xf]
      %v751 = vld [vmem:[%s1 + $0x198] sm:$0xf]
      %v752 = vld [vmem:[%s1 + $0x19c] sm:$0xf]
      %v753 = vld [vmem:[%s1 + $0x1a0] sm:$0xf]
      %v754 = vld [vmem:[%s1 + $0x1a4] sm:$0xf]
      %v755 = vld [vmem:[%s1 + $0x1a8] sm:$0xf]
      %v756 = vld [vmem:[%s1 + $0x1ac] sm:$0xf]
      %v757 = vld [vmem:[%s1 + $0x1b0] sm:$0xf]
      %v758 = vld [vmem:[%s1 + $0x1b4] sm:$0xf]
      %v759 = vld [vmem:[%s1 + $0x1b8] sm:$0xf]
      %v760 = vld [vmem:[%s1 + $0x1bc] sm:$0xf]
      %v761 = vld [vmem:[%s1 + $0x1c0] sm:$0xf]
      %v762 = vld [vmem:[%s1 + $0x1c4] sm:$0xf]
      %v763 = vld [vmem:[%s1 + $0x1c8] sm:$0xf]
      %v764 = vld [vmem:[%s1 + $0x1cc] sm:$0xf]
      %v765 = vld [vmem:[%s1 + $0x1d0] sm:$0xf]
      %v766 = vld [vmem:[%s1 + $0x1d4] sm:$0xf]
      %v767 = vld [vmem:[%s1 + $0x1d8] sm:$0xf]
      %v768 = vld [vmem:[%s1 + $0x1dc] sm:$0xf]
      %v769 = vld [vmem:[%s1 + $0x1e0] sm:$0xf]
      %v770 = vld [vmem:[%s1 + $0x1e4] sm:$0xf]
      %v771 = vld [vmem:[%s1 + $0x1e8] sm:$0xf]
      %v772 = vld [vmem:[%s1 + $0x1ec] sm:$0xf]
      %v773 = vld [vmem:[%s1 + $0x1f0] sm:$0xf]
      %v774 = vld [vmem:[%s1 + $0x1f4] sm:$0xf]
      %v775 = vld [vmem:[%s1 + $0x1f8] sm:$0xf]
      %v776 = vld [vmem:[%s1 + $0x1fc] sm:$0xf]
      %v777 = vld [vmem:[%s1 + $0x200] sm:$0xf]
      %v778 = vld [vmem:[%s1 + $0x204] sm:$0xf]
      %v779 = vld [vmem:[%s1 + $0x208] sm:$0xf]
      %v780 = vld [vmem:[%s1 + $0x20c] sm:$0xf]
      %v781 = vld [vmem:[%s1 + $0x210] sm:$0xf]
      %v782 = vld [vmem:[%s1 + $0x214] sm:$0xf]
      %v783 = vld [vmem:[%s1 + $0x218] sm:$0xf]
      %v784 = vld [vmem:[%s1 + $0x21c] sm:$0xf]
      %v785 = vld [vmem:[%s1 + $0x220] sm:$0xf]
      %v786 = vld [vmem:[%s1 + $0x224] sm:$0xf]
      %v787 = vld [vmem:[%s1 + $0x228] sm:$0xf]
      %v788 = vld [vmem:[%s1 + $0x22c] sm:$0xf]
      %v789 = vld [vmem:[%s1 + $0x230] sm:$0xf]
      %v790 = vld [vmem:[%s1 + $0x234] sm:$0xf]
      %v791 = vld [vmem:[%s1 + $0x238] sm:$0xf]
      %v792 = vld [vmem:[%s1 + $0x23c] sm:$0xf]
      %v793 = vld [vmem:[%s1 + $0x240] sm:$0xf]
      %v794 = vld [vmem:[%s1 + $0x244] sm:$0xf]
      %v795 = vld [vmem:[%s1 + $0x248] sm:$0xf]
      %v796 = vld [vmem:[%s1 + $0x24c] sm:$0xf]
      %v797 = vld [vmem:[%s1 + $0x250] sm:$0xf]
      %v798 = vld [vmem:[%s1 + $0x254] sm:$0xf]
      %v799 = vld [vmem:[%s1 + $0x258] sm:$0xf]
      %v800 = vld [vmem:[%s1 + $0x25c] sm:$0xf]
      %v801 = vld [vmem:[%s1 + $0x260] sm:$0xf]
      %v802 = vld [vmem:[%s1 + $0x264] sm:$0xf]
      %v803 = vld [vmem:[%s1 + $0x268] sm:$0xf]
      %v804 = vld [vmem:[%s1 + $0x26c] sm:$0xf]
      %v805 = vld [vmem:[%s1 + $0x270] sm:$0xf]
      %v806 = vld [vmem:[%s1 + $0x274] sm:$0xf]
      %v807 = vld [vmem:[%s1 + $0x278] sm:$0xf]
      %v808 = vld [vmem:[%s1 + $0x27c] sm:$0xf]
      %v809 = vld [vmem:[%s1 + $0x280] sm:$0xf]
      %v810 = vld [vmem:[%s1 + $0x284] sm:$0xf]
      %v811 = vld [vmem:[%s1 + $0x288] sm:$0xf]
      %v812 = vld [vmem:[%s1 + $0x28c] sm:$0xf]
      %v813 = vld [vmem:[%s1 + $0x290] sm:$0xf]
      %v814 = vld [vmem:[%s1 + $0x294] sm:$0xf]
      %v815 = vld [vmem:[%s1 + $0x298] sm:$0xf]
      %v816 = vld [vmem:[%s1 + $0x29c] sm:$0xf]
      %v817 = vld [vmem:[%s1 + $0x2a0] sm:$0xf]
      %v818 = vld [vmem:[%s1 + $0x2a4] sm:$0xf]
      %v819 = vld [vmem:[%s1 + $0x2a8] sm:$0xf]
      %v820 = vld [vmem:[%s1 + $0x2ac] sm:$0xf]
      %v821 = vld [vmem:[%s1 + $0x2b0] sm:$0xf]
      %v822 = vld [vmem:[%s1 + $0x2b4] sm:$0xf]
      %v823 = vld [vmem:[%s1 + $0x2b8] sm:$0xf]
      %v824 = vld [vmem:[%s1 + $0x2bc] sm:$0xf]
      %v825 = vld [vmem:[%s1 + $0x2c0] sm:$0xf]
      %v826 = vld [vmem:[%s1 + $0x2c4] sm:$0xf]
      %v827 = vld [vmem:[%s1 + $0x2c8] sm:$0xf]
      %v828 = vld [vmem:[%s1 + $0x2cc] sm:$0xf]
      %v829 = vld [vmem:[%s1 + $0x2d0] sm:$0xf]
      %v830 = vld [vmem:[%s1 + $0x2d4] sm:$0xf]
      %v831 = vld [vmem:[%s1 + $0x2d8] sm:$0xf]
      %v832 = vld [vmem:[%s1 + $0x2dc] sm:$0xf]
      %v833 = vld [vmem:[%s1 + $0x2e0] sm:$0xf]
      %v834 = vld [vmem:[%s1 + $0x2e4] sm:$0xf]
      %v835 = vld [vmem:[%s1 + $0x2e8] sm:$0xf]
      %v836 = vld [vmem:[%s1 + $0x2ec] sm:$0xf]
      %v837 = vld [vmem:[%s1 + $0x2f0] sm:$0xf]
      %v838 = vld [vmem:[%s1 + $0x2f4] sm:$0xf]
      %v839 = vld [vmem:[%s1 + $0x2f8] sm:$0xf]
      %v840 = vld [vmem:[%s1 + $0x2fc] sm:$0xf]
      %v841 = vld [vmem:[%s1 + $0x300] sm:$0xf]
      %v842 = vld [vmem:[%s1 + $0x304] sm:$0xf]
      %v843 = vld [vmem:[%s1 + $0x308] sm:$0xf]
      %v844 = vld [vmem:[%s1 + $0x30c] sm:$0xf]
      %v845 = vld [vmem:[%s1 + $0x310] sm:$0xf]
      %v846 = vld [vmem:[%s1 + $0x314] sm:$0xf]
      %v847 = vld [vmem:[%s1 + $0x318] sm:$0xf]
      %v848 = vld [vmem:[%s1 + $0x31c] sm:$0xf]
      %v849 = vld [vmem:[%s1 + $0x320] sm:$0xf]
      %v850 = vld [vmem:[%s1 + $0x324] sm:$0xf]
      %v851 = vld [vmem:[%s1 + $0x328] sm:$0xf]
      %v852 = vld [vmem:[%s1 + $0x32c] sm:$0xf]
      %v853 = vld [vmem:[%s1 + $0x330] sm:$0xf]
      %v854 = vld [vmem:[%s1 + $0x334] sm:$0xf]
      %v855 = vld [vmem:[%s1 + $0x338] sm:$0xf]
      %v856 = vld [vmem:[%s1 + $0x33c] sm:$0xf]
      %v857 = vld [vmem:[%s1 + $0x340] sm:$0xf]
      %v858 = vld [vmem:[%s1 + $0x344] sm:$0xf]
      %v859 = vld [vmem:[%s1 + $0x348] sm:$0xf]
      %v860 = vld [vmem:[%s1 + $0x34c] sm:$0xf]
      %v861 = vld [vmem:[%s1 + $0x350] sm:$0xf]
      %v862 = vld [vmem:[%s1 + $0x354] sm:$0xf]
      %v863 = vld [vmem:[%s1 + $0x358] sm:$0xf]
      %v864 = vld [vmem:[%s1 + $0x35c] sm:$0xf]
      %v865 = vld [vmem:[%s1 + $0x360] sm:$0xf]
      %v866 = vld [vmem:[%s1 + $0x364] sm:$0xf]
      %v867 = vld [vmem:[%s1 + $0x368] sm:$0xf]
      %v868 = vld [vmem:[%s1 + $0x36c] sm:$0xf]
      %v869 = vld [vmem:[%s1 + $0x370] sm:$0xf]
      %v870 = vld [vmem:[%s1 + $0x374] sm:$0xf]
      %v871 = vld [vmem:[%s1 + $0x378] sm:$0xf]
      %v872 = vld [vmem:[%s1 + $0x37c] sm:$0xf]
      %v873 = vld [vmem:[%s1 + $0x380] sm:$0xf]
      %v874 = vld [vmem:[%s1 + $0x384] sm:$0xf]
      %v875 = vld [vmem:[%s1 + $0x388] sm:$0xf]
      %v876 = vld [vmem:[%s1 + $0x38c] sm:$0xf]
      %v877 = vld [vmem:[%s1 + $0x390] sm:$0xf]
      %v878 = vld [vmem:[%s1 + $0x394] sm:$0xf]
      %v879 = vld [vmem:[%s1 + $0x398] sm:$0xf]
      %v880 = vld [vmem:[%s1 + $0x39c] sm:$0xf]
      %v881 = vld [vmem:[%s1 + $0x3a0] sm:$0xf]
      %v882 = vld [vmem:[%s1 + $0x3a4] sm:$0xf]
      %v883 = vld [vmem:[%s1 + $0x3a8] sm:$0xf]
      %v884 = vld [vmem:[%s1 + $0x3ac] sm:$0xf]
      %v885 = vld [vmem:[%s1 + $0x3b0] sm:$0xf]
      %v886 = vld [vmem:[%s1 + $0x3b4] sm:$0xf]
      %v887 = vld [vmem:[%s1 + $0x3b8] sm:$0xf]
      %v888 = vld [vmem:[%s1 + $0x3bc] sm:$0xf]
      %v889 = vld [vmem:[%s1 + $0x3c0] sm:$0xf]
      %v890 = vld [vmem:[%s1 + $0x3c4] sm:$0xf]
      %v891 = vld [vmem:[%s1 + $0x3c8] sm:$0xf]
      %v892 = vld [vmem:[%s1 + $0x3cc] sm:$0xf]
      %v893 = vld [vmem:[%s1 + $0x3d0] sm:$0xf]
      %v894 = vld [vmem:[%s1 + $0x3d4] sm:$0xf]
      %v895 = vld [vmem:[%s1 + $0x3d8] sm:$0xf]
      %v896 = vld [vmem:[%s1 + $0x3dc] sm:$0xf]
      %v897 = vld [vmem:[%s1 + $0x3e0] sm:$0xf]
      %v898 = vld [vmem:[%s1 + $0x3e4] sm:$0xf]
      %v899 = vld [vmem:[%s1 + $0x3e8] sm:$0xf]
      %v900 = vld [vmem:[%s1 + $0x3ec] sm:$0xf]
      %v901 = vld [vmem:[%s1 + $0x3f0] sm:$0xf]
      %v902 = vld [vmem:[%s1 + $0x3f4] sm:$0xf]
      %v903 = vld [vmem:[%s1 + $0x3f8] sm:$0xf]
      %v904 = vld [vmem:[%s1 + $0x3fc] sm:$0xf]
      %v1161 = vunpack.c.l.b16 %v649
      %v1162 = vunpack.c.l.b16 %v650
      %v1163 = vunpack.c.l.b16 %v651
      %v1164 = vunpack.c.l.b16 %v652
      %v1165 = vunpack.c.l.b16 %v653
      %v1166 = vunpack.c.l.b16 %v654
      %v1167 = vunpack.c.l.b16 %v655
      %v1168 = vunpack.c.l.b16 %v656
      %v1169 = vunpack.c.l.b16 %v657
      %v1170 = vunpack.c.l.b16 %v658
      %v1171 = vunpack.c.l.b16 %v659
      %v1172 = vunpack.c.l.b16 %v660
      %v1173 = vunpack.c.l.b16 %v661
      %v1174 = vunpack.c.l.b16 %v662
      %v1175 = vunpack.c.l.b16 %v663
      %v1176 = vunpack.c.l.b16 %v664
      %v1177 = vunpack.c.l.b16 %v665
      %v1178 = vunpack.c.l.b16 %v666
      %v1179 = vunpack.c.l.b16 %v667
      %v1180 = vunpack.c.l.b16 %v668
      %v1181 = vunpack.c.l.b16 %v669
      %v1182 = vunpack.c.l.b16 %v670
      %v1183 = vunpack.c.l.b16 %v671
      %v1184 = vunpack.c.l.b16 %v672
      %v1185 = vunpack.c.l.b16 %v673
      %v1186 = vunpack.c.l.b16 %v674
      %v1187 = vunpack.c.l.b16 %v675
      %v1188 = vunpack.c.l.b16 %v676
      %v1189 = vunpack.c.l.b16 %v677
      %v1190 = vunpack.c.l.b16 %v678
      %v1191 = vunpack.c.l.b16 %v679
      %v1192 = vunpack.c.l.b16 %v680
      %v1193 = vunpack.c.l.b16 %v681
      %v1194 = vunpack.c.l.b16 %v682
      %v1195 = vunpack.c.l.b16 %v683
      %v1196 = vunpack.c.l.b16 %v684
      %v1197 = vunpack.c.l.b16 %v685
      %v1198 = vunpack.c.l.b16 %v686
      %v1199 = vunpack.c.l.b16 %v687
      %v1200 = vunpack.c.l.b16 %v688
      %v1201 = vunpack.c.l.b16 %v689
      %v1202 = vunpack.c.l.b16 %v690
      %v1203 = vunpack.c.l.b16 %v691
      %v1204 = vunpack.c.l.b16 %v692
      %v1205 = vunpack.c.l.b16 %v693
      %v1206 = vunpack.c.l.b16 %v694
      %v1207 = vunpack.c.l.b16 %v695
      %v1208 = vunpack.c.l.b16 %v696
      %v1209 = vunpack.c.l.b16 %v697
      %v1210 = vunpack.c.l.b16 %v698
      %v1211 = vunpack.c.l.b16 %v699
      %v1212 = vunpack.c.l.b16 %v700
      %v1213 = vunpack.c.l.b16 %v701
      %v1214 = vunpack.c.l.b16 %v702
      %v1215 = vunpack.c.l.b16 %v703
      %v1216 = vunpack.c.l.b16 %v704
      %v1217 = vunpack.c.l.b16 %v705
      %v1218 = vunpack.c.l.b16 %v706
      %v1219 = vunpack.c.l.b16 %v707
      %v1220 = vunpack.c.l.b16 %v708
      %v1221 = vunpack.c.l.b16 %v709
      %v1222 = vunpack.c.l.b16 %v710
      %v1223 = vunpack.c.l.b16 %v711
      %v1224 = vunpack.c.l.b16 %v712
      %v1225 = vunpack.c.l.b16 %v713
      %v1226 = vunpack.c.l.b16 %v714
      %v1227 = vunpack.c.l.b16 %v715
      %v1228 = vunpack.c.l.b16 %v716
      %v1229 = vunpack.c.l.b16 %v717
      %v1230 = vunpack.c.l.b16 %v718
      %v1231 = vunpack.c.l.b16 %v719
      %v1232 = vunpack.c.l.b16 %v720
      %v1233 = vunpack.c.l.b16 %v721
      %v1234 = vunpack.c.l.b16 %v722
      %v1235 = vunpack.c.l.b16 %v723
      %v1236 = vunpack.c.l.b16 %v724
      %v1237 = vunpack.c.l.b16 %v725
      %v1238 = vunpack.c.l.b16 %v726
      %v1239 = vunpack.c.l.b16 %v727
      %v1240 = vunpack.c.l.b16 %v728
      %v1241 = vunpack.c.l.b16 %v729
      %v1242 = vunpack.c.l.b16 %v730
      %v1243 = vunpack.c.l.b16 %v731
      %v1244 = vunpack.c.l.b16 %v732
      %v1245 = vunpack.c.l.b16 %v733
      %v1246 = vunpack.c.l.b16 %v734
      %v1247 = vunpack.c.l.b16 %v735
      %v1248 = vunpack.c.l.b16 %v736
      %v1249 = vunpack.c.l.b16 %v737
      %v1250 = vunpack.c.l.b16 %v738
      %v1251 = vunpack.c.l.b16 %v739
      %v1252 = vunpack.c.l.b16 %v740
      %v1253 = vunpack.c.l.b16 %v741
      %v1254 = vunpack.c.l.b16 %v742
      %v1255 = vunpack.c.l.b16 %v743
      %v1256 = vunpack.c.l.b16 %v744
      %v1257 = vunpack.c.l.b16 %v745
      %v1258 = vunpack.c.l.b16 %v746
      %v1259 = vunpack.c.l.b16 %v747
      %v1260 = vunpack.c.l.b16 %v748
      %v1261 = vunpack.c.l.b16 %v749
      %v1262 = vunpack.c.l.b16 %v750
      %v1263 = vunpack.c.l.b16 %v751
      %v1264 = vunpack.c.l.b16 %v752
      %v1265 = vunpack.c.l.b16 %v753
      %v1266 = vunpack.c.l.b16 %v754
      %v1267 = vunpack.c.l.b16 %v755
      %v1268 = vunpack.c.l.b16 %v756
      %v1269 = vunpack.c.l.b16 %v757
      %v1270 = vunpack.c.l.b16 %v758
      %v1271 = vunpack.c.l.b16 %v759
      %v1272 = vunpack.c.l.b16 %v760
      %v1273 = vunpack.c.l.b16 %v761
      %v1274 = vunpack.c.l.b16 %v762
      %v1275 = vunpack.c.l.b16 %v763
      %v1276 = vunpack.c.l.b16 %v764
      %v1277 = vunpack.c.l.b16 %v765
      %v1278 = vunpack.c.l.b16 %v766
      %v1279 = vunpack.c.l.b16 %v767
      %v1280 = vunpack.c.l.b16 %v768
      %v1281 = vunpack.c.l.b16 %v769
      %v1282 = vunpack.c.l.b16 %v770
      %v1283 = vunpack.c.l.b16 %v771
      %v1284 = vunpack.c.l.b16 %v772
      %v1285 = vunpack.c.l.b16 %v773
      %v1286 = vunpack.c.l.b16 %v774
      %v1287 = vunpack.c.l.b16 %v775
      %v1288 = vunpack.c.l.b16 %v776
      %v1289 = vunpack.c.l.b16 %v777
      %v1290 = vunpack.c.l.b16 %v778
      %v1291 = vunpack.c.l.b16 %v779
      %v1292 = vunpack.c.l.b16 %v780
      %v1293 = vunpack.c.l.b16 %v781
      %v1294 = vunpack.c.l.b16 %v782
      %v1295 = vunpack.c.l.b16 %v783
      %v1296 = vunpack.c.l.b16 %v784
      %v1297 = vunpack.c.l.b16 %v785
      %v1298 = vunpack.c.l.b16 %v786
      %v1299 = vunpack.c.l.b16 %v787
      %v1300 = vunpack.c.l.b16 %v788
      %v1301 = vunpack.c.l.b16 %v789
      %v1302 = vunpack.c.l.b16 %v790
      %v1303 = vunpack.c.l.b16 %v791
      %v1304 = vunpack.c.l.b16 %v792
      %v1305 = vunpack.c.l.b16 %v793
      %v1306 = vunpack.c.l.b16 %v794
      %v1307 = vunpack.c.l.b16 %v795
      %v1308 = vunpack.c.l.b16 %v796
      %v1309 = vunpack.c.l.b16 %v797
      %v1310 = vunpack.c.l.b16 %v798
      %v1311 = vunpack.c.l.b16 %v799
      %v1312 = vunpack.c.l.b16 %v800
      %v1313 = vunpack.c.l.b16 %v801
      %v1314 = vunpack.c.l.b16 %v802
      %v1315 = vunpack.c.l.b16 %v803
      %v1316 = vunpack.c.l.b16 %v804
      %v1317 = vunpack.c.l.b16 %v805
      %v1318 = vunpack.c.l.b16 %v806
      %v1319 = vunpack.c.l.b16 %v807
      %v1320 = vunpack.c.l.b16 %v808
      %v1321 = vunpack.c.l.b16 %v809
      %v1322 = vunpack.c.l.b16 %v810
      %v1323 = vunpack.c.l.b16 %v811
      %v1324 = vunpack.c.l.b16 %v812
      %v1325 = vunpack.c.l.b16 %v813
      %v1326 = vunpack.c.l.b16 %v814
      %v1327 = vunpack.c.l.b16 %v815
      %v1328 = vunpack.c.l.b16 %v816
      %v1329 = vunpack.c.l.b16 %v817
      %v1330 = vunpack.c.l.b16 %v818
      %v1331 = vunpack.c.l.b16 %v819
      %v1332 = vunpack.c.l.b16 %v820
      %v1333 = vunpack.c.l.b16 %v821
      %v1334 = vunpack.c.l.b16 %v822
      %v1335 = vunpack.c.l.b16 %v823
      %v1336 = vunpack.c.l.b16 %v824
      %v1337 = vunpack.c.l.b16 %v825
      %v1338 = vunpack.c.l.b16 %v826
      %v1339 = vunpack.c.l.b16 %v827
      %v1340 = vunpack.c.l.b16 %v828
      %v1341 = vunpack.c.l.b16 %v829
      %v1342 = vunpack.c.l.b16 %v830
      %v1343 = vunpack.c.l.b16 %v831
      %v1344 = vunpack.c.l.b16 %v832
      %v1345 = vunpack.c.l.b16 %v833
      %v1346 = vunpack.c.l.b16 %v834
      %v1347 = vunpack.c.l.b16 %v835
      %v1348 = vunpack.c.l.b16 %v836
      %v1349 = vunpack.c.l.b16 %v837
      %v1350 = vunpack.c.l.b16 %v838
      %v1351 = vunpack.c.l.b16 %v839
      %v1352 = vunpack.c.l.b16 %v840
      %v1353 = vunpack.c.l.b16 %v841
      %v1354 = vunpack.c.l.b16 %v842
      %v1355 = vunpack.c.l.b16 %v843
      %v1356 = vunpack.c.l.b16 %v844
      %v1357 = vunpack.c.l.b16 %v845
      %v1358 = vunpack.c.l.b16 %v846
      %v1359 = vunpack.c.l.b16 %v847
      %v1360 = vunpack.c.l.b16 %v848
      %v1361 = vunpack.c.l.b16 %v849
      %v1362 = vunpack.c.l.b16 %v850
      %v1363 = vunpack.c.l.b16 %v851
      %v1364 = vunpack.c.l.b16 %v852
      %v1365 = vunpack.c.l.b16 %v853
      %v1366 = vunpack.c.l.b16 %v854
      %v1367 = vunpack.c.l.b16 %v855
      %v1368 = vunpack.c.l.b16 %v856
      %v1369 = vunpack.c.l.b16 %v857
      %v1370 = vunpack.c.l.b16 %v858
      %v1371 = vunpack.c.l.b16 %v859
      %v1372 = vunpack.c.l.b16 %v860
      %v1373 = vunpack.c.l.b16 %v861
      %v1374 = vunpack.c.l.b16 %v862
      %v1375 = vunpack.c.l.b16 %v863
      %v1376 = vunpack.c.l.b16 %v864
      %v1377 = vunpack.c.l.b16 %v865
      %v1378 = vunpack.c.l.b16 %v866
      %v1379 = vunpack.c.l.b16 %v867
      %v1380 = vunpack.c.l.b16 %v868
      %v1381 = vunpack.c.l.b16 %v869
      %v1382 = vunpack.c.l.b16 %v870
      %v1383 = vunpack.c.l.b16 %v871
      %v1384 = vunpack.c.l.b16 %v872
      %v1385 = vunpack.c.l.b16 %v873
      %v1386 = vunpack.c.l.b16 %v874
      %v1387 = vunpack.c.l.b16 %v875
      %v1388 = vunpack.c.l.b16 %v876
      %v1389 = vunpack.c.l.b16 %v877
      %v1390 = vunpack.c.l.b16 %v878
      %v1391 = vunpack.c.l.b16 %v879
      %v1392 = vunpack.c.l.b16 %v880
      %v1393 = vunpack.c.l.b16 %v881
      %v1394 = vunpack.c.l.b16 %v882
      %v1395 = vunpack.c.l.b16 %v883
      %v1396 = vunpack.c.l.b16 %v884
      %v1397 = vunpack.c.l.b16 %v885
      %v1398 = vunpack.c.l.b16 %v886
      %v1399 = vunpack.c.l.b16 %v887
      %v1400 = vunpack.c.l.b16 %v888
      %v1401 = vunpack.c.l.b16 %v889
      %v1402 = vunpack.c.l.b16 %v890
      %v1403 = vunpack.c.l.b16 %v891
      %v1404 = vunpack.c.l.b16 %v892
      %v1405 = vunpack.c.l.b16 %v893
      %v1406 = vunpack.c.l.b16 %v894
      %v1407 = vunpack.c.l.b16 %v895
      %v1408 = vunpack.c.l.b16 %v896
      %v1409 = vunpack.c.l.b16 %v897
      %v1410 = vunpack.c.l.b16 %v898
      %v1411 = vunpack.c.l.b16 %v899
      %v1412 = vunpack.c.l.b16 %v900
      %v1413 = vunpack.c.l.b16 %v901
      %v1414 = vunpack.c.l.b16 %v902
      %v1415 = vunpack.c.l.b16 %v903
      %v1416 = vunpack.c.l.b16 %v904
      %v1417 = vpack.c.b16 %v1162, %v1161
      %v1418 = vpack.c.b16 %v1164, %v1163
      %v1419 = vpack.c.b16 %v1166, %v1165
      %v1420 = vpack.c.b16 %v1168, %v1167
      %v1421 = vpack.c.b16 %v1170, %v1169
      %v1422 = vpack.c.b16 %v1172, %v1171
      %v1423 = vpack.c.b16 %v1174, %v1173
      %v1424 = vpack.c.b16 %v1176, %v1175
      %v1425 = vpack.c.b16 %v1178, %v1177
      %v1426 = vpack.c.b16 %v1180, %v1179
      %v1427 = vpack.c.b16 %v1182, %v1181
      %v1428 = vpack.c.b16 %v1184, %v1183
      %v1429 = vpack.c.b16 %v1186, %v1185
      %v1430 = vpack.c.b16 %v1188, %v1187
      %v1431 = vpack.c.b16 %v1190, %v1189
      %v1432 = vpack.c.b16 %v1192, %v1191
      %v1433 = vpack.c.b16 %v1194, %v1193
      %v1434 = vpack.c.b16 %v1196, %v1195
      %v1435 = vpack.c.b16 %v1198, %v1197
      %v1436 = vpack.c.b16 %v1200, %v1199
      %v1437 = vpack.c.b16 %v1202, %v1201
      %v1438 = vpack.c.b16 %v1204, %v1203
      %v1439 = vpack.c.b16 %v1206, %v1205
      %v1440 = vpack.c.b16 %v1208, %v1207
      %v1441 = vpack.c.b16 %v1210, %v1209
      %v1442 = vpack.c.b16 %v1212, %v1211
      %v1443 = vpack.c.b16 %v1214, %v1213
      %v1444 = vpack.c.b16 %v1216, %v1215
      %v1445 = vpack.c.b16 %v1218, %v1217
      %v1446 = vpack.c.b16 %v1220, %v1219
      %v1447 = vpack.c.b16 %v1222, %v1221
      %v1448 = vpack.c.b16 %v1224, %v1223
      %v1449 = vpack.c.b16 %v1226, %v1225
      %v1450 = vpack.c.b16 %v1228, %v1227
      %v1451 = vpack.c.b16 %v1230, %v1229
      %v1452 = vpack.c.b16 %v1232, %v1231
      %v1453 = vpack.c.b16 %v1234, %v1233
      %v1454 = vpack.c.b16 %v1236, %v1235
      %v1455 = vpack.c.b16 %v1238, %v1237
      %v1456 = vpack.c.b16 %v1240, %v1239
      %v1457 = vpack.c.b16 %v1242, %v1241
      %v1458 = vpack.c.b16 %v1244, %v1243
      %v1459 = vpack.c.b16 %v1246, %v1245
      %v1460 = vpack.c.b16 %v1248, %v1247
      %v1461 = vpack.c.b16 %v1250, %v1249
      %v1462 = vpack.c.b16 %v1252, %v1251
      %v1463 = vpack.c.b16 %v1254, %v1253
      %v1464 = vpack.c.b16 %v1256, %v1255
      %v1465 = vpack.c.b16 %v1258, %v1257
      %v1466 = vpack.c.b16 %v1260, %v1259
      %v1467 = vpack.c.b16 %v1262, %v1261
      %v1468 = vpack.c.b16 %v1264, %v1263
      %v1469 = vpack.c.b16 %v1266, %v1265
      %v1470 = vpack.c.b16 %v1268, %v1267
      %v1471 = vpack.c.b16 %v1270, %v1269
      %v1472 = vpack.c.b16 %v1272, %v1271
      %v1473 = vpack.c.b16 %v1274, %v1273
      %v1474 = vpack.c.b16 %v1276, %v1275
      %v1475 = vpack.c.b16 %v1278, %v1277
      %v1476 = vpack.c.b16 %v1280, %v1279
      %v1477 = vpack.c.b16 %v1282, %v1281
      %v1478 = vpack.c.b16 %v1284, %v1283
      %v1479 = vpack.c.b16 %v1286, %v1285
      %v1480 = vpack.c.b16 %v1288, %v1287
      %v1481 = vpack.c.b16 %v1290, %v1289
      %v1482 = vpack.c.b16 %v1292, %v1291
      %v1483 = vpack.c.b16 %v1294, %v1293
      %v1484 = vpack.c.b16 %v1296, %v1295
      %v1485 = vpack.c.b16 %v1298, %v1297
      %v1486 = vpack.c.b16 %v1300, %v1299
      %v1487 = vpack.c.b16 %v1302, %v1301
      %v1488 = vpack.c.b16 %v1304, %v1303
      %v1489 = vpack.c.b16 %v1306, %v1305
      %v1490 = vpack.c.b16 %v1308, %v1307
      %v1491 = vpack.c.b16 %v1310, %v1309
      %v1492 = vpack.c.b16 %v1312, %v1311
      %v1493 = vpack.c.b16 %v1314, %v1313
      %v1494 = vpack.c.b16 %v1316, %v1315
      %v1495 = vpack.c.b16 %v1318, %v1317
      %v1496 = vpack.c.b16 %v1320, %v1319
      %v1497 = vpack.c.b16 %v1322, %v1321
      %v1498 = vpack.c.b16 %v1324, %v1323
      %v1499 = vpack.c.b16 %v1326, %v1325
      %v1500 = vpack.c.b16 %v1328, %v1327
      %v1501 = vpack.c.b16 %v1330, %v1329
      %v1502 = vpack.c.b16 %v1332, %v1331
      %v1503 = vpack.c.b16 %v1334, %v1333
      %v1504 = vpack.c.b16 %v1336, %v1335
      %v1505 = vpack.c.b16 %v1338, %v1337
      %v1506 = vpack.c.b16 %v1340, %v1339
      %v1507 = vpack.c.b16 %v1342, %v1341
      %v1508 = vpack.c.b16 %v1344, %v1343
      %v1509 = vpack.c.b16 %v1346, %v1345
      %v1510 = vpack.c.b16 %v1348, %v1347
      %v1511 = vpack.c.b16 %v1350, %v1349
      %v1512 = vpack.c.b16 %v1352, %v1351
      %v1513 = vpack.c.b16 %v1354, %v1353
      %v1514 = vpack.c.b16 %v1356, %v1355
      %v1515 = vpack.c.b16 %v1358, %v1357
      %v1516 = vpack.c.b16 %v1360, %v1359
      %v1517 = vpack.c.b16 %v1362, %v1361
      %v1518 = vpack.c.b16 %v1364, %v1363
      %v1519 = vpack.c.b16 %v1366, %v1365
      %v1520 = vpack.c.b16 %v1368, %v1367
      %v1521 = vpack.c.b16 %v1370, %v1369
      %v1522 = vpack.c.b16 %v1372, %v1371
      %v1523 = vpack.c.b16 %v1374, %v1373
      %v1524 = vpack.c.b16 %v1376, %v1375
      %v1525 = vpack.c.b16 %v1378, %v1377
      %v1526 = vpack.c.b16 %v1380, %v1379
      %v1527 = vpack.c.b16 %v1382, %v1381
      %v1528 = vpack.c.b16 %v1384, %v1383
      %v1529 = vpack.c.b16 %v1386, %v1385
      %v1530 = vpack.c.b16 %v1388, %v1387
      %v1531 = vpack.c.b16 %v1390, %v1389
      %v1532 = vpack.c.b16 %v1392, %v1391
      %v1533 = vpack.c.b16 %v1394, %v1393
      %v1534 = vpack.c.b16 %v1396, %v1395
      %v1535 = vpack.c.b16 %v1398, %v1397
      %v1536 = vpack.c.b16 %v1400, %v1399
      %v1537 = vpack.c.b16 %v1402, %v1401
      %v1538 = vpack.c.b16 %v1404, %v1403
      %v1539 = vpack.c.b16 %v1406, %v1405
      %v1540 = vpack.c.b16 %v1408, %v1407
      %v1541 = vpack.c.b16 %v1410, %v1409
      %v1542 = vpack.c.b16 %v1412, %v1411
      %v1543 = vpack.c.b16 %v1414, %v1413
      %v1544 = vpack.c.b16 %v1416, %v1415
      %1673 = vmatprep.subr.bf16.mxu0 0
      %1674 = vmatpush1.bf16.msra.mxu0 %v1417
      %1675 = vmatprep.subr.bf16.mxu0 0
      %1676 = vmatpush1.bf16.msra.mxu0 %v1418
      %1677 = vmatprep.subr.bf16.mxu0 0
      %1678 = vmatpush1.bf16.msra.mxu0 %v1419
      %1679 = vmatprep.subr.bf16.mxu0 0
      %1680 = vmatpush1.bf16.msra.mxu0 %v1420
      %1681 = vmatprep.subr.bf16.mxu0 0
      %1682 = vmatpush1.bf16.msra.mxu0 %v1421
      %1683 = vmatprep.subr.bf16.mxu0 0
      %1684 = vmatpush1.bf16.msra.mxu0 %v1422
      %1685 = vmatprep.subr.bf16.mxu0 0
      %1686 = vmatpush1.bf16.msra.mxu0 %v1423
      %1687 = vmatprep.subr.bf16.mxu0 0
      %1688 = vmatpush1.bf16.msra.mxu0 %v1424
      %1689 = vmatprep.subr.bf16.mxu0 0
      %1690 = vmatpush1.bf16.msra.mxu0 %v1425
      %1691 = vmatprep.subr.bf16.mxu0 0
      %1692 = vmatpush1.bf16.msra.mxu0 %v1426
      %1693 = vmatprep.subr.bf16.mxu0 0
      %1694 = vmatpush1.bf16.msra.mxu0 %v1427
      %1695 = vmatprep.subr.bf16.mxu0 0
      %1696 = vmatpush1.bf16.msra.mxu0 %v1428
      %1697 = vmatprep.subr.bf16.mxu0 0
      %1698 = vmatpush1.bf16.msra.mxu0 %v1429
      %1699 = vmatprep.subr.bf16.mxu0 0
      %1700 = vmatpush1.bf16.msra.mxu0 %v1430
      %1701 = vmatprep.subr.bf16.mxu0 0
      %1702 = vmatpush1.bf16.msra.mxu0 %v1431
      %1703 = vmatprep.subr.bf16.mxu0 0
      %1704 = vmatpush1.bf16.msra.mxu0 %v1432
      %1705 = vmatprep.mubr.bf16.mxu0 %v634
      %1706 = vmatmul.mubr.bf16.gmra.mrb[0].mxu0 %v633
      %v1707 = vpop.f32.mrb[0].mxu0
      %v1708 = vadd.f32 0.0, %v1707
      %v1709 = vpop.f32.mrb[0].mxu0
      %v1710 = vpop.f32.mrb[0].mxu0
      %v1711 = vadd.f32 0.0, %v1710
      %v1712 = vpop.f32.mrb[0].mxu0
      %1713 = vdwg.mxu0
      %1714 = vmatprep.subr.bf16.mxu0 0
      %1715 = vmatpush1.bf16.msra.mxu0 %v1433
      %1716 = vmatprep.subr.bf16.mxu0 0
      %1717 = vmatpush1.bf16.msra.mxu0 %v1434
      %1718 = vmatprep.subr.bf16.mxu0 0
      %1719 = vmatpush1.bf16.msra.mxu0 %v1435
      %1720 = vmatprep.subr.bf16.mxu0 0
      %1721 = vmatpush1.bf16.msra.mxu0 %v1436
      %1722 = vmatprep.subr.bf16.mxu0 0
      %1723 = vmatpush1.bf16.msra.mxu0 %v1437
      %1724 = vmatprep.subr.bf16.mxu0 0
      %1725 = vmatpush1.bf16.msra.mxu0 %v1438
      %1726 = vmatprep.subr.bf16.mxu0 0
      %1727 = vmatpush1.bf16.msra.mxu0 %v1439
      %1728 = vmatprep.subr.bf16.mxu0 0
      %1729 = vmatpush1.bf16.msra.mxu0 %v1440
      %1730 = vmatprep.subr.bf16.mxu0 0
      %1731 = vmatpush1.bf16.msra.mxu0 %v1441
      %1732 = vmatprep.subr.bf16.mxu0 0
      %1733 = vmatpush1.bf16.msra.mxu0 %v1442
      %1734 = vmatprep.subr.bf16.mxu0 0
      %1735 = vmatpush1.bf16.msra.mxu0 %v1443
      %1736 = vmatprep.subr.bf16.mxu0 0
      %1737 = vmatpush1.bf16.msra.mxu0 %v1444
      %1738 = vmatprep.subr.bf16.mxu0 0
      %1739 = vmatpush1.bf16.msra.mxu0 %v1445
      %1740 = vmatprep.subr.bf16.mxu0 0
      %1741 = vmatpush1.bf16.msra.mxu0 %v1446
      %1742 = vmatprep.subr.bf16.mxu0 0
      %1743 = vmatpush1.bf16.msra.mxu0 %v1447
      %1744 = vmatprep.subr.bf16.mxu0 0
      %1745 = vmatpush1.bf16.msra.mxu0 %v1448
      %1746 = vmatprep.mubr.bf16.mxu0 %v636
      %1747 = vmatmul.mubr.bf16.gmra.mrb[0].mxu0 %v635
      %v1748 = vpop.f32.mrb[0].mxu0
      %v1749 = vadd.f32 %v1708, %v1748
      %v1750 = vpop.f32.mrb[0].mxu0
      %v1751 = vpop.f32.mrb[0].mxu0
      %v1752 = vadd.f32 %v1711, %v1751
      %v1753 = vpop.f32.mrb[0].mxu0
      %1754 = vdwg.mxu0
      %1755 = vmatprep.subr.bf16.mxu0 0
      %1756 = vmatpush1.bf16.msra.mxu0 %v1449
      %1757 = vmatprep.subr.bf16.mxu0 0
      %1758 = vmatpush1.bf16.msra.mxu0 %v1450
      %1759 = vmatprep.subr.bf16.mxu0 0
      %1760 = vmatpush1.bf16.msra.mxu0 %v1451
      %1761 = vmatprep.subr.bf16.mxu0 0
      %1762 = vmatpush1.bf16.msra.mxu0 %v1452
      %1763 = vmatprep.subr.bf16.mxu0 0
      %1764 = vmatpush1.bf16.msra.mxu0 %v1453
      %1765 = vmatprep.subr.bf16.mxu0 0
      %1766 = vmatpush1.bf16.msra.mxu0 %v1454
      %1767 = vmatprep.subr.bf16.mxu0 0
      %1768 = vmatpush1.bf16.msra.mxu0 %v1455
      %1769 = vmatprep.subr.bf16.mxu0 0
      %1770 = vmatpush1.bf16.msra.mxu0 %v1456
      %1771 = vmatprep.subr.bf16.mxu0 0
      %1772 = vmatpush1.bf16.msra.mxu0 %v1457
      %1773 = vmatprep.subr.bf16.mxu0 0
      %1774 = vmatpush1.bf16.msra.mxu0 %v1458
      %1775 = vmatprep.subr.bf16.mxu0 0
      %1776 = vmatpush1.bf16.msra.mxu0 %v1459
      %1777 = vmatprep.subr.bf16.mxu0 0
      %1778 = vmatpush1.bf16.msra.mxu0 %v1460
      %1779 = vmatprep.subr.bf16.mxu0 0
      %1780 = vmatpush1.bf16.msra.mxu0 %v1461
      %1781 = vmatprep.subr.bf16.mxu0 0
      %1782 = vmatpush1.bf16.msra.mxu0 %v1462
      %1783 = vmatprep.subr.bf16.mxu0 0
      %1784 = vmatpush1.bf16.msra.mxu0 %v1463
      %1785 = vmatprep.subr.bf16.mxu0 0
      %1786 = vmatpush1.bf16.msra.mxu0 %v1464
      %1787 = vmatprep.mubr.bf16.mxu0 %v638
      %1788 = vmatmul.mubr.bf16.gmra.mrb[0].mxu0 %v637
      %v1789 = vpop.f32.mrb[0].mxu0
      %v1790 = vadd.f32 %v1749, %v1789
      %v1791 = vpop.f32.mrb[0].mxu0
      %v1792 = vpop.f32.mrb[0].mxu0
      %v1793 = vadd.f32 %v1752, %v1792
      %v1794 = vpop.f32.mrb[0].mxu0
      %1795 = vdwg.mxu0
      %1796 = vmatprep.subr.bf16.mxu0 0
      %1797 = vmatpush1.bf16.msra.mxu0 %v1465
      %1798 = vmatprep.subr.bf16.mxu0 0
      %1799 = vmatpush1.bf16.msra.mxu0 %v1466
      %1800 = vmatprep.subr.bf16.mxu0 0
      %1801 = vmatpush1.bf16.msra.mxu0 %v1467
      %1802 = vmatprep.subr.bf16.mxu0 0
      %1803 = vmatpush1.bf16.msra.mxu0 %v1468
      %1804 = vmatprep.subr.bf16.mxu0 0
      %1805 = vmatpush1.bf16.msra.mxu0 %v1469
      %1806 = vmatprep.subr.bf16.mxu0 0
      %1807 = vmatpush1.bf16.msra.mxu0 %v1470
      %1808 = vmatprep.subr.bf16.mxu0 0
      %1809 = vmatpush1.bf16.msra.mxu0 %v1471
      %1810 = vmatprep.subr.bf16.mxu0 0
      %1811 = vmatpush1.bf16.msra.mxu0 %v1472
      %1812 = vmatprep.subr.bf16.mxu0 0
      %1813 = vmatpush1.bf16.msra.mxu0 %v1473
      %1814 = vmatprep.subr.bf16.mxu0 0
      %1815 = vmatpush1.bf16.msra.mxu0 %v1474
      %1816 = vmatprep.subr.bf16.mxu0 0
      %1817 = vmatpush1.bf16.msra.mxu0 %v1475
      %1818 = vmatprep.subr.bf16.mxu0 0
      %1819 = vmatpush1.bf16.msra.mxu0 %v1476
      %1820 = vmatprep.subr.bf16.mxu0 0
      %1821 = vmatpush1.bf16.msra.mxu0 %v1477
      %1822 = vmatprep.subr.bf16.mxu0 0
      %1823 = vmatpush1.bf16.msra.mxu0 %v1478
      %1824 = vmatprep.subr.bf16.mxu0 0
      %1825 = vmatpush1.bf16.msra.mxu0 %v1479
      %1826 = vmatprep.subr.bf16.mxu0 0
      %1827 = vmatpush1.bf16.msra.mxu0 %v1480
      %1828 = vmatprep.mubr.bf16.mxu0 %v640
      %1829 = vmatmul.mubr.bf16.gmra.mrb[0].mxu0 %v639
      %v1830 = vpop.f32.mrb[0].mxu0
      %v1831 = vadd.f32 %v1790, %v1830
      %v1832 = vpop.f32.mrb[0].mxu0
      %v1833 = vpop.f32.mrb[0].mxu0
      %v1834 = vadd.f32 %v1793, %v1833
      %v1835 = vpop.f32.mrb[0].mxu0
      %1836 = vdwg.mxu0
      %1837 = vmatprep.subr.bf16.mxu0 0
      %1838 = vmatpush1.bf16.msra.mxu0 %v1481
      %1839 = vmatprep.subr.bf16.mxu0 0
      %1840 = vmatpush1.bf16.msra.mxu0 %v1482
      %1841 = vmatprep.subr.bf16.mxu0 0
      %1842 = vmatpush1.bf16.msra.mxu0 %v1483
      %1843 = vmatprep.subr.bf16.mxu0 0
      %1844 = vmatpush1.bf16.msra.mxu0 %v1484
      %1845 = vmatprep.subr.bf16.mxu0 0
      %1846 = vmatpush1.bf16.msra.mxu0 %v1485
      %1847 = vmatprep.subr.bf16.mxu0 0
      %1848 = vmatpush1.bf16.msra.mxu0 %v1486
      %1849 = vmatprep.subr.bf16.mxu0 0
      %1850 = vmatpush1.bf16.msra.mxu0 %v1487
      %1851 = vmatprep.subr.bf16.mxu0 0
      %1852 = vmatpush1.bf16.msra.mxu0 %v1488
      %1853 = vmatprep.subr.bf16.mxu0 0
      %1854 = vmatpush1.bf16.msra.mxu0 %v1489
      %1855 = vmatprep.subr.bf16.mxu0 0
      %1856 = vmatpush1.bf16.msra.mxu0 %v1490
      %1857 = vmatprep.subr.bf16.mxu0 0
      %1858 = vmatpush1.bf16.msra.mxu0 %v1491
      %1859 = vmatprep.subr.bf16.mxu0 0
      %1860 = vmatpush1.bf16.msra.mxu0 %v1492
      %1861 = vmatprep.subr.bf16.mxu0 0
      %1862 = vmatpush1.bf16.msra.mxu0 %v1493
      %1863 = vmatprep.subr.bf16.mxu0 0
      %1864 = vmatpush1.bf16.msra.mxu0 %v1494
      %1865 = vmatprep.subr.bf16.mxu0 0
      %1866 = vmatpush1.bf16.msra.mxu0 %v1495
      %1867 = vmatprep.subr.bf16.mxu0 0
      %1868 = vmatpush1.bf16.msra.mxu0 %v1496
      %1869 = vmatprep.mubr.bf16.mxu0 %v642
      %1870 = vmatmul.mubr.bf16.gmra.mrb[0].mxu0 %v641
      %v1871 = vpop.f32.mrb[0].mxu0
      %v1872 = vadd.f32 %v1831, %v1871
      %v1873 = vpop.f32.mrb[0].mxu0
      %v1874 = vpop.f32.mrb[0].mxu0
      %v1875 = vadd.f32 %v1834, %v1874
      %v1876 = vpop.f32.mrb[0].mxu0
      %1877 = vdwg.mxu0
      %1878 = vmatprep.subr.bf16.mxu0 0
      %1879 = vmatpush1.bf16.msra.mxu0 %v1497
      %1880 = vmatprep.subr.bf16.mxu0 0
      %1881 = vmatpush1.bf16.msra.mxu0 %v1498
      %1882 = vmatprep.subr.bf16.mxu0 0
      %1883 = vmatpush1.bf16.msra.mxu0 %v1499
      %1884 = vmatprep.subr.bf16.mxu0 0
      %1885 = vmatpush1.bf16.msra.mxu0 %v1500
      %1886 = vmatprep.subr.bf16.mxu0 0
      %1887 = vmatpush1.bf16.msra.mxu0 %v1501
      %1888 = vmatprep.subr.bf16.mxu0 0
      %1889 = vmatpush1.bf16.msra.mxu0 %v1502
      %1890 = vmatprep.subr.bf16.mxu0 0
      %1891 = vmatpush1.bf16.msra.mxu0 %v1503
      %1892 = vmatprep.subr.bf16.mxu0 0
      %1893 = vmatpush1.bf16.msra.mxu0 %v1504
      %1894 = vmatprep.subr.bf16.mxu0 0
      %1895 = vmatpush1.bf16.msra.mxu0 %v1505
      %1896 = vmatprep.subr.bf16.mxu0 0
      %1897 = vmatpush1.bf16.msra.mxu0 %v1506
      %1898 = vmatprep.subr.bf16.mxu0 0
      %1899 = vmatpush1.bf16.msra.mxu0 %v1507
      %1900 = vmatprep.subr.bf16.mxu0 0
      %1901 = vmatpush1.bf16.msra.mxu0 %v1508
      %1902 = vmatprep.subr.bf16.mxu0 0
      %1903 = vmatpush1.bf16.msra.mxu0 %v1509
      %1904 = vmatprep.subr.bf16.mxu0 0
      %1905 = vmatpush1.bf16.msra.mxu0 %v1510
      %1906 = vmatprep.subr.bf16.mxu0 0
      %1907 = vmatpush1.bf16.msra.mxu0 %v1511
      %1908 = vmatprep.subr.bf16.mxu0 0
      %1909 = vmatpush1.bf16.msra.mxu0 %v1512
      %1910 = vmatprep.mubr.bf16.mxu0 %v644
      %1911 = vmatmul.mubr.bf16.gmra.mrb[0].mxu0 %v643
      %v1912 = vpop.f32.mrb[0].mxu0
      %v1913 = vadd.f32 %v1872, %v1912
      %v1914 = vpop.f32.mrb[0].mxu0
      %v1915 = vpop.f32.mrb[0].mxu0
      %v1916 = vadd.f32 %v1875, %v1915
      %v1917 = vpop.f32.mrb[0].mxu0
      %1918 = vdwg.mxu0
      %1919 = vmatprep.subr.bf16.mxu0 0
      %1920 = vmatpush1.bf16.msra.mxu0 %v1513
      %1921 = vmatprep.subr.bf16.mxu0 0
      %1922 = vmatpush1.bf16.msra.mxu0 %v1514
      %1923 = vmatprep.subr.bf16.mxu0 0
      %1924 = vmatpush1.bf16.msra.mxu0 %v1515
      %1925 = vmatprep.subr.bf16.mxu0 0
      %1926 = vmatpush1.bf16.msra.mxu0 %v1516
      %1927 = vmatprep.subr.bf16.mxu0 0
      %1928 = vmatpush1.bf16.msra.mxu0 %v1517
      %1929 = vmatprep.subr.bf16.mxu0 0
      %1930 = vmatpush1.bf16.msra.mxu0 %v1518
      %1931 = vmatprep.subr.bf16.mxu0 0
      %1932 = vmatpush1.bf16.msra.mxu0 %v1519
      %1933 = vmatprep.subr.bf16.mxu0 0
      %1934 = vmatpush1.bf16.msra.mxu0 %v1520
      %1935 = vmatprep.subr.bf16.mxu0 0
      %1936 = vmatpush1.bf16.msra.mxu0 %v1521
      %1937 = vmatprep.subr.bf16.mxu0 0
      %1938 = vmatpush1.bf16.msra.mxu0 %v1522
      %1939 = vmatprep.subr.bf16.mxu0 0
      %1940 = vmatpush1.bf16.msra.mxu0 %v1523
      %1941 = vmatprep.subr.bf16.mxu0 0
      %1942 = vmatpush1.bf16.msra.mxu0 %v1524
      %1943 = vmatprep.subr.bf16.mxu0 0
      %1944 = vmatpush1.bf16.msra.mxu0 %v1525
      %1945 = vmatprep.subr.bf16.mxu0 0
      %1946 = vmatpush1.bf16.msra.mxu0 %v1526
      %1947 = vmatprep.subr.bf16.mxu0 0
      %1948 = vmatpush1.bf16.msra.mxu0 %v1527
      %1949 = vmatprep.subr.bf16.mxu0 0
      %1950 = vmatpush1.bf16.msra.mxu0 %v1528
      %1951 = vmatprep.mubr.bf16.mxu0 %v646
      %1952 = vmatmul.mubr.bf16.gmra.mrb[0].mxu0 %v645
      %v1953 = vpop.f32.mrb[0].mxu0
      %v1954 = vadd.f32 %v1913, %v1953
      %v1955 = vpop.f32.mrb[0].mxu0
      %v1956 = vpop.f32.mrb[0].mxu0
      %v1957 = vadd.f32 %v1916, %v1956
      %v1958 = vpop.f32.mrb[0].mxu0
      %1959 = vdwg.mxu0
      %1960 = vmatprep.subr.bf16.mxu0 0
      %1961 = vmatpush1.bf16.msra.mxu0 %v1529
      %1962 = vmatprep.subr.bf16.mxu0 0
      %1963 = vmatpush1.bf16.msra.mxu0 %v1530
      %1964 = vmatprep.subr.bf16.mxu0 0
      %1965 = vmatpush1.bf16.msra.mxu0 %v1531
      %1966 = vmatprep.subr.bf16.mxu0 0
      %1967 = vmatpush1.bf16.msra.mxu0 %v1532
      %1968 = vmatprep.subr.bf16.mxu0 0
      %1969 = vmatpush1.bf16.msra.mxu0 %v1533
      %1970 = vmatprep.subr.bf16.mxu0 0
      %1971 = vmatpush1.bf16.msra.mxu0 %v1534
      %1972 = vmatprep.subr.bf16.mxu0 0
      %1973 = vmatpush1.bf16.msra.mxu0 %v1535
      %1974 = vmatprep.subr.bf16.mxu0 0
      %1975 = vmatpush1.bf16.msra.mxu0 %v1536
      %1976 = vmatprep.subr.bf16.mxu0 0
      %1977 = vmatpush1.bf16.msra.mxu0 %v1537
      %1978 = vmatprep.subr.bf16.mxu0 0
      %1979 = vmatpush1.bf16.msra.mxu0 %v1538
      %1980 = vmatprep.subr.bf16.mxu0 0
      %1981 = vmatpush1.bf16.msra.mxu0 %v1539
      %1982 = vmatprep.subr.bf16.mxu0 0
      %1983 = vmatpush1.bf16.msra.mxu0 %v1540
      %1984 = vmatprep.subr.bf16.mxu0 0
      %1985 = vmatpush1.bf16.msra.mxu0 %v1541
      %1986 = vmatprep.subr.bf16.mxu0 0
      %1987 = vmatpush1.bf16.msra.mxu0 %v1542
      %1988 = vmatprep.subr.bf16.mxu0 0
      %1989 = vmatpush1.bf16.msra.mxu0 %v1543
      %1990 = vmatprep.subr.bf16.mxu0 0
      %1991 = vmatpush1.bf16.msra.mxu0 %v1544
      %1992 = vmatprep.mubr.bf16.mxu0 %v648
      %1993 = vmatmul.mubr.bf16.gmra.mrb[0].mxu0 %v647
      %v1994 = vpop.f32.mrb[0].mxu0
      %v1995 = vadd.f32 %v1954, %v1994
      %v1996 = vpop.f32.mrb[0].mxu0
      %v1997 = vpop.f32.mrb[0].mxu0
      %v1998 = vadd.f32 %v1957, %v1997
      %v1999 = vpop.f32.mrb[0].mxu0
      %2000 = vdwg.mxu0
      %v2001 = vadd.f32 %v1995, %v1998
      %v2002 = vrot.slane %v2001, 4
      %v2003 = vadd.f32 %v2001, %v2002
      %v2004 = vrot.slane %v2003, 2
      %v2005 = vadd.f32 %v2003, %v2004
      %v2006 = vrot.slane %v2005, 1
      %v2007 = vadd.f32 %v2005, %v2006
      %v2008 = vmul.f32 %v1995, %v1995
      %v2009 = vmul.f32 %v1998, %v1998
      %v2010 = vadd.f32 %v2008, %v2009
      %v2011 = vrot.slane %v2010, 4
      %v2012 = vadd.f32 %v2010, %v2011
      %v2013 = vrot.slane %v2012, 2
      %v2014 = vadd.f32 %v2012, %v2013
      %v2015 = vrot.slane %v2014, 1
      %v2016 = vadd.f32 %v2014, %v2015
      %v2017 = vmul.f32 %v2007, 0.0625
      %v2018 = vmul.f32 %v2016, 0.0625
      %v2019 = vmul.f32 %v2017, %v2017
      %v2020 = vsub.f32 %v2018, %v2019
      %v2021 = vmax.f32 %v2020, 0.0
      %v2022 = vsub.f32 %v1995, %v2017
      %v2023 = vsub.f32 %v1998, %v2017
      %v2024 = vadd.f32 %v2021, 1e-05
      %v2025 = vrsqrt.pop %v2024
      %v2026 = vmul.f32 %v2022, %v2025
      %v2027 = vmul.f32 %v2023, %v2025
      %v2028 = vld [vmem:[%s2] sm:$0x1]
      %v2030 = vlaneseq
      %v2031 = vshrl.u32 %v2030, 7
      %v2032 = vsub.s32 0, %v2031
      %v2033 = vrot.slane %v2028, %v2032
      %v2035 = vmul.f32 %v2026, %v2033
      %v2036 = vmul.f32 %v2027, %v2033
      %v2037 = vld [vmem:[%s3] sm:$0x1]
      %v2039 = vlaneseq
      %v2040 = vshrl.u32 %v2039, 7
      %v2041 = vsub.s32 0, %v2040
      %v2042 = vrot.slane %v2037, %v2041
      %v2044 = vadd.f32 %v2035, %v2042
      %v2045 = vadd.f32 %v2036, %v2042
      %vm2046 = vcmp.ge.f32.partialorder %v2044, 0.0
      %vm2047 = vcmp.ge.f32.partialorder %v2045, 0.0
      %v2048 = vmul.f32 %v2044, 0.01
      %v2049 = vmul.f32 %v2045, 0.01
      %v2050 = vsel %vm2046, %v2044, %v2048
      %v2051 = vsel %vm2047, %v2045, %v2049
      %2052 = vst [vmem:[%s197] sm:$0xff] %v2050
      %2053 = vst [vmem:[%s197 + $0x8] sm:$0xff] %v2051
      %p2054 = scmp.lt.s32.totalorder %s15, 1
      %s2055 = scalar_select %p2054, %s15, 1
      %s2056 = smul.addr %s2055, 2
      %s2057 = smul.addr %s2056, 8
      %s2058 = scalar_lea.vmem %s4, %s2057
      // Predicated region
      $region37: #{discriminator_forward.4} parent=35 // pred_check
        %p2059 = pneg %p122
      $region38: #{discriminator_forward.4} parent=35 // pred_check_branch
        %2061 = sbr.rel (%p2059) target = $region40
      $region39: #{discriminator_forward.4} parent=35 // pred_region
        _
      $region40: #{discriminator_forward.4} parent=35 // pred_fallthru
        _
    $region36: #{discriminator_forward.4} parent=5 // pred_fallthru
      _
    %p2062 = scmp.le.s32.totalorder 2, %s10
    // Predicated region
    $region41: #{discriminator_forward.4} parent=5 // pred_check
      %p2063 = pneg %p2062
    $region42: #{discriminator_forward.4} parent=5 // pred_check_branch
      %2065 = sbr.rel (%p2063) target = $region44
    $region43: #{discriminator_forward.4} parent=5 // pred_region
      %s2066 = ssub.s32 %s10, 2
      // Predicated region
      $region45: #{discriminator_forward.4} parent=43 // pred_check
        %p2067 = pneg %p128
      $region46: #{discriminator_forward.4} parent=43 // pred_check_branch
        %2069 = sbr.rel (%p2067) target = $region48
      $region47: #{discriminator_forward.4} parent=43 // pred_region
        %p2070 = scmp.lt.s32.totalorder %s16, 1
        %s2071 = scalar_select %p2070, %s16, 1
        %s2072 = smul.addr %s2071, 2
        %s2073 = smul.addr %s2072, 8
        %s2074 = scalar_lea.vmem %s4, %s2073
      $region48: #{discriminator_forward.4} parent=43 // pred_fallthru
        _
    $region44: #{discriminator_forward.4} parent=5 // pred_fallthru
      _
  $region6: #{discriminator_forward.4} parent=0 // loop_footer
    %s14 = sadd.s32 1, %s10
  $region7: #{discriminator_forward.4} parent=0 // loop_footer_branch
    %9 = sbr.rel target = $region3
  $region8: #{discriminator_forward.4} parent=0 // loop_exit
    _

// kernel: discriminator_forward.3
$region0: #{discriminator_forward.3}
  #allocation0 [shape = 'u32[]', space=smem, size = 0x4, offset = 0x4, fixed_abs, tag = 'smem constant byte address 0x4 - core index']
  #allocation1 [shape = 'u32[144,128]{1,0:T(1,128)}', space=vmem, size = 0x12000, scoped, tag = 'internal scratch']
  #allocation2 [shape = 'f32[64,2048]{1,0:T(8,128)}', space=vmem, size = 0x80000, scoped, tag = 'scratch operand']
  %s0 = inlined_call_operand.vmem [shape: f32[2,81,512], index: 0, kind: input, shape index: {}]
  %s1 = inlined_call_operand.vmem [shape: bf16[2048,128], index: 1, kind: input, shape index: {}]
  %s2 = inlined_call_operand.vmem [shape: f32[1,128], index: 2, kind: input, shape index: {}]
  %s3 = inlined_call_operand.vmem [shape: f32[1,128], index: 3, kind: input, shape index: {}]
  %s4 = inlined_call_operand.vmem [shape: f32[2,64,128], index: 4, kind: output, shape index: {}]
  %s5 = sld [smem:[#allocation0]]
  $region49: #{discriminator_forward.3} parent=0
    _
  %s7 = ssub.s32 1, %s5
  %s8 = scalar_select 0, %s7, %s5
  loop: start=0, step=1, limit=4
  $region2: #{discriminator_forward.3} parent=0 // loop_pre_header
    _
  $region3: #{discriminator_forward.3} parent=0 // loop_header
    %s10 = sphi 0, %s14
    %p11 = scmp.ge.s32.totalorder %s10, 4
    %s20 = sphi 0, %s22
    %s23 = sphi 0, %s20
    %s24 = sphi 0, %s23
    %s40 = sphi 0, %s24
    %s44 = sphi 0, %s44
    %s46 = sphi 0, %s44
    %s47 = sphi 0, %s46
    %s61 = sphi 0, %s47
    %s65 = sphi 0, %s65
    %s67 = sphi 0, %s65
    %s68 = sphi 0, %s67
    %s82 = sphi 0, %s68
    %s86 = sphi 0, %s86
    %s88 = sphi 0, %s86
    %s89 = sphi 0, %s88
    %s103 = sphi 0, %s89
    %s109 = sphi 0, %s111
    %s112 = sphi 0, %s109
    %s113 = sphi 0, %s112
    %s129 = sphi 0, %s113
  $region4: #{discriminator_forward.3} parent=0 // loop_header_branch
    %13 = sbr.rel (%p11) target = $region8
  $region5: #{discriminator_forward.3} parent=0 // loop_body
    %s15 = ssub.s32 %s10, 1
    %s16 = ssub.s32 %s10, 2
    %s17 = sadd.s32 %s10, 1
    %s18 = ssub.s32 %s10, %s17
    %p19 = scmp.eq.s32.totalorder %s18, 0
    %s21 = sadd.s32 %s20, 1
    %s22 = scalar_select %p19, %s20, %s21
    %p25 = pneg %p19
    %p26 = scmp.eq.s32.totalorder %s10, 1
    %p27 = por %p25, %p26
    %p28 = scmp.ne.s32.totalorder %s20, %s23
    %p29 = scmp.eq.s32.totalorder %s10, 0
    %p30 = por %p28, %p29
    %p31 = scmp.ne.s32.totalorder %s20, %s23
    %p32 = scmp.eq.s32.totalorder %s15, 1
    %p33 = por %p31, %p32
    %p34 = scmp.ne.s32.totalorder %s23, %s24
    %p35 = scmp.eq.s32.totalorder %s15, 0
    %p36 = por %p34, %p35
    %p37 = scmp.ne.s32.totalorder %s23, %s24
    %p38 = scmp.eq.s32.totalorder %s16, 1
    %p39 = por %p37, %p38
    %p41 = scmp.ne.s32.totalorder %s24, %s40
    %p42 = scmp.eq.s32.totalorder %s16, 0
    %p43 = por %p41, %p42
    %s45 = sadd.s32 %s44, 1
    %p48 = scmp.eq.s32.totalorder %s10, 1
    %p49 = scmp.ne.s32.totalorder %s44, %s46
    %p50 = scmp.eq.s32.totalorder %s10, 0
    %p51 = por %p49, %p50
    %p52 = scmp.ne.s32.totalorder %s44, %s46
    %p53 = scmp.eq.s32.totalorder %s15, 1
    %p54 = por %p52, %p53
    %p55 = scmp.ne.s32.totalorder %s46, %s47
    %p56 = scmp.eq.s32.totalorder %s15, 0
    %p57 = por %p55, %p56
    %p58 = scmp.ne.s32.totalorder %s46, %s47
    %p59 = scmp.eq.s32.totalorder %s16, 1
    %p60 = por %p58, %p59
    %p62 = scmp.ne.s32.totalorder %s47, %s61
    %p63 = scmp.eq.s32.totalorder %s16, 0
    %p64 = por %p62, %p63
    %s66 = sadd.s32 %s65, 1
    %p69 = scmp.eq.s32.totalorder %s10, 1
    %p70 = scmp.ne.s32.totalorder %s65, %s67
    %p71 = scmp.eq.s32.totalorder %s10, 0
    %p72 = por %p70, %p71
    %p73 = scmp.ne.s32.totalorder %s65, %s67
    %p74 = scmp.eq.s32.totalorder %s15, 1
    %p75 = por %p73, %p74
    %p76 = scmp.ne.s32.totalorder %s67, %s68
    %p77 = scmp.eq.s32.totalorder %s15, 0
    %p78 = por %p76, %p77
    %p79 = scmp.ne.s32.totalorder %s67, %s68
    %p80 = scmp.eq.s32.totalorder %s16, 1
    %p81 = por %p79, %p80
    %p83 = scmp.ne.s32.totalorder %s68, %s82
    %p84 = scmp.eq.s32.totalorder %s16, 0
    %p85 = por %p83, %p84
    %s87 = sadd.s32 %s86, 1
    %p90 = scmp.eq.s32.totalorder %s10, 1
    %p91 = scmp.ne.s32.totalorder %s86, %s88
    %p92 = scmp.eq.s32.totalorder %s10, 0
    %p93 = por %p91, %p92
    %p94 = scmp.ne.s32.totalorder %s86, %s88
    %p95 = scmp.eq.s32.totalorder %s15, 1
    %p96 = por %p94, %p95
    %p97 = scmp.ne.s32.totalorder %s88, %s89
    %p98 = scmp.eq.s32.totalorder %s15, 0
    %p99 = por %p97, %p98
    %p100 = scmp.ne.s32.totalorder %s88, %s89
    %p101 = scmp.eq.s32.totalorder %s16, 1
    %p102 = por %p100, %p101
    %p104 = scmp.ne.s32.totalorder %s89, %s103
    %p105 = scmp.eq.s32.totalorder %s16, 0
    %p106 = por %p104, %p105
    %s107 = ssub.s32 %s10, %s17
    %p108 = scmp.eq.s32.totalorder %s107, 0
    %s110 = sadd.s32 %s109, 1
    %s111 = scalar_select %p108, %s109, %s110
    %p114 = pneg %p108
    %p115 = scmp.eq.s32.totalorder %s10, 1
    %p116 = por %p114, %p115
    %p117 = scmp.ne.s32.totalorder %s109, %s112
    %p118 = scmp.eq.s32.totalorder %s10, 0
    %p119 = por %p117, %p118
    %p120 = scmp.ne.s32.totalorder %s109, %s112
    %p121 = scmp.eq.s32.totalorder %s15, 1
    %p122 = por %p120, %p121
    %p123 = scmp.ne.s32.totalorder %s112, %s113
    %p124 = scmp.eq.s32.totalorder %s15, 0
    %p125 = por %p123, %p124
    %p126 = scmp.ne.s32.totalorder %s112, %s113
    %p127 = scmp.eq.s32.totalorder %s16, 1
    %p128 = por %p126, %p127
    %p130 = scmp.ne.s32.totalorder %s113, %s129
    %p131 = scmp.eq.s32.totalorder %s16, 0
    %p132 = por %p130, %p131
    %p133 = scmp.le.s32.totalorder 1, %s10
    %p134 = scmp.lt.s32.totalorder %s10, 3
    %p135 = pnand %p133, %p134
    %p136 = pneg %p135
    // Predicated region
    $region9: #{discriminator_forward.3} parent=5 // pred_check
      _
    $region10: #{discriminator_forward.3} parent=5 // pred_check_branch
      %138 = sbr.rel (%p135) target = $region12
    $region11: #{discriminator_forward.3} parent=5 // pred_region
      %s139 = ssub.s32 %s10, 1
      // Predicated region
      $region13: #{discriminator_forward.3} parent=11 // pred_check
        %p140 = pneg %p57
      $region14: #{discriminator_forward.3} parent=11 // pred_check_branch
        %142 = sbr.rel (%p140) target = $region16
      $region15: #{discriminator_forward.3} parent=11 // pred_region
        _
      $region16: #{discriminator_forward.3} parent=11 // pred_fallthru
        _
      // Predicated region
      $region17: #{discriminator_forward.3} parent=11 // pred_check
        %p143 = pneg %p78
      $region18: #{discriminator_forward.3} parent=11 // pred_check_branch
        %145 = sbr.rel (%p143) target = $region20
      $region19: #{discriminator_forward.3} parent=11 // pred_region
        _
      $region20: #{discriminator_forward.3} parent=11 // pred_fallthru
        _
      // Predicated region
      $region21: #{discriminator_forward.3} parent=11 // pred_check
        %p146 = pneg %p99
      $region22: #{discriminator_forward.3} parent=11 // pred_check_branch
        %148 = sbr.rel (%p146) target = $region24
      $region23: #{discriminator_forward.3} parent=11 // pred_region
        _
      $region24: #{discriminator_forward.3} parent=11 // pred_fallthru
        _
    $region12: #{discriminator_forward.3} parent=5 // pred_fallthru
      _
    %p149 = scmp.lt.s32.totalorder %s10, 2
    // Predicated region
    $region25: #{discriminator_forward.3} parent=5 // pred_check
      %p150 = pneg %p149
    $region26: #{discriminator_forward.3} parent=5 // pred_check_branch
      %152 = sbr.rel (%p150) target = $region28
    $region27: #{discriminator_forward.3} parent=5 // pred_region
      // Predicated region
      $region29: #{discriminator_forward.3} parent=27 // pred_check
        %p153 = pneg %p30
      $region30: #{discriminator_forward.3} parent=27 // pred_check_branch
        %155 = sbr.rel (%p153) target = $region32
      $region31: #{discriminator_forward.3} parent=27 // pred_region
        %p156 = scmp.lt.s32.totalorder %s10, 1
        %s157 = scalar_select %p156, %s10, 1
        %s158 = smul.addr %s157, 44
        %s159 = smul.addr %s158, 8
        %s160 = scalar_lea.vmem %s0, %s159
      $region32: #{discriminator_forward.3} parent=27 // pred_fallthru
        _
    $region28: #{discriminator_forward.3} parent=5 // pred_fallthru
      _
    %p161 = scmp.le.s32.totalorder 1, %s10
    %p162 = scmp.lt.s32.totalorder %s10, 3
    %p163 = pnand %p161, %p162
    %p164 = pneg %p163
    // Predicated region
    $region33: #{discriminator_forward.3} parent=5 // pred_check
      _
    $region34: #{discriminator_forward.3} parent=5 // pred_check_branch
      %166 = sbr.rel (%p163) target = $region36
    $region35: #{discriminator_forward.3} parent=5 // pred_region
      %s167 = ssub.s32 %s10, 1
      %p168 = scmp.lt.s32.totalorder %s15, 1
      %s169 = scalar_select %p168, %s15, 1
      %s170 = smul.addr %s169, 44
      %s171 = smul.addr %s170, 8
      %s172 = scalar_lea.vmem %s0, %s171
      %p173 = pneg %p36
      %p174 = pneg %p33
      %p175 = pneg %p57
      %p176 = pneg %p54
      %p177 = pneg %p78
      %p178 = pneg %p75
      %p179 = pneg %p99
      %p180 = pneg %p96
      %p181 = pneg %p125
      %p182 = pneg %p122
      %p183 = scmp.lt.s32.totalorder %s15, 1
      %s184 = scalar_select %p183, %s15, 1
      %s185 = smul.addr %s184, 8
      %s186 = smul.addr %s185, 8
      %s187 = scalar_lea.vmem %s4, %s186
      %p188 = scmp.lt.s32.totalorder %s15, 1
      %s189 = scalar_select %p188, %s15, 1
      %s190 = smul.addr %s189, 44
      %s191 = smul.addr %s190, 8
      %s192 = scalar_lea.vmem %s0, %s191
      %p193 = scmp.lt.s32.totalorder %s15, 1
      %s194 = scalar_select %p193, %s15, 1
      %s195 = smul.addr %s194, 8
      %s196 = smul.addr %s195, 8
      %s197 = scalar_lea.vmem %s4, %s196
      %v199 = vld [vmem:[%s192] sm:$0xff]
      %v200 = vld [vmem:[%s192 + $0x8] sm:$0xff]
      %v201 = vld [vmem:[%s192 + $0x10] sm:$0xff]
      %v202 = vld [vmem:[%s192 + $0x18] sm:$0xff]
      %203 = vst [vmem:[#allocation2] sm:$0xff] %v199
      %204 = vst [vmem:[#allocation2 + $0x8] sm:$0xff] %v200
      %205 = vst [vmem:[#allocation2 + $0x10] sm:$0xff] %v201
      %206 = vst [vmem:[#allocation2 + $0x18] sm:$0xff] %v202
      %v207 = vld [vmem:[%s192 + $0x20] sm:$0xfe]
      %v208 = vld [vmem:[%s192 + $0x28] sm:$0xfe]
      %v209 = vld [vmem:[%s192 + $0x30] sm:$0xfe]
      %v210 = vld [vmem:[%s192 + $0x38] sm:$0xfe]
      %v211 = vld [vmem:[%s192 + $0x40] sm:$0x1]
      %v212 = vld [vmem:[%s192 + $0x48] sm:$0x1]
      %v213 = vld [vmem:[%s192 + $0x50] sm:$0x1]
      %v214 = vld [vmem:[%s192 + $0x58] sm:$0x1]
      %vm223 = vcmask 1046528
      %v224 = vrot.slane %v207, 1
      %v225 = vrot.slane %v211, 1
      %v226 = vsel %vm223, %v224, %v225
      %v227 = vrot.slane %v208, 1
      %v228 = vrot.slane %v212, 1
      %v229 = vsel %vm223, %v227, %v228
      %v230 = vrot.slane %v209, 1
      %v231 = vrot.slane %v213, 1
      %v232 = vsel %vm223, %v230, %v231
      %v233 = vrot.slane %v210, 1
      %v234 = vrot.slane %v214, 1
      %v235 = vsel %vm223, %v233, %v234
      %240 = vst [vmem:[#allocation2 + $0x80] sm:$0xff] %v226
      %241 = vst [vmem:[#allocation2 + $0x88] sm:$0xff] %v229
      %242 = vst [vmem:[#allocation2 + $0x90] sm:$0xff] %v232
      %243 = vst [vmem:[#allocation2 + $0x98] sm:$0xff] %v235
      %v244 = vld [vmem:[%s192 + $0x40] sm:$0xfc]
      %v245 = vld [vmem:[%s192 + $0x48] sm:$0xfc]
      %v246 = vld [vmem:[%s192 + $0x50] sm:$0xfc]
      %v247 = vld [vmem:[%s192 + $0x58] sm:$0xfc]
      %v248 = vld [vmem:[%s192 + $0x60] sm:$0x3]
      %v249 = vld [vmem:[%s192 + $0x68] sm:$0x3]
      %v250 = vld [vmem:[%s192 + $0x70] sm:$0x3]
      %v251 = vld [vmem:[%s192 + $0x78] sm:$0x3]
      %vm260 = vcmask 1045504
      %v261 = vrot.slane %v244, 2
      %v262 = vrot.slane %v248, 2
      %v263 = vsel %vm260, %v261, %v262
      %v264 = vrot.slane %v245, 2
      %v265 = vrot.slane %v249, 2
      %v266 = vsel %vm260, %v264, %v265
      %v267 = vrot.slane %v246, 2
      %v268 = vrot.slane %v250, 2
      %v269 = vsel %vm260, %v267, %v268
      %v270 = vrot.slane %v247, 2
      %v271 = vrot.slane %v251, 2
      %v272 = vsel %vm260, %v270, %v271
      %277 = vst [vmem:[#allocation2 + $0x100] sm:$0xff] %v263
      %278 = vst [vmem:[#allocation2 + $0x108] sm:$0xff] %v266
      %279 = vst [vmem:[#allocation2 + $0x110] sm:$0xff] %v269
      %280 = vst [vmem:[#allocation2 + $0x118] sm:$0xff] %v272
      %v281 = vld [vmem:[%s192 + $0x60] sm:$0xf8]
      %v282 = vld [vmem:[%s192 + $0x68] sm:$0xf8]
      %v283 = vld [vmem:[%s192 + $0x70] sm:$0xf8]
      %v284 = vld [vmem:[%s192 + $0x78] sm:$0xf8]
      %v285 = vld [vmem:[%s192 + $0x80] sm:$0x7]
      %v286 = vld [vmem:[%s192 + $0x88] sm:$0x7]
      %v287 = vld [vmem:[%s192 + $0x90] sm:$0x7]
      %v288 = vld [vmem:[%s192 + $0x98] sm:$0x7]
      %vm297 = vcmask 1044480
      %v298 = vrot.slane %v281, 3
      %v299 = vrot.slane %v285, 3
      %v300 = vsel %vm297, %v298, %v299
      %v301 = vrot.slane %v282, 3
      %v302 = vrot.slane %v286, 3
      %v303 = vsel %vm297, %v301, %v302
      %v304 = vrot.slane %v283, 3
      %v305 = vrot.slane %v287, 3
      %v306 = vsel %vm297, %v304, %v305
      %v307 = vrot.slane %v284, 3
      %v308 = vrot.slane %v288, 3
      %v309 = vsel %vm297, %v307, %v308
      %314 = vst [vmem:[#allocation2 + $0x180] sm:$0xff] %v300
      %315 = vst [vmem:[#allocation2 + $0x188] sm:$0xff] %v303
      %316 = vst [vmem:[#allocation2 + $0x190] sm:$0xff] %v306
      %317 = vst [vmem:[#allocation2 + $0x198] sm:$0xff] %v309
      %v318 = vld [vmem:[%s192 + $0x80] sm:$0xf0]
      %v319 = vld [vmem:[%s192 + $0x88] sm:$0xf0]
      %v320 = vld [vmem:[%s192 + $0x90] sm:$0xf0]
      %v321 = vld [vmem:[%s192 + $0x98] sm:$0xf0]
      %v322 = vld [vmem:[%s192 + $0xa0] sm:$0xf]
      %v323 = vld [vmem:[%s192 + $0xa8] sm:$0xf]
      %v324 = vld [vmem:[%s192 + $0xb0] sm:$0xf]
      %v325 = vld [vmem:[%s192 + $0xb8] sm:$0xf]
      %vm334 = vcmask 1043456
      %v335 = vrot.slane %v318, 4
      %v336 = vrot.slane %v322, 4
      %v337 = vsel %vm334, %v335, %v336
      %v338 = vrot.slane %v319, 4
      %v339 = vrot.slane %v323, 4
      %v340 = vsel %vm334, %v338, %v339
      %v341 = vrot.slane %v320, 4
      %v342 = vrot.slane %v324, 4
      %v343 = vsel %vm334, %v341, %v342
      %v344 = vrot.slane %v321, 4
      %v345 = vrot.slane %v325, 4
      %v346 = vsel %vm334, %v344, %v345
      %351 = vst [vmem:[#allocation2 + $0x200] sm:$0xff] %v337
      %352 = vst [vmem:[#allocation2 + $0x208] sm:$0xff] %v340
      %353 = vst [vmem:[#allocation2 + $0x210] sm:$0xff] %v343
      %354 = vst [vmem:[#allocation2 + $0x218] sm:$0xff] %v346
      %v355 = vld [vmem:[%s192 + $0xa0] sm:$0xe0]
      %v356 = vld [vmem:[%s192 + $0xa8] sm:$0xe0]
      %v357 = vld [vmem:[%s192 + $0xb0] sm:$0xe0]
      %v358 = vld [vmem:[%s192 + $0xb8] sm:$0xe0]
      %v359 = vld [vmem:[%s192 + $0xc0] sm:$0x1f]
      %v360 = vld [vmem:[%s192 + $0xc8] sm:$0x1f]
      %v361 = vld [vmem:[%s192 + $0xd0] sm:$0x1f]
      %v362 = vld [vmem:[%s192 + $0xd8] sm:$0x1f]
      %vm371 = vcmask 1042432
      %v372 = vrot.slane %v355, 5
      %v373 = vrot.slane %v359, 5
      %v374 = vsel %vm371, %v372, %v373
      %v375 = vrot.slane %v356, 5
      %v376 = vrot.slane %v360, 5
      %v377 = vsel %vm371, %v375, %v376
      %v378 = vrot.slane %v357, 5
      %v379 = vrot.slane %v361, 5
      %v380 = vsel %vm371, %v378, %v379
      %v381 = vrot.slane %v358, 5
      %v382 = vrot.slane %v362, 5
      %v383 = vsel %vm371, %v381, %v382
      %388 = vst [vmem:[#allocation2 + $0x280] sm:$0xff] %v374
      %389 = vst [vmem:[#allocation2 + $0x288] sm:$0xff] %v377
      %390 = vst [vmem:[#allocation2 + $0x290] sm:$0xff] %v380
      %391 = vst [vmem:[#allocation2 + $0x298] sm:$0xff] %v383
      %v392 = vld [vmem:[%s192 + $0xc0] sm:$0xc0]
      %v393 = vld [vmem:[%s192 + $0xc8] sm:$0xc0]
      %v394 = vld [vmem:[%s192 + $0xd0] sm:$0xc0]
      %v395 = vld [vmem:[%s192 + $0xd8] sm:$0xc0]
      %v396 = vld [vmem:[%s192 + $0xe0] sm:$0x3f]
      %v397 = vld [vmem:[%s192 + $0xe8] sm:$0x3f]
      %v398 = vld [vmem:[%s192 + $0xf0] sm:$0x3f]
      %v399 = vld [vmem:[%s192 + $0xf8] sm:$0x3f]
      %vm408 = vcmask 1041408
      %v409 = vrot.slane %v392, 6
      %v410 = vrot.slane %v396, 6
      %v411 = vsel %vm408, %v409, %v410
      %v412 = vrot.slane %v393, 6
      %v413 = vrot.slane %v397, 6
      %v414 = vsel %vm408, %v412, %v413
      %v415 = vrot.slane %v394, 6
      %v416 = vrot.slane %v398, 6
      %v417 = vsel %vm408, %v415, %v416
      %v418 = vrot.slane %v395, 6
      %v419 = vrot.slane %v399, 6
      %v420 = vsel %vm408, %v418, %v419
      %425 = vst [vmem:[#allocation2 + $0x300] sm:$0xff] %v411
      %426 = vst [vmem:[#allocation2 + $0x308] sm:$0xff] %v414
      %427 = vst [vmem:[#allocation2 + $0x310] sm:$0xff] %v417
      %428 = vst [vmem:[#allocation2 + $0x318] sm:$0xff] %v420
      %v429 = vld [vmem:[%s192 + $0xe0] sm:$0x80]
      %v430 = vld [vmem:[%s192 + $0xe8] sm:$0x80]
      %v431 = vld [vmem:[%s192 + $0xf0] sm:$0x80]
      %v432 = vld [vmem:[%s192 + $0xf8] sm:$0x80]
      %v433 = vld [vmem:[%s192 + $0x100] sm:$0x7f]
      %v434 = vld [vmem:[%s192 + $0x108] sm:$0x7f]
      %v435 = vld [vmem:[%s192 + $0x110] sm:$0x7f]
      %v436 = vld [vmem:[%s192 + $0x118] sm:$0x7f]
      %vm445 = vcmask 1040384
      %v446 = vrot.slane %v429, 7
      %v447 = vrot.slane %v433, 7
      %v448 = vsel %vm445, %v446, %v447
      %v449 = vrot.slane %v430, 7
      %v450 = vrot.slane %v434, 7
      %v451 = vsel %vm445, %v449, %v450
      %v452 = vrot.slane %v431, 7
      %v453 = vrot.slane %v435, 7
      %v454 = vsel %vm445, %v452, %v453
      %v455 = vrot.slane %v432, 7
      %v456 = vrot.slane %v436, 7
      %v457 = vsel %vm445, %v455, %v456
      %462 = vst [vmem:[#allocation2 + $0x380] sm:$0xff] %v448
      %463 = vst [vmem:[#allocation2 + $0x388] sm:$0xff] %v451
      %464 = vst [vmem:[#allocation2 + $0x390] sm:$0xff] %v454
      %465 = vst [vmem:[#allocation2 + $0x398] sm:$0xff] %v457
      %v466 = vld [vmem:[%s192] sm:$0xfe]
      %v467 = vld [vmem:[%s192 + $0x8] sm:$0xfe]
      %v468 = vld [vmem:[%s192 + $0x10] sm:$0xfe]
      %v469 = vld [vmem:[%s192 + $0x18] sm:$0xfe]
      %v470 = vld [vmem:[%s192 + $0x20] sm:$0x1]
      %v471 = vld [vmem:[%s192 + $0x28] sm:$0x1]
      %v472 = vld [vmem:[%s192 + $0x30] sm:$0x1]
      %v473 = vld [vmem:[%s192 + $0x38] sm:$0x1]
      %v482 = vrot.slane %v466, 1
      %v483 = vrot.slane %v470, 1
      %v484 = vsel %vm223, %v482, %v483
      %v485 = vrot.slane %v467, 1
      %v486 = vrot.slane %v471, 1
      %v487 = vsel %vm223, %v485, %v486
      %v488 = vrot.slane %v468, 1
      %v489 = vrot.slane %v472, 1
      %v490 = vsel %vm223, %v488, %v489
      %v491 = vrot.slane %v469, 1
      %v492 = vrot.slane %v473, 1
      %v493 = vsel %vm223, %v491, %v492
      %498 = vst [vmem:[#allocation2 + $0x20] sm:$0xff] %v484
      %499 = vst [vmem:[#allocation2 + $0x28] sm:$0xff] %v487
      %500 = vst [vmem:[#allocation2 + $0x30] sm:$0xff] %v490
      %501 = vst [vmem:[#allocation2 + $0x38] sm:$0xff] %v493
      %v502 = vld [vmem:[%s192 + $0x20] sm:$0xfc]
      %v503 = vld [vmem:[%s192 + $0x28] sm:$0xfc]
      %v504 = vld [vmem:[%s192 + $0x30] sm:$0xfc]
      %v505 = vld [vmem:[%s192 + $0x38] sm:$0xfc]
      %v506 = vld [vmem:[%s192 + $0x40] sm:$0x3]
      %v507 = vld [vmem:[%s192 + $0x48] sm:$0x3]
      %v508 = vld [vmem:[%s192 + $0x50] sm:$0x3]
      %v509 = vld [vmem:[%s192 + $0x58] sm:$0x3]
      %v518 = vrot.slane %v502, 2
      %v519 = vrot.slane %v506, 2
      %v520 = vsel %vm260, %v518, %v519
      %v521 = vrot.slane %v503, 2
      %v522 = vrot.slane %v507, 2
      %v523 = vsel %vm260, %v521, %v522
      %v524 = vrot.slane %v504, 2
      %v525 = vrot.slane %v508, 2
      %v526 = vsel %vm260, %v524, %v525
      %v527 = vrot.slane %v505, 2
      %v528 = vrot.slane %v509, 2
      %v529 = vsel %vm260, %v527, %v528
      %534 = vst [vmem:[#allocation2 + $0xa0] sm:$0xff] %v520
      %535 = vst [vmem:[#allocation2 + $0xa8] sm:$0xff] %v523
      %536 = vst [vmem:[#allocation2 + $0xb0] sm:$0xff] %v526
      %537 = vst [vmem:[#allocation2 + $0xb8] sm:$0xff] %v529
      %v538 = vld [vmem:[%s192 + $0x40] sm:$0xf8]
      %v539 = vld [vmem:[%s192 + $0x48] sm:$0xf8]
      %v540 = vld [vmem:[%s192 + $0x50] sm:$0xf8]
      %v541 = vld [vmem:[%s192 + $0x58] sm:$0xf8]
      %v542 = vld [vmem:[%s192 + $0x60] sm:$0x7]
      %v543 = vld [vmem:[%s192 + $0x68] sm:$0x7]
      %v544 = vld [vmem:[%s192 + $0x70] sm:$0x7]
      %v545 = vld [vmem:[%s192 + $0x78] sm:$0x7]
      %v554 = vrot.slane %v538, 3
      %v555 = vrot.slane %v542, 3
      %v556 = vsel %vm297, %v554, %v555
      %v557 = vrot.slane %v539, 3
      %v558 = vrot.slane %v543, 3
      %v559 = vsel %vm297, %v557, %v558
      %v560 = vrot.slane %v540, 3
      %v561 = vrot.slane %v544, 3
      %v562 = vsel %vm297, %v560, %v561
      %v563 = vrot.slane %v541, 3
      %v564 = vrot.slane %v545, 3
      %v565 = vsel %vm297, %v563, %v564
      %570 = vst [vmem:[#allocation2 + $0x120] sm:$0xff] %v556
      %571 = vst [vmem:[#allocation2 + $0x128] sm:$0xff] %v559
      %572 = vst [vmem:[#allocation2 + $0x130] sm:$0xff] %v562
      %573 = vst [vmem:[#allocation2 + $0x138] sm:$0xff] %v565
      %v574 = vld [vmem:[%s192 + $0x60] sm:$0xf0]
      %v575 = vld [vmem:[%s192 + $0x68] sm:$0xf0]
      %v576 = vld [vmem:[%s192 + $0x70] sm:$0xf0]
      %v577 = vld [vmem:[%s192 + $0x78] sm:$0xf0]
      %v578 = vld [vmem:[%s192 + $0x80] sm:$0xf]
      %v579 = vld [vmem:[%s192 + $0x88] sm:$0xf]
      %v580 = vld [vmem:[%s192 + $0x90] sm:$0xf]
      %v581 = vld [vmem:[%s192 + $0x98] sm:$0xf]
      %v590 = vrot.slane %v574, 4
      %v591 = vrot.slane %v578, 4
      %v592 = vsel %vm334, %v590, %v591
      %v593 = vrot.slane %v575, 4
      %v594 = vrot.slane %v579, 4
      %v595 = vsel %vm334, %v593, %v594
      %v596 = vrot.slane %v576, 4
      %v597 = vrot.slane %v580, 4
      %v598 = vsel %vm334, %v596, %v597
      %v599 = vrot.slane %v577, 4
      %v600 = vrot.slane %v581, 4
      %v601 = vsel %vm334, %v599, %v600
      %606 = vst [vmem:[#allocation2 + $0x1a0] sm:$0xff] %v592
      %607 = vst [vmem:[#allocation2 + $0x1a8] sm:$0xff] %v595
      %608 = vst [vmem:[#allocation2 + $0x1b0] sm:$0xff] %v598
      %609 = vst [vmem:[#allocation2 + $0x1b8] sm:$0xff] %v601
      %v610 = vld [vmem:[%s192 + $0x80] sm:$0xe0]
      %v611 = vld [vmem:[%s192 + $0x88] sm:$0xe0]
      %v612 = vld [vmem:[%s192 + $0x90] sm:$0xe0]
      %v613 = vld [vmem:[%s192 + $0x98] sm:$0xe0]
      %v614 = vld [vmem:[%s192 + $0xa0] sm:$0x1f]
      %v615 = vld [vmem:[%s192 + $0xa8] sm:$0x1f]
      %v616 = vld [vmem:[%s192 + $0xb0] sm:$0x1f]
      %v617 = vld [vmem:[%s192 + $0xb8] sm:$0x1f]
      %v626 = vrot.slane %v610, 5
      %v627 = vrot.slane %v614, 5
      %v628 = vsel %vm371, %v626, %v627
      %v629 = vrot.slane %v611, 5
      %v630 = vrot.slane %v615, 5
      %v631 = vsel %vm371, %v629, %v630
      %v632 = vrot.slane %v612, 5
      %v633 = vrot.slane %v616, 5
      %v634 = vsel %vm371, %v632, %v633
      %v635 = vrot.slane %v613, 5
      %v636 = vrot.slane %v617, 5
      %v637 = vsel %vm371, %v635, %v636
      %642 = vst [vmem:[#allocation2 + $0x220] sm:$0xff] %v628
      %643 = vst [vmem:[#allocation2 + $0x228] sm:$0xff] %v631
      %644 = vst [vmem:[#allocation2 + $0x230] sm:$0xff] %v634
      %645 = vst [vmem:[#allocation2 + $0x238] sm:$0xff] %v637
      %v646 = vld [vmem:[%s192 + $0xa0] sm:$0xc0]
      %v647 = vld [vmem:[%s192 + $0xa8] sm:$0xc0]
      %v648 = vld [vmem:[%s192 + $0xb0] sm:$0xc0]
      %v649 = vld [vmem:[%s192 + $0xb8] sm:$0xc0]
      %v650 = vld [vmem:[%s192 + $0xc0] sm:$0x3f]
      %v651 = vld [vmem:[%s192 + $0xc8] sm:$0x3f]
      %v652 = vld [vmem:[%s192 + $0xd0] sm:$0x3f]
      %v653 = vld [vmem:[%s192 + $0xd8] sm:$0x3f]
      %v662 = vrot.slane %v646, 6
      %v663 = vrot.slane %v650, 6
      %v664 = vsel %vm408, %v662, %v663
      %v665 = vrot.slane %v647, 6
      %v666 = vrot.slane %v651, 6
      %v667 = vsel %vm408, %v665, %v666
      %v668 = vrot.slane %v648, 6
      %v669 = vrot.slane %v652, 6
      %v670 = vsel %vm408, %v668, %v669
      %v671 = vrot.slane %v649, 6
      %v672 = vrot.slane %v653, 6
      %v673 = vsel %vm408, %v671, %v672
      %678 = vst [vmem:[#allocation2 + $0x2a0] sm:$0xff] %v664
      %679 = vst [vmem:[#allocation2 + $0x2a8] sm:$0xff] %v667
      %680 = vst [vmem:[#allocation2 + $0x2b0] sm:$0xff] %v670
      %681 = vst [vmem:[#allocation2 + $0x2b8] sm:$0xff] %v673
      %v682 = vld [vmem:[%s192 + $0xc0] sm:$0x80]
      %v683 = vld [vmem:[%s192 + $0xc8] sm:$0x80]
      %v684 = vld [vmem:[%s192 + $0xd0] sm:$0x80]
      %v685 = vld [vmem:[%s192 + $0xd8] sm:$0x80]
      %v686 = vld [vmem:[%s192 + $0xe0] sm:$0x7f]
      %v687 = vld [vmem:[%s192 + $0xe8] sm:$0x7f]
      %v688 = vld [vmem:[%s192 + $0xf0] sm:$0x7f]
      %v689 = vld [vmem:[%s192 + $0xf8] sm:$0x7f]
      %v698 = vrot.slane %v682, 7
      %v699 = vrot.slane %v686, 7
      %v700 = vsel %vm445, %v698, %v699
      %v701 = vrot.slane %v683, 7
      %v702 = vrot.slane %v687, 7
      %v703 = vsel %vm445, %v701, %v702
      %v704 = vrot.slane %v684, 7
      %v705 = vrot.slane %v688, 7
      %v706 = vsel %vm445, %v704, %v705
      %v707 = vrot.slane %v685, 7
      %v708 = vrot.slane %v689, 7
      %v709 = vsel %vm445, %v707, %v708
      %714 = vst [vmem:[#allocation2 + $0x320] sm:$0xff] %v700
      %715 = vst [vmem:[#allocation2 + $0x328] sm:$0xff] %v703
      %716 = vst [vmem:[#allocation2 + $0x330] sm:$0xff] %v706
      %717 = vst [vmem:[#allocation2 + $0x338] sm:$0xff] %v709
      %v718 = vld [vmem:[%s192 + $0x100] sm:$0xff]
      %v719 = vld [vmem:[%s192 + $0x108] sm:$0xff]
      %v720 = vld [vmem:[%s192 + $0x110] sm:$0xff]
      %v721 = vld [vmem:[%s192 + $0x118] sm:$0xff]
      %722 = vst [vmem:[#allocation2 + $0x3a0] sm:$0xff] %v718
      %723 = vst [vmem:[#allocation2 + $0x3a8] sm:$0xff] %v719
      %724 = vst [vmem:[#allocation2 + $0x3b0] sm:$0xff] %v720
      %725 = vst [vmem:[#allocation2 + $0x3b8] sm:$0xff] %v721
      %v726 = vld [vmem:[%s192 + $0x20] sm:$0xfe]
      %v727 = vld [vmem:[%s192 + $0x28] sm:$0xfe]
      %v728 = vld [vmem:[%s192 + $0x30] sm:$0xfe]
      %v729 = vld [vmem:[%s192 + $0x38] sm:$0xfe]
      %v730 = vld [vmem:[%s192 + $0x40] sm:$0x1]
      %v731 = vld [vmem:[%s192 + $0x48] sm:$0x1]
      %v732 = vld [vmem:[%s192 + $0x50] sm:$0x1]
      %v733 = vld [vmem:[%s192 + $0x58] sm:$0x1]
      %v742 = vrot.slane %v726, 1
      %v743 = vrot.slane %v730, 1
      %v744 = vsel %vm223, %v742, %v743
      %v745 = vrot.slane %v727, 1
      %v746 = vrot.slane %v731, 1
      %v747 = vsel %vm223, %v745, %v746
      %v748 = vrot.slane %v728, 1
      %v749 = vrot.slane %v732, 1
      %v750 = vsel %vm223, %v748, %v749
      %v751 = vrot.slane %v729, 1
      %v752 = vrot.slane %v733, 1
      %v753 = vsel %vm223, %v751, %v752
      %758 = vst [vmem:[#allocation2 + $0x40] sm:$0xff] %v744
      %759 = vst [vmem:[#allocation2 + $0x48] sm:$0xff] %v747
      %760 = vst [vmem:[#allocation2 + $0x50] sm:$0xff] %v750
      %761 = vst [vmem:[#allocation2 + $0x58] sm:$0xff] %v753
      %v762 = vld [vmem:[%s192 + $0x40] sm:$0xfc]
      %v763 = vld [vmem:[%s192 + $0x48] sm:$0xfc]
      %v764 = vld [vmem:[%s192 + $0x50] sm:$0xfc]
      %v765 = vld [vmem:[%s192 + $0x58] sm:$0xfc]
      %v766 = vld [vmem:[%s192 + $0x60] sm:$0x3]
      %v767 = vld [vmem:[%s192 + $0x68] sm:$0x3]
      %v768 = vld [vmem:[%s192 + $0x70] sm:$0x3]
      %v769 = vld [vmem:[%s192 + $0x78] sm:$0x3]
      %v778 = vrot.slane %v762, 2
      %v779 = vrot.slane %v766, 2
      %v780 = vsel %vm260, %v778, %v779
      %v781 = vrot.slane %v763, 2
      %v782 = vrot.slane %v767, 2
      %v783 = vsel %vm260, %v781, %v782
      %v784 = vrot.slane %v764, 2
      %v785 = vrot.slane %v768, 2
      %v786 = vsel %vm260, %v784, %v785
      %v787 = vrot.slane %v765, 2
      %v788 = vrot.slane %v769, 2
      %v789 = vsel %vm260, %v787, %v788
      %794 = vst [vmem:[#allocation2 + $0xc0] sm:$0xff] %v780
      %795 = vst [vmem:[#allocation2 + $0xc8] sm:$0xff] %v783
      %796 = vst [vmem:[#allocation2 + $0xd0] sm:$0xff] %v786
      %797 = vst [vmem:[#allocation2 + $0xd8] sm:$0xff] %v789
      %v798 = vld [vmem:[%s192 + $0x60] sm:$0xf8]
      %v799 = vld [vmem:[%s192 + $0x68] sm:$0xf8]
      %v800 = vld [vmem:[%s192 + $0x70] sm:$0xf8]
      %v801 = vld [vmem:[%s192 + $0x78] sm:$0xf8]
      %v802 = vld [vmem:[%s192 + $0x80] sm:$0x7]
      %v803 = vld [vmem:[%s192 + $0x88] sm:$0x7]
      %v804 = vld [vmem:[%s192 + $0x90] sm:$0x7]
      %v805 = vld [vmem:[%s192 + $0x98] sm:$0x7]
      %v814 = vrot.slane %v798, 3
      %v815 = vrot.slane %v802, 3
      %v816 = vsel %vm297, %v814, %v815
      %v817 = vrot.slane %v799, 3
      %v818 = vrot.slane %v803, 3
      %v819 = vsel %vm297, %v817, %v818
      %v820 = vrot.slane %v800, 3
      %v821 = vrot.slane %v804, 3
      %v822 = vsel %vm297, %v820, %v821
      %v823 = vrot.slane %v801, 3
      %v824 = vrot.slane %v805, 3
      %v825 = vsel %vm297, %v823, %v824
      %830 = vst [vmem:[#allocation2 + $0x140] sm:$0xff] %v816
      %831 = vst [vmem:[#allocation2 + $0x148] sm:$0xff] %v819
      %832 = vst [vmem:[#allocation2 + $0x150] sm:$0xff] %v822
      %833 = vst [vmem:[#allocation2 + $0x158] sm:$0xff] %v825
      %v834 = vld [vmem:[%s192 + $0x80] sm:$0xf0]
      %v835 = vld [vmem:[%s192 + $0x88] sm:$0xf0]
      %v836 = vld [vmem:[%s192 + $0x90] sm:$0xf0]
      %v837 = vld [vmem:[%s192 + $0x98] sm:$0xf0]
      %v838 = vld [vmem:[%s192 + $0xa0] sm:$0xf]
      %v839 = vld [vmem:[%s192 + $0xa8] sm:$0xf]
      %v840 = vld [vmem:[%s192 + $0xb0] sm:$0xf]
      %v841 = vld [vmem:[%s192 + $0xb8] sm:$0xf]
      %v850 = vrot.slane %v834, 4
      %v851 = vrot.slane %v838, 4
      %v852 = vsel %vm334, %v850, %v851
      %v853 = vrot.slane %v835, 4
      %v854 = vrot.slane %v839, 4
      %v855 = vsel %vm334, %v853, %v854
      %v856 = vrot.slane %v836, 4
      %v857 = vrot.slane %v840, 4
      %v858 = vsel %vm334, %v856, %v857
      %v859 = vrot.slane %v837, 4
      %v860 = vrot.slane %v841, 4
      %v861 = vsel %vm334, %v859, %v860
      %866 = vst [vmem:[#allocation2 + $0x1c0] sm:$0xff] %v852
      %867 = vst [vmem:[#allocation2 + $0x1c8] sm:$0xff] %v855
      %868 = vst [vmem:[#allocation2 + $0x1d0] sm:$0xff] %v858
      %869 = vst [vmem:[#allocation2 + $0x1d8] sm:$0xff] %v861
      %v870 = vld [vmem:[%s192 + $0xa0] sm:$0xe0]
      %v871 = vld [vmem:[%s192 + $0xa8] sm:$0xe0]
      %v872 = vld [vmem:[%s192 + $0xb0] sm:$0xe0]
      %v873 = vld [vmem:[%s192 + $0xb8] sm:$0xe0]
      %v874 = vld [vmem:[%s192 + $0xc0] sm:$0x1f]
      %v875 = vld [vmem:[%s192 + $0xc8] sm:$0x1f]
      %v876 = vld [vmem:[%s192 + $0xd0] sm:$0x1f]
      %v877 = vld [vmem:[%s192 + $0xd8] sm:$0x1f]
      %v886 = vrot.slane %v870, 5
      %v887 = vrot.slane %v874, 5
      %v888 = vsel %vm371, %v886, %v887
      %v889 = vrot.slane %v871, 5
      %v890 = vrot.slane %v875, 5
      %v891 = vsel %vm371, %v889, %v890
      %v892 = vrot.slane %v872, 5
      %v893 = vrot.slane %v876, 5
      %v894 = vsel %vm371, %v892, %v893
      %v895 = vrot.slane %v873, 5
      %v896 = vrot.slane %v877, 5
      %v897 = vsel %vm371, %v895, %v896
      %902 = vst [vmem:[#allocation2 + $0x240] sm:$0xff] %v888
      %903 = vst [vmem:[#allocation2 + $0x248] sm:$0xff] %v891
      %904 = vst [vmem:[#allocation2 + $0x250] sm:$0xff] %v894
      %905 = vst [vmem:[#allocation2 + $0x258] sm:$0xff] %v897
      %v906 = vld [vmem:[%s192 + $0xc0] sm:$0xc0]
      %v907 = vld [vmem:[%s192 + $0xc8] sm:$0xc0]
      %v908 = vld [vmem:[%s192 + $0xd0] sm:$0xc0]
      %v909 = vld [vmem:[%s192 + $0xd8] sm:$0xc0]
      %v910 = vld [vmem:[%s192 + $0xe0] sm:$0x3f]
      %v911 = vld [vmem:[%s192 + $0xe8] sm:$0x3f]
      %v912 = vld [vmem:[%s192 + $0xf0] sm:$0x3f]
      %v913 = vld [vmem:[%s192 + $0xf8] sm:$0x3f]
      %v922 = vrot.slane %v906, 6
      %v923 = vrot.slane %v910, 6
      %v924 = vsel %vm408, %v922, %v923
      %v925 = vrot.slane %v907, 6
      %v926 = vrot.slane %v911, 6
      %v927 = vsel %vm408, %v925, %v926
      %v928 = vrot.slane %v908, 6
      %v929 = vrot.slane %v912, 6
      %v930 = vsel %vm408, %v928, %v929
      %v931 = vrot.slane %v909, 6
      %v932 = vrot.slane %v913, 6
      %v933 = vsel %vm408, %v931, %v932
      %938 = vst [vmem:[#allocation2 + $0x2c0] sm:$0xff] %v924
      %939 = vst [vmem:[#allocation2 + $0x2c8] sm:$0xff] %v927
      %940 = vst [vmem:[#allocation2 + $0x2d0] sm:$0xff] %v930
      %941 = vst [vmem:[#allocation2 + $0x2d8] sm:$0xff] %v933
      %v942 = vld [vmem:[%s192 + $0xe0] sm:$0x80]
      %v943 = vld [vmem:[%s192 + $0xe8] sm:$0x80]
      %v944 = vld [vmem:[%s192 + $0xf0] sm:$0x80]
      %v945 = vld [vmem:[%s192 + $0xf8] sm:$0x80]
      %v946 = vld [vmem:[%s192 + $0x100] sm:$0x7f]
      %v947 = vld [vmem:[%s192 + $0x108] sm:$0x7f]
      %v948 = vld [vmem:[%s192 + $0x110] sm:$0x7f]
      %v949 = vld [vmem:[%s192 + $0x118] sm:$0x7f]
      %v958 = vrot.slane %v942, 7
      %v959 = vrot.slane %v946, 7
      %v960 = vsel %vm445, %v958, %v959
      %v961 = vrot.slane %v943, 7
      %v962 = vrot.slane %v947, 7
      %v963 = vsel %vm445, %v961, %v962
      %v964 = vrot.slane %v944, 7
      %v965 = vrot.slane %v948, 7
      %v966 = vsel %vm445, %v964, %v965
      %v967 = vrot.slane %v945, 7
      %v968 = vrot.slane %v949, 7
      %v969 = vsel %vm445, %v967, %v968
      %974 = vst [vmem:[#allocation2 + $0x340] sm:$0xff] %v960
      %975 = vst [vmem:[#allocation2 + $0x348] sm:$0xff] %v963
      %976 = vst [vmem:[#allocation2 + $0x350] sm:$0xff] %v966
      %977 = vst [vmem:[#allocation2 + $0x358] sm:$0xff] %v969
      %v978 = vld [vmem:[%s192 + $0x120] sm:$0xff]
      %v979 = vld [vmem:[%s192 + $0x128] sm:$0xff]
      %v980 = vld [vmem:[%s192 + $0x130] sm:$0xff]
      %v981 = vld [vmem:[%s192 + $0x138] sm:$0xff]
      %982 = vst [vmem:[#allocation2 + $0x3c0] sm:$0xff] %v978
      %983 = vst [vmem:[#allocation2 + $0x3c8] sm:$0xff] %v979
      %984 = vst [vmem:[#allocation2 + $0x3d0] sm:$0xff] %v980
      %985 = vst [vmem:[#allocation2 + $0x3d8] sm:$0xff] %v981
      %v986 = vld [vmem:[%s192 + $0x20] sm:$0xfc]
      %v987 = vld [vmem:[%s192 + $0x28] sm:$0xfc]
      %v988 = vld [vmem:[%s192 + $0x30] sm:$0xfc]
      %v989 = vld [vmem:[%s192 + $0x38] sm:$0xfc]
      %v990 = vld [vmem:[%s192 + $0x40] sm:$0x3]
      %v991 = vld [vmem:[%s192 + $0x48] sm:$0x3]
      %v992 = vld [vmem:[%s192 + $0x50] sm:$0x3]
      %v993 = vld [vmem:[%s192 + $0x58] sm:$0x3]
      %v1002 = vrot.slane %v986, 2
      %v1003 = vrot.slane %v990, 2
      %v1004 = vsel %vm260, %v1002, %v1003
      %v1005 = vrot.slane %v987, 2
      %v1006 = vrot.slane %v991, 2
      %v1007 = vsel %vm260, %v1005, %v1006
      %v1008 = vrot.slane %v988, 2
      %v1009 = vrot.slane %v992, 2
      %v1010 = vsel %vm260, %v1008, %v1009
      %v1011 = vrot.slane %v989, 2
      %v1012 = vrot.slane %v993, 2
      %v1013 = vsel %vm260, %v1011, %v1012
      %1018 = vst [vmem:[#allocation2 + $0x60] sm:$0xff] %v1004
      %1019 = vst [vmem:[#allocation2 + $0x68] sm:$0xff] %v1007
      %1020 = vst [vmem:[#allocation2 + $0x70] sm:$0xff] %v1010
      %1021 = vst [vmem:[#allocation2 + $0x78] sm:$0xff] %v1013
      %v1022 = vld [vmem:[%s192 + $0x40] sm:$0xf8]
      %v1023 = vld [vmem:[%s192 + $0x48] sm:$0xf8]
      %v1024 = vld [vmem:[%s192 + $0x50] sm:$0xf8]
      %v1025 = vld [vmem:[%s192 + $0x58] sm:$0xf8]
      %v1026 = vld [vmem:[%s192 + $0x60] sm:$0x7]
      %v1027 = vld [vmem:[%s192 + $0x68] sm:$0x7]
      %v1028 = vld [vmem:[%s192 + $0x70] sm:$0x7]
      %v1029 = vld [vmem:[%s192 + $0x78] sm:$0x7]
      %v1038 = vrot.slane %v1022, 3
      %v1039 = vrot.slane %v1026, 3
      %v1040 = vsel %vm297, %v1038, %v1039
      %v1041 = vrot.slane %v1023, 3
      %v1042 = vrot.slane %v1027, 3
      %v1043 = vsel %vm297, %v1041, %v1042
      %v1044 = vrot.slane %v1024, 3
      %v1045 = vrot.slane %v1028, 3
      %v1046 = vsel %vm297, %v1044, %v1045
      %v1047 = vrot.slane %v1025, 3
      %v1048 = vrot.slane %v1029, 3
      %v1049 = vsel %vm297, %v1047, %v1048
      %1054 = vst [vmem:[#allocation2 + $0xe0] sm:$0xff] %v1040
      %1055 = vst [vmem:[#allocation2 + $0xe8] sm:$0xff] %v1043
      %1056 = vst [vmem:[#allocation2 + $0xf0] sm:$0xff] %v1046
      %1057 = vst [vmem:[#allocation2 + $0xf8] sm:$0xff] %v1049
      %v1058 = vld [vmem:[%s192 + $0x60] sm:$0xf0]
      %v1059 = vld [vmem:[%s192 + $0x68] sm:$0xf0]
      %v1060 = vld [vmem:[%s192 + $0x70] sm:$0xf0]
      %v1061 = vld [vmem:[%s192 + $0x78] sm:$0xf0]
      %v1062 = vld [vmem:[%s192 + $0x80] sm:$0xf]
      %v1063 = vld [vmem:[%s192 + $0x88] sm:$0xf]
      %v1064 = vld [vmem:[%s192 + $0x90] sm:$0xf]
      %v1065 = vld [vmem:[%s192 + $0x98] sm:$0xf]
      %v1074 = vrot.slane %v1058, 4
      %v1075 = vrot.slane %v1062, 4
      %v1076 = vsel %vm334, %v1074, %v1075
      %v1077 = vrot.slane %v1059, 4
      %v1078 = vrot.slane %v1063, 4
      %v1079 = vsel %vm334, %v1077, %v1078
      %v1080 = vrot.slane %v1060, 4
      %v1081 = vrot.slane %v1064, 4
      %v1082 = vsel %vm334, %v1080, %v1081
      %v1083 = vrot.slane %v1061, 4
      %v1084 = vrot.slane %v1065, 4
      %v1085 = vsel %vm334, %v1083, %v1084
      %1090 = vst [vmem:[#allocation2 + $0x160] sm:$0xff] %v1076
      %1091 = vst [vmem:[#allocation2 + $0x168] sm:$0xff] %v1079
      %1092 = vst [vmem:[#allocation2 + $0x170] sm:$0xff] %v1082
      %1093 = vst [vmem:[#allocation2 + $0x178] sm:$0xff] %v1085
      %v1094 = vld [vmem:[%s192 + $0x80] sm:$0xe0]
      %v1095 = vld [vmem:[%s192 + $0x88] sm:$0xe0]
      %v1096 = vld [vmem:[%s192 + $0x90] sm:$0xe0]
      %v1097 = vld [vmem:[%s192 + $0x98] sm:$0xe0]
      %v1098 = vld [vmem:[%s192 + $0xa0] sm:$0x1f]
      %v1099 = vld [vmem:[%s192 + $0xa8] sm:$0x1f]
      %v1100 = vld [vmem:[%s192 + $0xb0] sm:$0x1f]
      %v1101 = vld [vmem:[%s192 + $0xb8] sm:$0x1f]
      %v1110 = vrot.slane %v1094, 5
      %v1111 = vrot.slane %v1098, 5
      %v1112 = vsel %vm371, %v1110, %v1111
      %v1113 = vrot.slane %v1095, 5
      %v1114 = vrot.slane %v1099, 5
      %v1115 = vsel %vm371, %v1113, %v1114
      %v1116 = vrot.slane %v1096, 5
      %v1117 = vrot.slane %v1100, 5
      %v1118 = vsel %vm371, %v1116, %v1117
      %v1119 = vrot.slane %v1097, 5
      %v1120 = vrot.slane %v1101, 5
      %v1121 = vsel %vm371, %v1119, %v1120
      %1126 = vst [vmem:[#allocation2 + $0x1e0] sm:$0xff] %v1112
      %1127 = vst [vmem:[#allocation2 + $0x1e8] sm:$0xff] %v1115
      %1128 = vst [vmem:[#allocation2 + $0x1f0] sm:$0xff] %v1118
      %1129 = vst [vmem:[#allocation2 + $0x1f8] sm:$0xff] %v1121
      %v1130 = vld [vmem:[%s192 + $0xa0] sm:$0xc0]
      %v1131 = vld [vmem:[%s192 + $0xa8] sm:$0xc0]
      %v1132 = vld [vmem:[%s192 + $0xb0] sm:$0xc0]
      %v1133 = vld [vmem:[%s192 + $0xb8] sm:$0xc0]
      %v1134 = vld [vmem:[%s192 + $0xc0] sm:$0x3f]
      %v1135 = vld [vmem:[%s192 + $0xc8] sm:$0x3f]
      %v1136 = vld [vmem:[%s192 + $0xd0] sm:$0x3f]
      %v1137 = vld [vmem:[%s192 + $0xd8] sm:$0x3f]
      %v1146 = vrot.slane %v1130, 6
      %v1147 = vrot.slane %v1134, 6
      %v1148 = vsel %vm408, %v1146, %v1147
      %v1149 = vrot.slane %v1131, 6
      %v1150 = vrot.slane %v1135, 6
      %v1151 = vsel %vm408, %v1149, %v1150
      %v1152 = vrot.slane %v1132, 6
      %v1153 = vrot.slane %v1136, 6
      %v1154 = vsel %vm408, %v1152, %v1153
      %v1155 = vrot.slane %v1133, 6
      %v1156 = vrot.slane %v1137, 6
      %v1157 = vsel %vm408, %v1155, %v1156
      %1162 = vst [vmem:[#allocation2 + $0x260] sm:$0xff] %v1148
      %1163 = vst [vmem:[#allocation2 + $0x268] sm:$0xff] %v1151
      %1164 = vst [vmem:[#allocation2 + $0x270] sm:$0xff] %v1154
      %1165 = vst [vmem:[#allocation2 + $0x278] sm:$0xff] %v1157
      %v1166 = vld [vmem:[%s192 + $0xc0] sm:$0x80]
      %v1167 = vld [vmem:[%s192 + $0xc8] sm:$0x80]
      %v1168 = vld [vmem:[%s192 + $0xd0] sm:$0x80]
      %v1169 = vld [vmem:[%s192 + $0xd8] sm:$0x80]
      %v1170 = vld [vmem:[%s192 + $0xe0] sm:$0x7f]
      %v1171 = vld [vmem:[%s192 + $0xe8] sm:$0x7f]
      %v1172 = vld [vmem:[%s192 + $0xf0] sm:$0x7f]
      %v1173 = vld [vmem:[%s192 + $0xf8] sm:$0x7f]
      %v1182 = vrot.slane %v1166, 7
      %v1183 = vrot.slane %v1170, 7
      %v1184 = vsel %vm445, %v1182, %v1183
      %v1185 = vrot.slane %v1167, 7
      %v1186 = vrot.slane %v1171, 7
      %v1187 = vsel %vm445, %v1185, %v1186
      %v1188 = vrot.slane %v1168, 7
      %v1189 = vrot.slane %v1172, 7
      %v1190 = vsel %vm445, %v1188, %v1189
      %v1191 = vrot.slane %v1169, 7
      %v1192 = vrot.slane %v1173, 7
      %v1193 = vsel %vm445, %v1191, %v1192
      %1198 = vst [vmem:[#allocation2 + $0x2e0] sm:$0xff] %v1184
      %1199 = vst [vmem:[#allocation2 + $0x2e8] sm:$0xff] %v1187
      %1200 = vst [vmem:[#allocation2 + $0x2f0] sm:$0xff] %v1190
      %1201 = vst [vmem:[#allocation2 + $0x2f8] sm:$0xff] %v1193
      %v1202 = vld [vmem:[%s192 + $0x100] sm:$0xff]
      %v1203 = vld [vmem:[%s192 + $0x108] sm:$0xff]
      %v1204 = vld [vmem:[%s192 + $0x110] sm:$0xff]
      %v1205 = vld [vmem:[%s192 + $0x118] sm:$0xff]
      %1206 = vst [vmem:[#allocation2 + $0x360] sm:$0xff] %v1202
      %1207 = vst [vmem:[#allocation2 + $0x368] sm:$0xff] %v1203
      %1208 = vst [vmem:[#allocation2 + $0x370] sm:$0xff] %v1204
      %1209 = vst [vmem:[#allocation2 + $0x378] sm:$0xff] %v1205
      %v1210 = vld [vmem:[%s192 + $0x120] sm:$0xfe]
      %v1211 = vld [vmem:[%s192 + $0x128] sm:$0xfe]
      %v1212 = vld [vmem:[%s192 + $0x130] sm:$0xfe]
      %v1213 = vld [vmem:[%s192 + $0x138] sm:$0xfe]
      %v1214 = vld [vmem:[%s192 + $0x140] sm:$0x1]
      %v1215 = vld [vmem:[%s192 + $0x148] sm:$0x1]
      %v1216 = vld [vmem:[%s192 + $0x150] sm:$0x1]
      %v1217 = vld [vmem:[%s192 + $0x158] sm:$0x1]
      %v1226 = vrot.slane %v1210, 1
      %v1227 = vrot.slane %v1214, 1
      %v1228 = vsel %vm223, %v1226, %v1227
      %v1229 = vrot.slane %v1211, 1
      %v1230 = vrot.slane %v1215, 1
      %v1231 = vsel %vm223, %v1229, %v1230
      %v1232 = vrot.slane %v1212, 1
      %v1233 = vrot.slane %v1216, 1
      %v1234 = vsel %vm223, %v1232, %v1233
      %v1235 = vrot.slane %v1213, 1
      %v1236 = vrot.slane %v1217, 1
      %v1237 = vsel %vm223, %v1235, %v1236
      %1242 = vst [vmem:[#allocation2 + $0x3e0] sm:$0xff] %v1228
      %1243 = vst [vmem:[#allocation2 + $0x3e8] sm:$0xff] %v1231
      %1244 = vst [vmem:[#allocation2 + $0x3f0] sm:$0xff] %v1234
      %1245 = vst [vmem:[#allocation2 + $0x3f8] sm:$0xff] %v1237
      %v1246 = vld [vmem:[#allocation2] sm:$0xff]
      %v1247 = vld [vmem:[#allocation2 + $0x8] sm:$0xff]
      %v1248 = vld [vmem:[#allocation2 + $0x10] sm:$0xff]
      %v1249 = vld [vmem:[#allocation2 + $0x18] sm:$0xff]
      %v1250 = vld [vmem:[#allocation2 + $0x20] sm:$0xff]
      %v1251 = vld [vmem:[#allocation2 + $0x28] sm:$0xff]
      %v1252 = vld [vmem:[#allocation2 + $0x30] sm:$0xff]
      %v1253 = vld [vmem:[#allocation2 + $0x38] sm:$0xff]
      %v1254 = vld [vmem:[#allocation2 + $0x40] sm:$0xff]
      %v1255 = vld [vmem:[#allocation2 + $0x48] sm:$0xff]
      %v1256 = vld [vmem:[#allocation2 + $0x50] sm:$0xff]
      %v1257 = vld [vmem:[#allocation2 + $0x58] sm:$0xff]
      %v1258 = vld [vmem:[#allocation2 + $0x60] sm:$0xff]
      %v1259 = vld [vmem:[#allocation2 + $0x68] sm:$0xff]
      %v1260 = vld [vmem:[#allocation2 + $0x70] sm:$0xff]
      %v1261 = vld [vmem:[#allocation2 + $0x78] sm:$0xff]
      %v1262 = vld [vmem:[#allocation2 + $0x80] sm:$0xff]
      %v1263 = vld [vmem:[#allocation2 + $0x88] sm:$0xff]
      %v1264 = vld [vmem:[#allocation2 + $0x90] sm:$0xff]
      %v1265 = vld [vmem:[#allocation2 + $0x98] sm:$0xff]
      %v1266 = vld [vmem:[#allocation2 + $0xa0] sm:$0xff]
      %v1267 = vld [vmem:[#allocation2 + $0xa8] sm:$0xff]
      %v1268 = vld [vmem:[#allocation2 + $0xb0] sm:$0xff]
      %v1269 = vld [vmem:[#allocation2 + $0xb8] sm:$0xff]
      %v1270 = vld [vmem:[#allocation2 + $0xc0] sm:$0xff]
      %v1271 = vld [vmem:[#allocation2 + $0xc8] sm:$0xff]
      %v1272 = vld [vmem:[#allocation2 + $0xd0] sm:$0xff]
      %v1273 = vld [vmem:[#allocation2 + $0xd8] sm:$0xff]
      %v1274 = vld [vmem:[#allocation2 + $0xe0] sm:$0xff]
      %v1275 = vld [vmem:[#allocation2 + $0xe8] sm:$0xff]
      %v1276 = vld [vmem:[#allocation2 + $0xf0] sm:$0xff]
      %v1277 = vld [vmem:[#allocation2 + $0xf8] sm:$0xff]
      %v1278 = vld [vmem:[#allocation2 + $0x100] sm:$0xff]
      %v1279 = vld [vmem:[#allocation2 + $0x108] sm:$0xff]
      %v1280 = vld [vmem:[#allocation2 + $0x110] sm:$0xff]
      %v1281 = vld [vmem:[#allocation2 + $0x118] sm:$0xff]
      %v1282 = vld [vmem:[#allocation2 + $0x120] sm:$0xff]
      %v1283 = vld [vmem:[#allocation2 + $0x128] sm:$0xff]
      %v1284 = vld [vmem:[#allocation2 + $0x130] sm:$0xff]
      %v1285 = vld [vmem:[#allocation2 + $0x138] sm:$0xff]
      %v1286 = vld [vmem:[#allocation2 + $0x140] sm:$0xff]
      %v1287 = vld [vmem:[#allocation2 + $0x148] sm:$0xff]
      %v1288 = vld [vmem:[#allocation2 + $0x150] sm:$0xff]
      %v1289 = vld [vmem:[#allocation2 + $0x158] sm:$0xff]
      %v1290 = vld [vmem:[#allocation2 + $0x160] sm:$0xff]
      %v1291 = vld [vmem:[#allocation2 + $0x168] sm:$0xff]
      %v1292 = vld [vmem:[#allocation2 + $0x170] sm:$0xff]
      %v1293 = vld [vmem:[#allocation2 + $0x178] sm:$0xff]
      %v1294 = vld [vmem:[#allocation2 + $0x180] sm:$0xff]
      %v1295 = vld [vmem:[#allocation2 + $0x188] sm:$0xff]
      %v1296 = vld [vmem:[#allocation2 + $0x190] sm:$0xff]
      %v1297 = vld [vmem:[#allocation2 + $0x198] sm:$0xff]
      %v1298 = vld [vmem:[#allocation2 + $0x1a0] sm:$0xff]
      %v1299 = vld [vmem:[#allocation2 + $0x1a8] sm:$0xff]
      %v1300 = vld [vmem:[#allocation2 + $0x1b0] sm:$0xff]
      %v1301 = vld [vmem:[#allocation2 + $0x1b8] sm:$0xff]
      %v1302 = vld [vmem:[#allocation2 + $0x1c0] sm:$0xff]
      %v1303 = vld [vmem:[#allocation2 + $0x1c8] sm:$0xff]
      %v1304 = vld [vmem:[#allocation2 + $0x1d0] sm:$0xff]
      %v1305 = vld [vmem:[#allocation2 + $0x1d8] sm:$0xff]
      %v1306 = vld [vmem:[#allocation2 + $0x1e0] sm:$0xff]
      %v1307 = vld [vmem:[#allocation2 + $0x1e8] sm:$0xff]
      %v1308 = vld [vmem:[#allocation2 + $0x1f0] sm:$0xff]
      %v1309 = vld [vmem:[#allocation2 + $0x1f8] sm:$0xff]
      %v1310 = vld [vmem:[#allocation2 + $0x200] sm:$0xff]
      %v1311 = vld [vmem:[#allocation2 + $0x208] sm:$0xff]
      %v1312 = vld [vmem:[#allocation2 + $0x210] sm:$0xff]
      %v1313 = vld [vmem:[#allocation2 + $0x218] sm:$0xff]
      %v1314 = vld [vmem:[#allocation2 + $0x220] sm:$0xff]
      %v1315 = vld [vmem:[#allocation2 + $0x228] sm:$0xff]
      %v1316 = vld [vmem:[#allocation2 + $0x230] sm:$0xff]
      %v1317 = vld [vmem:[#allocation2 + $0x238] sm:$0xff]
      %v1318 = vld [vmem:[#allocation2 + $0x240] sm:$0xff]
      %v1319 = vld [vmem:[#allocation2 + $0x248] sm:$0xff]
      %v1320 = vld [vmem:[#allocation2 + $0x250] sm:$0xff]
      %v1321 = vld [vmem:[#allocation2 + $0x258] sm:$0xff]
      %v1322 = vld [vmem:[#allocation2 + $0x260] sm:$0xff]
      %v1323 = vld [vmem:[#allocation2 + $0x268] sm:$0xff]
      %v1324 = vld [vmem:[#allocation2 + $0x270] sm:$0xff]
      %v1325 = vld [vmem:[#allocation2 + $0x278] sm:$0xff]
      %v1326 = vld [vmem:[#allocation2 + $0x280] sm:$0xff]
      %v1327 = vld [vmem:[#allocation2 + $0x288] sm:$0xff]
      %v1328 = vld [vmem:[#allocation2 + $0x290] sm:$0xff]
      %v1329 = vld [vmem:[#allocation2 + $0x298] sm:$0xff]
      %v1330 = vld [vmem:[#allocation2 + $0x2a0] sm:$0xff]
      %v1331 = vld [vmem:[#allocation2 + $0x2a8] sm:$0xff]
      %v1332 = vld [vmem:[#allocation2 + $0x2b0] sm:$0xff]
      %v1333 = vld [vmem:[#allocation2 + $0x2b8] sm:$0xff]
      %v1334 = vld [vmem:[#allocation2 + $0x2c0] sm:$0xff]
      %v1335 = vld [vmem:[#allocation2 + $0x2c8] sm:$0xff]
      %v1336 = vld [vmem:[#allocation2 + $0x2d0] sm:$0xff]
      %v1337 = vld [vmem:[#allocation2 + $0x2d8] sm:$0xff]
      %v1338 = vld [vmem:[#allocation2 + $0x2e0] sm:$0xff]
      %v1339 = vld [vmem:[#allocation2 + $0x2e8] sm:$0xff]
      %v1340 = vld [vmem:[#allocation2 + $0x2f0] sm:$0xff]
      %v1341 = vld [vmem:[#allocation2 + $0x2f8] sm:$0xff]
      %v1342 = vld [vmem:[#allocation2 + $0x300] sm:$0xff]
      %v1343 = vld [vmem:[#allocation2 + $0x308] sm:$0xff]
      %v1344 = vld [vmem:[#allocation2 + $0x310] sm:$0xff]
      %v1345 = vld [vmem:[#allocation2 + $0x318] sm:$0xff]
      %v1346 = vld [vmem:[#allocation2 + $0x320] sm:$0xff]
      %v1347 = vld [vmem:[#allocation2 + $0x328] sm:$0xff]
      %v1348 = vld [vmem:[#allocation2 + $0x330] sm:$0xff]
      %v1349 = vld [vmem:[#allocation2 + $0x338] sm:$0xff]
      %v1350 = vld [vmem:[#allocation2 + $0x340] sm:$0xff]
      %v1351 = vld [vmem:[#allocation2 + $0x348] sm:$0xff]
      %v1352 = vld [vmem:[#allocation2 + $0x350] sm:$0xff]
      %v1353 = vld [vmem:[#allocation2 + $0x358] sm:$0xff]
      %v1354 = vld [vmem:[#allocation2 + $0x360] sm:$0xff]
      %v1355 = vld [vmem:[#allocation2 + $0x368] sm:$0xff]
      %v1356 = vld [vmem:[#allocation2 + $0x370] sm:$0xff]
      %v1357 = vld [vmem:[#allocation2 + $0x378] sm:$0xff]
      %v1358 = vld [vmem:[#allocation2 + $0x380] sm:$0xff]
      %v1359 = vld [vmem:[#allocation2 + $0x388] sm:$0xff]
      %v1360 = vld [vmem:[#allocation2 + $0x390] sm:$0xff]
      %v1361 = vld [vmem:[#allocation2 + $0x398] sm:$0xff]
      %v1362 = vld [vmem:[#allocation2 + $0x3a0] sm:$0xff]
      %v1363 = vld [vmem:[#allocation2 + $0x3a8] sm:$0xff]
      %v1364 = vld [vmem:[#allocation2 + $0x3b0] sm:$0xff]
      %v1365 = vld [vmem:[#allocation2 + $0x3b8] sm:$0xff]
      %v1366 = vld [vmem:[#allocation2 + $0x3c0] sm:$0xff]
      %v1367 = vld [vmem:[#allocation2 + $0x3c8] sm:$0xff]
      %v1368 = vld [vmem:[#allocation2 + $0x3d0] sm:$0xff]
      %v1369 = vld [vmem:[#allocation2 + $0x3d8] sm:$0xff]
      %v1370 = vld [vmem:[#allocation2 + $0x3e0] sm:$0xff]
      %v1371 = vld [vmem:[#allocation2 + $0x3e8] sm:$0xff]
      %v1372 = vld [vmem:[#allocation2 + $0x3f0] sm:$0xff]
      %v1373 = vld [vmem:[#allocation2 + $0x3f8] sm:$0xff]
      %v1374 = vpack.c.bf16 %v1262, %v1246
      %v1375 = vpack.c.bf16 %v1263, %v1247
      %v1376 = vpack.c.bf16 %v1264, %v1248
      %v1377 = vpack.c.bf16 %v1265, %v1249
      %v1378 = vpack.c.bf16 %v1266, %v1250
      %v1379 = vpack.c.bf16 %v1267, %v1251
      %v1380 = vpack.c.bf16 %v1268, %v1252
      %v1381 = vpack.c.bf16 %v1269, %v1253
      %v1382 = vpack.c.bf16 %v1270, %v1254
      %v1383 = vpack.c.bf16 %v1271, %v1255
      %v1384 = vpack.c.bf16 %v1272, %v1256
      %v1385 = vpack.c.bf16 %v1273, %v1257
      %v1386 = vpack.c.bf16 %v1274, %v1258
      %v1387 = vpack.c.bf16 %v1275, %v1259
      %v1388 = vpack.c.bf16 %v1276, %v1260
      %v1389 = vpack.c.bf16 %v1277, %v1261
      %v1390 = vpack.c.bf16 %v1294, %v1278
      %v1391 = vpack.c.bf16 %v1295, %v1279
      %v1392 = vpack.c.bf16 %v1296, %v1280
      %v1393 = vpack.c.bf16 %v1297, %v1281
      %v1394 = vpack.c.bf16 %v1298, %v1282
      %v1395 = vpack.c.bf16 %v1299, %v1283
      %v1396 = vpack.c.bf16 %v1300, %v1284
      %v1397 = vpack.c.bf16 %v1301, %v1285
      %v1398 = vpack.c.bf16 %v1302, %v1286
      %v1399 = vpack.c.bf16 %v1303, %v1287
      %v1400 = vpack.c.bf16 %v1304, %v1288
      %v1401 = vpack.c.bf16 %v1305, %v1289
      %v1402 = vpack.c.bf16 %v1306, %v1290
      %v1403 = vpack.c.bf16 %v1307, %v1291
      %v1404 = vpack.c.bf16 %v1308, %v1292
      %v1405 = vpack.c.bf16 %v1309, %v1293
      %v1406 = vpack.c.bf16 %v1326, %v1310
      %v1407 = vpack.c.bf16 %v1327, %v1311
      %v1408 = vpack.c.bf16 %v1328, %v1312
      %v1409 = vpack.c.bf16 %v1329, %v1313
      %v1410 = vpack.c.bf16 %v1330, %v1314
      %v1411 = vpack.c.bf16 %v1331, %v1315
      %v1412 = vpack.c.bf16 %v1332, %v1316
      %v1413 = vpack.c.bf16 %v1333, %v1317
      %v1414 = vpack.c.bf16 %v1334, %v1318
      %v1415 = vpack.c.bf16 %v1335, %v1319
      %v1416 = vpack.c.bf16 %v1336, %v1320
      %v1417 = vpack.c.bf16 %v1337, %v1321
      %v1418 = vpack.c.bf16 %v1338, %v1322
      %v1419 = vpack.c.bf16 %v1339, %v1323
      %v1420 = vpack.c.bf16 %v1340, %v1324
      %v1421 = vpack.c.bf16 %v1341, %v1325
      %v1422 = vpack.c.bf16 %v1358, %v1342
      %v1423 = vpack.c.bf16 %v1359, %v1343
      %v1424 = vpack.c.bf16 %v1360, %v1344
      %v1425 = vpack.c.bf16 %v1361, %v1345
      %v1426 = vpack.c.bf16 %v1362, %v1346
      %v1427 = vpack.c.bf16 %v1363, %v1347
      %v1428 = vpack.c.bf16 %v1364, %v1348
      %v1429 = vpack.c.bf16 %v1365, %v1349
      %v1430 = vpack.c.bf16 %v1366, %v1350
      %v1431 = vpack.c.bf16 %v1367, %v1351
      %v1432 = vpack.c.bf16 %v1368, %v1352
      %v1433 = vpack.c.bf16 %v1369, %v1353
      %v1434 = vpack.c.bf16 %v1370, %v1354
      %v1435 = vpack.c.bf16 %v1371, %v1355
      %v1436 = vpack.c.bf16 %v1372, %v1356
      %v1437 = vpack.c.bf16 %v1373, %v1357
      %v1438 = vld [vmem:[%s1] sm:$0xf]
      %v1439 = vld [vmem:[%s1 + $0x4] sm:$0xf]
      %v1440 = vld [vmem:[%s1 + $0x8] sm:$0xf]
      %v1441 = vld [vmem:[%s1 + $0xc] sm:$0xf]
      %v1442 = vld [vmem:[%s1 + $0x10] sm:$0xf]
      %v1443 = vld [vmem:[%s1 + $0x14] sm:$0xf]
      %v1444 = vld [vmem:[%s1 + $0x18] sm:$0xf]
      %v1445 = vld [vmem:[%s1 + $0x1c] sm:$0xf]
      %v1446 = vld [vmem:[%s1 + $0x20] sm:$0xf]
      %v1447 = vld [vmem:[%s1 + $0x24] sm:$0xf]
      %v1448 = vld [vmem:[%s1 + $0x28] sm:$0xf]
      %v1449 = vld [vmem:[%s1 + $0x2c] sm:$0xf]
      %v1450 = vld [vmem:[%s1 + $0x30] sm:$0xf]
      %v1451 = vld [vmem:[%s1 + $0x34] sm:$0xf]
      %v1452 = vld [vmem:[%s1 + $0x38] sm:$0xf]
      %v1453 = vld [vmem:[%s1 + $0x3c] sm:$0xf]
      %v1454 = vld [vmem:[%s1 + $0x40] sm:$0xf]
      %v1455 = vld [vmem:[%s1 + $0x44] sm:$0xf]
      %v1456 = vld [vmem:[%s1 + $0x48] sm:$0xf]
      %v1457 = vld [vmem:[%s1 + $0x4c] sm:$0xf]
      %v1458 = vld [vmem:[%s1 + $0x50] sm:$0xf]
      %v1459 = vld [vmem:[%s1 + $0x54] sm:$0xf]
      %v1460 = vld [vmem:[%s1 + $0x58] sm:$0xf]
      %v1461 = vld [vmem:[%s1 + $0x5c] sm:$0xf]
      %v1462 = vld [vmem:[%s1 + $0x60] sm:$0xf]
      %v1463 = vld [vmem:[%s1 + $0x64] sm:$0xf]
      %v1464 = vld [vmem:[%s1 + $0x68] sm:$0xf]
      %v1465 = vld [vmem:[%s1 + $0x6c] sm:$0xf]
      %v1466 = vld [vmem:[%s1 + $0x70] sm:$0xf]
      %v1467 = vld [vmem:[%s1 + $0x74] sm:$0xf]
      %v1468 = vld [vmem:[%s1 + $0x78] sm:$0xf]
      %v1469 = vld [vmem:[%s1 + $0x7c] sm:$0xf]
      %v1470 = vld [vmem:[%s1 + $0x80] sm:$0xf]
      %v1471 = vld [vmem:[%s1 + $0x84] sm:$0xf]
      %v1472 = vld [vmem:[%s1 + $0x88] sm:$0xf]
      %v1473 = vld [vmem:[%s1 + $0x8c] sm:$0xf]
      %v1474 = vld [vmem:[%s1 + $0x90] sm:$0xf]
      %v1475 = vld [vmem:[%s1 + $0x94] sm:$0xf]
      %v1476 = vld [vmem:[%s1 + $0x98] sm:$0xf]
      %v1477 = vld [vmem:[%s1 + $0x9c] sm:$0xf]
      %v1478 = vld [vmem:[%s1 + $0xa0] sm:$0xf]
      %v1479 = vld [vmem:[%s1 + $0xa4] sm:$0xf]
      %v1480 = vld [vmem:[%s1 + $0xa8] sm:$0xf]
      %v1481 = vld [vmem:[%s1 + $0xac] sm:$0xf]
      %v1482 = vld [vmem:[%s1 + $0xb0] sm:$0xf]
      %v1483 = vld [vmem:[%s1 + $0xb4] sm:$0xf]
      %v1484 = vld [vmem:[%s1 + $0xb8] sm:$0xf]
      %v1485 = vld [vmem:[%s1 + $0xbc] sm:$0xf]
      %v1486 = vld [vmem:[%s1 + $0xc0] sm:$0xf]
      %v1487 = vld [vmem:[%s1 + $0xc4] sm:$0xf]
      %v1488 = vld [vmem:[%s1 + $0xc8] sm:$0xf]
      %v1489 = vld [vmem:[%s1 + $0xcc] sm:$0xf]
      %v1490 = vld [vmem:[%s1 + $0xd0] sm:$0xf]
      %v1491 = vld [vmem:[%s1 + $0xd4] sm:$0xf]
      %v1492 = vld [vmem:[%s1 + $0xd8] sm:$0xf]
      %v1493 = vld [vmem:[%s1 + $0xdc] sm:$0xf]
      %v1494 = vld [vmem:[%s1 + $0xe0] sm:$0xf]
      %v1495 = vld [vmem:[%s1 + $0xe4] sm:$0xf]
      %v1496 = vld [vmem:[%s1 + $0xe8] sm:$0xf]
      %v1497 = vld [vmem:[%s1 + $0xec] sm:$0xf]
      %v1498 = vld [vmem:[%s1 + $0xf0] sm:$0xf]
      %v1499 = vld [vmem:[%s1 + $0xf4] sm:$0xf]
      %v1500 = vld [vmem:[%s1 + $0xf8] sm:$0xf]
      %v1501 = vld [vmem:[%s1 + $0xfc] sm:$0xf]
      %v1502 = vld [vmem:[%s1 + $0x100] sm:$0xf]
      %v1503 = vld [vmem:[%s1 + $0x104] sm:$0xf]
      %v1504 = vld [vmem:[%s1 + $0x108] sm:$0xf]
      %v1505 = vld [vmem:[%s1 + $0x10c] sm:$0xf]
      %v1506 = vld [vmem:[%s1 + $0x110] sm:$0xf]
      %v1507 = vld [vmem:[%s1 + $0x114] sm:$0xf]
      %v1508 = vld [vmem:[%s1 + $0x118] sm:$0xf]
      %v1509 = vld [vmem:[%s1 + $0x11c] sm:$0xf]
      %v1510 = vld [vmem:[%s1 + $0x120] sm:$0xf]
      %v1511 = vld [vmem:[%s1 + $0x124] sm:$0xf]
      %v1512 = vld [vmem:[%s1 + $0x128] sm:$0xf]
      %v1513 = vld [vmem:[%s1 + $0x12c] sm:$0xf]
      %v1514 = vld [vmem:[%s1 + $0x130] sm:$0xf]
      %v1515 = vld [vmem:[%s1 + $0x134] sm:$0xf]
      %v1516 = vld [vmem:[%s1 + $0x138] sm:$0xf]
      %v1517 = vld [vmem:[%s1 + $0x13c] sm:$0xf]
      %v1518 = vld [vmem:[%s1 + $0x140] sm:$0xf]
      %v1519 = vld [vmem:[%s1 + $0x144] sm:$0xf]
      %v1520 = vld [vmem:[%s1 + $0x148] sm:$0xf]
      %v1521 = vld [vmem:[%s1 + $0x14c] sm:$0xf]
      %v1522 = vld [vmem:[%s1 + $0x150] sm:$0xf]
      %v1523 = vld [vmem:[%s1 + $0x154] sm:$0xf]
      %v1524 = vld [vmem:[%s1 + $0x158] sm:$0xf]
      %v1525 = vld [vmem:[%s1 + $0x15c] sm:$0xf]
      %v1526 = vld [vmem:[%s1 + $0x160] sm:$0xf]
      %v1527 = vld [vmem:[%s1 + $0x164] sm:$0xf]
      %v1528 = vld [vmem:[%s1 + $0x168] sm:$0xf]
      %v1529 = vld [vmem:[%s1 + $0x16c] sm:$0xf]
      %v1530 = vld [vmem:[%s1 + $0x170] sm:$0xf]
      %v1531 = vld [vmem:[%s1 + $0x174] sm:$0xf]
      %v1532 = vld [vmem:[%s1 + $0x178] sm:$0xf]
      %v1533 = vld [vmem:[%s1 + $0x17c] sm:$0xf]
      %v1534 = vld [vmem:[%s1 + $0x180] sm:$0xf]
      %v1535 = vld [vmem:[%s1 + $0x184] sm:$0xf]
      %v1536 = vld [vmem:[%s1 + $0x188] sm:$0xf]
      %v1537 = vld [vmem:[%s1 + $0x18c] sm:$0xf]
      %v1538 = vld [vmem:[%s1 + $0x190] sm:$0xf]
      %v1539 = vld [vmem:[%s1 + $0x194] sm:$0xf]
      %v1540 = vld [vmem:[%s1 + $0x198] sm:$0xf]
      %v1541 = vld [vmem:[%s1 + $0x19c] sm:$0xf]
      %v1542 = vld [vmem:[%s1 + $0x1a0] sm:$0xf]
      %v1543 = vld [vmem:[%s1 + $0x1a4] sm:$0xf]
      %v1544 = vld [vmem:[%s1 + $0x1a8] sm:$0xf]
      %v1545 = vld [vmem:[%s1 + $0x1ac] sm:$0xf]
      %v1546 = vld [vmem:[%s1 + $0x1b0] sm:$0xf]
      %v1547 = vld [vmem:[%s1 + $0x1b4] sm:$0xf]
      %v1548 = vld [vmem:[%s1 + $0x1b8] sm:$0xf]
      %v1549 = vld [vmem:[%s1 + $0x1bc] sm:$0xf]
      %v1550 = vld [vmem:[%s1 + $0x1c0] sm:$0xf]
      %v1551 = vld [vmem:[%s1 + $0x1c4] sm:$0xf]
      %v1552 = vld [vmem:[%s1 + $0x1c8] sm:$0xf]
      %v1553 = vld [vmem:[%s1 + $0x1cc] sm:$0xf]
      %v1554 = vld [vmem:[%s1 + $0x1d0] sm:$0xf]
      %v1555 = vld [vmem:[%s1 + $0x1d4] sm:$0xf]
      %v1556 = vld [vmem:[%s1 + $0x1d8] sm:$0xf]
      %v1557 = vld [vmem:[%s1 + $0x1dc] sm:$0xf]
      %v1558 = vld [vmem:[%s1 + $0x1e0] sm:$0xf]
      %v1559 = vld [vmem:[%s1 + $0x1e4] sm:$0xf]
      %v1560 = vld [vmem:[%s1 + $0x1e8] sm:$0xf]
      %v1561 = vld [vmem:[%s1 + $0x1ec] sm:$0xf]
      %v1562 = vld [vmem:[%s1 + $0x1f0] sm:$0xf]
      %v1563 = vld [vmem:[%s1 + $0x1f4] sm:$0xf]
      %v1564 = vld [vmem:[%s1 + $0x1f8] sm:$0xf]
      %v1565 = vld [vmem:[%s1 + $0x1fc] sm:$0xf]
      %v1566 = vld [vmem:[%s1 + $0x200] sm:$0xf]
      %v1567 = vld [vmem:[%s1 + $0x204] sm:$0xf]
      %v1568 = vld [vmem:[%s1 + $0x208] sm:$0xf]
      %v1569 = vld [vmem:[%s1 + $0x20c] sm:$0xf]
      %v1570 = vld [vmem:[%s1 + $0x210] sm:$0xf]
      %v1571 = vld [vmem:[%s1 + $0x214] sm:$0xf]
      %v1572 = vld [vmem:[%s1 + $0x218] sm:$0xf]
      %v1573 = vld [vmem:[%s1 + $0x21c] sm:$0xf]
      %v1574 = vld [vmem:[%s1 + $0x220] sm:$0xf]
      %v1575 = vld [vmem:[%s1 + $0x224] sm:$0xf]
      %v1576 = vld [vmem:[%s1 + $0x228] sm:$0xf]
      %v1577 = vld [vmem:[%s1 + $0x22c] sm:$0xf]
      %v1578 = vld [vmem:[%s1 + $0x230] sm:$0xf]
      %v1579 = vld [vmem:[%s1 + $0x234] sm:$0xf]
      %v1580 = vld [vmem:[%s1 + $0x238] sm:$0xf]
      %v1581 = vld [vmem:[%s1 + $0x23c] sm:$0xf]
      %v1582 = vld [vmem:[%s1 + $0x240] sm:$0xf]
      %v1583 = vld [vmem:[%s1 + $0x244] sm:$0xf]
      %v1584 = vld [vmem:[%s1 + $0x248] sm:$0xf]
      %v1585 = vld [vmem:[%s1 + $0x24c] sm:$0xf]
      %v1586 = vld [vmem:[%s1 + $0x250] sm:$0xf]
      %v1587 = vld [vmem:[%s1 + $0x254] sm:$0xf]
      %v1588 = vld [vmem:[%s1 + $0x258] sm:$0xf]
      %v1589 = vld [vmem:[%s1 + $0x25c] sm:$0xf]
      %v1590 = vld [vmem:[%s1 + $0x260] sm:$0xf]
      %v1591 = vld [vmem:[%s1 + $0x264] sm:$0xf]
      %v1592 = vld [vmem:[%s1 + $0x268] sm:$0xf]
      %v1593 = vld [vmem:[%s1 + $0x26c] sm:$0xf]
      %v1594 = vld [vmem:[%s1 + $0x270] sm:$0xf]
      %v1595 = vld [vmem:[%s1 + $0x274] sm:$0xf]
      %v1596 = vld [vmem:[%s1 + $0x278] sm:$0xf]
      %v1597 = vld [vmem:[%s1 + $0x27c] sm:$0xf]
      %v1598 = vld [vmem:[%s1 + $0x280] sm:$0xf]
      %v1599 = vld [vmem:[%s1 + $0x284] sm:$0xf]
      %v1600 = vld [vmem:[%s1 + $0x288] sm:$0xf]
      %v1601 = vld [vmem:[%s1 + $0x28c] sm:$0xf]
      %v1602 = vld [vmem:[%s1 + $0x290] sm:$0xf]
      %v1603 = vld [vmem:[%s1 + $0x294] sm:$0xf]
      %v1604 = vld [vmem:[%s1 + $0x298] sm:$0xf]
      %v1605 = vld [vmem:[%s1 + $0x29c] sm:$0xf]
      %v1606 = vld [vmem:[%s1 + $0x2a0] sm:$0xf]
      %v1607 = vld [vmem:[%s1 + $0x2a4] sm:$0xf]
      %v1608 = vld [vmem:[%s1 + $0x2a8] sm:$0xf]
      %v1609 = vld [vmem:[%s1 + $0x2ac] sm:$0xf]
      %v1610 = vld [vmem:[%s1 + $0x2b0] sm:$0xf]
      %v1611 = vld [vmem:[%s1 + $0x2b4] sm:$0xf]
      %v1612 = vld [vmem:[%s1 + $0x2b8] sm:$0xf]
      %v1613 = vld [vmem:[%s1 + $0x2bc] sm:$0xf]
      %v1614 = vld [vmem:[%s1 + $0x2c0] sm:$0xf]
      %v1615 = vld [vmem:[%s1 + $0x2c4] sm:$0xf]
      %v1616 = vld [vmem:[%s1 + $0x2c8] sm:$0xf]
      %v1617 = vld [vmem:[%s1 + $0x2cc] sm:$0xf]
      %v1618 = vld [vmem:[%s1 + $0x2d0] sm:$0xf]
      %v1619 = vld [vmem:[%s1 + $0x2d4] sm:$0xf]
      %v1620 = vld [vmem:[%s1 + $0x2d8] sm:$0xf]
      %v1621 = vld [vmem:[%s1 + $0x2dc] sm:$0xf]
      %v1622 = vld [vmem:[%s1 + $0x2e0] sm:$0xf]
      %v1623 = vld [vmem:[%s1 + $0x2e4] sm:$0xf]
      %v1624 = vld [vmem:[%s1 + $0x2e8] sm:$0xf]
      %v1625 = vld [vmem:[%s1 + $0x2ec] sm:$0xf]
      %v1626 = vld [vmem:[%s1 + $0x2f0] sm:$0xf]
      %v1627 = vld [vmem:[%s1 + $0x2f4] sm:$0xf]
      %v1628 = vld [vmem:[%s1 + $0x2f8] sm:$0xf]
      %v1629 = vld [vmem:[%s1 + $0x2fc] sm:$0xf]
      %v1630 = vld [vmem:[%s1 + $0x300] sm:$0xf]
      %v1631 = vld [vmem:[%s1 + $0x304] sm:$0xf]
      %v1632 = vld [vmem:[%s1 + $0x308] sm:$0xf]
      %v1633 = vld [vmem:[%s1 + $0x30c] sm:$0xf]
      %v1634 = vld [vmem:[%s1 + $0x310] sm:$0xf]
      %v1635 = vld [vmem:[%s1 + $0x314] sm:$0xf]
      %v1636 = vld [vmem:[%s1 + $0x318] sm:$0xf]
      %v1637 = vld [vmem:[%s1 + $0x31c] sm:$0xf]
      %v1638 = vld [vmem:[%s1 + $0x320] sm:$0xf]
      %v1639 = vld [vmem:[%s1 + $0x324] sm:$0xf]
      %v1640 = vld [vmem:[%s1 + $0x328] sm:$0xf]
      %v1641 = vld [vmem:[%s1 + $0x32c] sm:$0xf]
      %v1642 = vld [vmem:[%s1 + $0x330] sm:$0xf]
      %v1643 = vld [vmem:[%s1 + $0x334] sm:$0xf]
      %v1644 = vld [vmem:[%s1 + $0x338] sm:$0xf]
      %v1645 = vld [vmem:[%s1 + $0x33c] sm:$0xf]
      %v1646 = vld [vmem:[%s1 + $0x340] sm:$0xf]
      %v1647 = vld [vmem:[%s1 + $0x344] sm:$0xf]
      %v1648 = vld [vmem:[%s1 + $0x348] sm:$0xf]
      %v1649 = vld [vmem:[%s1 + $0x34c] sm:$0xf]
      %v1650 = vld [vmem:[%s1 + $0x350] sm:$0xf]
      %v1651 = vld [vmem:[%s1 + $0x354] sm:$0xf]
      %v1652 = vld [vmem:[%s1 + $0x358] sm:$0xf]
      %v1653 = vld [vmem:[%s1 + $0x35c] sm:$0xf]
      %v1654 = vld [vmem:[%s1 + $0x360] sm:$0xf]
      %v1655 = vld [vmem:[%s1 + $0x364] sm:$0xf]
      %v1656 = vld [vmem:[%s1 + $0x368] sm:$0xf]
      %v1657 = vld [vmem:[%s1 + $0x36c] sm:$0xf]
      %v1658 = vld [vmem:[%s1 + $0x370] sm:$0xf]
      %v1659 = vld [vmem:[%s1 + $0x374] sm:$0xf]
      %v1660 = vld [vmem:[%s1 + $0x378] sm:$0xf]
      %v1661 = vld [vmem:[%s1 + $0x37c] sm:$0xf]
      %v1662 = vld [vmem:[%s1 + $0x380] sm:$0xf]
      %v1663 = vld [vmem:[%s1 + $0x384] sm:$0xf]
      %v1664 = vld [vmem:[%s1 + $0x388] sm:$0xf]
      %v1665 = vld [vmem:[%s1 + $0x38c] sm:$0xf]
      %v1666 = vld [vmem:[%s1 + $0x390] sm:$0xf]
      %v1667 = vld [vmem:[%s1 + $0x394] sm:$0xf]
      %v1668 = vld [vmem:[%s1 + $0x398] sm:$0xf]
      %v1669 = vld [vmem:[%s1 + $0x39c] sm:$0xf]
      %v1670 = vld [vmem:[%s1 + $0x3a0] sm:$0xf]
      %v1671 = vld [vmem:[%s1 + $0x3a4] sm:$0xf]
      %v1672 = vld [vmem:[%s1 + $0x3a8] sm:$0xf]
      %v1673 = vld [vmem:[%s1 + $0x3ac] sm:$0xf]
      %v1674 = vld [vmem:[%s1 + $0x3b0] sm:$0xf]
      %v1675 = vld [vmem:[%s1 + $0x3b4] sm:$0xf]
      %v1676 = vld [vmem:[%s1 + $0x3b8] sm:$0xf]
      %v1677 = vld [vmem:[%s1 + $0x3bc] sm:$0xf]
      %v1678 = vld [vmem:[%s1 + $0x3c0] sm:$0xf]
      %v1679 = vld [vmem:[%s1 + $0x3c4] sm:$0xf]
      %v1680 = vld [vmem:[%s1 + $0x3c8] sm:$0xf]
      %v1681 = vld [vmem:[%s1 + $0x3cc] sm:$0xf]
      %v1682 = vld [vmem:[%s1 + $0x3d0] sm:$0xf]
      %v1683 = vld [vmem:[%s1 + $0x3d4] sm:$0xf]
      %v1684 = vld [vmem:[%s1 + $0x3d8] sm:$0xf]
      %v1685 = vld [vmem:[%s1 + $0x3dc] sm:$0xf]
      %v1686 = vld [vmem:[%s1 + $0x3e0] sm:$0xf]
      %v1687 = vld [vmem:[%s1 + $0x3e4] sm:$0xf]
      %v1688 = vld [vmem:[%s1 + $0x3e8] sm:$0xf]
      %v1689 = vld [vmem:[%s1 + $0x3ec] sm:$0xf]
      %v1690 = vld [vmem:[%s1 + $0x3f0] sm:$0xf]
      %v1691 = vld [vmem:[%s1 + $0x3f4] sm:$0xf]
      %v1692 = vld [vmem:[%s1 + $0x3f8] sm:$0xf]
      %v1693 = vld [vmem:[%s1 + $0x3fc] sm:$0xf]
      %v1950 = vunpack.c.l.b16 %v1438
      %v1951 = vunpack.c.l.b16 %v1439
      %v1952 = vunpack.c.l.b16 %v1440
      %v1953 = vunpack.c.l.b16 %v1441
      %v1954 = vunpack.c.l.b16 %v1442
      %v1955 = vunpack.c.l.b16 %v1443
      %v1956 = vunpack.c.l.b16 %v1444
      %v1957 = vunpack.c.l.b16 %v1445
      %v1958 = vunpack.c.l.b16 %v1446
      %v1959 = vunpack.c.l.b16 %v1447
      %v1960 = vunpack.c.l.b16 %v1448
      %v1961 = vunpack.c.l.b16 %v1449
      %v1962 = vunpack.c.l.b16 %v1450
      %v1963 = vunpack.c.l.b16 %v1451
      %v1964 = vunpack.c.l.b16 %v1452
      %v1965 = vunpack.c.l.b16 %v1453
      %v1966 = vunpack.c.l.b16 %v1454
      %v1967 = vunpack.c.l.b16 %v1455
      %v1968 = vunpack.c.l.b16 %v1456
      %v1969 = vunpack.c.l.b16 %v1457
      %v1970 = vunpack.c.l.b16 %v1458
      %v1971 = vunpack.c.l.b16 %v1459
      %v1972 = vunpack.c.l.b16 %v1460
      %v1973 = vunpack.c.l.b16 %v1461
      %v1974 = vunpack.c.l.b16 %v1462
      %v1975 = vunpack.c.l.b16 %v1463
      %v1976 = vunpack.c.l.b16 %v1464
      %v1977 = vunpack.c.l.b16 %v1465
      %v1978 = vunpack.c.l.b16 %v1466
      %v1979 = vunpack.c.l.b16 %v1467
      %v1980 = vunpack.c.l.b16 %v1468
      %v1981 = vunpack.c.l.b16 %v1469
      %v1982 = vunpack.c.l.b16 %v1470
      %v1983 = vunpack.c.l.b16 %v1471
      %v1984 = vunpack.c.l.b16 %v1472
      %v1985 = vunpack.c.l.b16 %v1473
      %v1986 = vunpack.c.l.b16 %v1474
      %v1987 = vunpack.c.l.b16 %v1475
      %v1988 = vunpack.c.l.b16 %v1476
      %v1989 = vunpack.c.l.b16 %v1477
      %v1990 = vunpack.c.l.b16 %v1478
      %v1991 = vunpack.c.l.b16 %v1479
      %v1992 = vunpack.c.l.b16 %v1480
      %v1993 = vunpack.c.l.b16 %v1481
      %v1994 = vunpack.c.l.b16 %v1482
      %v1995 = vunpack.c.l.b16 %v1483
      %v1996 = vunpack.c.l.b16 %v1484
      %v1997 = vunpack.c.l.b16 %v1485
      %v1998 = vunpack.c.l.b16 %v1486
      %v1999 = vunpack.c.l.b16 %v1487
      %v2000 = vunpack.c.l.b16 %v1488
      %v2001 = vunpack.c.l.b16 %v1489
      %v2002 = vunpack.c.l.b16 %v1490
      %v2003 = vunpack.c.l.b16 %v1491
      %v2004 = vunpack.c.l.b16 %v1492
      %v2005 = vunpack.c.l.b16 %v1493
      %v2006 = vunpack.c.l.b16 %v1494
      %v2007 = vunpack.c.l.b16 %v1495
      %v2008 = vunpack.c.l.b16 %v1496
      %v2009 = vunpack.c.l.b16 %v1497
      %v2010 = vunpack.c.l.b16 %v1498
      %v2011 = vunpack.c.l.b16 %v1499
      %v2012 = vunpack.c.l.b16 %v1500
      %v2013 = vunpack.c.l.b16 %v1501
      %v2014 = vunpack.c.l.b16 %v1502
      %v2015 = vunpack.c.l.b16 %v1503
      %v2016 = vunpack.c.l.b16 %v1504
      %v2017 = vunpack.c.l.b16 %v1505
      %v2018 = vunpack.c.l.b16 %v1506
      %v2019 = vunpack.c.l.b16 %v1507
      %v2020 = vunpack.c.l.b16 %v1508
      %v2021 = vunpack.c.l.b16 %v1509
      %v2022 = vunpack.c.l.b16 %v1510
      %v2023 = vunpack.c.l.b16 %v1511
      %v2024 = vunpack.c.l.b16 %v1512
      %v2025 = vunpack.c.l.b16 %v1513
      %v2026 = vunpack.c.l.b16 %v1514
      %v2027 = vunpack.c.l.b16 %v1515
      %v2028 = vunpack.c.l.b16 %v1516
      %v2029 = vunpack.c.l.b16 %v1517
      %v2030 = vunpack.c.l.b16 %v1518
      %v2031 = vunpack.c.l.b16 %v1519
      %v2032 = vunpack.c.l.b16 %v1520
      %v2033 = vunpack.c.l.b16 %v1521
      %v2034 = vunpack.c.l.b16 %v1522
      %v2035 = vunpack.c.l.b16 %v1523
      %v2036 = vunpack.c.l.b16 %v1524
      %v2037 = vunpack.c.l.b16 %v1525
      %v2038 = vunpack.c.l.b16 %v1526
      %v2039 = vunpack.c.l.b16 %v1527
      %v2040 = vunpack.c.l.b16 %v1528
      %v2041 = vunpack.c.l.b16 %v1529
      %v2042 = vunpack.c.l.b16 %v1530
      %v2043 = vunpack.c.l.b16 %v1531
      %v2044 = vunpack.c.l.b16 %v1532
      %v2045 = vunpack.c.l.b16 %v1533
      %v2046 = vunpack.c.l.b16 %v1534
      %v2047 = vunpack.c.l.b16 %v1535
      %v2048 = vunpack.c.l.b16 %v1536
      %v2049 = vunpack.c.l.b16 %v1537
      %v2050 = vunpack.c.l.b16 %v1538
      %v2051 = vunpack.c.l.b16 %v1539
      %v2052 = vunpack.c.l.b16 %v1540
      %v2053 = vunpack.c.l.b16 %v1541
      %v2054 = vunpack.c.l.b16 %v1542
      %v2055 = vunpack.c.l.b16 %v1543
      %v2056 = vunpack.c.l.b16 %v1544
      %v2057 = vunpack.c.l.b16 %v1545
      %v2058 = vunpack.c.l.b16 %v1546
      %v2059 = vunpack.c.l.b16 %v1547
      %v2060 = vunpack.c.l.b16 %v1548
      %v2061 = vunpack.c.l.b16 %v1549
      %v2062 = vunpack.c.l.b16 %v1550
      %v2063 = vunpack.c.l.b16 %v1551
      %v2064 = vunpack.c.l.b16 %v1552
      %v2065 = vunpack.c.l.b16 %v1553
      %v2066 = vunpack.c.l.b16 %v1554
      %v2067 = vunpack.c.l.b16 %v1555
      %v2068 = vunpack.c.l.b16 %v1556
      %v2069 = vunpack.c.l.b16 %v1557
      %v2070 = vunpack.c.l.b16 %v1558
      %v2071 = vunpack.c.l.b16 %v1559
      %v2072 = vunpack.c.l.b16 %v1560
      %v2073 = vunpack.c.l.b16 %v1561
      %v2074 = vunpack.c.l.b16 %v1562
      %v2075 = vunpack.c.l.b16 %v1563
      %v2076 = vunpack.c.l.b16 %v1564
      %v2077 = vunpack.c.l.b16 %v1565
      %v2078 = vunpack.c.l.b16 %v1566
      %v2079 = vunpack.c.l.b16 %v1567
      %v2080 = vunpack.c.l.b16 %v1568
      %v2081 = vunpack.c.l.b16 %v1569
      %v2082 = vunpack.c.l.b16 %v1570
      %v2083 = vunpack.c.l.b16 %v1571
      %v2084 = vunpack.c.l.b16 %v1572
      %v2085 = vunpack.c.l.b16 %v1573
      %v2086 = vunpack.c.l.b16 %v1574
      %v2087 = vunpack.c.l.b16 %v1575
      %v2088 = vunpack.c.l.b16 %v1576
      %v2089 = vunpack.c.l.b16 %v1577
      %v2090 = vunpack.c.l.b16 %v1578
      %v2091 = vunpack.c.l.b16 %v1579
      %v2092 = vunpack.c.l.b16 %v1580
      %v2093 = vunpack.c.l.b16 %v1581
      %v2094 = vunpack.c.l.b16 %v1582
      %v2095 = vunpack.c.l.b16 %v1583
      %v2096 = vunpack.c.l.b16 %v1584
      %v2097 = vunpack.c.l.b16 %v1585
      %v2098 = vunpack.c.l.b16 %v1586
      %v2099 = vunpack.c.l.b16 %v1587
      %v2100 = vunpack.c.l.b16 %v1588
      %v2101 = vunpack.c.l.b16 %v1589
      %v2102 = vunpack.c.l.b16 %v1590
      %v2103 = vunpack.c.l.b16 %v1591
      %v2104 = vunpack.c.l.b16 %v1592
      %v2105 = vunpack.c.l.b16 %v1593
      %v2106 = vunpack.c.l.b16 %v1594
      %v2107 = vunpack.c.l.b16 %v1595
      %v2108 = vunpack.c.l.b16 %v1596
      %v2109 = vunpack.c.l.b16 %v1597
      %v2110 = vunpack.c.l.b16 %v1598
      %v2111 = vunpack.c.l.b16 %v1599
      %v2112 = vunpack.c.l.b16 %v1600
      %v2113 = vunpack.c.l.b16 %v1601
      %v2114 = vunpack.c.l.b16 %v1602
      %v2115 = vunpack.c.l.b16 %v1603
      %v2116 = vunpack.c.l.b16 %v1604
      %v2117 = vunpack.c.l.b16 %v1605
      %v2118 = vunpack.c.l.b16 %v1606
      %v2119 = vunpack.c.l.b16 %v1607
      %v2120 = vunpack.c.l.b16 %v1608
      %v2121 = vunpack.c.l.b16 %v1609
      %v2122 = vunpack.c.l.b16 %v1610
      %v2123 = vunpack.c.l.b16 %v1611
      %v2124 = vunpack.c.l.b16 %v1612
      %v2125 = vunpack.c.l.b16 %v1613
      %v2126 = vunpack.c.l.b16 %v1614
      %v2127 = vunpack.c.l.b16 %v1615
      %v2128 = vunpack.c.l.b16 %v1616
      %v2129 = vunpack.c.l.b16 %v1617
      %v2130 = vunpack.c.l.b16 %v1618
      %v2131 = vunpack.c.l.b16 %v1619
      %v2132 = vunpack.c.l.b16 %v1620
      %v2133 = vunpack.c.l.b16 %v1621
      %v2134 = vunpack.c.l.b16 %v1622
      %v2135 = vunpack.c.l.b16 %v1623
      %v2136 = vunpack.c.l.b16 %v1624
      %v2137 = vunpack.c.l.b16 %v1625
      %v2138 = vunpack.c.l.b16 %v1626
      %v2139 = vunpack.c.l.b16 %v1627
      %v2140 = vunpack.c.l.b16 %v1628
      %v2141 = vunpack.c.l.b16 %v1629
      %v2142 = vunpack.c.l.b16 %v1630
      %v2143 = vunpack.c.l.b16 %v1631
      %v2144 = vunpack.c.l.b16 %v1632
      %v2145 = vunpack.c.l.b16 %v1633
      %v2146 = vunpack.c.l.b16 %v1634
      %v2147 = vunpack.c.l.b16 %v1635
      %v2148 = vunpack.c.l.b16 %v1636
      %v2149 = vunpack.c.l.b16 %v1637
      %v2150 = vunpack.c.l.b16 %v1638
      %v2151 = vunpack.c.l.b16 %v1639
      %v2152 = vunpack.c.l.b16 %v1640
      %v2153 = vunpack.c.l.b16 %v1641
      %v2154 = vunpack.c.l.b16 %v1642
      %v2155 = vunpack.c.l.b16 %v1643
      %v2156 = vunpack.c.l.b16 %v1644
      %v2157 = vunpack.c.l.b16 %v1645
      %v2158 = vunpack.c.l.b16 %v1646
      %v2159 = vunpack.c.l.b16 %v1647
      %v2160 = vunpack.c.l.b16 %v1648
      %v2161 = vunpack.c.l.b16 %v1649
      %v2162 = vunpack.c.l.b16 %v1650
      %v2163 = vunpack.c.l.b16 %v1651
      %v2164 = vunpack.c.l.b16 %v1652
      %v2165 = vunpack.c.l.b16 %v1653
      %v2166 = vunpack.c.l.b16 %v1654
      %v2167 = vunpack.c.l.b16 %v1655
      %v2168 = vunpack.c.l.b16 %v1656
      %v2169 = vunpack.c.l.b16 %v1657
      %v2170 = vunpack.c.l.b16 %v1658
      %v2171 = vunpack.c.l.b16 %v1659
      %v2172 = vunpack.c.l.b16 %v1660
      %v2173 = vunpack.c.l.b16 %v1661
      %v2174 = vunpack.c.l.b16 %v1662
      %v2175 = vunpack.c.l.b16 %v1663
      %v2176 = vunpack.c.l.b16 %v1664
      %v2177 = vunpack.c.l.b16 %v1665
      %v2178 = vunpack.c.l.b16 %v1666
      %v2179 = vunpack.c.l.b16 %v1667
      %v2180 = vunpack.c.l.b16 %v1668
      %v2181 = vunpack.c.l.b16 %v1669
      %v2182 = vunpack.c.l.b16 %v1670
      %v2183 = vunpack.c.l.b16 %v1671
      %v2184 = vunpack.c.l.b16 %v1672
      %v2185 = vunpack.c.l.b16 %v1673
      %v2186 = vunpack.c.l.b16 %v1674
      %v2187 = vunpack.c.l.b16 %v1675
      %v2188 = vunpack.c.l.b16 %v1676
      %v2189 = vunpack.c.l.b16 %v1677
      %v2190 = vunpack.c.l.b16 %v1678
      %v2191 = vunpack.c.l.b16 %v1679
      %v2192 = vunpack.c.l.b16 %v1680
      %v2193 = vunpack.c.l.b16 %v1681
      %v2194 = vunpack.c.l.b16 %v1682
      %v2195 = vunpack.c.l.b16 %v1683
      %v2196 = vunpack.c.l.b16 %v1684
      %v2197 = vunpack.c.l.b16 %v1685
      %v2198 = vunpack.c.l.b16 %v1686
      %v2199 = vunpack.c.l.b16 %v1687
      %v2200 = vunpack.c.l.b16 %v1688
      %v2201 = vunpack.c.l.b16 %v1689
      %v2202 = vunpack.c.l.b16 %v1690
      %v2203 = vunpack.c.l.b16 %v1691
      %v2204 = vunpack.c.l.b16 %v1692
      %v2205 = vunpack.c.l.b16 %v1693
      %v2206 = vpack.c.b16 %v1951, %v1950
      %v2207 = vpack.c.b16 %v1953, %v1952
      %v2208 = vpack.c.b16 %v1955, %v1954
      %v2209 = vpack.c.b16 %v1957, %v1956
      %v2210 = vpack.c.b16 %v1959, %v1958
      %v2211 = vpack.c.b16 %v1961, %v1960
      %v2212 = vpack.c.b16 %v1963, %v1962
      %v2213 = vpack.c.b16 %v1965, %v1964
      %v2214 = vpack.c.b16 %v1967, %v1966
      %v2215 = vpack.c.b16 %v1969, %v1968
      %v2216 = vpack.c.b16 %v1971, %v1970
      %v2217 = vpack.c.b16 %v1973, %v1972
      %v2218 = vpack.c.b16 %v1975, %v1974
      %v2219 = vpack.c.b16 %v1977, %v1976
      %v2220 = vpack.c.b16 %v1979, %v1978
      %v2221 = vpack.c.b16 %v1981, %v1980
      %v2222 = vpack.c.b16 %v1983, %v1982
      %v2223 = vpack.c.b16 %v1985, %v1984
      %v2224 = vpack.c.b16 %v1987, %v1986
      %v2225 = vpack.c.b16 %v1989, %v1988
      %v2226 = vpack.c.b16 %v1991, %v1990
      %v2227 = vpack.c.b16 %v1993, %v1992
      %v2228 = vpack.c.b16 %v1995, %v1994
      %v2229 = vpack.c.b16 %v1997, %v1996
      %v2230 = vpack.c.b16 %v1999, %v1998
      %v2231 = vpack.c.b16 %v2001, %v2000
      %v2232 = vpack.c.b16 %v2003, %v2002
      %v2233 = vpack.c.b16 %v2005, %v2004
      %v2234 = vpack.c.b16 %v2007, %v2006
      %v2235 = vpack.c.b16 %v2009, %v2008
      %v2236 = vpack.c.b16 %v2011, %v2010
      %v2237 = vpack.c.b16 %v2013, %v2012
      %v2238 = vpack.c.b16 %v2015, %v2014
      %v2239 = vpack.c.b16 %v2017, %v2016
      %v2240 = vpack.c.b16 %v2019, %v2018
      %v2241 = vpack.c.b16 %v2021, %v2020
      %v2242 = vpack.c.b16 %v2023, %v2022
      %v2243 = vpack.c.b16 %v2025, %v2024
      %v2244 = vpack.c.b16 %v2027, %v2026
      %v2245 = vpack.c.b16 %v2029, %v2028
      %v2246 = vpack.c.b16 %v2031, %v2030
      %v2247 = vpack.c.b16 %v2033, %v2032
      %v2248 = vpack.c.b16 %v2035, %v2034
      %v2249 = vpack.c.b16 %v2037, %v2036
      %v2250 = vpack.c.b16 %v2039, %v2038
      %v2251 = vpack.c.b16 %v2041, %v2040
      %v2252 = vpack.c.b16 %v2043, %v2042
      %v2253 = vpack.c.b16 %v2045, %v2044
      %v2254 = vpack.c.b16 %v2047, %v2046
      %v2255 = vpack.c.b16 %v2049, %v2048
      %v2256 = vpack.c.b16 %v2051, %v2050
      %v2257 = vpack.c.b16 %v2053, %v2052
      %v2258 = vpack.c.b16 %v2055, %v2054
      %v2259 = vpack.c.b16 %v2057, %v2056
      %v2260 = vpack.c.b16 %v2059, %v2058
      %v2261 = vpack.c.b16 %v2061, %v2060
      %v2262 = vpack.c.b16 %v2063, %v2062
      %v2263 = vpack.c.b16 %v2065, %v2064
      %v2264 = vpack.c.b16 %v2067, %v2066
      %v2265 = vpack.c.b16 %v2069, %v2068
      %v2266 = vpack.c.b16 %v2071, %v2070
      %v2267 = vpack.c.b16 %v2073, %v2072
      %v2268 = vpack.c.b16 %v2075, %v2074
      %v2269 = vpack.c.b16 %v2077, %v2076
      %v2270 = vpack.c.b16 %v2079, %v2078
      %v2271 = vpack.c.b16 %v2081, %v2080
      %v2272 = vpack.c.b16 %v2083, %v2082
      %v2273 = vpack.c.b16 %v2085, %v2084
      %v2274 = vpack.c.b16 %v2087, %v2086
      %v2275 = vpack.c.b16 %v2089, %v2088
      %v2276 = vpack.c.b16 %v2091, %v2090
      %v2277 = vpack.c.b16 %v2093, %v2092
      %v2278 = vpack.c.b16 %v2095, %v2094
      %v2279 = vpack.c.b16 %v2097, %v2096
      %v2280 = vpack.c.b16 %v2099, %v2098
      %v2281 = vpack.c.b16 %v2101, %v2100
      %v2282 = vpack.c.b16 %v2103, %v2102
      %v2283 = vpack.c.b16 %v2105, %v2104
      %v2284 = vpack.c.b16 %v2107, %v2106
      %v2285 = vpack.c.b16 %v2109, %v2108
      %v2286 = vpack.c.b16 %v2111, %v2110
      %v2287 = vpack.c.b16 %v2113, %v2112
      %v2288 = vpack.c.b16 %v2115, %v2114
      %v2289 = vpack.c.b16 %v2117, %v2116
      %v2290 = vpack.c.b16 %v2119, %v2118
      %v2291 = vpack.c.b16 %v2121, %v2120
      %v2292 = vpack.c.b16 %v2123, %v2122
      %v2293 = vpack.c.b16 %v2125, %v2124
      %v2294 = vpack.c.b16 %v2127, %v2126
      %v2295 = vpack.c.b16 %v2129, %v2128
      %v2296 = vpack.c.b16 %v2131, %v2130
      %v2297 = vpack.c.b16 %v2133, %v2132
      %v2298 = vpack.c.b16 %v2135, %v2134
      %v2299 = vpack.c.b16 %v2137, %v2136
      %v2300 = vpack.c.b16 %v2139, %v2138
      %v2301 = vpack.c.b16 %v2141, %v2140
      %v2302 = vpack.c.b16 %v2143, %v2142
      %v2303 = vpack.c.b16 %v2145, %v2144
      %v2304 = vpack.c.b16 %v2147, %v2146
      %v2305 = vpack.c.b16 %v2149, %v2148
      %v2306 = vpack.c.b16 %v2151, %v2150
      %v2307 = vpack.c.b16 %v2153, %v2152
      %v2308 = vpack.c.b16 %v2155, %v2154
      %v2309 = vpack.c.b16 %v2157, %v2156
      %v2310 = vpack.c.b16 %v2159, %v2158
      %v2311 = vpack.c.b16 %v2161, %v2160
      %v2312 = vpack.c.b16 %v2163, %v2162
      %v2313 = vpack.c.b16 %v2165, %v2164
      %v2314 = vpack.c.b16 %v2167, %v2166
      %v2315 = vpack.c.b16 %v2169, %v2168
      %v2316 = vpack.c.b16 %v2171, %v2170
      %v2317 = vpack.c.b16 %v2173, %v2172
      %v2318 = vpack.c.b16 %v2175, %v2174
      %v2319 = vpack.c.b16 %v2177, %v2176
      %v2320 = vpack.c.b16 %v2179, %v2178
      %v2321 = vpack.c.b16 %v2181, %v2180
      %v2322 = vpack.c.b16 %v2183, %v2182
      %v2323 = vpack.c.b16 %v2185, %v2184
      %v2324 = vpack.c.b16 %v2187, %v2186
      %v2325 = vpack.c.b16 %v2189, %v2188
      %v2326 = vpack.c.b16 %v2191, %v2190
      %v2327 = vpack.c.b16 %v2193, %v2192
      %v2328 = vpack.c.b16 %v2195, %v2194
      %v2329 = vpack.c.b16 %v2197, %v2196
      %v2330 = vpack.c.b16 %v2199, %v2198
      %v2331 = vpack.c.b16 %v2201, %v2200
      %v2332 = vpack.c.b16 %v2203, %v2202
      %v2333 = vpack.c.b16 %v2205, %v2204
      %2462 = vmatprep.subr.bf16.mxu0 0
      %2463 = vmatpush1.bf16.msra.mxu0 %v2206
      %2464 = vmatprep.subr.bf16.mxu0 0
      %2465 = vmatpush1.bf16.msra.mxu0 %v2207
      %2466 = vmatprep.subr.bf16.mxu0 0
      %2467 = vmatpush1.bf16.msra.mxu0 %v2208
      %2468 = vmatprep.subr.bf16.mxu0 0
      %2469 = vmatpush1.bf16.msra.mxu0 %v2209
      %2470 = vmatprep.subr.bf16.mxu0 0
      %2471 = vmatpush1.bf16.msra.mxu0 %v2210
      %2472 = vmatprep.subr.bf16.mxu0 0
      %2473 = vmatpush1.bf16.msra.mxu0 %v2211
      %2474 = vmatprep.subr.bf16.mxu0 0
      %2475 = vmatpush1.bf16.msra.mxu0 %v2212
      %2476 = vmatprep.subr.bf16.mxu0 0
      %2477 = vmatpush1.bf16.msra.mxu0 %v2213
      %2478 = vmatprep.subr.bf16.mxu0 0
      %2479 = vmatpush1.bf16.msra.mxu0 %v2214
      %2480 = vmatprep.subr.bf16.mxu0 0
      %2481 = vmatpush1.bf16.msra.mxu0 %v2215
      %2482 = vmatprep.subr.bf16.mxu0 0
      %2483 = vmatpush1.bf16.msra.mxu0 %v2216
      %2484 = vmatprep.subr.bf16.mxu0 0
      %2485 = vmatpush1.bf16.msra.mxu0 %v2217
      %2486 = vmatprep.subr.bf16.mxu0 0
      %2487 = vmatpush1.bf16.msra.mxu0 %v2218
      %2488 = vmatprep.subr.bf16.mxu0 0
      %2489 = vmatpush1.bf16.msra.mxu0 %v2219
      %2490 = vmatprep.subr.bf16.mxu0 0
      %2491 = vmatpush1.bf16.msra.mxu0 %v2220
      %2492 = vmatprep.subr.bf16.mxu0 0
      %2493 = vmatpush1.bf16.msra.mxu0 %v2221
      %2494 = vmatprep.mubr.bf16.mxu0 %v1375
      %2495 = vmatmul.mubr.bf16.gmra.mrb[0].mxu0 %v1374
      %v2496 = vpop.f32.mrb[0].mxu0
      %v2497 = vadd.f32 0.0, %v2496
      %v2498 = vpop.f32.mrb[0].mxu0
      %v2499 = vpop.f32.mrb[0].mxu0
      %v2500 = vadd.f32 0.0, %v2499
      %v2501 = vpop.f32.mrb[0].mxu0
      %2502 = vmatprep.mubr.bf16.mxu0 %v1391
      %2503 = vmatmul.mubr.bf16.gmra.mrb[0].mxu0 %v1390
      %v2504 = vpop.f32.mrb[0].mxu0
      %v2505 = vadd.f32 0.0, %v2504
      %v2506 = vpop.f32.mrb[0].mxu0
      %v2507 = vpop.f32.mrb[0].mxu0
      %v2508 = vadd.f32 0.0, %v2507
      %v2509 = vpop.f32.mrb[0].mxu0
      %2510 = vmatprep.mubr.bf16.mxu0 %v1407
      %2511 = vmatmul.mubr.bf16.gmra.mrb[0].mxu0 %v1406
      %v2512 = vpop.f32.mrb[0].mxu0
      %v2513 = vadd.f32 0.0, %v2512
      %v2514 = vpop.f32.mrb[0].mxu0
      %v2515 = vpop.f32.mrb[0].mxu0
      %v2516 = vadd.f32 0.0, %v2515
      %v2517 = vpop.f32.mrb[0].mxu0
      %2518 = vmatprep.mubr.bf16.mxu0 %v1423
      %2519 = vmatmul.mubr.bf16.gmra.mrb[0].mxu0 %v1422
      %v2520 = vpop.f32.mrb[0].mxu0
      %v2521 = vadd.f32 0.0, %v2520
      %v2522 = vpop.f32.mrb[0].mxu0
      %v2523 = vpop.f32.mrb[0].mxu0
      %v2524 = vadd.f32 0.0, %v2523
      %v2525 = vpop.f32.mrb[0].mxu0
      %2526 = vdwg.mxu0
      %2527 = vmatprep.subr.bf16.mxu0 0
      %2528 = vmatpush1.bf16.msra.mxu0 %v2222
      %2529 = vmatprep.subr.bf16.mxu0 0
      %2530 = vmatpush1.bf16.msra.mxu0 %v2223
      %2531 = vmatprep.subr.bf16.mxu0 0
      %2532 = vmatpush1.bf16.msra.mxu0 %v2224
      %2533 = vmatprep.subr.bf16.mxu0 0
      %2534 = vmatpush1.bf16.msra.mxu0 %v2225
      %2535 = vmatprep.subr.bf16.mxu0 0
      %2536 = vmatpush1.bf16.msra.mxu0 %v2226
      %2537 = vmatprep.subr.bf16.mxu0 0
      %2538 = vmatpush1.bf16.msra.mxu0 %v2227
      %2539 = vmatprep.subr.bf16.mxu0 0
      %2540 = vmatpush1.bf16.msra.mxu0 %v2228
      %2541 = vmatprep.subr.bf16.mxu0 0
      %2542 = vmatpush1.bf16.msra.mxu0 %v2229
      %2543 = vmatprep.subr.bf16.mxu0 0
      %2544 = vmatpush1.bf16.msra.mxu0 %v2230
      %2545 = vmatprep.subr.bf16.mxu0 0
      %2546 = vmatpush1.bf16.msra.mxu0 %v2231
      %2547 = vmatprep.subr.bf16.mxu0 0
      %2548 = vmatpush1.bf16.msra.mxu0 %v2232
      %2549 = vmatprep.subr.bf16.mxu0 0
      %2550 = vmatpush1.bf16.msra.mxu0 %v2233
      %2551 = vmatprep.subr.bf16.mxu0 0
      %2552 = vmatpush1.bf16.msra.mxu0 %v2234
      %2553 = vmatprep.subr.bf16.mxu0 0
      %2554 = vmatpush1.bf16.msra.mxu0 %v2235
      %2555 = vmatprep.subr.bf16.mxu0 0
      %2556 = vmatpush1.bf16.msra.mxu0 %v2236
      %2557 = vmatprep.subr.bf16.mxu0 0
      %2558 = vmatpush1.bf16.msra.mxu0 %v2237
      %2559 = vmatprep.mubr.bf16.mxu0 %v1377
      %2560 = vmatmul.mubr.bf16.gmra.mrb[0].mxu0 %v1376
      %v2561 = vpop.f32.mrb[0].mxu0
      %v2562 = vadd.f32 %v2497, %v2561
      %v2563 = vpop.f32.mrb[0].mxu0
      %v2564 = vpop.f32.mrb[0].mxu0
      %v2565 = vadd.f32 %v2500, %v2564
      %v2566 = vpop.f32.mrb[0].mxu0
      %2567 = vmatprep.mubr.bf16.mxu0 %v1393
      %2568 = vmatmul.mubr.bf16.gmra.mrb[0].mxu0 %v1392
      %v2569 = vpop.f32.mrb[0].mxu0
      %v2570 = vadd.f32 %v2505, %v2569
      %v2571 = vpop.f32.mrb[0].mxu0
      %v2572 = vpop.f32.mrb[0].mxu0
      %v2573 = vadd.f32 %v2508, %v2572
      %v2574 = vpop.f32.mrb[0].mxu0
      %2575 = vmatprep.mubr.bf16.mxu0 %v1409
      %2576 = vmatmul.mubr.bf16.gmra.mrb[0].mxu0 %v1408
      %v2577 = vpop.f32.mrb[0].mxu0
      %v2578 = vadd.f32 %v2513, %v2577
      %v2579 = vpop.f32.mrb[0].mxu0
      %v2580 = vpop.f32.mrb[0].mxu0
      %v2581 = vadd.f32 %v2516, %v2580
      %v2582 = vpop.f32.mrb[0].mxu0
      %2583 = vmatprep.mubr.bf16.mxu0 %v1425
      %2584 = vmatmul.mubr.bf16.gmra.mrb[0].mxu0 %v1424
      %v2585 = vpop.f32.mrb[0].mxu0
      %v2586 = vadd.f32 %v2521, %v2585
      %v2587 = vpop.f32.mrb[0].mxu0
      %v2588 = vpop.f32.mrb[0].mxu0
      %v2589 = vadd.f32 %v2524, %v2588
      %v2590 = vpop.f32.mrb[0].mxu0
      %2591 = vdwg.mxu0
      %2592 = vmatprep.subr.bf16.mxu0 0
      %2593 = vmatpush1.bf16.msra.mxu0 %v2238
      %2594 = vmatprep.subr.bf16.mxu0 0
      %2595 = vmatpush1.bf16.msra.mxu0 %v2239
      %2596 = vmatprep.subr.bf16.mxu0 0
      %2597 = vmatpush1.bf16.msra.mxu0 %v2240
      %2598 = vmatprep.subr.bf16.mxu0 0
      %2599 = vmatpush1.bf16.msra.mxu0 %v2241
      %2600 = vmatprep.subr.bf16.mxu0 0
      %2601 = vmatpush1.bf16.msra.mxu0 %v2242
      %2602 = vmatprep.subr.bf16.mxu0 0
      %2603 = vmatpush1.bf16.msra.mxu0 %v2243
      %2604 = vmatprep.subr.bf16.mxu0 0
      %2605 = vmatpush1.bf16.msra.mxu0 %v2244
      %2606 = vmatprep.subr.bf16.mxu0 0
      %2607 = vmatpush1.bf16.msra.mxu0 %v2245
      %2608 = vmatprep.subr.bf16.mxu0 0
      %2609 = vmatpush1.bf16.msra.mxu0 %v2246
      %2610 = vmatprep.subr.bf16.mxu0 0
      %2611 = vmatpush1.bf16.msra.mxu0 %v2247
      %2612 = vmatprep.subr.bf16.mxu0 0
      %2613 = vmatpush1.bf16.msra.mxu0 %v2248
      %2614 = vmatprep.subr.bf16.mxu0 0
      %2615 = vmatpush1.bf16.msra.mxu0 %v2249
      %2616 = vmatprep.subr.bf16.mxu0 0
      %2617 = vmatpush1.bf16.msra.mxu0 %v2250
      %2618 = vmatprep.subr.bf16.mxu0 0
      %2619 = vmatpush1.bf16.msra.mxu0 %v2251
      %2620 = vmatprep.subr.bf16.mxu0 0
      %2621 = vmatpush1.bf16.msra.mxu0 %v2252
      %2622 = vmatprep.subr.bf16.mxu0 0
      %2623 = vmatpush1.bf16.msra.mxu0 %v2253
      %2624 = vmatprep.mubr.bf16.mxu0 %v1379
      %2625 = vmatmul.mubr.bf16.gmra.mrb[0].mxu0 %v1378
      %v2626 = vpop.f32.mrb[0].mxu0
      %v2627 = vadd.f32 %v2562, %v2626
      %v2628 = vpop.f32.mrb[0].mxu0
      %v2629 = vpop.f32.mrb[0].mxu0
      %v2630 = vadd.f32 %v2565, %v2629
      %v2631 = vpop.f32.mrb[0].mxu0
      %2632 = vmatprep.mubr.bf16.mxu0 %v1395
      %2633 = vmatmul.mubr.bf16.gmra.mrb[0].mxu0 %v1394
      %v2634 = vpop.f32.mrb[0].mxu0
      %v2635 = vadd.f32 %v2570, %v2634
      %v2636 = vpop.f32.mrb[0].mxu0
      %v2637 = vpop.f32.mrb[0].mxu0
      %v2638 = vadd.f32 %v2573, %v2637
      %v2639 = vpop.f32.mrb[0].mxu0
      %2640 = vmatprep.mubr.bf16.mxu0 %v1411
      %2641 = vmatmul.mubr.bf16.gmra.mrb[0].mxu0 %v1410
      %v2642 = vpop.f32.mrb[0].mxu0
      %v2643 = vadd.f32 %v2578, %v2642
      %v2644 = vpop.f32.mrb[0].mxu0
      %v2645 = vpop.f32.mrb[0].mxu0
      %v2646 = vadd.f32 %v2581, %v2645
      %v2647 = vpop.f32.mrb[0].mxu0
      %2648 = vmatprep.mubr.bf16.mxu0 %v1427
      %2649 = vmatmul.mubr.bf16.gmra.mrb[0].mxu0 %v1426
      %v2650 = vpop.f32.mrb[0].mxu0
      %v2651 = vadd.f32 %v2586, %v2650
      %v2652 = vpop.f32.mrb[0].mxu0
      %v2653 = vpop.f32.mrb[0].mxu0
      %v2654 = vadd.f32 %v2589, %v2653
      %v2655 = vpop.f32.mrb[0].mxu0
      %2656 = vdwg.mxu0
      %2657 = vmatprep.subr.bf16.mxu0 0
      %2658 = vmatpush1.bf16.msra.mxu0 %v2254
      %2659 = vmatprep.subr.bf16.mxu0 0
      %2660 = vmatpush1.bf16.msra.mxu0 %v2255
      %2661 = vmatprep.subr.bf16.mxu0 0
      %2662 = vmatpush1.bf16.msra.mxu0 %v2256
      %2663 = vmatprep.subr.bf16.mxu0 0
      %2664 = vmatpush1.bf16.msra.mxu0 %v2257
      %2665 = vmatprep.subr.bf16.mxu0 0
      %2666 = vmatpush1.bf16.msra.mxu0 %v2258
      %2667 = vmatprep.subr.bf16.mxu0 0
      %2668 = vmatpush1.bf16.msra.mxu0 %v2259
      %2669 = vmatprep.subr.bf16.mxu0 0
      %2670 = vmatpush1.bf16.msra.mxu0 %v2260
      %2671 = vmatprep.subr.bf16.mxu0 0
      %2672 = vmatpush1.bf16.msra.mxu0 %v2261
      %2673 = vmatprep.subr.bf16.mxu0 0
      %2674 = vmatpush1.bf16.msra.mxu0 %v2262
      %2675 = vmatprep.subr.bf16.mxu0 0
      %2676 = vmatpush1.bf16.msra.mxu0 %v2263
      %2677 = vmatprep.subr.bf16.mxu0 0
      %2678 = vmatpush1.bf16.msra.mxu0 %v2264
      %2679 = vmatprep.subr.bf16.mxu0 0
      %2680 = vmatpush1.bf16.msra.mxu0 %v2265
      %2681 = vmatprep.subr.bf16.mxu0 0
      %2682 = vmatpush1.bf16.msra.mxu0 %v2266
      %2683 = vmatprep.subr.bf16.mxu0 0
      %2684 = vmatpush1.bf16.msra.mxu0 %v2267
      %2685 = vmatprep.subr.bf16.mxu0 0
      %2686 = vmatpush1.bf16.msra.mxu0 %v2268
      %2687 = vmatprep.subr.bf16.mxu0 0
      %2688 = vmatpush1.bf16.msra.mxu0 %v2269
      %2689 = vmatprep.mubr.bf16.mxu0 %v1381
      %2690 = vmatmul.mubr.bf16.gmra.mrb[0].mxu0 %v1380
      %v2691 = vpop.f32.mrb[0].mxu0
      %v2692 = vadd.f32 %v2627, %v2691
      %v2693 = vpop.f32.mrb[0].mxu0
      %v2694 = vpop.f32.mrb[0].mxu0
      %v2695 = vadd.f32 %v2630, %v2694
      %v2696 = vpop.f32.mrb[0].mxu0
      %2697 = vmatprep.mubr.bf16.mxu0 %v1397
      %2698 = vmatmul.mubr.bf16.gmra.mrb[0].mxu0 %v1396
      %v2699 = vpop.f32.mrb[0].mxu0
      %v2700 = vadd.f32 %v2635, %v2699
      %v2701 = vpop.f32.mrb[0].mxu0
      %v2702 = vpop.f32.mrb[0].mxu0
      %v2703 = vadd.f32 %v2638, %v2702
      %v2704 = vpop.f32.mrb[0].mxu0
      %2705 = vmatprep.mubr.bf16.mxu0 %v1413
      %2706 = vmatmul.mubr.bf16.gmra.mrb[0].mxu0 %v1412
      %v2707 = vpop.f32.mrb[0].mxu0
      %v2708 = vadd.f32 %v2643, %v2707
      %v2709 = vpop.f32.mrb[0].mxu0
      %v2710 = vpop.f32.mrb[0].mxu0
      %v2711 = vadd.f32 %v2646, %v2710
      %v2712 = vpop.f32.mrb[0].mxu0
      %2713 = vmatprep.mubr.bf16.mxu0 %v1429
      %2714 = vmatmul.mubr.bf16.gmra.mrb[0].mxu0 %v1428
      %v2715 = vpop.f32.mrb[0].mxu0
      %v2716 = vadd.f32 %v2651, %v2715
      %v2717 = vpop.f32.mrb[0].mxu0
      %v2718 = vpop.f32.mrb[0].mxu0
      %v2719 = vadd.f32 %v2654, %v2718
      %v2720 = vpop.f32.mrb[0].mxu0
      %2721 = vdwg.mxu0
      %2722 = vmatprep.subr.bf16.mxu0 0
      %2723 = vmatpush1.bf16.msra.mxu0 %v2270
      %2724 = vmatprep.subr.bf16.mxu0 0
      %2725 = vmatpush1.bf16.msra.mxu0 %v2271
      %2726 = vmatprep.subr.bf16.mxu0 0
      %2727 = vmatpush1.bf16.msra.mxu0 %v2272
      %2728 = vmatprep.subr.bf16.mxu0 0
      %2729 = vmatpush1.bf16.msra.mxu0 %v2273
      %2730 = vmatprep.subr.bf16.mxu0 0
      %2731 = vmatpush1.bf16.msra.mxu0 %v2274
      %2732 = vmatprep.subr.bf16.mxu0 0
      %2733 = vmatpush1.bf16.msra.mxu0 %v2275
      %2734 = vmatprep.subr.bf16.mxu0 0
      %2735 = vmatpush1.bf16.msra.mxu0 %v2276
      %2736 = vmatprep.subr.bf16.mxu0 0
      %2737 = vmatpush1.bf16.msra.mxu0 %v2277
      %2738 = vmatprep.subr.bf16.mxu0 0
      %2739 = vmatpush1.bf16.msra.mxu0 %v2278
      %2740 = vmatprep.subr.bf16.mxu0 0
      %2741 = vmatpush1.bf16.msra.mxu0 %v2279
      %2742 = vmatprep.subr.bf16.mxu0 0
      %2743 = vmatpush1.bf16.msra.mxu0 %v2280
      %2744 = vmatprep.subr.bf16.mxu0 0
      %2745 = vmatpush1.bf16.msra.mxu0 %v2281
      %2746 = vmatprep.subr.bf16.mxu0 0
      %2747 = vmatpush1.bf16.msra.mxu0 %v2282
      %2748 = vmatprep.subr.bf16.mxu0 0
      %2749 = vmatpush1.bf16.msra.mxu0 %v2283
      %2750 = vmatprep.subr.bf16.mxu0 0
      %2751 = vmatpush1.bf16.msra.mxu0 %v2284
      %2752 = vmatprep.subr.bf16.mxu0 0
      %2753 = vmatpush1.bf16.msra.mxu0 %v2285
      %2754 = vmatprep.mubr.bf16.mxu0 %v1383
      %2755 = vmatmul.mubr.bf16.gmra.mrb[0].mxu0 %v1382
      %v2756 = vpop.f32.mrb[0].mxu0
      %v2757 = vadd.f32 %v2692, %v2756
      %v2758 = vpop.f32.mrb[0].mxu0
      %v2759 = vpop.f32.mrb[0].mxu0
      %v2760 = vadd.f32 %v2695, %v2759
      %v2761 = vpop.f32.mrb[0].mxu0
      %2762 = vmatprep.mubr.bf16.mxu0 %v1399
      %2763 = vmatmul.mubr.bf16.gmra.mrb[0].mxu0 %v1398
      %v2764 = vpop.f32.mrb[0].mxu0
      %v2765 = vadd.f32 %v2700, %v2764
      %v2766 = vpop.f32.mrb[0].mxu0
      %v2767 = vpop.f32.mrb[0].mxu0
      %v2768 = vadd.f32 %v2703, %v2767
      %v2769 = vpop.f32.mrb[0].mxu0
      %2770 = vmatprep.mubr.bf16.mxu0 %v1415
      %2771 = vmatmul.mubr.bf16.gmra.mrb[0].mxu0 %v1414
      %v2772 = vpop.f32.mrb[0].mxu0
      %v2773 = vadd.f32 %v2708, %v2772
      %v2774 = vpop.f32.mrb[0].mxu0
      %v2775 = vpop.f32.mrb[0].mxu0
      %v2776 = vadd.f32 %v2711, %v2775
      %v2777 = vpop.f32.mrb[0].mxu0
      %2778 = vmatprep.mubr.bf16.mxu0 %v1431
      %2779 = vmatmul.mubr.bf16.gmra.mrb[0].mxu0 %v1430
      %v2780 = vpop.f32.mrb[0].mxu0
      %v2781 = vadd.f32 %v2716, %v2780
      %v2782 = vpop.f32.mrb[0].mxu0
      %v2783 = vpop.f32.mrb[0].mxu0
      %v2784 = vadd.f32 %v2719, %v2783
      %v2785 = vpop.f32.mrb[0].mxu0
      %2786 = vdwg.mxu0
      %2787 = vmatprep.subr.bf16.mxu0 0
      %2788 = vmatpush1.bf16.msra.mxu0 %v2286
      %2789 = vmatprep.subr.bf16.mxu0 0
      %2790 = vmatpush1.bf16.msra.mxu0 %v2287
      %2791 = vmatprep.subr.bf16.mxu0 0
      %2792 = vmatpush1.bf16.msra.mxu0 %v2288
      %2793 = vmatprep.subr.bf16.mxu0 0
      %2794 = vmatpush1.bf16.msra.mxu0 %v2289
      %2795 = vmatprep.subr.bf16.mxu0 0
      %2796 = vmatpush1.bf16.msra.mxu0 %v2290
      %2797 = vmatprep.subr.bf16.mxu0 0
      %2798 = vmatpush1.bf16.msra.mxu0 %v2291
      %2799 = vmatprep.subr.bf16.mxu0 0
      %2800 = vmatpush1.bf16.msra.mxu0 %v2292
      %2801 = vmatprep.subr.bf16.mxu0 0
      %2802 = vmatpush1.bf16.msra.mxu0 %v2293
      %2803 = vmatprep.subr.bf16.mxu0 0
      %2804 = vmatpush1.bf16.msra.mxu0 %v2294
      %2805 = vmatprep.subr.bf16.mxu0 0
      %2806 = vmatpush1.bf16.msra.mxu0 %v2295
      %2807 = vmatprep.subr.bf16.mxu0 0
      %2808 = vmatpush1.bf16.msra.mxu0 %v2296
      %2809 = vmatprep.subr.bf16.mxu0 0
      %2810 = vmatpush1.bf16.msra.mxu0 %v2297
      %2811 = vmatprep.subr.bf16.mxu0 0
      %2812 = vmatpush1.bf16.msra.mxu0 %v2298
      %2813 = vmatprep.subr.bf16.mxu0 0
      %2814 = vmatpush1.bf16.msra.mxu0 %v2299
      %2815 = vmatprep.subr.bf16.mxu0 0
      %2816 = vmatpush1.bf16.msra.mxu0 %v2300
      %2817 = vmatprep.subr.bf16.mxu0 0
      %2818 = vmatpush1.bf16.msra.mxu0 %v2301
      %2819 = vmatprep.mubr.bf16.mxu0 %v1385
      %2820 = vmatmul.mubr.bf16.gmra.mrb[0].mxu0 %v1384
      %v2821 = vpop.f32.mrb[0].mxu0
      %v2822 = vadd.f32 %v2757, %v2821
      %v2823 = vpop.f32.mrb[0].mxu0
      %v2824 = vpop.f32.mrb[0].mxu0
      %v2825 = vadd.f32 %v2760, %v2824
      %v2826 = vpop.f32.mrb[0].mxu0
      %2827 = vmatprep.mubr.bf16.mxu0 %v1401
      %2828 = vmatmul.mubr.bf16.gmra.mrb[0].mxu0 %v1400
      %v2829 = vpop.f32.mrb[0].mxu0
      %v2830 = vadd.f32 %v2765, %v2829
      %v2831 = vpop.f32.mrb[0].mxu0
      %v2832 = vpop.f32.mrb[0].mxu0
      %v2833 = vadd.f32 %v2768, %v2832
      %v2834 = vpop.f32.mrb[0].mxu0
      %2835 = vmatprep.mubr.bf16.mxu0 %v1417
      %2836 = vmatmul.mubr.bf16.gmra.mrb[0].mxu0 %v1416
      %v2837 = vpop.f32.mrb[0].mxu0
      %v2838 = vadd.f32 %v2773, %v2837
      %v2839 = vpop.f32.mrb[0].mxu0
      %v2840 = vpop.f32.mrb[0].mxu0
      %v2841 = vadd.f32 %v2776, %v2840
      %v2842 = vpop.f32.mrb[0].mxu0
      %2843 = vmatprep.mubr.bf16.mxu0 %v1433
      %2844 = vmatmul.mubr.bf16.gmra.mrb[0].mxu0 %v1432
      %v2845 = vpop.f32.mrb[0].mxu0
      %v2846 = vadd.f32 %v2781, %v2845
      %v2847 = vpop.f32.mrb[0].mxu0
      %v2848 = vpop.f32.mrb[0].mxu0
      %v2849 = vadd.f32 %v2784, %v2848
      %v2850 = vpop.f32.mrb[0].mxu0
      %2851 = vdwg.mxu0
      %2852 = vmatprep.subr.bf16.mxu0 0
      %2853 = vmatpush1.bf16.msra.mxu0 %v2302
      %2854 = vmatprep.subr.bf16.mxu0 0
      %2855 = vmatpush1.bf16.msra.mxu0 %v2303
      %2856 = vmatprep.subr.bf16.mxu0 0
      %2857 = vmatpush1.bf16.msra.mxu0 %v2304
      %2858 = vmatprep.subr.bf16.mxu0 0
      %2859 = vmatpush1.bf16.msra.mxu0 %v2305
      %2860 = vmatprep.subr.bf16.mxu0 0
      %2861 = vmatpush1.bf16.msra.mxu0 %v2306
      %2862 = vmatprep.subr.bf16.mxu0 0
      %2863 = vmatpush1.bf16.msra.mxu0 %v2307
      %2864 = vmatprep.subr.bf16.mxu0 0
      %2865 = vmatpush1.bf16.msra.mxu0 %v2308
      %2866 = vmatprep.subr.bf16.mxu0 0
      %2867 = vmatpush1.bf16.msra.mxu0 %v2309
      %2868 = vmatprep.subr.bf16.mxu0 0
      %2869 = vmatpush1.bf16.msra.mxu0 %v2310
      %2870 = vmatprep.subr.bf16.mxu0 0
      %2871 = vmatpush1.bf16.msra.mxu0 %v2311
      %2872 = vmatprep.subr.bf16.mxu0 0
      %2873 = vmatpush1.bf16.msra.mxu0 %v2312
      %2874 = vmatprep.subr.bf16.mxu0 0
      %2875 = vmatpush1.bf16.msra.mxu0 %v2313
      %2876 = vmatprep.subr.bf16.mxu0 0
      %2877 = vmatpush1.bf16.msra.mxu0 %v2314
      %2878 = vmatprep.subr.bf16.mxu0 0
      %2879 = vmatpush1.bf16.msra.mxu0 %v2315
      %2880 = vmatprep.subr.bf16.mxu0 0
      %2881 = vmatpush1.bf16.msra.mxu0 %v2316
      %2882 = vmatprep.subr.bf16.mxu0 0
      %2883 = vmatpush1.bf16.msra.mxu0 %v2317
      %2884 = vmatprep.mubr.bf16.mxu0 %v1387
      %2885 = vmatmul.mubr.bf16.gmra.mrb[0].mxu0 %v1386
      %v2886 = vpop.f32.mrb[0].mxu0
      %v2887 = vadd.f32 %v2822, %v2886
      %v2888 = vpop.f32.mrb[0].mxu0
      %v2889 = vpop.f32.mrb[0].mxu0
      %v2890 = vadd.f32 %v2825, %v2889
      %v2891 = vpop.f32.mrb[0].mxu0
      %2892 = vmatprep.mubr.bf16.mxu0 %v1403
      %2893 = vmatmul.mubr.bf16.gmra.mrb[0].mxu0 %v1402
      %v2894 = vpop.f32.mrb[0].mxu0
      %v2895 = vadd.f32 %v2830, %v2894
      %v2896 = vpop.f32.mrb[0].mxu0
      %v2897 = vpop.f32.mrb[0].mxu0
      %v2898 = vadd.f32 %v2833, %v2897
      %v2899 = vpop.f32.mrb[0].mxu0
      %2900 = vmatprep.mubr.bf16.mxu0 %v1419
      %2901 = vmatmul.mubr.bf16.gmra.mrb[0].mxu0 %v1418
      %v2902 = vpop.f32.mrb[0].mxu0
      %v2903 = vadd.f32 %v2838, %v2902
      %v2904 = vpop.f32.mrb[0].mxu0
      %v2905 = vpop.f32.mrb[0].mxu0
      %v2906 = vadd.f32 %v2841, %v2905
      %v2907 = vpop.f32.mrb[0].mxu0
      %2908 = vmatprep.mubr.bf16.mxu0 %v1435
      %2909 = vmatmul.mubr.bf16.gmra.mrb[0].mxu0 %v1434
      %v2910 = vpop.f32.mrb[0].mxu0
      %v2911 = vadd.f32 %v2846, %v2910
      %v2912 = vpop.f32.mrb[0].mxu0
      %v2913 = vpop.f32.mrb[0].mxu0
      %v2914 = vadd.f32 %v2849, %v2913
      %v2915 = vpop.f32.mrb[0].mxu0
      %2916 = vdwg.mxu0
      %2917 = vmatprep.subr.bf16.mxu0 0
      %2918 = vmatpush1.bf16.msra.mxu0 %v2318
      %2919 = vmatprep.subr.bf16.mxu0 0
      %2920 = vmatpush1.bf16.msra.mxu0 %v2319
      %2921 = vmatprep.subr.bf16.mxu0 0
      %2922 = vmatpush1.bf16.msra.mxu0 %v2320
      %2923 = vmatprep.subr.bf16.mxu0 0
      %2924 = vmatpush1.bf16.msra.mxu0 %v2321
      %2925 = vmatprep.subr.bf16.mxu0 0
      %2926 = vmatpush1.bf16.msra.mxu0 %v2322
      %2927 = vmatprep.subr.bf16.mxu0 0
      %2928 = vmatpush1.bf16.msra.mxu0 %v2323
      %2929 = vmatprep.subr.bf16.mxu0 0
      %2930 = vmatpush1.bf16.msra.mxu0 %v2324
      %2931 = vmatprep.subr.bf16.mxu0 0
      %2932 = vmatpush1.bf16.msra.mxu0 %v2325
      %2933 = vmatprep.subr.bf16.mxu0 0
      %2934 = vmatpush1.bf16.msra.mxu0 %v2326
      %2935 = vmatprep.subr.bf16.mxu0 0
      %2936 = vmatpush1.bf16.msra.mxu0 %v2327
      %2937 = vmatprep.subr.bf16.mxu0 0
      %2938 = vmatpush1.bf16.msra.mxu0 %v2328
      %2939 = vmatprep.subr.bf16.mxu0 0
      %2940 = vmatpush1.bf16.msra.mxu0 %v2329
      %2941 = vmatprep.subr.bf16.mxu0 0
      %2942 = vmatpush1.bf16.msra.mxu0 %v2330
      %2943 = vmatprep.subr.bf16.mxu0 0
      %2944 = vmatpush1.bf16.msra.mxu0 %v2331
      %2945 = vmatprep.subr.bf16.mxu0 0
      %2946 = vmatpush1.bf16.msra.mxu0 %v2332
      %2947 = vmatprep.subr.bf16.mxu0 0
      %2948 = vmatpush1.bf16.msra.mxu0 %v2333
      %2949 = vmatprep.mubr.bf16.mxu0 %v1389
      %2950 = vmatmul.mubr.bf16.gmra.mrb[0].mxu0 %v1388
      %v2951 = vpop.f32.mrb[0].mxu0
      %v2952 = vadd.f32 %v2887, %v2951
      %v2953 = vpop.f32.mrb[0].mxu0
      %v2954 = vpop.f32.mrb[0].mxu0
      %v2955 = vadd.f32 %v2890, %v2954
      %v2956 = vpop.f32.mrb[0].mxu0
      %2957 = vmatprep.mubr.bf16.mxu0 %v1405
      %2958 = vmatmul.mubr.bf16.gmra.mrb[0].mxu0 %v1404
      %v2959 = vpop.f32.mrb[0].mxu0
      %v2960 = vadd.f32 %v2895, %v2959
      %v2961 = vpop.f32.mrb[0].mxu0
      %v2962 = vpop.f32.mrb[0].mxu0
      %v2963 = vadd.f32 %v2898, %v2962
      %v2964 = vpop.f32.mrb[0].mxu0
      %2965 = vmatprep.mubr.bf16.mxu0 %v1421
      %2966 = vmatmul.mubr.bf16.gmra.mrb[0].mxu0 %v1420
      %v2967 = vpop.f32.mrb[0].mxu0
      %v2968 = vadd.f32 %v2903, %v2967
      %v2969 = vpop.f32.mrb[0].mxu0
      %v2970 = vpop.f32.mrb[0].mxu0
      %v2971 = vadd.f32 %v2906, %v2970
      %v2972 = vpop.f32.mrb[0].mxu0
      %2973 = vmatprep.mubr.bf16.mxu0 %v1437
      %2974 = vmatmul.mubr.bf16.gmra.mrb[0].mxu0 %v1436
      %v2975 = vpop.f32.mrb[0].mxu0
      %v2976 = vadd.f32 %v2911, %v2975
      %v2977 = vpop.f32.mrb[0].mxu0
      %v2978 = vpop.f32.mrb[0].mxu0
      %v2979 = vadd.f32 %v2914, %v2978
      %v2980 = vpop.f32.mrb[0].mxu0
      %2981 = vdwg.mxu0
      %v2982 = vadd.f32 %v2952, %v2955
      %v2983 = vadd.f32 %v2982, %v2960
      %v2984 = vadd.f32 %v2983, %v2963
      %v2985 = vadd.f32 %v2984, %v2968
      %v2986 = vadd.f32 %v2985, %v2971
      %v2987 = vadd.f32 %v2986, %v2976
      %v2988 = vadd.f32 %v2987, %v2979
      %v2989 = vrot.slane %v2988, 4
      %v2990 = vadd.f32 %v2988, %v2989
      %v2991 = vrot.slane %v2990, 2
      %v2992 = vadd.f32 %v2990, %v2991
      %v2993 = vrot.slane %v2992, 1
      %v2994 = vadd.f32 %v2992, %v2993
      %v2995 = vmul.f32 %v2952, %v2952
      %v2996 = vmul.f32 %v2955, %v2955
      %v2997 = vmul.f32 %v2960, %v2960
      %v2998 = vmul.f32 %v2963, %v2963
      %v2999 = vmul.f32 %v2968, %v2968
      %v3000 = vmul.f32 %v2971, %v2971
      %v3001 = vmul.f32 %v2976, %v2976
      %v3002 = vmul.f32 %v2979, %v2979
      %v3003 = vadd.f32 %v2995, %v2996
      %v3004 = vadd.f32 %v3003, %v2997
      %v3005 = vadd.f32 %v3004, %v2998
      %v3006 = vadd.f32 %v3005, %v2999
      %v3007 = vadd.f32 %v3006, %v3000
      %v3008 = vadd.f32 %v3007, %v3001
      %v3009 = vadd.f32 %v3008, %v3002
      %v3010 = vrot.slane %v3009, 4
      %v3011 = vadd.f32 %v3009, %v3010
      %v3012 = vrot.slane %v3011, 2
      %v3013 = vadd.f32 %v3011, %v3012
      %v3014 = vrot.slane %v3013, 1
      %v3015 = vadd.f32 %v3013, %v3014
      %v3016 = vmul.f32 %v2994, 0.015625
      %v3017 = vmul.f32 %v3015, 0.015625
      %v3018 = vmul.f32 %v3016, %v3016
      %v3019 = vsub.f32 %v3017, %v3018
      %v3020 = vmax.f32 %v3019, 0.0
      %v3021 = vsub.f32 %v2952, %v3016
      %v3022 = vsub.f32 %v2955, %v3016
      %v3023 = vsub.f32 %v2960, %v3016
      %v3024 = vsub.f32 %v2963, %v3016
      %v3025 = vsub.f32 %v2968, %v3016
      %v3026 = vsub.f32 %v2971, %v3016
      %v3027 = vsub.f32 %v2976, %v3016
      %v3028 = vsub.f32 %v2979, %v3016
      %v3029 = vadd.f32 %v3020, 1e-05
      %v3030 = vrsqrt.pop %v3029
      %v3031 = vmul.f32 %v3021, %v3030
      %v3032 = vmul.f32 %v3022, %v3030
      %v3033 = vmul.f32 %v3023, %v3030
      %v3034 = vmul.f32 %v3024, %v3030
      %v3035 = vmul.f32 %v3025, %v3030
      %v3036 = vmul.f32 %v3026, %v3030
      %v3037 = vmul.f32 %v3027, %v3030
      %v3038 = vmul.f32 %v3028, %v3030
      %v3039 = vld [vmem:[%s2] sm:$0x1]
      %v3041 = vlaneseq
      %v3042 = vshrl.u32 %v3041, 7
      %v3043 = vsub.s32 0, %v3042
      %v3044 = vrot.slane %v3039, %v3043
      %v3046 = vmul.f32 %v3031, %v3044
      %v3047 = vmul.f32 %v3032, %v3044
      %v3048 = vmul.f32 %v3033, %v3044
      %v3049 = vmul.f32 %v3034, %v3044
      %v3050 = vmul.f32 %v3035, %v3044
      %v3051 = vmul.f32 %v3036, %v3044
      %v3052 = vmul.f32 %v3037, %v3044
      %v3053 = vmul.f32 %v3038, %v3044
      %v3054 = vld [vmem:[%s3] sm:$0x1]
      %v3056 = vlaneseq
      %v3057 = vshrl.u32 %v3056, 7
      %v3058 = vsub.s32 0, %v3057
      %v3059 = vrot.slane %v3054, %v3058
      %v3061 = vadd.f32 %v3046, %v3059
      %v3062 = vadd.f32 %v3047, %v3059
      %v3063 = vadd.f32 %v3048, %v3059
      %v3064 = vadd.f32 %v3049, %v3059
      %v3065 = vadd.f32 %v3050, %v3059
      %v3066 = vadd.f32 %v3051, %v3059
      %v3067 = vadd.f32 %v3052, %v3059
      %v3068 = vadd.f32 %v3053, %v3059
      %vm3069 = vcmp.ge.f32.partialorder %v3061, 0.0
      %vm3070 = vcmp.ge.f32.partialorder %v3062, 0.0
      %vm3071 = vcmp.ge.f32.partialorder %v3063, 0.0
      %vm3072 = vcmp.ge.f32.partialorder %v3064, 0.0
      %vm3073 = vcmp.ge.f32.partialorder %v3065, 0.0
      %vm3074 = vcmp.ge.f32.partialorder %v3066, 0.0
      %vm3075 = vcmp.ge.f32.partialorder %v3067, 0.0
      %vm3076 = vcmp.ge.f32.partialorder %v3068, 0.0
      %v3077 = vmul.f32 %v3061, 0.01
      %v3078 = vmul.f32 %v3062, 0.01
      %v3079 = vmul.f32 %v3063, 0.01
      %v3080 = vmul.f32 %v3064, 0.01
      %v3081 = vmul.f32 %v3065, 0.01
      %v3082 = vmul.f32 %v3066, 0.01
      %v3083 = vmul.f32 %v3067, 0.01
      %v3084 = vmul.f32 %v3068, 0.01
      %v3085 = vsel %vm3069, %v3061, %v3077
      %v3086 = vsel %vm3070, %v3062, %v3078
      %v3087 = vsel %vm3071, %v3063, %v3079
      %v3088 = vsel %vm3072, %v3064, %v3080
      %v3089 = vsel %vm3073, %v3065, %v3081
      %v3090 = vsel %vm3074, %v3066, %v3082
      %v3091 = vsel %vm3075, %v3067, %v3083
      %v3092 = vsel %vm3076, %v3068, %v3084
      %3093 = vst [vmem:[%s197] sm:$0xff] %v3085
      %3094 = vst [vmem:[%s197 + $0x8] sm:$0xff] %v3086
      %3095 = vst [vmem:[%s197 + $0x10] sm:$0xff] %v3087
      %3096 = vst [vmem:[%s197 + $0x18] sm:$0xff] %v3088
      %3097 = vst [vmem:[%s197 + $0x20] sm:$0xff] %v3089
      %3098 = vst [vmem:[%s197 + $0x28] sm:$0xff] %v3090
      %3099 = vst [vmem:[%s197 + $0x30] sm:$0xff] %v3091
      %3100 = vst [vmem:[%s197 + $0x38] sm:$0xff] %v3092
      %p3101 = scmp.lt.s32.totalorder %s15, 1
      %s3102 = scalar_select %p3101, %s15, 1
      %s3103 = smul.addr %s3102, 8
      %s3104 = smul.addr %s3103, 8
      %s3105 = scalar_lea.vmem %s4, %s3104
      // Predicated region
      $region37: #{discriminator_forward.3} parent=35 // pred_check
        %p3106 = pneg %p122
      $region38: #{discriminator_forward.3} parent=35 // pred_check_branch
        %3108 = sbr.rel (%p3106) target = $region40
      $region39: #{discriminator_forward.3} parent=35 // pred_region
        _
      $region40: #{discriminator_forward.3} parent=35 // pred_fallthru
        _
    $region36: #{discriminator_forward.3} parent=5 // pred_fallthru
      _
    %p3109 = scmp.le.s32.totalorder 2, %s10
    // Predicated region
    $region41: #{discriminator_forward.3} parent=5 // pred_check
      %p3110 = pneg %p3109
    $region42: #{discriminator_forward.3} parent=5 // pred_check_branch
      %3112 = sbr.rel (%p3110) target = $region44
    $region43: #{discriminator_forward.3} parent=5 // pred_region
      %s3113 = ssub.s32 %s10, 2
      // Predicated region
      $region45: #{discriminator_forward.3} parent=43 // pred_check
        %p3114 = pneg %p128
      $region46: #{discriminator_forward.3} parent=43 // pred_check_branch
        %3116 = sbr.rel (%p3114) target = $region48
      $region47: #{discriminator_forward.3} parent=43 // pred_region
        %p3117 = scmp.lt.s32.totalorder %s16, 1
        %s3118 = scalar_select %p3117, %s16, 1
        %s3119 = smul.addr %s3118, 8
        %s3120 = smul.addr %s3119, 8
        %s3121 = scalar_lea.vmem %s4, %s3120
      $region48: #{discriminator_forward.3} parent=43 // pred_fallthru
        _
    $region44: #{discriminator_forward.3} parent=5 // pred_fallthru
      _
  $region6: #{discriminator_forward.3} parent=0 // loop_footer
    %s14 = sadd.s32 1, %s10
  $region7: #{discriminator_forward.3} parent=0 // loop_footer_branch
    %9 = sbr.rel target = $region3
  $region8: #{discriminator_forward.3} parent=0 // loop_exit
    _

// kernel: discriminator_forward.5
$region0: #{discriminator_forward.5}
  #allocation0 [shape = 'u32[]', space=smem, size = 0x4, offset = 0x4, fixed_abs, tag = 'smem constant byte address 0x4 - core index']
  #allocation1 [shape = 'u32[144,128]{1,0:T(1,128)}', space=vmem, size = 0x12000, scoped, tag = 'internal scratch']
  #allocation2 [shape = 'f32[4,2048]{1,0:T(4,128)}', space=vmem, size = 0x8000, scoped, tag = 'scratch operand']
  #allocation3 [shape = 'f32[16,128]{1,0:T(8,128)}', space=vmem, size = 0x2000, scoped, tag = 'scratch operand']
  #allocation4 [shape = 'f32[4,1152]{1,0:T(4,128)}', space=vmem, size = 0x4800, scoped, tag = 'scratch operand']
  #allocation5 [shape = 'f32[1,512]{1,0:T(1,128)}', space=vmem, size = 0x800, scoped, tag = 'scratch operand']
  %s0 = inlined_call_operand.vmem [shape: f32[2,9,512], index: 0, kind: input, shape index: {}]
  %s1 = inlined_call_operand.vmem [shape: bf16[2048,128], index: 1, kind: input, shape index: {}]
  %s2 = inlined_call_operand.vmem [shape: f32[1,128], index: 2, kind: input, shape index: {}]
  %s3 = inlined_call_operand.vmem [shape: f32[1,128], index: 3, kind: input, shape index: {}]
  %s4 = inlined_call_operand.vmem [shape: bf16[1152,128], index: 4, kind: input, shape index: {}]
  %s5 = inlined_call_operand.vmem [shape: bf16[512,128], index: 5, kind: input, shape index: {}]
  %s6 = inlined_call_operand.vmem [shape: f32[2,4,128], index: 6, kind: output, shape index: {0}]
  %s7 = inlined_call_operand.hbm [shape: f32[2,1,128], index: 7, kind: output, shape index: {1}]
  %8 = xla_tuple %s6, %s7
  %s9 = sld [smem:[#allocation0]]
  $region65: #{discriminator_forward.5} parent=0
    _
  %s11 = ssub.s32 1, %s9
  %s12 = scalar_select 0, %s11, %s9
  $region1: #{discriminator_forward.5} parent=0
    #allocation6 [shape = 'u8[1024]{0}', space=vmem, size = 0x400, scoped, tag = 'output window, operand 1']
    #allocation7 [shape = 's32[2]{0}', space=sflag, size = 0x8, scoped, tag = 'scoped memory for discriminator_forward.5']
    %13 = vsyncpa [#allocation7], 0
    %s14 = scalar_lea.sflag [#allocation7], 1
    %15 = vsyncpa %s14, 0
    loop: start=0, step=1, limit=4
    $region2: #{discriminator_forward.5} parent=1 // loop_pre_header
      _
    $region3: #{discriminator_forward.5} parent=1 // loop_header
      %s17 = sphi 0, %s21
      %p18 = scmp.ge.s32.totalorder %s17, 4
      %s27 = sphi 0, %s29
      %s30 = sphi 0, %s27
      %s31 = sphi 0, %s30
      %s47 = sphi 0, %s31
      %s51 = sphi 0, %s51
      %s53 = sphi 0, %s51
      %s54 = sphi 0, %s53
      %s68 = sphi 0, %s54
      %s72 = sphi 0, %s72
      %s74 = sphi 0, %s72
      %s75 = sphi 0, %s74
      %s89 = sphi 0, %s75
      %s93 = sphi 0, %s93
      %s95 = sphi 0, %s93
      %s96 = sphi 0, %s95
      %s110 = sphi 0, %s96
      %s114 = sphi 0, %s114
      %s116 = sphi 0, %s114
      %s117 = sphi 0, %s116
      %s131 = sphi 0, %s117
      %s135 = sphi 0, %s135
      %s137 = sphi 0, %s135
      %s138 = sphi 0, %s137
      %s152 = sphi 0, %s138
      %s158 = sphi 0, %s160
      %s161 = sphi 0, %s158
      %s162 = sphi 0, %s161
      %s178 = sphi 0, %s162
      %s184 = sphi 0, %s186
      %s187 = sphi 0, %s184
      %s188 = sphi 0, %s187
      %s204 = sphi 0, %s188
    $region4: #{discriminator_forward.5} parent=1 // loop_header_branch
      %20 = sbr.rel (%p18) target = $region8
    $region5: #{discriminator_forward.5} parent=1 // loop_body
      %s22 = ssub.s32 %s17, 1
      %s23 = ssub.s32 %s17, 2
      %s24 = sadd.s32 %s17, 1
      %s25 = ssub.s32 %s17, %s24
      %p26 = scmp.eq.s32.totalorder %s25, 0
      %s28 = sadd.s32 %s27, 1
      %s29 = scalar_select %p26, %s27, %s28
      %p32 = pneg %p26
      %p33 = scmp.eq.s32.totalorder %s17, 1
      %p34 = por %p32, %p33
      %p35 = scmp.ne.s32.totalorder %s27, %s30
      %p36 = scmp.eq.s32.totalorder %s17, 0
      %p37 = por %p35, %p36
      %p38 = scmp.ne.s32.totalorder %s27, %s30
      %p39 = scmp.eq.s32.totalorder %s22, 1
      %p40 = por %p38, %p39
      %p41 = scmp.ne.s32.totalorder %s30, %s31
      %p42 = scmp.eq.s32.totalorder %s22, 0
      %p43 = por %p41, %p42
      %p44 = scmp.ne.s32.totalorder %s30, %s31
      %p45 = scmp.eq.s32.totalorder %s23, 1
      %p46 = por %p44, %p45
      %p48 = scmp.ne.s32.totalorder %s31, %s47
      %p49 = scmp.eq.s32.totalorder %s23, 0
      %p50 = por %p48, %p49
      %s52 = sadd.s32 %s51, 1
      %p55 = scmp.eq.s32.totalorder %s17, 1
      %p56 = scmp.ne.s32.totalorder %s51, %s53
      %p57 = scmp.eq.s32.totalorder %s17, 0
      %p58 = por %p56, %p57
      %p59 = scmp.ne.s32.totalorder %s51, %s53
      %p60 = scmp.eq.s32.totalorder %s22, 1
      %p61 = por %p59, %p60
      %p62 = scmp.ne.s32.totalorder %s53, %s54
      %p63 = scmp.eq.s32.totalorder %s22, 0
      %p64 = por %p62, %p63
      %p65 = scmp.ne.s32.totalorder %s53, %s54
      %p66 = scmp.eq.s32.totalorder %s23, 1
      %p67 = por %p65, %p66
      %p69 = scmp.ne.s32.totalorder %s54, %s68
      %p70 = scmp.eq.s32.totalorder %s23, 0
      %p71 = por %p69, %p70
      %s73 = sadd.s32 %s72, 1
      %p76 = scmp.eq.s32.totalorder %s17, 1
      %p77 = scmp.ne.s32.totalorder %s72, %s74
      %p78 = scmp.eq.s32.totalorder %s17, 0
      %p79 = por %p77, %p78
      %p80 = scmp.ne.s32.totalorder %s72, %s74
      %p81 = scmp.eq.s32.totalorder %s22, 1
      %p82 = por %p80, %p81
      %p83 = scmp.ne.s32.totalorder %s74, %s75
      %p84 = scmp.eq.s32.totalorder %s22, 0
      %p85 = por %p83, %p84
      %p86 = scmp.ne.s32.totalorder %s74, %s75
      %p87 = scmp.eq.s32.totalorder %s23, 1
      %p88 = por %p86, %p87
      %p90 = scmp.ne.s32.totalorder %s75, %s89
      %p91 = scmp.eq.s32.totalorder %s23, 0
      %p92 = por %p90, %p91
      %s94 = sadd.s32 %s93, 1
      %p97 = scmp.eq.s32.totalorder %s17, 1
      %p98 = scmp.ne.s32.totalorder %s93, %s95
      %p99 = scmp.eq.s32.totalorder %s17, 0
      %p100 = por %p98, %p99
      %p101 = scmp.ne.s32.totalorder %s93, %s95
      %p102 = scmp.eq.s32.totalorder %s22, 1
      %p103 = por %p101, %p102
      %p104 = scmp.ne.s32.totalorder %s95, %s96
      %p105 = scmp.eq.s32.totalorder %s22, 0
      %p106 = por %p104, %p105
      %p107 = scmp.ne.s32.totalorder %s95, %s96
      %p108 = scmp.eq.s32.totalorder %s23, 1
      %p109 = por %p107, %p108
      %p111 = scmp.ne.s32.totalorder %s96, %s110
      %p112 = scmp.eq.s32.totalorder %s23, 0
      %p113 = por %p111, %p112
      %s115 = sadd.s32 %s114, 1
      %p118 = scmp.eq.s32.totalorder %s17, 1
      %p119 = scmp.ne.s32.totalorder %s114, %s116
      %p120 = scmp.eq.s32.totalorder %s17, 0
      %p121 = por %p119, %p120
      %p122 = scmp.ne.s32.totalorder %s114, %s116
      %p123 = scmp.eq.s32.totalorder %s22, 1
      %p124 = por %p122, %p123
      %p125 = scmp.ne.s32.totalorder %s116, %s117
      %p126 = scmp.eq.s32.totalorder %s22, 0
      %p127 = por %p125, %p126
      %p128 = scmp.ne.s32.totalorder %s116, %s117
      %p129 = scmp.eq.s32.totalorder %s23, 1
      %p130 = por %p128, %p129
      %p132 = scmp.ne.s32.totalorder %s117, %s131
      %p133 = scmp.eq.s32.totalorder %s23, 0
      %p134 = por %p132, %p133
      %s136 = sadd.s32 %s135, 1
      %p139 = scmp.eq.s32.totalorder %s17, 1
      %p140 = scmp.ne.s32.totalorder %s135, %s137
      %p141 = scmp.eq.s32.totalorder %s17, 0
      %p142 = por %p140, %p141
      %p143 = scmp.ne.s32.totalorder %s135, %s137
      %p144 = scmp.eq.s32.totalorder %s22, 1
      %p145 = por %p143, %p144
      %p146 = scmp.ne.s32.totalorder %s137, %s138
      %p147 = scmp.eq.s32.totalorder %s22, 0
      %p148 = por %p146, %p147
      %p149 = scmp.ne.s32.totalorder %s137, %s138
      %p150 = scmp.eq.s32.totalorder %s23, 1
      %p151 = por %p149, %p150
      %p153 = scmp.ne.s32.totalorder %s138, %s152
      %p154 = scmp.eq.s32.totalorder %s23, 0
      %p155 = por %p153, %p154
      %s156 = ssub.s32 %s17, %s24
      %p157 = scmp.eq.s32.totalorder %s156, 0
      %s159 = sadd.s32 %s158, 1
      %s160 = scalar_select %p157, %s158, %s159
      %p163 = pneg %p157
      %p164 = scmp.eq.s32.totalorder %s17, 1
      %p165 = por %p163, %p164
      %p166 = scmp.ne.s32.totalorder %s158, %s161
      %p167 = scmp.eq.s32.totalorder %s17, 0
      %p168 = por %p166, %p167
      %p169 = scmp.ne.s32.totalorder %s158, %s161
      %p170 = scmp.eq.s32.totalorder %s22, 1
      %p171 = por %p169, %p170
      %p172 = scmp.ne.s32.totalorder %s161, %s162
      %p173 = scmp.eq.s32.totalorder %s22, 0
      %p174 = por %p172, %p173
      %p175 = scmp.ne.s32.totalorder %s161, %s162
      %p176 = scmp.eq.s32.totalorder %s23, 1
      %p177 = por %p175, %p176
      %p179 = scmp.ne.s32.totalorder %s162, %s178
      %p180 = scmp.eq.s32.totalorder %s23, 0
      %p181 = por %p179, %p180
      %s182 = ssub.s32 %s17, %s24
      %p183 = scmp.eq.s32.totalorder %s182, 0
      %s185 = sadd.s32 %s184, 1
      %s186 = scalar_select %p183, %s184, %s185
      %p189 = pneg %p183
      %p190 = scmp.eq.s32.totalorder %s17, 1
      %p191 = por %p189, %p190
      %p192 = scmp.ne.s32.totalorder %s184, %s187
      %p193 = scmp.eq.s32.totalorder %s17, 0
      %p194 = por %p192, %p193
      %p195 = scmp.ne.s32.totalorder %s184, %s187
      %p196 = scmp.eq.s32.totalorder %s22, 1
      %p197 = por %p195, %p196
      %p198 = scmp.ne.s32.totalorder %s187, %s188
      %p199 = scmp.eq.s32.totalorder %s22, 0
      %p200 = por %p198, %p199
      %p201 = scmp.ne.s32.totalorder %s187, %s188
      %p202 = scmp.eq.s32.totalorder %s23, 1
      %p203 = por %p201, %p202
      %p205 = scmp.ne.s32.totalorder %s188, %s204
      %p206 = scmp.eq.s32.totalorder %s23, 0
      %p207 = por %p205, %p206
      %p208 = scmp.le.s32.totalorder 1, %s17
      %p209 = scmp.lt.s32.totalorder %s17, 3
      %p210 = pnand %p208, %p209
      %p211 = pneg %p210
      // Predicated region
      $region9: #{discriminator_forward.5} parent=5 // pred_check
        _
      $region10: #{discriminator_forward.5} parent=5 // pred_check_branch
        %213 = sbr.rel (%p210) target = $region12
      $region11: #{discriminator_forward.5} parent=5 // pred_region
        %s214 = ssub.s32 %s17, 1
        // Predicated region
        $region13: #{discriminator_forward.5} parent=11 // pred_check
          %p215 = pneg %p64
        $region14: #{discriminator_forward.5} parent=11 // pred_check_branch
          %217 = sbr.rel (%p215) target = $region16
        $region15: #{discriminator_forward.5} parent=11 // pred_region
          _
        $region16: #{discriminator_forward.5} parent=11 // pred_fallthru
          _
        // Predicated region
        $region17: #{discriminator_forward.5} parent=11 // pred_check
          %p218 = pneg %p85
        $region18: #{discriminator_forward.5} parent=11 // pred_check_branch
          %220 = sbr.rel (%p218) target = $region20
        $region19: #{discriminator_forward.5} parent=11 // pred_region
          _
        $region20: #{discriminator_forward.5} parent=11 // pred_fallthru
          _
        // Predicated region
        $region21: #{discriminator_forward.5} parent=11 // pred_check
          %p221 = pneg %p106
        $region22: #{discriminator_forward.5} parent=11 // pred_check_branch
          %223 = sbr.rel (%p221) target = $region24
        $region23: #{discriminator_forward.5} parent=11 // pred_region
          _
        $region24: #{discriminator_forward.5} parent=11 // pred_fallthru
          _
        // Predicated region
        $region25: #{discriminator_forward.5} parent=11 // pred_check
          %p224 = pneg %p127
        $region26: #{discriminator_forward.5} parent=11 // pred_check_branch
          %226 = sbr.rel (%p224) target = $region28
        $region27: #{discriminator_forward.5} parent=11 // pred_region
          _
        $region28: #{discriminator_forward.5} parent=11 // pred_fallthru
          _
        // Predicated region
        $region29: #{discriminator_forward.5} parent=11 // pred_check
          %p227 = pneg %p148
        $region30: #{discriminator_forward.5} parent=11 // pred_check_branch
          %229 = sbr.rel (%p227) target = $region32
        $region31: #{discriminator_forward.5} parent=11 // pred_region
          _
        $region32: #{discriminator_forward.5} parent=11 // pred_fallthru
          _
      $region12: #{discriminator_forward.5} parent=5 // pred_fallthru
        _
      %p230 = scmp.lt.s32.totalorder %s17, 2
      // Predicated region
      $region33: #{discriminator_forward.5} parent=5 // pred_check
        %p231 = pneg %p230
      $region34: #{discriminator_forward.5} parent=5 // pred_check_branch
        %233 = sbr.rel (%p231) target = $region36
      $region35: #{discriminator_forward.5} parent=5 // pred_region
        // Predicated region
        $region37: #{discriminator_forward.5} parent=35 // pred_check
          %p234 = pneg %p37
        $region38: #{discriminator_forward.5} parent=35 // pred_check_branch
          %236 = sbr.rel (%p234) target = $region40
        $region39: #{discriminator_forward.5} parent=35 // pred_region
          %p237 = scmp.lt.s32.totalorder %s17, 1
          %s238 = scalar_select %p237, %s17, 1
          %s239 = smul.addr %s238, 8
          %s240 = smul.addr %s239, 8
          %s241 = scalar_lea.vmem %s0, %s240
        $region40: #{discriminator_forward.5} parent=35 // pred_fallthru
          _
      $region36: #{discriminator_forward.5} parent=5 // pred_fallthru
        _
      %p242 = scmp.le.s32.totalorder 1, %s17
      %p243 = scmp.lt.s32.totalorder %s17, 3
      %p244 = pnand %p242, %p243
      %p245 = pneg %p244
      // Predicated region
      $region41: #{discriminator_forward.5} parent=5 // pred_check
        _
      $region42: #{discriminator_forward.5} parent=5 // pred_check_branch
        %247 = sbr.rel (%p244) target = $region44
      $region43: #{discriminator_forward.5} parent=5 // pred_region
        %s248 = ssub.s32 %s17, 1
        %p249 = scmp.lt.s32.totalorder %s22, 1
        %s250 = scalar_select %p249, %s22, 1
        %s251 = smul.addr %s250, 8
        %s252 = smul.addr %s251, 8
        %s253 = scalar_lea.vmem %s0, %s252
        %p254 = pneg %p43
        %p255 = pneg %p40
        %p256 = pneg %p64
        %p257 = pneg %p61
        %p258 = pneg %p85
        %p259 = pneg %p82
        %p260 = pneg %p106
        %p261 = pneg %p103
        %p262 = pneg %p127
        %p263 = pneg %p124
        %p264 = pneg %p148
        %p265 = pneg %p145
        %p266 = pneg %p174
        %p267 = pneg %p171
        %p268 = scmp.lt.s32.totalorder %s22, 1
        %s269 = scalar_select %p268, %s22, 1
        %s270 = smul.addr %s269, 4
        %s271 = scalar_lea.vmem %s6, %s270
        %p272 = pneg %p200
        %p273 = pneg %p197
        %s274 = sand.u32 %s187, 1
        %s275 = scalar_lea.sflag [#allocation7], %s274
        %s276 = sand.u32 %s187, 1
        %s277 = scalar_lea.vmem [#allocation6], %s276
        %p278 = scmp.lt.s32.totalorder %s22, 1
        %s279 = scalar_select %p278, %s22, 1
        %s280 = smul.addr %s279, 8
        %s281 = smul.addr %s280, 8
        %s282 = scalar_lea.vmem %s0, %s281
        %p283 = scmp.lt.s32.totalorder %s22, 1
        %s284 = scalar_select %p283, %s22, 1
        %s285 = smul.addr %s284, 4
        %s286 = scalar_lea.vmem %s6, %s285
        %v288 = vld [vmem:[%s282] sm:$0x3]
        %v289 = vld [vmem:[%s282 + $0x8] sm:$0x3]
        %v290 = vld [vmem:[%s282 + $0x10] sm:$0x3]
        %v291 = vld [vmem:[%s282 + $0x18] sm:$0x3]
        %v296 = vcombine.low %v288, %v289
        %v297 = vcombine.low %v290, %v291
        %300 = vst [vmem:[#allocation2] sm:$0x33] %v296
        %301 = vst [vmem:[#allocation2 + $0x8] sm:$0x33] %v297
        %v302 = vld [vmem:[%s282] sm:$0x18]
        %v303 = vld [vmem:[%s282 + $0x8] sm:$0x18]
        %v304 = vld [vmem:[%s282 + $0x10] sm:$0x18]
        %v305 = vld [vmem:[%s282 + $0x18] sm:$0x18]
        %v310 = vcombine.low %v302, %v303
        %v311 = vcombine.high %v302, %v303
        %v312 = vcombine.low %v304, %v305
        %v313 = vcombine.high %v304, %v305
        %vm314 = vcmask 1042432
        %vm315 = vcmask 1046532
        %vm316 = vmor %vm314, %vm315
        %v317 = vrot.slane %v310, 5
        %v318 = vrot.slane %v317, 4
        %v319 = vrot.slane %v311, 5
        %v320 = vsel %vm316, %v318, %v319
        %v321 = vrot.slane %v312, 5
        %v322 = vrot.slane %v321, 4
        %v323 = vrot.slane %v313, 5
        %v324 = vsel %vm316, %v322, %v323
        %327 = vst [vmem:[#allocation2] sm:$0xcc] %v320
        %328 = vst [vmem:[#allocation2 + $0x8] sm:$0xcc] %v324
        %v329 = vld [vmem:[%s282] sm:$0x6]
        %v330 = vld [vmem:[%s282 + $0x8] sm:$0x6]
        %v331 = vld [vmem:[%s282 + $0x10] sm:$0x6]
        %v332 = vld [vmem:[%s282 + $0x18] sm:$0x6]
        %v337 = vcombine.low %v329, %v330
        %v338 = vcombine.low %v331, %v332
        %v339 = vrot.slane %v337, 5
        %v340 = vrot.slane %v339, 4
        %v341 = vrot.slane %v338, 5
        %v342 = vrot.slane %v341, 4
        %345 = vst [vmem:[#allocation2 + $0x10] sm:$0x33] %v340
        %346 = vst [vmem:[#allocation2 + $0x18] sm:$0x33] %v342
        %v347 = vld [vmem:[%s282] sm:$0x30]
        %v348 = vld [vmem:[%s282 + $0x8] sm:$0x30]
        %v349 = vld [vmem:[%s282 + $0x10] sm:$0x30]
        %v350 = vld [vmem:[%s282 + $0x18] sm:$0x30]
        %v355 = vcombine.high %v347, %v348
        %v356 = vcombine.high %v349, %v350
        %v357 = vrot.slane %v355, 6
        %v358 = vrot.slane %v356, 6
        %361 = vst [vmem:[#allocation2 + $0x10] sm:$0xcc] %v357
        %362 = vst [vmem:[#allocation2 + $0x18] sm:$0xcc] %v358
        %v363 = vld [vmem:[%s282] sm:$0x18]
        %v364 = vld [vmem:[%s282 + $0x8] sm:$0x18]
        %v365 = vld [vmem:[%s282 + $0x10] sm:$0x18]
        %v366 = vld [vmem:[%s282 + $0x18] sm:$0x18]
        %v371 = vcombine.low %v363, %v364
        %v372 = vcombine.high %v363, %v364
        %v373 = vcombine.low %v365, %v366
        %v374 = vcombine.high %v365, %v366
        %vm375 = vcmask 1040384
        %vm376 = vcmask 1044484
        %vm377 = vmor %vm375, %vm376
        %v378 = vrot.slane %v371, 7
        %v379 = vrot.slane %v378, 4
        %v380 = vrot.slane %v372, 7
        %v381 = vsel %vm377, %v379, %v380
        %v382 = vrot.slane %v373, 7
        %v383 = vrot.slane %v382, 4
        %v384 = vrot.slane %v374, 7
        %v385 = vsel %vm377, %v383, %v384
        %388 = vst [vmem:[#allocation2 + $0x20] sm:$0x33] %v381
        %389 = vst [vmem:[#allocation2 + $0x28] sm:$0x33] %v385
        %v390 = vld [vmem:[%s282] sm:$0xc0]
        %v391 = vld [vmem:[%s282 + $0x8] sm:$0xc0]
        %v392 = vld [vmem:[%s282 + $0x10] sm:$0xc0]
        %v393 = vld [vmem:[%s282 + $0x18] sm:$0xc0]
        %v398 = vcombine.high %v390, %v391
        %v399 = vcombine.high %v392, %v393
        %402 = vst [vmem:[#allocation2 + $0x20] sm:$0xcc] %v398
        %403 = vst [vmem:[#allocation2 + $0x28] sm:$0xcc] %v399
        %v404 = vld [vmem:[%s282] sm:$0x30]
        %v405 = vld [vmem:[%s282 + $0x8] sm:$0x30]
        %v406 = vld [vmem:[%s282 + $0x10] sm:$0x30]
        %v407 = vld [vmem:[%s282 + $0x18] sm:$0x30]
        %v412 = vcombine.high %v404, %v405
        %v413 = vcombine.high %v406, %v407
        %416 = vst [vmem:[#allocation2 + $0x30] sm:$0x33] %v412
        %417 = vst [vmem:[#allocation2 + $0x38] sm:$0x33] %v413
        %v418 = vld [vmem:[%s282] sm:$0x80]
        %v419 = vld [vmem:[%s282 + $0x8] sm:$0x80]
        %v420 = vld [vmem:[%s282 + $0x10] sm:$0x80]
        %v421 = vld [vmem:[%s282 + $0x18] sm:$0x80]
        %v422 = vld [vmem:[%s282 + $0x20] sm:$0x1]
        %v423 = vld [vmem:[%s282 + $0x28] sm:$0x1]
        %v424 = vld [vmem:[%s282 + $0x30] sm:$0x1]
        %v425 = vld [vmem:[%s282 + $0x38] sm:$0x1]
        %v434 = vcombine.high %v418, %v419
        %v435 = vcombine.high %v420, %v421
        %v436 = vcombine.low %v422, %v423
        %v437 = vcombine.low %v424, %v425
        %v438 = vrot.slane %v434, 5
        %v439 = vrot.slane %v438, 4
        %v440 = vrot.slane %v436, 5
        %v441 = vsel %vm316, %v439, %v440
        %v442 = vrot.slane %v435, 5
        %v443 = vrot.slane %v442, 4
        %v444 = vrot.slane %v437, 5
        %v445 = vsel %vm316, %v443, %v444
        %448 = vst [vmem:[#allocation2 + $0x30] sm:$0xcc] %v441
        %449 = vst [vmem:[#allocation2 + $0x38] sm:$0xcc] %v445
        %v450 = vld [vmem:[#allocation2] sm:$0xff]
        %v451 = vld [vmem:[#allocation2 + $0x8] sm:$0xff]
        %v452 = vld [vmem:[#allocation2 + $0x10] sm:$0xff]
        %v453 = vld [vmem:[#allocation2 + $0x18] sm:$0xff]
        %v454 = vld [vmem:[#allocation2 + $0x20] sm:$0xff]
        %v455 = vld [vmem:[#allocation2 + $0x28] sm:$0xff]
        %v456 = vld [vmem:[#allocation2 + $0x30] sm:$0xff]
        %v457 = vld [vmem:[#allocation2 + $0x38] sm:$0xff]
        %v466 = vcombine.high %v450, %v450
        %v467 = vcombine.high %v451, %v451
        %v468 = vcombine.high %v452, %v452
        %v469 = vcombine.high %v453, %v453
        %v470 = vcombine.high %v454, %v454
        %v471 = vcombine.high %v455, %v455
        %v472 = vcombine.high %v456, %v456
        %v473 = vcombine.high %v457, %v457
        %v482 = vpack.c.bf16 %v450, %v450
        %v483 = vpack.c.bf16 %v466, %v466
        %v484 = vpack.c.bf16 %v451, %v451
        %v485 = vpack.c.bf16 %v467, %v467
        %v486 = vpack.c.bf16 %v452, %v452
        %v487 = vpack.c.bf16 %v468, %v468
        %v488 = vpack.c.bf16 %v453, %v453
        %v489 = vpack.c.bf16 %v469, %v469
        %v490 = vpack.c.bf16 %v454, %v454
        %v491 = vpack.c.bf16 %v470, %v470
        %v492 = vpack.c.bf16 %v455, %v455
        %v493 = vpack.c.bf16 %v471, %v471
        %v494 = vpack.c.bf16 %v456, %v456
        %v495 = vpack.c.bf16 %v472, %v472
        %v496 = vpack.c.bf16 %v457, %v457
        %v497 = vpack.c.bf16 %v473, %v473
        %v498 = vld [vmem:[%s1] sm:$0xf]
        %v499 = vld [vmem:[%s1 + $0x4] sm:$0xf]
        %v500 = vld [vmem:[%s1 + $0x8] sm:$0xf]
        %v501 = vld [vmem:[%s1 + $0xc] sm:$0xf]
        %v502 = vld [vmem:[%s1 + $0x10] sm:$0xf]
        %v503 = vld [vmem:[%s1 + $0x14] sm:$0xf]
        %v504 = vld [vmem:[%s1 + $0x18] sm:$0xf]
        %v505 = vld [vmem:[%s1 + $0x1c] sm:$0xf]
        %v506 = vld [vmem:[%s1 + $0x20] sm:$0xf]
        %v507 = vld [vmem:[%s1 + $0x24] sm:$0xf]
        %v508 = vld [vmem:[%s1 + $0x28] sm:$0xf]
        %v509 = vld [vmem:[%s1 + $0x2c] sm:$0xf]
        %v510 = vld [vmem:[%s1 + $0x30] sm:$0xf]
        %v511 = vld [vmem:[%s1 + $0x34] sm:$0xf]
        %v512 = vld [vmem:[%s1 + $0x38] sm:$0xf]
        %v513 = vld [vmem:[%s1 + $0x3c] sm:$0xf]
        %v514 = vld [vmem:[%s1 + $0x40] sm:$0xf]
        %v515 = vld [vmem:[%s1 + $0x44] sm:$0xf]
        %v516 = vld [vmem:[%s1 + $0x48] sm:$0xf]
        %v517 = vld [vmem:[%s1 + $0x4c] sm:$0xf]
        %v518 = vld [vmem:[%s1 + $0x50] sm:$0xf]
        %v519 = vld [vmem:[%s1 + $0x54] sm:$0xf]
        %v520 = vld [vmem:[%s1 + $0x58] sm:$0xf]
        %v521 = vld [vmem:[%s1 + $0x5c] sm:$0xf]
        %v522 = vld [vmem:[%s1 + $0x60] sm:$0xf]
        %v523 = vld [vmem:[%s1 + $0x64] sm:$0xf]
        %v524 = vld [vmem:[%s1 + $0x68] sm:$0xf]
        %v525 = vld [vmem:[%s1 + $0x6c] sm:$0xf]
        %v526 = vld [vmem:[%s1 + $0x70] sm:$0xf]
        %v527 = vld [vmem:[%s1 + $0x74] sm:$0xf]
        %v528 = vld [vmem:[%s1 + $0x78] sm:$0xf]
        %v529 = vld [vmem:[%s1 + $0x7c] sm:$0xf]
        %v530 = vld [vmem:[%s1 + $0x80] sm:$0xf]
        %v531 = vld [vmem:[%s1 + $0x84] sm:$0xf]
        %v532 = vld [vmem:[%s1 + $0x88] sm:$0xf]
        %v533 = vld [vmem:[%s1 + $0x8c] sm:$0xf]
        %v534 = vld [vmem:[%s1 + $0x90] sm:$0xf]
        %v535 = vld [vmem:[%s1 + $0x94] sm:$0xf]
        %v536 = vld [vmem:[%s1 + $0x98] sm:$0xf]
        %v537 = vld [vmem:[%s1 + $0x9c] sm:$0xf]
        %v538 = vld [vmem:[%s1 + $0xa0] sm:$0xf]
        %v539 = vld [vmem:[%s1 + $0xa4] sm:$0xf]
        %v540 = vld [vmem:[%s1 + $0xa8] sm:$0xf]
        %v541 = vld [vmem:[%s1 + $0xac] sm:$0xf]
        %v542 = vld [vmem:[%s1 + $0xb0] sm:$0xf]
        %v543 = vld [vmem:[%s1 + $0xb4] sm:$0xf]
        %v544 = vld [vmem:[%s1 + $0xb8] sm:$0xf]
        %v545 = vld [vmem:[%s1 + $0xbc] sm:$0xf]
        %v546 = vld [vmem:[%s1 + $0xc0] sm:$0xf]
        %v547 = vld [vmem:[%s1 + $0xc4] sm:$0xf]
        %v548 = vld [vmem:[%s1 + $0xc8] sm:$0xf]
        %v549 = vld [vmem:[%s1 + $0xcc] sm:$0xf]
        %v550 = vld [vmem:[%s1 + $0xd0] sm:$0xf]
        %v551 = vld [vmem:[%s1 + $0xd4] sm:$0xf]
        %v552 = vld [vmem:[%s1 + $0xd8] sm:$0xf]
        %v553 = vld [vmem:[%s1 + $0xdc] sm:$0xf]
        %v554 = vld [vmem:[%s1 + $0xe0] sm:$0xf]
        %v555 = vld [vmem:[%s1 + $0xe4] sm:$0xf]
        %v556 = vld [vmem:[%s1 + $0xe8] sm:$0xf]
        %v557 = vld [vmem:[%s1 + $0xec] sm:$0xf]
        %v558 = vld [vmem:[%s1 + $0xf0] sm:$0xf]
        %v559 = vld [vmem:[%s1 + $0xf4] sm:$0xf]
        %v560 = vld [vmem:[%s1 + $0xf8] sm:$0xf]
        %v561 = vld [vmem:[%s1 + $0xfc] sm:$0xf]
        %v562 = vld [vmem:[%s1 + $0x100] sm:$0xf]
        %v563 = vld [vmem:[%s1 + $0x104] sm:$0xf]
        %v564 = vld [vmem:[%s1 + $0x108] sm:$0xf]
        %v565 = vld [vmem:[%s1 + $0x10c] sm:$0xf]
        %v566 = vld [vmem:[%s1 + $0x110] sm:$0xf]
        %v567 = vld [vmem:[%s1 + $0x114] sm:$0xf]
        %v568 = vld [vmem:[%s1 + $0x118] sm:$0xf]
        %v569 = vld [vmem:[%s1 + $0x11c] sm:$0xf]
        %v570 = vld [vmem:[%s1 + $0x120] sm:$0xf]
        %v571 = vld [vmem:[%s1 + $0x124] sm:$0xf]
        %v572 = vld [vmem:[%s1 + $0x128] sm:$0xf]
        %v573 = vld [vmem:[%s1 + $0x12c] sm:$0xf]
        %v574 = vld [vmem:[%s1 + $0x130] sm:$0xf]
        %v575 = vld [vmem:[%s1 + $0x134] sm:$0xf]
        %v576 = vld [vmem:[%s1 + $0x138] sm:$0xf]
        %v577 = vld [vmem:[%s1 + $0x13c] sm:$0xf]
        %v578 = vld [vmem:[%s1 + $0x140] sm:$0xf]
        %v579 = vld [vmem:[%s1 + $0x144] sm:$0xf]
        %v580 = vld [vmem:[%s1 + $0x148] sm:$0xf]
        %v581 = vld [vmem:[%s1 + $0x14c] sm:$0xf]
        %v582 = vld [vmem:[%s1 + $0x150] sm:$0xf]
        %v583 = vld [vmem:[%s1 + $0x154] sm:$0xf]
        %v584 = vld [vmem:[%s1 + $0x158] sm:$0xf]
        %v585 = vld [vmem:[%s1 + $0x15c] sm:$0xf]
        %v586 = vld [vmem:[%s1 + $0x160] sm:$0xf]
        %v587 = vld [vmem:[%s1 + $0x164] sm:$0xf]
        %v588 = vld [vmem:[%s1 + $0x168] sm:$0xf]
        %v589 = vld [vmem:[%s1 + $0x16c] sm:$0xf]
        %v590 = vld [vmem:[%s1 + $0x170] sm:$0xf]
        %v591 = vld [vmem:[%s1 + $0x174] sm:$0xf]
        %v592 = vld [vmem:[%s1 + $0x178] sm:$0xf]
        %v593 = vld [vmem:[%s1 + $0x17c] sm:$0xf]
        %v594 = vld [vmem:[%s1 + $0x180] sm:$0xf]
        %v595 = vld [vmem:[%s1 + $0x184] sm:$0xf]
        %v596 = vld [vmem:[%s1 + $0x188] sm:$0xf]
        %v597 = vld [vmem:[%s1 + $0x18c] sm:$0xf]
        %v598 = vld [vmem:[%s1 + $0x190] sm:$0xf]
        %v599 = vld [vmem:[%s1 + $0x194] sm:$0xf]
        %v600 = vld [vmem:[%s1 + $0x198] sm:$0xf]
        %v601 = vld [vmem:[%s1 + $0x19c] sm:$0xf]
        %v602 = vld [vmem:[%s1 + $0x1a0] sm:$0xf]
        %v603 = vld [vmem:[%s1 + $0x1a4] sm:$0xf]
        %v604 = vld [vmem:[%s1 + $0x1a8] sm:$0xf]
        %v605 = vld [vmem:[%s1 + $0x1ac] sm:$0xf]
        %v606 = vld [vmem:[%s1 + $0x1b0] sm:$0xf]
        %v607 = vld [vmem:[%s1 + $0x1b4] sm:$0xf]
        %v608 = vld [vmem:[%s1 + $0x1b8] sm:$0xf]
        %v609 = vld [vmem:[%s1 + $0x1bc] sm:$0xf]
        %v610 = vld [vmem:[%s1 + $0x1c0] sm:$0xf]
        %v611 = vld [vmem:[%s1 + $0x1c4] sm:$0xf]
        %v612 = vld [vmem:[%s1 + $0x1c8] sm:$0xf]
        %v613 = vld [vmem:[%s1 + $0x1cc] sm:$0xf]
        %v614 = vld [vmem:[%s1 + $0x1d0] sm:$0xf]
        %v615 = vld [vmem:[%s1 + $0x1d4] sm:$0xf]
        %v616 = vld [vmem:[%s1 + $0x1d8] sm:$0xf]
        %v617 = vld [vmem:[%s1 + $0x1dc] sm:$0xf]
        %v618 = vld [vmem:[%s1 + $0x1e0] sm:$0xf]
        %v619 = vld [vmem:[%s1 + $0x1e4] sm:$0xf]
        %v620 = vld [vmem:[%s1 + $0x1e8] sm:$0xf]
        %v621 = vld [vmem:[%s1 + $0x1ec] sm:$0xf]
        %v622 = vld [vmem:[%s1 + $0x1f0] sm:$0xf]
        %v623 = vld [vmem:[%s1 + $0x1f4] sm:$0xf]
        %v624 = vld [vmem:[%s1 + $0x1f8] sm:$0xf]
        %v625 = vld [vmem:[%s1 + $0x1fc] sm:$0xf]
        %v626 = vld [vmem:[%s1 + $0x200] sm:$0xf]
        %v627 = vld [vmem:[%s1 + $0x204] sm:$0xf]
        %v628 = vld [vmem:[%s1 + $0x208] sm:$0xf]
        %v629 = vld [vmem:[%s1 + $0x20c] sm:$0xf]
        %v630 = vld [vmem:[%s1 + $0x210] sm:$0xf]
        %v631 = vld [vmem:[%s1 + $0x214] sm:$0xf]
        %v632 = vld [vmem:[%s1 + $0x218] sm:$0xf]
        %v633 = vld [vmem:[%s1 + $0x21c] sm:$0xf]
        %v634 = vld [vmem:[%s1 + $0x220] sm:$0xf]
        %v635 = vld [vmem:[%s1 + $0x224] sm:$0xf]
        %v636 = vld [vmem:[%s1 + $0x228] sm:$0xf]
        %v637 = vld [vmem:[%s1 + $0x22c] sm:$0xf]
        %v638 = vld [vmem:[%s1 + $0x230] sm:$0xf]
        %v639 = vld [vmem:[%s1 + $0x234] sm:$0xf]
        %v640 = vld [vmem:[%s1 + $0x238] sm:$0xf]
        %v641 = vld [vmem:[%s1 + $0x23c] sm:$0xf]
        %v642 = vld [vmem:[%s1 + $0x240] sm:$0xf]
        %v643 = vld [vmem:[%s1 + $0x244] sm:$0xf]
        %v644 = vld [vmem:[%s1 + $0x248] sm:$0xf]
        %v645 = vld [vmem:[%s1 + $0x24c] sm:$0xf]
        %v646 = vld [vmem:[%s1 + $0x250] sm:$0xf]
        %v647 = vld [vmem:[%s1 + $0x254] sm:$0xf]
        %v648 = vld [vmem:[%s1 + $0x258] sm:$0xf]
        %v649 = vld [vmem:[%s1 + $0x25c] sm:$0xf]
        %v650 = vld [vmem:[%s1 + $0x260] sm:$0xf]
        %v651 = vld [vmem:[%s1 + $0x264] sm:$0xf]
        %v652 = vld [vmem:[%s1 + $0x268] sm:$0xf]
        %v653 = vld [vmem:[%s1 + $0x26c] sm:$0xf]
        %v654 = vld [vmem:[%s1 + $0x270] sm:$0xf]
        %v655 = vld [vmem:[%s1 + $0x274] sm:$0xf]
        %v656 = vld [vmem:[%s1 + $0x278] sm:$0xf]
        %v657 = vld [vmem:[%s1 + $0x27c] sm:$0xf]
        %v658 = vld [vmem:[%s1 + $0x280] sm:$0xf]
        %v659 = vld [vmem:[%s1 + $0x284] sm:$0xf]
        %v660 = vld [vmem:[%s1 + $0x288] sm:$0xf]
        %v661 = vld [vmem:[%s1 + $0x28c] sm:$0xf]
        %v662 = vld [vmem:[%s1 + $0x290] sm:$0xf]
        %v663 = vld [vmem:[%s1 + $0x294] sm:$0xf]
        %v664 = vld [vmem:[%s1 + $0x298] sm:$0xf]
        %v665 = vld [vmem:[%s1 + $0x29c] sm:$0xf]
        %v666 = vld [vmem:[%s1 + $0x2a0] sm:$0xf]
        %v667 = vld [vmem:[%s1 + $0x2a4] sm:$0xf]
        %v668 = vld [vmem:[%s1 + $0x2a8] sm:$0xf]
        %v669 = vld [vmem:[%s1 + $0x2ac] sm:$0xf]
        %v670 = vld [vmem:[%s1 + $0x2b0] sm:$0xf]
        %v671 = vld [vmem:[%s1 + $0x2b4] sm:$0xf]
        %v672 = vld [vmem:[%s1 + $0x2b8] sm:$0xf]
        %v673 = vld [vmem:[%s1 + $0x2bc] sm:$0xf]
        %v674 = vld [vmem:[%s1 + $0x2c0] sm:$0xf]
        %v675 = vld [vmem:[%s1 + $0x2c4] sm:$0xf]
        %v676 = vld [vmem:[%s1 + $0x2c8] sm:$0xf]
        %v677 = vld [vmem:[%s1 + $0x2cc] sm:$0xf]
        %v678 = vld [vmem:[%s1 + $0x2d0] sm:$0xf]
        %v679 = vld [vmem:[%s1 + $0x2d4] sm:$0xf]
        %v680 = vld [vmem:[%s1 + $0x2d8] sm:$0xf]
        %v681 = vld [vmem:[%s1 + $0x2dc] sm:$0xf]
        %v682 = vld [vmem:[%s1 + $0x2e0] sm:$0xf]
        %v683 = vld [vmem:[%s1 + $0x2e4] sm:$0xf]
        %v684 = vld [vmem:[%s1 + $0x2e8] sm:$0xf]
        %v685 = vld [vmem:[%s1 + $0x2ec] sm:$0xf]
        %v686 = vld [vmem:[%s1 + $0x2f0] sm:$0xf]
        %v687 = vld [vmem:[%s1 + $0x2f4] sm:$0xf]
        %v688 = vld [vmem:[%s1 + $0x2f8] sm:$0xf]
        %v689 = vld [vmem:[%s1 + $0x2fc] sm:$0xf]
        %v690 = vld [vmem:[%s1 + $0x300] sm:$0xf]
        %v691 = vld [vmem:[%s1 + $0x304] sm:$0xf]
        %v692 = vld [vmem:[%s1 + $0x308] sm:$0xf]
        %v693 = vld [vmem:[%s1 + $0x30c] sm:$0xf]
        %v694 = vld [vmem:[%s1 + $0x310] sm:$0xf]
        %v695 = vld [vmem:[%s1 + $0x314] sm:$0xf]
        %v696 = vld [vmem:[%s1 + $0x318] sm:$0xf]
        %v697 = vld [vmem:[%s1 + $0x31c] sm:$0xf]
        %v698 = vld [vmem:[%s1 + $0x320] sm:$0xf]
        %v699 = vld [vmem:[%s1 + $0x324] sm:$0xf]
        %v700 = vld [vmem:[%s1 + $0x328] sm:$0xf]
        %v701 = vld [vmem:[%s1 + $0x32c] sm:$0xf]
        %v702 = vld [vmem:[%s1 + $0x330] sm:$0xf]
        %v703 = vld [vmem:[%s1 + $0x334] sm:$0xf]
        %v704 = vld [vmem:[%s1 + $0x338] sm:$0xf]
        %v705 = vld [vmem:[%s1 + $0x33c] sm:$0xf]
        %v706 = vld [vmem:[%s1 + $0x340] sm:$0xf]
        %v707 = vld [vmem:[%s1 + $0x344] sm:$0xf]
        %v708 = vld [vmem:[%s1 + $0x348] sm:$0xf]
        %v709 = vld [vmem:[%s1 + $0x34c] sm:$0xf]
        %v710 = vld [vmem:[%s1 + $0x350] sm:$0xf]
        %v711 = vld [vmem:[%s1 + $0x354] sm:$0xf]
        %v712 = vld [vmem:[%s1 + $0x358] sm:$0xf]
        %v713 = vld [vmem:[%s1 + $0x35c] sm:$0xf]
        %v714 = vld [vmem:[%s1 + $0x360] sm:$0xf]
        %v715 = vld [vmem:[%s1 + $0x364] sm:$0xf]
        %v716 = vld [vmem:[%s1 + $0x368] sm:$0xf]
        %v717 = vld [vmem:[%s1 + $0x36c] sm:$0xf]
        %v718 = vld [vmem:[%s1 + $0x370] sm:$0xf]
        %v719 = vld [vmem:[%s1 + $0x374] sm:$0xf]
        %v720 = vld [vmem:[%s1 + $0x378] sm:$0xf]
        %v721 = vld [vmem:[%s1 + $0x37c] sm:$0xf]
        %v722 = vld [vmem:[%s1 + $0x380] sm:$0xf]
        %v723 = vld [vmem:[%s1 + $0x384] sm:$0xf]
        %v724 = vld [vmem:[%s1 + $0x388] sm:$0xf]
        %v725 = vld [vmem:[%s1 + $0x38c] sm:$0xf]
        %v726 = vld [vmem:[%s1 + $0x390] sm:$0xf]
        %v727 = vld [vmem:[%s1 + $0x394] sm:$0xf]
        %v728 = vld [vmem:[%s1 + $0x398] sm:$0xf]
        %v729 = vld [vmem:[%s1 + $0x39c] sm:$0xf]
        %v730 = vld [vmem:[%s1 + $0x3a0] sm:$0xf]
        %v731 = vld [vmem:[%s1 + $0x3a4] sm:$0xf]
        %v732 = vld [vmem:[%s1 + $0x3a8] sm:$0xf]
        %v733 = vld [vmem:[%s1 + $0x3ac] sm:$0xf]
        %v734 = vld [vmem:[%s1 + $0x3b0] sm:$0xf]
        %v735 = vld [vmem:[%s1 + $0x3b4] sm:$0xf]
        %v736 = vld [vmem:[%s1 + $0x3b8] sm:$0xf]
        %v737 = vld [vmem:[%s1 + $0x3bc] sm:$0xf]
        %v738 = vld [vmem:[%s1 + $0x3c0] sm:$0xf]
        %v739 = vld [vmem:[%s1 + $0x3c4] sm:$0xf]
        %v740 = vld [vmem:[%s1 + $0x3c8] sm:$0xf]
        %v741 = vld [vmem:[%s1 + $0x3cc] sm:$0xf]
        %v742 = vld [vmem:[%s1 + $0x3d0] sm:$0xf]
        %v743 = vld [vmem:[%s1 + $0x3d4] sm:$0xf]
        %v744 = vld [vmem:[%s1 + $0x3d8] sm:$0xf]
        %v745 = vld [vmem:[%s1 + $0x3dc] sm:$0xf]
        %v746 = vld [vmem:[%s1 + $0x3e0] sm:$0xf]
        %v747 = vld [vmem:[%s1 + $0x3e4] sm:$0xf]
        %v748 = vld [vmem:[%s1 + $0x3e8] sm:$0xf]
        %v749 = vld [vmem:[%s1 + $0x3ec] sm:$0xf]
        %v750 = vld [vmem:[%s1 + $0x3f0] sm:$0xf]
        %v751 = vld [vmem:[%s1 + $0x3f4] sm:$0xf]
        %v752 = vld [vmem:[%s1 + $0x3f8] sm:$0xf]
        %v753 = vld [vmem:[%s1 + $0x3fc] sm:$0xf]
        %v1010 = vunpack.c.l.b16 %v498
        %v1011 = vunpack.c.l.b16 %v499
        %v1012 = vunpack.c.l.b16 %v500
        %v1013 = vunpack.c.l.b16 %v501
        %v1014 = vunpack.c.l.b16 %v502
        %v1015 = vunpack.c.l.b16 %v503
        %v1016 = vunpack.c.l.b16 %v504
        %v1017 = vunpack.c.l.b16 %v505
        %v1018 = vunpack.c.l.b16 %v506
        %v1019 = vunpack.c.l.b16 %v507
        %v1020 = vunpack.c.l.b16 %v508
        %v1021 = vunpack.c.l.b16 %v509
        %v1022 = vunpack.c.l.b16 %v510
        %v1023 = vunpack.c.l.b16 %v511
        %v1024 = vunpack.c.l.b16 %v512
        %v1025 = vunpack.c.l.b16 %v513
        %v1026 = vunpack.c.l.b16 %v514
        %v1027 = vunpack.c.l.b16 %v515
        %v1028 = vunpack.c.l.b16 %v516
        %v1029 = vunpack.c.l.b16 %v517
        %v1030 = vunpack.c.l.b16 %v518
        %v1031 = vunpack.c.l.b16 %v519
        %v1032 = vunpack.c.l.b16 %v520
        %v1033 = vunpack.c.l.b16 %v521
        %v1034 = vunpack.c.l.b16 %v522
        %v1035 = vunpack.c.l.b16 %v523
        %v1036 = vunpack.c.l.b16 %v524
        %v1037 = vunpack.c.l.b16 %v525
        %v1038 = vunpack.c.l.b16 %v526
        %v1039 = vunpack.c.l.b16 %v527
        %v1040 = vunpack.c.l.b16 %v528
        %v1041 = vunpack.c.l.b16 %v529
        %v1042 = vunpack.c.l.b16 %v530
        %v1043 = vunpack.c.l.b16 %v531
        %v1044 = vunpack.c.l.b16 %v532
        %v1045 = vunpack.c.l.b16 %v533
        %v1046 = vunpack.c.l.b16 %v534
        %v1047 = vunpack.c.l.b16 %v535
        %v1048 = vunpack.c.l.b16 %v536
        %v1049 = vunpack.c.l.b16 %v537
        %v1050 = vunpack.c.l.b16 %v538
        %v1051 = vunpack.c.l.b16 %v539
        %v1052 = vunpack.c.l.b16 %v540
        %v1053 = vunpack.c.l.b16 %v541
        %v1054 = vunpack.c.l.b16 %v542
        %v1055 = vunpack.c.l.b16 %v543
        %v1056 = vunpack.c.l.b16 %v544
        %v1057 = vunpack.c.l.b16 %v545
        %v1058 = vunpack.c.l.b16 %v546
        %v1059 = vunpack.c.l.b16 %v547
        %v1060 = vunpack.c.l.b16 %v548
        %v1061 = vunpack.c.l.b16 %v549
        %v1062 = vunpack.c.l.b16 %v550
        %v1063 = vunpack.c.l.b16 %v551
        %v1064 = vunpack.c.l.b16 %v552
        %v1065 = vunpack.c.l.b16 %v553
        %v1066 = vunpack.c.l.b16 %v554
        %v1067 = vunpack.c.l.b16 %v555
        %v1068 = vunpack.c.l.b16 %v556
        %v1069 = vunpack.c.l.b16 %v557
        %v1070 = vunpack.c.l.b16 %v558
        %v1071 = vunpack.c.l.b16 %v559
        %v1072 = vunpack.c.l.b16 %v560
        %v1073 = vunpack.c.l.b16 %v561
        %v1074 = vunpack.c.l.b16 %v562
        %v1075 = vunpack.c.l.b16 %v563
        %v1076 = vunpack.c.l.b16 %v564
        %v1077 = vunpack.c.l.b16 %v565
        %v1078 = vunpack.c.l.b16 %v566
        %v1079 = vunpack.c.l.b16 %v567
        %v1080 = vunpack.c.l.b16 %v568
        %v1081 = vunpack.c.l.b16 %v569
        %v1082 = vunpack.c.l.b16 %v570
        %v1083 = vunpack.c.l.b16 %v571
        %v1084 = vunpack.c.l.b16 %v572
        %v1085 = vunpack.c.l.b16 %v573
        %v1086 = vunpack.c.l.b16 %v574
        %v1087 = vunpack.c.l.b16 %v575
        %v1088 = vunpack.c.l.b16 %v576
        %v1089 = vunpack.c.l.b16 %v577
        %v1090 = vunpack.c.l.b16 %v578
        %v1091 = vunpack.c.l.b16 %v579
        %v1092 = vunpack.c.l.b16 %v580
        %v1093 = vunpack.c.l.b16 %v581
        %v1094 = vunpack.c.l.b16 %v582
        %v1095 = vunpack.c.l.b16 %v583
        %v1096 = vunpack.c.l.b16 %v584
        %v1097 = vunpack.c.l.b16 %v585
        %v1098 = vunpack.c.l.b16 %v586
        %v1099 = vunpack.c.l.b16 %v587
        %v1100 = vunpack.c.l.b16 %v588
        %v1101 = vunpack.c.l.b16 %v589
        %v1102 = vunpack.c.l.b16 %v590
        %v1103 = vunpack.c.l.b16 %v591
        %v1104 = vunpack.c.l.b16 %v592
        %v1105 = vunpack.c.l.b16 %v593
        %v1106 = vunpack.c.l.b16 %v594
        %v1107 = vunpack.c.l.b16 %v595
        %v1108 = vunpack.c.l.b16 %v596
        %v1109 = vunpack.c.l.b16 %v597
        %v1110 = vunpack.c.l.b16 %v598
        %v1111 = vunpack.c.l.b16 %v599
        %v1112 = vunpack.c.l.b16 %v600
        %v1113 = vunpack.c.l.b16 %v601
        %v1114 = vunpack.c.l.b16 %v602
        %v1115 = vunpack.c.l.b16 %v603
        %v1116 = vunpack.c.l.b16 %v604
        %v1117 = vunpack.c.l.b16 %v605
        %v1118 = vunpack.c.l.b16 %v606
        %v1119 = vunpack.c.l.b16 %v607
        %v1120 = vunpack.c.l.b16 %v608
        %v1121 = vunpack.c.l.b16 %v609
        %v1122 = vunpack.c.l.b16 %v610
        %v1123 = vunpack.c.l.b16 %v611
        %v1124 = vunpack.c.l.b16 %v612
        %v1125 = vunpack.c.l.b16 %v613
        %v1126 = vunpack.c.l.b16 %v614
        %v1127 = vunpack.c.l.b16 %v615
        %v1128 = vunpack.c.l.b16 %v616
        %v1129 = vunpack.c.l.b16 %v617
        %v1130 = vunpack.c.l.b16 %v618
        %v1131 = vunpack.c.l.b16 %v619
        %v1132 = vunpack.c.l.b16 %v620
        %v1133 = vunpack.c.l.b16 %v621
        %v1134 = vunpack.c.l.b16 %v622
        %v1135 = vunpack.c.l.b16 %v623
        %v1136 = vunpack.c.l.b16 %v624
        %v1137 = vunpack.c.l.b16 %v625
        %v1138 = vunpack.c.l.b16 %v626
        %v1139 = vunpack.c.l.b16 %v627
        %v1140 = vunpack.c.l.b16 %v628
        %v1141 = vunpack.c.l.b16 %v629
        %v1142 = vunpack.c.l.b16 %v630
        %v1143 = vunpack.c.l.b16 %v631
        %v1144 = vunpack.c.l.b16 %v632
        %v1145 = vunpack.c.l.b16 %v633
        %v1146 = vunpack.c.l.b16 %v634
        %v1147 = vunpack.c.l.b16 %v635
        %v1148 = vunpack.c.l.b16 %v636
        %v1149 = vunpack.c.l.b16 %v637
        %v1150 = vunpack.c.l.b16 %v638
        %v1151 = vunpack.c.l.b16 %v639
        %v1152 = vunpack.c.l.b16 %v640
        %v1153 = vunpack.c.l.b16 %v641
        %v1154 = vunpack.c.l.b16 %v642
        %v1155 = vunpack.c.l.b16 %v643
        %v1156 = vunpack.c.l.b16 %v644
        %v1157 = vunpack.c.l.b16 %v645
        %v1158 = vunpack.c.l.b16 %v646
        %v1159 = vunpack.c.l.b16 %v647
        %v1160 = vunpack.c.l.b16 %v648
        %v1161 = vunpack.c.l.b16 %v649
        %v1162 = vunpack.c.l.b16 %v650
        %v1163 = vunpack.c.l.b16 %v651
        %v1164 = vunpack.c.l.b16 %v652
        %v1165 = vunpack.c.l.b16 %v653
        %v1166 = vunpack.c.l.b16 %v654
        %v1167 = vunpack.c.l.b16 %v655
        %v1168 = vunpack.c.l.b16 %v656
        %v1169 = vunpack.c.l.b16 %v657
        %v1170 = vunpack.c.l.b16 %v658
        %v1171 = vunpack.c.l.b16 %v659
        %v1172 = vunpack.c.l.b16 %v660
        %v1173 = vunpack.c.l.b16 %v661
        %v1174 = vunpack.c.l.b16 %v662
        %v1175 = vunpack.c.l.b16 %v663
        %v1176 = vunpack.c.l.b16 %v664
        %v1177 = vunpack.c.l.b16 %v665
        %v1178 = vunpack.c.l.b16 %v666
        %v1179 = vunpack.c.l.b16 %v667
        %v1180 = vunpack.c.l.b16 %v668
        %v1181 = vunpack.c.l.b16 %v669
        %v1182 = vunpack.c.l.b16 %v670
        %v1183 = vunpack.c.l.b16 %v671
        %v1184 = vunpack.c.l.b16 %v672
        %v1185 = vunpack.c.l.b16 %v673
        %v1186 = vunpack.c.l.b16 %v674
        %v1187 = vunpack.c.l.b16 %v675
        %v1188 = vunpack.c.l.b16 %v676
        %v1189 = vunpack.c.l.b16 %v677
        %v1190 = vunpack.c.l.b16 %v678
        %v1191 = vunpack.c.l.b16 %v679
        %v1192 = vunpack.c.l.b16 %v680
        %v1193 = vunpack.c.l.b16 %v681
        %v1194 = vunpack.c.l.b16 %v682
        %v1195 = vunpack.c.l.b16 %v683
        %v1196 = vunpack.c.l.b16 %v684
        %v1197 = vunpack.c.l.b16 %v685
        %v1198 = vunpack.c.l.b16 %v686
        %v1199 = vunpack.c.l.b16 %v687
        %v1200 = vunpack.c.l.b16 %v688
        %v1201 = vunpack.c.l.b16 %v689
        %v1202 = vunpack.c.l.b16 %v690
        %v1203 = vunpack.c.l.b16 %v691
        %v1204 = vunpack.c.l.b16 %v692
        %v1205 = vunpack.c.l.b16 %v693
        %v1206 = vunpack.c.l.b16 %v694
        %v1207 = vunpack.c.l.b16 %v695
        %v1208 = vunpack.c.l.b16 %v696
        %v1209 = vunpack.c.l.b16 %v697
        %v1210 = vunpack.c.l.b16 %v698
        %v1211 = vunpack.c.l.b16 %v699
        %v1212 = vunpack.c.l.b16 %v700
        %v1213 = vunpack.c.l.b16 %v701
        %v1214 = vunpack.c.l.b16 %v702
        %v1215 = vunpack.c.l.b16 %v703
        %v1216 = vunpack.c.l.b16 %v704
        %v1217 = vunpack.c.l.b16 %v705
        %v1218 = vunpack.c.l.b16 %v706
        %v1219 = vunpack.c.l.b16 %v707
        %v1220 = vunpack.c.l.b16 %v708
        %v1221 = vunpack.c.l.b16 %v709
        %v1222 = vunpack.c.l.b16 %v710
        %v1223 = vunpack.c.l.b16 %v711
        %v1224 = vunpack.c.l.b16 %v712
        %v1225 = vunpack.c.l.b16 %v713
        %v1226 = vunpack.c.l.b16 %v714
        %v1227 = vunpack.c.l.b16 %v715
        %v1228 = vunpack.c.l.b16 %v716
        %v1229 = vunpack.c.l.b16 %v717
        %v1230 = vunpack.c.l.b16 %v718
        %v1231 = vunpack.c.l.b16 %v719
        %v1232 = vunpack.c.l.b16 %v720
        %v1233 = vunpack.c.l.b16 %v721
        %v1234 = vunpack.c.l.b16 %v722
        %v1235 = vunpack.c.l.b16 %v723
        %v1236 = vunpack.c.l.b16 %v724
        %v1237 = vunpack.c.l.b16 %v725
        %v1238 = vunpack.c.l.b16 %v726
        %v1239 = vunpack.c.l.b16 %v727
        %v1240 = vunpack.c.l.b16 %v728
        %v1241 = vunpack.c.l.b16 %v729
        %v1242 = vunpack.c.l.b16 %v730
        %v1243 = vunpack.c.l.b16 %v731
        %v1244 = vunpack.c.l.b16 %v732
        %v1245 = vunpack.c.l.b16 %v733
        %v1246 = vunpack.c.l.b16 %v734
        %v1247 = vunpack.c.l.b16 %v735
        %v1248 = vunpack.c.l.b16 %v736
        %v1249 = vunpack.c.l.b16 %v737
        %v1250 = vunpack.c.l.b16 %v738
        %v1251 = vunpack.c.l.b16 %v739
        %v1252 = vunpack.c.l.b16 %v740
        %v1253 = vunpack.c.l.b16 %v741
        %v1254 = vunpack.c.l.b16 %v742
        %v1255 = vunpack.c.l.b16 %v743
        %v1256 = vunpack.c.l.b16 %v744
        %v1257 = vunpack.c.l.b16 %v745
        %v1258 = vunpack.c.l.b16 %v746
        %v1259 = vunpack.c.l.b16 %v747
        %v1260 = vunpack.c.l.b16 %v748
        %v1261 = vunpack.c.l.b16 %v749
        %v1262 = vunpack.c.l.b16 %v750
        %v1263 = vunpack.c.l.b16 %v751
        %v1264 = vunpack.c.l.b16 %v752
        %v1265 = vunpack.c.l.b16 %v753
        %v1266 = vpack.c.b16 %v1011, %v1010
        %v1267 = vpack.c.b16 %v1013, %v1012
        %v1268 = vpack.c.b16 %v1015, %v1014
        %v1269 = vpack.c.b16 %v1017, %v1016
        %v1270 = vpack.c.b16 %v1019, %v1018
        %v1271 = vpack.c.b16 %v1021, %v1020
        %v1272 = vpack.c.b16 %v1023, %v1022
        %v1273 = vpack.c.b16 %v1025, %v1024
        %v1274 = vpack.c.b16 %v1027, %v1026
        %v1275 = vpack.c.b16 %v1029, %v1028
        %v1276 = vpack.c.b16 %v1031, %v1030
        %v1277 = vpack.c.b16 %v1033, %v1032
        %v1278 = vpack.c.b16 %v1035, %v1034
        %v1279 = vpack.c.b16 %v1037, %v1036
        %v1280 = vpack.c.b16 %v1039, %v1038
        %v1281 = vpack.c.b16 %v1041, %v1040
        %v1282 = vpack.c.b16 %v1043, %v1042
        %v1283 = vpack.c.b16 %v1045, %v1044
        %v1284 = vpack.c.b16 %v1047, %v1046
        %v1285 = vpack.c.b16 %v1049, %v1048
        %v1286 = vpack.c.b16 %v1051, %v1050
        %v1287 = vpack.c.b16 %v1053, %v1052
        %v1288 = vpack.c.b16 %v1055, %v1054
        %v1289 = vpack.c.b16 %v1057, %v1056
        %v1290 = vpack.c.b16 %v1059, %v1058
        %v1291 = vpack.c.b16 %v1061, %v1060
        %v1292 = vpack.c.b16 %v1063, %v1062
        %v1293 = vpack.c.b16 %v1065, %v1064
        %v1294 = vpack.c.b16 %v1067, %v1066
        %v1295 = vpack.c.b16 %v1069, %v1068
        %v1296 = vpack.c.b16 %v1071, %v1070
        %v1297 = vpack.c.b16 %v1073, %v1072
        %v1298 = vpack.c.b16 %v1075, %v1074
        %v1299 = vpack.c.b16 %v1077, %v1076
        %v1300 = vpack.c.b16 %v1079, %v1078
        %v1301 = vpack.c.b16 %v1081, %v1080
        %v1302 = vpack.c.b16 %v1083, %v1082
        %v1303 = vpack.c.b16 %v1085, %v1084
        %v1304 = vpack.c.b16 %v1087, %v1086
        %v1305 = vpack.c.b16 %v1089, %v1088
        %v1306 = vpack.c.b16 %v1091, %v1090
        %v1307 = vpack.c.b16 %v1093, %v1092
        %v1308 = vpack.c.b16 %v1095, %v1094
        %v1309 = vpack.c.b16 %v1097, %v1096
        %v1310 = vpack.c.b16 %v1099, %v1098
        %v1311 = vpack.c.b16 %v1101, %v1100
        %v1312 = vpack.c.b16 %v1103, %v1102
        %v1313 = vpack.c.b16 %v1105, %v1104
        %v1314 = vpack.c.b16 %v1107, %v1106
        %v1315 = vpack.c.b16 %v1109, %v1108
        %v1316 = vpack.c.b16 %v1111, %v1110
        %v1317 = vpack.c.b16 %v1113, %v1112
        %v1318 = vpack.c.b16 %v1115, %v1114
        %v1319 = vpack.c.b16 %v1117, %v1116
        %v1320 = vpack.c.b16 %v1119, %v1118
        %v1321 = vpack.c.b16 %v1121, %v1120
        %v1322 = vpack.c.b16 %v1123, %v1122
        %v1323 = vpack.c.b16 %v1125, %v1124
        %v1324 = vpack.c.b16 %v1127, %v1126
        %v1325 = vpack.c.b16 %v1129, %v1128
        %v1326 = vpack.c.b16 %v1131, %v1130
        %v1327 = vpack.c.b16 %v1133, %v1132
        %v1328 = vpack.c.b16 %v1135, %v1134
        %v1329 = vpack.c.b16 %v1137, %v1136
        %v1330 = vpack.c.b16 %v1139, %v1138
        %v1331 = vpack.c.b16 %v1141, %v1140
        %v1332 = vpack.c.b16 %v1143, %v1142
        %v1333 = vpack.c.b16 %v1145, %v1144
        %v1334 = vpack.c.b16 %v1147, %v1146
        %v1335 = vpack.c.b16 %v1149, %v1148
        %v1336 = vpack.c.b16 %v1151, %v1150
        %v1337 = vpack.c.b16 %v1153, %v1152
        %v1338 = vpack.c.b16 %v1155, %v1154
        %v1339 = vpack.c.b16 %v1157, %v1156
        %v1340 = vpack.c.b16 %v1159, %v1158
        %v1341 = vpack.c.b16 %v1161, %v1160
        %v1342 = vpack.c.b16 %v1163, %v1162
        %v1343 = vpack.c.b16 %v1165, %v1164
        %v1344 = vpack.c.b16 %v1167, %v1166
        %v1345 = vpack.c.b16 %v1169, %v1168
        %v1346 = vpack.c.b16 %v1171, %v1170
        %v1347 = vpack.c.b16 %v1173, %v1172
        %v1348 = vpack.c.b16 %v1175, %v1174
        %v1349 = vpack.c.b16 %v1177, %v1176
        %v1350 = vpack.c.b16 %v1179, %v1178
        %v1351 = vpack.c.b16 %v1181, %v1180
        %v1352 = vpack.c.b16 %v1183, %v1182
        %v1353 = vpack.c.b16 %v1185, %v1184
        %v1354 = vpack.c.b16 %v1187, %v1186
        %v1355 = vpack.c.b16 %v1189, %v1188
        %v1356 = vpack.c.b16 %v1191, %v1190
        %v1357 = vpack.c.b16 %v1193, %v1192
        %v1358 = vpack.c.b16 %v1195, %v1194
        %v1359 = vpack.c.b16 %v1197, %v1196
        %v1360 = vpack.c.b16 %v1199, %v1198
        %v1361 = vpack.c.b16 %v1201, %v1200
        %v1362 = vpack.c.b16 %v1203, %v1202
        %v1363 = vpack.c.b16 %v1205, %v1204
        %v1364 = vpack.c.b16 %v1207, %v1206
        %v1365 = vpack.c.b16 %v1209, %v1208
        %v1366 = vpack.c.b16 %v1211, %v1210
        %v1367 = vpack.c.b16 %v1213, %v1212
        %v1368 = vpack.c.b16 %v1215, %v1214
        %v1369 = vpack.c.b16 %v1217, %v1216
        %v1370 = vpack.c.b16 %v1219, %v1218
        %v1371 = vpack.c.b16 %v1221, %v1220
        %v1372 = vpack.c.b16 %v1223, %v1222
        %v1373 = vpack.c.b16 %v1225, %v1224
        %v1374 = vpack.c.b16 %v1227, %v1226
        %v1375 = vpack.c.b16 %v1229, %v1228
        %v1376 = vpack.c.b16 %v1231, %v1230
        %v1377 = vpack.c.b16 %v1233, %v1232
        %v1378 = vpack.c.b16 %v1235, %v1234
        %v1379 = vpack.c.b16 %v1237, %v1236
        %v1380 = vpack.c.b16 %v1239, %v1238
        %v1381 = vpack.c.b16 %v1241, %v1240
        %v1382 = vpack.c.b16 %v1243, %v1242
        %v1383 = vpack.c.b16 %v1245, %v1244
        %v1384 = vpack.c.b16 %v1247, %v1246
        %v1385 = vpack.c.b16 %v1249, %v1248
        %v1386 = vpack.c.b16 %v1251, %v1250
        %v1387 = vpack.c.b16 %v1253, %v1252
        %v1388 = vpack.c.b16 %v1255, %v1254
        %v1389 = vpack.c.b16 %v1257, %v1256
        %v1390 = vpack.c.b16 %v1259, %v1258
        %v1391 = vpack.c.b16 %v1261, %v1260
        %v1392 = vpack.c.b16 %v1263, %v1262
        %v1393 = vpack.c.b16 %v1265, %v1264
        %1522 = vmatprep.subr.bf16.mxu0 0
        %1523 = vmatpush1.bf16.msra.mxu0 %v1266
        %1524 = vmatprep.subr.bf16.mxu0 0
        %1525 = vmatpush1.bf16.msra.mxu0 %v1267
        %1526 = vmatprep.subr.bf16.mxu0 0
        %1527 = vmatpush1.bf16.msra.mxu0 %v1268
        %1528 = vmatprep.subr.bf16.mxu0 0
        %1529 = vmatpush1.bf16.msra.mxu0 %v1269
        %1530 = vmatprep.subr.bf16.mxu0 0
        %1531 = vmatpush1.bf16.msra.mxu0 %v1270
        %1532 = vmatprep.subr.bf16.mxu0 0
        %1533 = vmatpush1.bf16.msra.mxu0 %v1271
        %1534 = vmatprep.subr.bf16.mxu0 0
        %1535 = vmatpush1.bf16.msra.mxu0 %v1272
        %1536 = vmatprep.subr.bf16.mxu0 0
        %1537 = vmatpush1.bf16.msra.mxu0 %v1273
        %1538 = vmatprep.subr.bf16.mxu0 0
        %1539 = vmatpush1.bf16.msra.mxu0 %v1274
        %1540 = vmatprep.subr.bf16.mxu0 0
        %1541 = vmatpush1.bf16.msra.mxu0 %v1275
        %1542 = vmatprep.subr.bf16.mxu0 0
        %1543 = vmatpush1.bf16.msra.mxu0 %v1276
        %1544 = vmatprep.subr.bf16.mxu0 0
        %1545 = vmatpush1.bf16.msra.mxu0 %v1277
        %1546 = vmatprep.subr.bf16.mxu0 0
        %1547 = vmatpush1.bf16.msra.mxu0 %v1278
        %1548 = vmatprep.subr.bf16.mxu0 0
        %1549 = vmatpush1.bf16.msra.mxu0 %v1279
        %1550 = vmatprep.subr.bf16.mxu0 0
        %1551 = vmatpush1.bf16.msra.mxu0 %v1280
        %1552 = vmatprep.subr.bf16.mxu0 0
        %1553 = vmatpush1.bf16.msra.mxu0 %v1281
        %1554 = vmatprep.mubr.bf16.mxu0 %v483
        %1555 = vmatmul.mubr.bf16.gmra.mrb[0].mxu0 %v482
        %v1556 = vpop.f32.mrb[0].mxu0
        %v1557 = vadd.f32 0.0, %v1556
        %v1558 = vpop.f32.mrb[0].mxu0
        %v1559 = vpop.f32.mrb[0].mxu0
        %v1560 = vpop.f32.mrb[0].mxu0
        %1561 = vdwg.mxu0
        %1562 = vmatprep.subr.bf16.mxu0 0
        %1563 = vmatpush1.bf16.msra.mxu0 %v1282
        %1564 = vmatprep.subr.bf16.mxu0 0
        %1565 = vmatpush1.bf16.msra.mxu0 %v1283
        %1566 = vmatprep.subr.bf16.mxu0 0
        %1567 = vmatpush1.bf16.msra.mxu0 %v1284
        %1568 = vmatprep.subr.bf16.mxu0 0
        %1569 = vmatpush1.bf16.msra.mxu0 %v1285
        %1570 = vmatprep.subr.bf16.mxu0 0
        %1571 = vmatpush1.bf16.msra.mxu0 %v1286
        %1572 = vmatprep.subr.bf16.mxu0 0
        %1573 = vmatpush1.bf16.msra.mxu0 %v1287
        %1574 = vmatprep.subr.bf16.mxu0 0
        %1575 = vmatpush1.bf16.msra.mxu0 %v1288
        %1576 = vmatprep.subr.bf16.mxu0 0
        %1577 = vmatpush1.bf16.msra.mxu0 %v1289
        %1578 = vmatprep.subr.bf16.mxu0 0
        %1579 = vmatpush1.bf16.msra.mxu0 %v1290
        %1580 = vmatprep.subr.bf16.mxu0 0
        %1581 = vmatpush1.bf16.msra.mxu0 %v1291
        %1582 = vmatprep.subr.bf16.mxu0 0
        %1583 = vmatpush1.bf16.msra.mxu0 %v1292
        %1584 = vmatprep.subr.bf16.mxu0 0
        %1585 = vmatpush1.bf16.msra.mxu0 %v1293
        %1586 = vmatprep.subr.bf16.mxu0 0
        %1587 = vmatpush1.bf16.msra.mxu0 %v1294
        %1588 = vmatprep.subr.bf16.mxu0 0
        %1589 = vmatpush1.bf16.msra.mxu0 %v1295
        %1590 = vmatprep.subr.bf16.mxu0 0
        %1591 = vmatpush1.bf16.msra.mxu0 %v1296
        %1592 = vmatprep.subr.bf16.mxu0 0
        %1593 = vmatpush1.bf16.msra.mxu0 %v1297
        %1594 = vmatprep.mubr.bf16.mxu0 %v485
        %1595 = vmatmul.mubr.bf16.gmra.mrb[0].mxu0 %v484
        %v1596 = vpop.f32.mrb[0].mxu0
        %v1597 = vadd.f32 %v1557, %v1596
        %v1598 = vpop.f32.mrb[0].mxu0
        %v1599 = vpop.f32.mrb[0].mxu0
        %v1600 = vpop.f32.mrb[0].mxu0
        %1601 = vdwg.mxu0
        %1602 = vmatprep.subr.bf16.mxu0 0
        %1603 = vmatpush1.bf16.msra.mxu0 %v1298
        %1604 = vmatprep.subr.bf16.mxu0 0
        %1605 = vmatpush1.bf16.msra.mxu0 %v1299
        %1606 = vmatprep.subr.bf16.mxu0 0
        %1607 = vmatpush1.bf16.msra.mxu0 %v1300
        %1608 = vmatprep.subr.bf16.mxu0 0
        %1609 = vmatpush1.bf16.msra.mxu0 %v1301
        %1610 = vmatprep.subr.bf16.mxu0 0
        %1611 = vmatpush1.bf16.msra.mxu0 %v1302
        %1612 = vmatprep.subr.bf16.mxu0 0
        %1613 = vmatpush1.bf16.msra.mxu0 %v1303
        %1614 = vmatprep.subr.bf16.mxu0 0
        %1615 = vmatpush1.bf16.msra.mxu0 %v1304
        %1616 = vmatprep.subr.bf16.mxu0 0
        %1617 = vmatpush1.bf16.msra.mxu0 %v1305
        %1618 = vmatprep.subr.bf16.mxu0 0
        %1619 = vmatpush1.bf16.msra.mxu0 %v1306
        %1620 = vmatprep.subr.bf16.mxu0 0
        %1621 = vmatpush1.bf16.msra.mxu0 %v1307
        %1622 = vmatprep.subr.bf16.mxu0 0
        %1623 = vmatpush1.bf16.msra.mxu0 %v1308
        %1624 = vmatprep.subr.bf16.mxu0 0
        %1625 = vmatpush1.bf16.msra.mxu0 %v1309
        %1626 = vmatprep.subr.bf16.mxu0 0
        %1627 = vmatpush1.bf16.msra.mxu0 %v1310
        %1628 = vmatprep.subr.bf16.mxu0 0
        %1629 = vmatpush1.bf16.msra.mxu0 %v1311
        %1630 = vmatprep.subr.bf16.mxu0 0
        %1631 = vmatpush1.bf16.msra.mxu0 %v1312
        %1632 = vmatprep.subr.bf16.mxu0 0
        %1633 = vmatpush1.bf16.msra.mxu0 %v1313
        %1634 = vmatprep.mubr.bf16.mxu0 %v487
        %1635 = vmatmul.mubr.bf16.gmra.mrb[0].mxu0 %v486
        %v1636 = vpop.f32.mrb[0].mxu0
        %v1637 = vadd.f32 %v1597, %v1636
        %v1638 = vpop.f32.mrb[0].mxu0
        %v1639 = vpop.f32.mrb[0].mxu0
        %v1640 = vpop.f32.mrb[0].mxu0
        %1641 = vdwg.mxu0
        %1642 = vmatprep.subr.bf16.mxu0 0
        %1643 = vmatpush1.bf16.msra.mxu0 %v1314
        %1644 = vmatprep.subr.bf16.mxu0 0
        %1645 = vmatpush1.bf16.msra.mxu0 %v1315
        %1646 = vmatprep.subr.bf16.mxu0 0
        %1647 = vmatpush1.bf16.msra.mxu0 %v1316
        %1648 = vmatprep.subr.bf16.mxu0 0
        %1649 = vmatpush1.bf16.msra.mxu0 %v1317
        %1650 = vmatprep.subr.bf16.mxu0 0
        %1651 = vmatpush1.bf16.msra.mxu0 %v1318
        %1652 = vmatprep.subr.bf16.mxu0 0
        %1653 = vmatpush1.bf16.msra.mxu0 %v1319
        %1654 = vmatprep.subr.bf16.mxu0 0
        %1655 = vmatpush1.bf16.msra.mxu0 %v1320
        %1656 = vmatprep.subr.bf16.mxu0 0
        %1657 = vmatpush1.bf16.msra.mxu0 %v1321
        %1658 = vmatprep.subr.bf16.mxu0 0
        %1659 = vmatpush1.bf16.msra.mxu0 %v1322
        %1660 = vmatprep.subr.bf16.mxu0 0
        %1661 = vmatpush1.bf16.msra.mxu0 %v1323
        %1662 = vmatprep.subr.bf16.mxu0 0
        %1663 = vmatpush1.bf16.msra.mxu0 %v1324
        %1664 = vmatprep.subr.bf16.mxu0 0
        %1665 = vmatpush1.bf16.msra.mxu0 %v1325
        %1666 = vmatprep.subr.bf16.mxu0 0
        %1667 = vmatpush1.bf16.msra.mxu0 %v1326
        %1668 = vmatprep.subr.bf16.mxu0 0
        %1669 = vmatpush1.bf16.msra.mxu0 %v1327
        %1670 = vmatprep.subr.bf16.mxu0 0
        %1671 = vmatpush1.bf16.msra.mxu0 %v1328
        %1672 = vmatprep.subr.bf16.mxu0 0
        %1673 = vmatpush1.bf16.msra.mxu0 %v1329
        %1674 = vmatprep.mubr.bf16.mxu0 %v489
        %1675 = vmatmul.mubr.bf16.gmra.mrb[0].mxu0 %v488
        %v1676 = vpop.f32.mrb[0].mxu0
        %v1677 = vadd.f32 %v1637, %v1676
        %v1678 = vpop.f32.mrb[0].mxu0
        %v1679 = vpop.f32.mrb[0].mxu0
        %v1680 = vpop.f32.mrb[0].mxu0
        %1681 = vdwg.mxu0
        %1682 = vmatprep.subr.bf16.mxu0 0
        %1683 = vmatpush1.bf16.msra.mxu0 %v1330
        %1684 = vmatprep.subr.bf16.mxu0 0
        %1685 = vmatpush1.bf16.msra.mxu0 %v1331
        %1686 = vmatprep.subr.bf16.mxu0 0
        %1687 = vmatpush1.bf16.msra.mxu0 %v1332
        %1688 = vmatprep.subr.bf16.mxu0 0
        %1689 = vmatpush1.bf16.msra.mxu0 %v1333
        %1690 = vmatprep.subr.bf16.mxu0 0
        %1691 = vmatpush1.bf16.msra.mxu0 %v1334
        %1692 = vmatprep.subr.bf16.mxu0 0
        %1693 = vmatpush1.bf16.msra.mxu0 %v1335
        %1694 = vmatprep.subr.bf16.mxu0 0
        %1695 = vmatpush1.bf16.msra.mxu0 %v1336
        %1696 = vmatprep.subr.bf16.mxu0 0
        %1697 = vmatpush1.bf16.msra.mxu0 %v1337
        %1698 = vmatprep.subr.bf16.mxu0 0
        %1699 = vmatpush1.bf16.msra.mxu0 %v1338
        %1700 = vmatprep.subr.bf16.mxu0 0
        %1701 = vmatpush1.bf16.msra.mxu0 %v1339
        %1702 = vmatprep.subr.bf16.mxu0 0
        %1703 = vmatpush1.bf16.msra.mxu0 %v1340
        %1704 = vmatprep.subr.bf16.mxu0 0
        %1705 = vmatpush1.bf16.msra.mxu0 %v1341
        %1706 = vmatprep.subr.bf16.mxu0 0
        %1707 = vmatpush1.bf16.msra.mxu0 %v1342
        %1708 = vmatprep.subr.bf16.mxu0 0
        %1709 = vmatpush1.bf16.msra.mxu0 %v1343
        %1710 = vmatprep.subr.bf16.mxu0 0
        %1711 = vmatpush1.bf16.msra.mxu0 %v1344
        %1712 = vmatprep.subr.bf16.mxu0 0
        %1713 = vmatpush1.bf16.msra.mxu0 %v1345
        %1714 = vmatprep.mubr.bf16.mxu0 %v491
        %1715 = vmatmul.mubr.bf16.gmra.mrb[0].mxu0 %v490
        %v1716 = vpop.f32.mrb[0].mxu0
        %v1717 = vadd.f32 %v1677, %v1716
        %v1718 = vpop.f32.mrb[0].mxu0
        %v1719 = vpop.f32.mrb[0].mxu0
        %v1720 = vpop.f32.mrb[0].mxu0
        %1721 = vdwg.mxu0
        %1722 = vmatprep.subr.bf16.mxu0 0
        %1723 = vmatpush1.bf16.msra.mxu0 %v1346
        %1724 = vmatprep.subr.bf16.mxu0 0
        %1725 = vmatpush1.bf16.msra.mxu0 %v1347
        %1726 = vmatprep.subr.bf16.mxu0 0
        %1727 = vmatpush1.bf16.msra.mxu0 %v1348
        %1728 = vmatprep.subr.bf16.mxu0 0
        %1729 = vmatpush1.bf16.msra.mxu0 %v1349
        %1730 = vmatprep.subr.bf16.mxu0 0
        %1731 = vmatpush1.bf16.msra.mxu0 %v1350
        %1732 = vmatprep.subr.bf16.mxu0 0
        %1733 = vmatpush1.bf16.msra.mxu0 %v1351
        %1734 = vmatprep.subr.bf16.mxu0 0
        %1735 = vmatpush1.bf16.msra.mxu0 %v1352
        %1736 = vmatprep.subr.bf16.mxu0 0
        %1737 = vmatpush1.bf16.msra.mxu0 %v1353
        %1738 = vmatprep.subr.bf16.mxu0 0
        %1739 = vmatpush1.bf16.msra.mxu0 %v1354
        %1740 = vmatprep.subr.bf16.mxu0 0
        %1741 = vmatpush1.bf16.msra.mxu0 %v1355
        %1742 = vmatprep.subr.bf16.mxu0 0
        %1743 = vmatpush1.bf16.msra.mxu0 %v1356
        %1744 = vmatprep.subr.bf16.mxu0 0
        %1745 = vmatpush1.bf16.msra.mxu0 %v1357
        %1746 = vmatprep.subr.bf16.mxu0 0
        %1747 = vmatpush1.bf16.msra.mxu0 %v1358
        %1748 = vmatprep.subr.bf16.mxu0 0
        %1749 = vmatpush1.bf16.msra.mxu0 %v1359
        %1750 = vmatprep.subr.bf16.mxu0 0
        %1751 = vmatpush1.bf16.msra.mxu0 %v1360
        %1752 = vmatprep.subr.bf16.mxu0 0
        %1753 = vmatpush1.bf16.msra.mxu0 %v1361
        %1754 = vmatprep.mubr.bf16.mxu0 %v493
        %1755 = vmatmul.mubr.bf16.gmra.mrb[0].mxu0 %v492
        %v1756 = vpop.f32.mrb[0].mxu0
        %v1757 = vadd.f32 %v1717, %v1756
        %v1758 = vpop.f32.mrb[0].mxu0
        %v1759 = vpop.f32.mrb[0].mxu0
        %v1760 = vpop.f32.mrb[0].mxu0
        %1761 = vdwg.mxu0
        %1762 = vmatprep.subr.bf16.mxu0 0
        %1763 = vmatpush1.bf16.msra.mxu0 %v1362
        %1764 = vmatprep.subr.bf16.mxu0 0
        %1765 = vmatpush1.bf16.msra.mxu0 %v1363
        %1766 = vmatprep.subr.bf16.mxu0 0
        %1767 = vmatpush1.bf16.msra.mxu0 %v1364
        %1768 = vmatprep.subr.bf16.mxu0 0
        %1769 = vmatpush1.bf16.msra.mxu0 %v1365
        %1770 = vmatprep.subr.bf16.mxu0 0
        %1771 = vmatpush1.bf16.msra.mxu0 %v1366
        %1772 = vmatprep.subr.bf16.mxu0 0
        %1773 = vmatpush1.bf16.msra.mxu0 %v1367
        %1774 = vmatprep.subr.bf16.mxu0 0
        %1775 = vmatpush1.bf16.msra.mxu0 %v1368
        %1776 = vmatprep.subr.bf16.mxu0 0
        %1777 = vmatpush1.bf16.msra.mxu0 %v1369
        %1778 = vmatprep.subr.bf16.mxu0 0
        %1779 = vmatpush1.bf16.msra.mxu0 %v1370
        %1780 = vmatprep.subr.bf16.mxu0 0
        %1781 = vmatpush1.bf16.msra.mxu0 %v1371
        %1782 = vmatprep.subr.bf16.mxu0 0
        %1783 = vmatpush1.bf16.msra.mxu0 %v1372
        %1784 = vmatprep.subr.bf16.mxu0 0
        %1785 = vmatpush1.bf16.msra.mxu0 %v1373
        %1786 = vmatprep.subr.bf16.mxu0 0
        %1787 = vmatpush1.bf16.msra.mxu0 %v1374
        %1788 = vmatprep.subr.bf16.mxu0 0
        %1789 = vmatpush1.bf16.msra.mxu0 %v1375
        %1790 = vmatprep.subr.bf16.mxu0 0
        %1791 = vmatpush1.bf16.msra.mxu0 %v1376
        %1792 = vmatprep.subr.bf16.mxu0 0
        %1793 = vmatpush1.bf16.msra.mxu0 %v1377
        %1794 = vmatprep.mubr.bf16.mxu0 %v495
        %1795 = vmatmul.mubr.bf16.gmra.mrb[0].mxu0 %v494
        %v1796 = vpop.f32.mrb[0].mxu0
        %v1797 = vadd.f32 %v1757, %v1796
        %v1798 = vpop.f32.mrb[0].mxu0
        %v1799 = vpop.f32.mrb[0].mxu0
        %v1800 = vpop.f32.mrb[0].mxu0
        %1801 = vdwg.mxu0
        %1802 = vmatprep.subr.bf16.mxu0 0
        %1803 = vmatpush1.bf16.msra.mxu0 %v1378
        %1804 = vmatprep.subr.bf16.mxu0 0
        %1805 = vmatpush1.bf16.msra.mxu0 %v1379
        %1806 = vmatprep.subr.bf16.mxu0 0
        %1807 = vmatpush1.bf16.msra.mxu0 %v1380
        %1808 = vmatprep.subr.bf16.mxu0 0
        %1809 = vmatpush1.bf16.msra.mxu0 %v1381
        %1810 = vmatprep.subr.bf16.mxu0 0
        %1811 = vmatpush1.bf16.msra.mxu0 %v1382
        %1812 = vmatprep.subr.bf16.mxu0 0
        %1813 = vmatpush1.bf16.msra.mxu0 %v1383
        %1814 = vmatprep.subr.bf16.mxu0 0
        %1815 = vmatpush1.bf16.msra.mxu0 %v1384
        %1816 = vmatprep.subr.bf16.mxu0 0
        %1817 = vmatpush1.bf16.msra.mxu0 %v1385
        %1818 = vmatprep.subr.bf16.mxu0 0
        %1819 = vmatpush1.bf16.msra.mxu0 %v1386
        %1820 = vmatprep.subr.bf16.mxu0 0
        %1821 = vmatpush1.bf16.msra.mxu0 %v1387
        %1822 = vmatprep.subr.bf16.mxu0 0
        %1823 = vmatpush1.bf16.msra.mxu0 %v1388
        %1824 = vmatprep.subr.bf16.mxu0 0
        %1825 = vmatpush1.bf16.msra.mxu0 %v1389
        %1826 = vmatprep.subr.bf16.mxu0 0
        %1827 = vmatpush1.bf16.msra.mxu0 %v1390
        %1828 = vmatprep.subr.bf16.mxu0 0
        %1829 = vmatpush1.bf16.msra.mxu0 %v1391
        %1830 = vmatprep.subr.bf16.mxu0 0
        %1831 = vmatpush1.bf16.msra.mxu0 %v1392
        %1832 = vmatprep.subr.bf16.mxu0 0
        %1833 = vmatpush1.bf16.msra.mxu0 %v1393
        %1834 = vmatprep.mubr.bf16.mxu0 %v497
        %1835 = vmatmul.mubr.bf16.gmra.mrb[0].mxu0 %v496
        %v1836 = vpop.f32.mrb[0].mxu0
        %v1837 = vadd.f32 %v1797, %v1836
        %v1838 = vpop.f32.mrb[0].mxu0
        %v1839 = vpop.f32.mrb[0].mxu0
        %v1840 = vpop.f32.mrb[0].mxu0
        %1841 = vdwg.mxu0
        %vm1842 = vcmask 1043456
        %v1843 = vsel %vm1842, %v1837, 0.0
        %v1844 = vrot.slane %v1843, 4
        %v1845 = vadd.f32 %v1843, %v1844
        %v1846 = vrot.slane %v1845, 2
        %v1847 = vadd.f32 %v1845, %v1846
        %v1848 = vrot.slane %v1847, 1
        %v1849 = vadd.f32 %v1847, %v1848
        %v1850 = vmul.f32 %v1837, %v1837
        %v1851 = vsel %vm1842, %v1850, 0.0
        %v1852 = vrot.slane %v1851, 4
        %v1853 = vadd.f32 %v1851, %v1852
        %v1854 = vrot.slane %v1853, 2
        %v1855 = vadd.f32 %v1853, %v1854
        %v1856 = vrot.slane %v1855, 1
        %v1857 = vadd.f32 %v1855, %v1856
        %v1858 = vmul.f32 %v1849, 0.25
        %v1859 = vmul.f32 %v1857, 0.25
        %v1860 = vmul.f32 %v1858, %v1858
        %v1861 = vsub.f32 %v1859, %v1860
        %v1862 = vmax.f32 %v1861, 0.0
        %v1863 = vsub.f32 %v1837, %v1858
        %v1864 = vadd.f32 %v1862, 1e-05
        %v1865 = vrsqrt.pop %v1864
        %v1866 = vmul.f32 %v1863, %v1865
        %v1867 = vld [vmem:[%s2] sm:$0x1]
        %v1869 = vlaneseq
        %v1870 = vshrl.u32 %v1869, 7
        %v1871 = vsub.s32 0, %v1870
        %v1872 = vrot.slane %v1867, %v1871
        %v1874 = vmul.f32 %v1866, %v1872
        %v1875 = vld [vmem:[%s3] sm:$0x1]
        %v1877 = vlaneseq
        %v1878 = vshrl.u32 %v1877, 7
        %v1879 = vsub.s32 0, %v1878
        %v1880 = vrot.slane %v1875, %v1879
        %v1882 = vadd.f32 %v1874, %v1880
        %vm1883 = vcmp.ge.f32.partialorder %v1882, 0.0
        %v1884 = vmul.f32 %v1882, 0.01
        %v1885 = vsel %vm1883, %v1882, %v1884
        %1886 = vst [vmem:[#allocation3] sm:$0xff] 0.0
        %1887 = vst [vmem:[#allocation3 + $0x8] sm:$0xff] 0.0
        %1888 = vst [vmem:[#allocation3 + $0x5] sm:$0x3] %v1885
        %1889 = vst [vmem:[#allocation3 + $0x7] sm:$0xc] %v1885
        %v1890 = vld [vmem:[#allocation3] sm:$0x3]
        %1891 = vst [vmem:[#allocation4] sm:$0x3] %v1890
        %v1892 = vld [vmem:[#allocation3 + $0x4] sm:$0x3]
        %v1894 = vrot.slane %v1892, 6
        %1896 = vst [vmem:[#allocation4] sm:$0xc] %v1894
        %v1897 = vld [vmem:[#allocation3 + $0x1] sm:$0x3]
        %1898 = vst [vmem:[#allocation4 + $0x4] sm:$0x3] %v1897
        %v1899 = vld [vmem:[#allocation3 + $0x5] sm:$0x3]
        %v1901 = vrot.slane %v1899, 6
        %1903 = vst [vmem:[#allocation4 + $0x4] sm:$0xc] %v1901
        %v1904 = vld [vmem:[#allocation3 + $0x2] sm:$0x3]
        %1905 = vst [vmem:[#allocation4 + $0x8] sm:$0x3] %v1904
        %v1906 = vld [vmem:[#allocation3 + $0x6] sm:$0x3]
        %v1908 = vrot.slane %v1906, 6
        %1910 = vst [vmem:[#allocation4 + $0x8] sm:$0xc] %v1908
        %v1911 = vld [vmem:[#allocation3 + $0x4] sm:$0x3]
        %1912 = vst [vmem:[#allocation4 + $0xc] sm:$0x3] %v1911
        %v1913 = vld [vmem:[#allocation3 + $0x8] sm:$0x3]
        %v1915 = vrot.slane %v1913, 6
        %1917 = vst [vmem:[#allocation4 + $0xc] sm:$0xc] %v1915
        %v1918 = vld [vmem:[#allocation3 + $0x5] sm:$0x3]
        %1919 = vst [vmem:[#allocation4 + $0x10] sm:$0x3] %v1918
        %v1920 = vld [vmem:[#allocation3 + $0x9] sm:$0x3]
        %v1922 = vrot.slane %v1920, 6
        %1924 = vst [vmem:[#allocation4 + $0x10] sm:$0xc] %v1922
        %v1925 = vld [vmem:[#allocation3 + $0x6] sm:$0x3]
        %1926 = vst [vmem:[#allocation4 + $0x14] sm:$0x3] %v1925
        %v1927 = vld [vmem:[#allocation3 + $0xa] sm:$0x3]
        %v1929 = vrot.slane %v1927, 6
        %1931 = vst [vmem:[#allocation4 + $0x14] sm:$0xc] %v1929
        %v1932 = vld [vmem:[#allocation3 + $0x8] sm:$0x3]
        %1933 = vst [vmem:[#allocation4 + $0x18] sm:$0x3] %v1932
        %v1934 = vld [vmem:[#allocation3 + $0xc] sm:$0x3]
        %v1936 = vrot.slane %v1934, 6
        %1938 = vst [vmem:[#allocation4 + $0x18] sm:$0xc] %v1936
        %v1939 = vld [vmem:[#allocation3 + $0x9] sm:$0x3]
        %1940 = vst [vmem:[#allocation4 + $0x1c] sm:$0x3] %v1939
        %v1941 = vld [vmem:[#allocation3 + $0xd] sm:$0x3]
        %v1943 = vrot.slane %v1941, 6
        %1945 = vst [vmem:[#allocation4 + $0x1c] sm:$0xc] %v1943
        %v1946 = vld [vmem:[#allocation3 + $0xa] sm:$0x3]
        %1947 = vst [vmem:[#allocation4 + $0x20] sm:$0x3] %v1946
        %v1948 = vld [vmem:[#allocation3 + $0xe] sm:$0x3]
        %v1950 = vrot.slane %v1948, 6
        %1952 = vst [vmem:[#allocation4 + $0x20] sm:$0xc] %v1950
        %v1953 = vld [vmem:[#allocation4] sm:$0xff]
        %v1954 = vld [vmem:[#allocation4 + $0x8] sm:$0xff]
        %v1955 = vld [vmem:[#allocation4 + $0x10] sm:$0xff]
        %v1956 = vld [vmem:[#allocation4 + $0x18] sm:$0xff]
        %v1957 = vld [vmem:[#allocation4 + $0x20] sm:$0xf]
        %v1962 = vcombine.high %v1953, %v1953
        %v1963 = vcombine.high %v1954, %v1954
        %v1964 = vcombine.high %v1955, %v1955
        %v1965 = vcombine.high %v1956, %v1956
        %v1970 = vpack.c.bf16 %v1953, %v1953
        %v1971 = vpack.c.bf16 %v1962, %v1962
        %v1972 = vpack.c.bf16 %v1954, %v1954
        %v1973 = vpack.c.bf16 %v1963, %v1963
        %v1974 = vpack.c.bf16 %v1955, %v1955
        %v1975 = vpack.c.bf16 %v1964, %v1964
        %v1976 = vpack.c.bf16 %v1956, %v1956
        %v1977 = vpack.c.bf16 %v1965, %v1965
        %v1978 = vpack.c.bf16 %v1957, %v1957
        %v1979 = vld [vmem:[%s4] sm:$0xf]
        %v1980 = vld [vmem:[%s4 + $0x4] sm:$0xf]
        %v1981 = vld [vmem:[%s4 + $0x8] sm:$0xf]
        %v1982 = vld [vmem:[%s4 + $0xc] sm:$0xf]
        %v1983 = vld [vmem:[%s4 + $0x10] sm:$0xf]
        %v1984 = vld [vmem:[%s4 + $0x14] sm:$0xf]
        %v1985 = vld [vmem:[%s4 + $0x18] sm:$0xf]
        %v1986 = vld [vmem:[%s4 + $0x1c] sm:$0xf]
        %v1987 = vld [vmem:[%s4 + $0x20] sm:$0xf]
        %v1988 = vld [vmem:[%s4 + $0x24] sm:$0xf]
        %v1989 = vld [vmem:[%s4 + $0x28] sm:$0xf]
        %v1990 = vld [vmem:[%s4 + $0x2c] sm:$0xf]
        %v1991 = vld [vmem:[%s4 + $0x30] sm:$0xf]
        %v1992 = vld [vmem:[%s4 + $0x34] sm:$0xf]
        %v1993 = vld [vmem:[%s4 + $0x38] sm:$0xf]
        %v1994 = vld [vmem:[%s4 + $0x3c] sm:$0xf]
        %v1995 = vld [vmem:[%s4 + $0x40] sm:$0xf]
        %v1996 = vld [vmem:[%s4 + $0x44] sm:$0xf]
        %v1997 = vld [vmem:[%s4 + $0x48] sm:$0xf]
        %v1998 = vld [vmem:[%s4 + $0x4c] sm:$0xf]
        %v1999 = vld [vmem:[%s4 + $0x50] sm:$0xf]
        %v2000 = vld [vmem:[%s4 + $0x54] sm:$0xf]
        %v2001 = vld [vmem:[%s4 + $0x58] sm:$0xf]
        %v2002 = vld [vmem:[%s4 + $0x5c] sm:$0xf]
        %v2003 = vld [vmem:[%s4 + $0x60] sm:$0xf]
        %v2004 = vld [vmem:[%s4 + $0x64] sm:$0xf]
        %v2005 = vld [vmem:[%s4 + $0x68] sm:$0xf]
        %v2006 = vld [vmem:[%s4 + $0x6c] sm:$0xf]
        %v2007 = vld [vmem:[%s4 + $0x70] sm:$0xf]
        %v2008 = vld [vmem:[%s4 + $0x74] sm:$0xf]
        %v2009 = vld [vmem:[%s4 + $0x78] sm:$0xf]
        %v2010 = vld [vmem:[%s4 + $0x7c] sm:$0xf]
        %v2011 = vld [vmem:[%s4 + $0x80] sm:$0xf]
        %v2012 = vld [vmem:[%s4 + $0x84] sm:$0xf]
        %v2013 = vld [vmem:[%s4 + $0x88] sm:$0xf]
        %v2014 = vld [vmem:[%s4 + $0x8c] sm:$0xf]
        %v2015 = vld [vmem:[%s4 + $0x90] sm:$0xf]
        %v2016 = vld [vmem:[%s4 + $0x94] sm:$0xf]
        %v2017 = vld [vmem:[%s4 + $0x98] sm:$0xf]
        %v2018 = vld [vmem:[%s4 + $0x9c] sm:$0xf]
        %v2019 = vld [vmem:[%s4 + $0xa0] sm:$0xf]
        %v2020 = vld [vmem:[%s4 + $0xa4] sm:$0xf]
        %v2021 = vld [vmem:[%s4 + $0xa8] sm:$0xf]
        %v2022 = vld [vmem:[%s4 + $0xac] sm:$0xf]
        %v2023 = vld [vmem:[%s4 + $0xb0] sm:$0xf]
        %v2024 = vld [vmem:[%s4 + $0xb4] sm:$0xf]
        %v2025 = vld [vmem:[%s4 + $0xb8] sm:$0xf]
        %v2026 = vld [vmem:[%s4 + $0xbc] sm:$0xf]
        %v2027 = vld [vmem:[%s4 + $0xc0] sm:$0xf]
        %v2028 = vld [vmem:[%s4 + $0xc4] sm:$0xf]
        %v2029 = vld [vmem:[%s4 + $0xc8] sm:$0xf]
        %v2030 = vld [vmem:[%s4 + $0xcc] sm:$0xf]
        %v2031 = vld [vmem:[%s4 + $0xd0] sm:$0xf]
        %v2032 = vld [vmem:[%s4 + $0xd4] sm:$0xf]
        %v2033 = vld [vmem:[%s4 + $0xd8] sm:$0xf]
        %v2034 = vld [vmem:[%s4 + $0xdc] sm:$0xf]
        %v2035 = vld [vmem:[%s4 + $0xe0] sm:$0xf]
        %v2036 = vld [vmem:[%s4 + $0xe4] sm:$0xf]
        %v2037 = vld [vmem:[%s4 + $0xe8] sm:$0xf]
        %v2038 = vld [vmem:[%s4 + $0xec] sm:$0xf]
        %v2039 = vld [vmem:[%s4 + $0xf0] sm:$0xf]
        %v2040 = vld [vmem:[%s4 + $0xf4] sm:$0xf]
        %v2041 = vld [vmem:[%s4 + $0xf8] sm:$0xf]
        %v2042 = vld [vmem:[%s4 + $0xfc] sm:$0xf]
        %v2043 = vld [vmem:[%s4 + $0x100] sm:$0xf]
        %v2044 = vld [vmem:[%s4 + $0x104] sm:$0xf]
        %v2045 = vld [vmem:[%s4 + $0x108] sm:$0xf]
        %v2046 = vld [vmem:[%s4 + $0x10c] sm:$0xf]
        %v2047 = vld [vmem:[%s4 + $0x110] sm:$0xf]
        %v2048 = vld [vmem:[%s4 + $0x114] sm:$0xf]
        %v2049 = vld [vmem:[%s4 + $0x118] sm:$0xf]
        %v2050 = vld [vmem:[%s4 + $0x11c] sm:$0xf]
        %v2051 = vld [vmem:[%s4 + $0x120] sm:$0xf]
        %v2052 = vld [vmem:[%s4 + $0x124] sm:$0xf]
        %v2053 = vld [vmem:[%s4 + $0x128] sm:$0xf]
        %v2054 = vld [vmem:[%s4 + $0x12c] sm:$0xf]
        %v2055 = vld [vmem:[%s4 + $0x130] sm:$0xf]
        %v2056 = vld [vmem:[%s4 + $0x134] sm:$0xf]
        %v2057 = vld [vmem:[%s4 + $0x138] sm:$0xf]
        %v2058 = vld [vmem:[%s4 + $0x13c] sm:$0xf]
        %v2059 = vld [vmem:[%s4 + $0x140] sm:$0xf]
        %v2060 = vld [vmem:[%s4 + $0x144] sm:$0xf]
        %v2061 = vld [vmem:[%s4 + $0x148] sm:$0xf]
        %v2062 = vld [vmem:[%s4 + $0x14c] sm:$0xf]
        %v2063 = vld [vmem:[%s4 + $0x150] sm:$0xf]
        %v2064 = vld [vmem:[%s4 + $0x154] sm:$0xf]
        %v2065 = vld [vmem:[%s4 + $0x158] sm:$0xf]
        %v2066 = vld [vmem:[%s4 + $0x15c] sm:$0xf]
        %v2067 = vld [vmem:[%s4 + $0x160] sm:$0xf]
        %v2068 = vld [vmem:[%s4 + $0x164] sm:$0xf]
        %v2069 = vld [vmem:[%s4 + $0x168] sm:$0xf]
        %v2070 = vld [vmem:[%s4 + $0x16c] sm:$0xf]
        %v2071 = vld [vmem:[%s4 + $0x170] sm:$0xf]
        %v2072 = vld [vmem:[%s4 + $0x174] sm:$0xf]
        %v2073 = vld [vmem:[%s4 + $0x178] sm:$0xf]
        %v2074 = vld [vmem:[%s4 + $0x17c] sm:$0xf]
        %v2075 = vld [vmem:[%s4 + $0x180] sm:$0xf]
        %v2076 = vld [vmem:[%s4 + $0x184] sm:$0xf]
        %v2077 = vld [vmem:[%s4 + $0x188] sm:$0xf]
        %v2078 = vld [vmem:[%s4 + $0x18c] sm:$0xf]
        %v2079 = vld [vmem:[%s4 + $0x190] sm:$0xf]
        %v2080 = vld [vmem:[%s4 + $0x194] sm:$0xf]
        %v2081 = vld [vmem:[%s4 + $0x198] sm:$0xf]
        %v2082 = vld [vmem:[%s4 + $0x19c] sm:$0xf]
        %v2083 = vld [vmem:[%s4 + $0x1a0] sm:$0xf]
        %v2084 = vld [vmem:[%s4 + $0x1a4] sm:$0xf]
        %v2085 = vld [vmem:[%s4 + $0x1a8] sm:$0xf]
        %v2086 = vld [vmem:[%s4 + $0x1ac] sm:$0xf]
        %v2087 = vld [vmem:[%s4 + $0x1b0] sm:$0xf]
        %v2088 = vld [vmem:[%s4 + $0x1b4] sm:$0xf]
        %v2089 = vld [vmem:[%s4 + $0x1b8] sm:$0xf]
        %v2090 = vld [vmem:[%s4 + $0x1bc] sm:$0xf]
        %v2091 = vld [vmem:[%s4 + $0x1c0] sm:$0xf]
        %v2092 = vld [vmem:[%s4 + $0x1c4] sm:$0xf]
        %v2093 = vld [vmem:[%s4 + $0x1c8] sm:$0xf]
        %v2094 = vld [vmem:[%s4 + $0x1cc] sm:$0xf]
        %v2095 = vld [vmem:[%s4 + $0x1d0] sm:$0xf]
        %v2096 = vld [vmem:[%s4 + $0x1d4] sm:$0xf]
        %v2097 = vld [vmem:[%s4 + $0x1d8] sm:$0xf]
        %v2098 = vld [vmem:[%s4 + $0x1dc] sm:$0xf]
        %v2099 = vld [vmem:[%s4 + $0x1e0] sm:$0xf]
        %v2100 = vld [vmem:[%s4 + $0x1e4] sm:$0xf]
        %v2101 = vld [vmem:[%s4 + $0x1e8] sm:$0xf]
        %v2102 = vld [vmem:[%s4 + $0x1ec] sm:$0xf]
        %v2103 = vld [vmem:[%s4 + $0x1f0] sm:$0xf]
        %v2104 = vld [vmem:[%s4 + $0x1f4] sm:$0xf]
        %v2105 = vld [vmem:[%s4 + $0x1f8] sm:$0xf]
        %v2106 = vld [vmem:[%s4 + $0x1fc] sm:$0xf]
        %v2107 = vld [vmem:[%s4 + $0x200] sm:$0xf]
        %v2108 = vld [vmem:[%s4 + $0x204] sm:$0xf]
        %v2109 = vld [vmem:[%s4 + $0x208] sm:$0xf]
        %v2110 = vld [vmem:[%s4 + $0x20c] sm:$0xf]
        %v2111 = vld [vmem:[%s4 + $0x210] sm:$0xf]
        %v2112 = vld [vmem:[%s4 + $0x214] sm:$0xf]
        %v2113 = vld [vmem:[%s4 + $0x218] sm:$0xf]
        %v2114 = vld [vmem:[%s4 + $0x21c] sm:$0xf]
        %v2115 = vld [vmem:[%s4 + $0x220] sm:$0xf]
        %v2116 = vld [vmem:[%s4 + $0x224] sm:$0xf]
        %v2117 = vld [vmem:[%s4 + $0x228] sm:$0xf]
        %v2118 = vld [vmem:[%s4 + $0x22c] sm:$0xf]
        %v2119 = vld [vmem:[%s4 + $0x230] sm:$0xf]
        %v2120 = vld [vmem:[%s4 + $0x234] sm:$0xf]
        %v2121 = vld [vmem:[%s4 + $0x238] sm:$0xf]
        %v2122 = vld [vmem:[%s4 + $0x23c] sm:$0xf]
        %v2267 = vunpack.c.l.b16 %v1979
        %v2268 = vunpack.c.l.b16 %v1980
        %v2269 = vunpack.c.l.b16 %v1981
        %v2270 = vunpack.c.l.b16 %v1982
        %v2271 = vunpack.c.l.b16 %v1983
        %v2272 = vunpack.c.l.b16 %v1984
        %v2273 = vunpack.c.l.b16 %v1985
        %v2274 = vunpack.c.l.b16 %v1986
        %v2275 = vunpack.c.l.b16 %v1987
        %v2276 = vunpack.c.l.b16 %v1988
        %v2277 = vunpack.c.l.b16 %v1989
        %v2278 = vunpack.c.l.b16 %v1990
        %v2279 = vunpack.c.l.b16 %v1991
        %v2280 = vunpack.c.l.b16 %v1992
        %v2281 = vunpack.c.l.b16 %v1993
        %v2282 = vunpack.c.l.b16 %v1994
        %v2283 = vunpack.c.l.b16 %v1995
        %v2284 = vunpack.c.l.b16 %v1996
        %v2285 = vunpack.c.l.b16 %v1997
        %v2286 = vunpack.c.l.b16 %v1998
        %v2287 = vunpack.c.l.b16 %v1999
        %v2288 = vunpack.c.l.b16 %v2000
        %v2289 = vunpack.c.l.b16 %v2001
        %v2290 = vunpack.c.l.b16 %v2002
        %v2291 = vunpack.c.l.b16 %v2003
        %v2292 = vunpack.c.l.b16 %v2004
        %v2293 = vunpack.c.l.b16 %v2005
        %v2294 = vunpack.c.l.b16 %v2006
        %v2295 = vunpack.c.l.b16 %v2007
        %v2296 = vunpack.c.l.b16 %v2008
        %v2297 = vunpack.c.l.b16 %v2009
        %v2298 = vunpack.c.l.b16 %v2010
        %v2299 = vunpack.c.l.b16 %v2011
        %v2300 = vunpack.c.l.b16 %v2012
        %v2301 = vunpack.c.l.b16 %v2013
        %v2302 = vunpack.c.l.b16 %v2014
        %v2303 = vunpack.c.l.b16 %v2015
        %v2304 = vunpack.c.l.b16 %v2016
        %v2305 = vunpack.c.l.b16 %v2017
        %v2306 = vunpack.c.l.b16 %v2018
        %v2307 = vunpack.c.l.b16 %v2019
        %v2308 = vunpack.c.l.b16 %v2020
        %v2309 = vunpack.c.l.b16 %v2021
        %v2310 = vunpack.c.l.b16 %v2022
        %v2311 = vunpack.c.l.b16 %v2023
        %v2312 = vunpack.c.l.b16 %v2024
        %v2313 = vunpack.c.l.b16 %v2025
        %v2314 = vunpack.c.l.b16 %v2026
        %v2315 = vunpack.c.l.b16 %v2027
        %v2316 = vunpack.c.l.b16 %v2028
        %v2317 = vunpack.c.l.b16 %v2029
        %v2318 = vunpack.c.l.b16 %v2030
        %v2319 = vunpack.c.l.b16 %v2031
        %v2320 = vunpack.c.l.b16 %v2032
        %v2321 = vunpack.c.l.b16 %v2033
        %v2322 = vunpack.c.l.b16 %v2034
        %v2323 = vunpack.c.l.b16 %v2035
        %v2324 = vunpack.c.l.b16 %v2036
        %v2325 = vunpack.c.l.b16 %v2037
        %v2326 = vunpack.c.l.b16 %v2038
        %v2327 = vunpack.c.l.b16 %v2039
        %v2328 = vunpack.c.l.b16 %v2040
        %v2329 = vunpack.c.l.b16 %v2041
        %v2330 = vunpack.c.l.b16 %v2042
        %v2331 = vunpack.c.l.b16 %v2043
        %v2332 = vunpack.c.l.b16 %v2044
        %v2333 = vunpack.c.l.b16 %v2045
        %v2334 = vunpack.c.l.b16 %v2046
        %v2335 = vunpack.c.l.b16 %v2047
        %v2336 = vunpack.c.l.b16 %v2048
        %v2337 = vunpack.c.l.b16 %v2049
        %v2338 = vunpack.c.l.b16 %v2050
        %v2339 = vunpack.c.l.b16 %v2051
        %v2340 = vunpack.c.l.b16 %v2052
        %v2341 = vunpack.c.l.b16 %v2053
        %v2342 = vunpack.c.l.b16 %v2054
        %v2343 = vunpack.c.l.b16 %v2055
        %v2344 = vunpack.c.l.b16 %v2056
        %v2345 = vunpack.c.l.b16 %v2057
        %v2346 = vunpack.c.l.b16 %v2058
        %v2347 = vunpack.c.l.b16 %v2059
        %v2348 = vunpack.c.l.b16 %v2060
        %v2349 = vunpack.c.l.b16 %v2061
        %v2350 = vunpack.c.l.b16 %v2062
        %v2351 = vunpack.c.l.b16 %v2063
        %v2352 = vunpack.c.l.b16 %v2064
        %v2353 = vunpack.c.l.b16 %v2065
        %v2354 = vunpack.c.l.b16 %v2066
        %v2355 = vunpack.c.l.b16 %v2067
        %v2356 = vunpack.c.l.b16 %v2068
        %v2357 = vunpack.c.l.b16 %v2069
        %v2358 = vunpack.c.l.b16 %v2070
        %v2359 = vunpack.c.l.b16 %v2071
        %v2360 = vunpack.c.l.b16 %v2072
        %v2361 = vunpack.c.l.b16 %v2073
        %v2362 = vunpack.c.l.b16 %v2074
        %v2363 = vunpack.c.l.b16 %v2075
        %v2364 = vunpack.c.l.b16 %v2076
        %v2365 = vunpack.c.l.b16 %v2077
        %v2366 = vunpack.c.l.b16 %v2078
        %v2367 = vunpack.c.l.b16 %v2079
        %v2368 = vunpack.c.l.b16 %v2080
        %v2369 = vunpack.c.l.b16 %v2081
        %v2370 = vunpack.c.l.b16 %v2082
        %v2371 = vunpack.c.l.b16 %v2083
        %v2372 = vunpack.c.l.b16 %v2084
        %v2373 = vunpack.c.l.b16 %v2085
        %v2374 = vunpack.c.l.b16 %v2086
        %v2375 = vunpack.c.l.b16 %v2087
        %v2376 = vunpack.c.l.b16 %v2088
        %v2377 = vunpack.c.l.b16 %v2089
        %v2378 = vunpack.c.l.b16 %v2090
        %v2379 = vunpack.c.l.b16 %v2091
        %v2380 = vunpack.c.l.b16 %v2092
        %v2381 = vunpack.c.l.b16 %v2093
        %v2382 = vunpack.c.l.b16 %v2094
        %v2383 = vunpack.c.l.b16 %v2095
        %v2384 = vunpack.c.l.b16 %v2096
        %v2385 = vunpack.c.l.b16 %v2097
        %v2386 = vunpack.c.l.b16 %v2098
        %v2387 = vunpack.c.l.b16 %v2099
        %v2388 = vunpack.c.l.b16 %v2100
        %v2389 = vunpack.c.l.b16 %v2101
        %v2390 = vunpack.c.l.b16 %v2102
        %v2391 = vunpack.c.l.b16 %v2103
        %v2392 = vunpack.c.l.b16 %v2104
        %v2393 = vunpack.c.l.b16 %v2105
        %v2394 = vunpack.c.l.b16 %v2106
        %v2395 = vunpack.c.l.b16 %v2107
        %v2396 = vunpack.c.l.b16 %v2108
        %v2397 = vunpack.c.l.b16 %v2109
        %v2398 = vunpack.c.l.b16 %v2110
        %v2399 = vunpack.c.l.b16 %v2111
        %v2400 = vunpack.c.l.b16 %v2112
        %v2401 = vunpack.c.l.b16 %v2113
        %v2402 = vunpack.c.l.b16 %v2114
        %v2403 = vunpack.c.l.b16 %v2115
        %v2404 = vunpack.c.l.b16 %v2116
        %v2405 = vunpack.c.l.b16 %v2117
        %v2406 = vunpack.c.l.b16 %v2118
        %v2407 = vunpack.c.l.b16 %v2119
        %v2408 = vunpack.c.l.b16 %v2120
        %v2409 = vunpack.c.l.b16 %v2121
        %v2410 = vunpack.c.l.b16 %v2122
        %v2411 = vpack.c.b16 %v2268, %v2267
        %v2412 = vpack.c.b16 %v2270, %v2269
        %v2413 = vpack.c.b16 %v2272, %v2271
        %v2414 = vpack.c.b16 %v2274, %v2273
        %v2415 = vpack.c.b16 %v2276, %v2275
        %v2416 = vpack.c.b16 %v2278, %v2277
        %v2417 = vpack.c.b16 %v2280, %v2279
        %v2418 = vpack.c.b16 %v2282, %v2281
        %v2419 = vpack.c.b16 %v2284, %v2283
        %v2420 = vpack.c.b16 %v2286, %v2285
        %v2421 = vpack.c.b16 %v2288, %v2287
        %v2422 = vpack.c.b16 %v2290, %v2289
        %v2423 = vpack.c.b16 %v2292, %v2291
        %v2424 = vpack.c.b16 %v2294, %v2293
        %v2425 = vpack.c.b16 %v2296, %v2295
        %v2426 = vpack.c.b16 %v2298, %v2297
        %v2427 = vpack.c.b16 %v2300, %v2299
        %v2428 = vpack.c.b16 %v2302, %v2301
        %v2429 = vpack.c.b16 %v2304, %v2303
        %v2430 = vpack.c.b16 %v2306, %v2305
        %v2431 = vpack.c.b16 %v2308, %v2307
        %v2432 = vpack.c.b16 %v2310, %v2309
        %v2433 = vpack.c.b16 %v2312, %v2311
        %v2434 = vpack.c.b16 %v2314, %v2313
        %v2435 = vpack.c.b16 %v2316, %v2315
        %v2436 = vpack.c.b16 %v2318, %v2317
        %v2437 = vpack.c.b16 %v2320, %v2319
        %v2438 = vpack.c.b16 %v2322, %v2321
        %v2439 = vpack.c.b16 %v2324, %v2323
        %v2440 = vpack.c.b16 %v2326, %v2325
        %v2441 = vpack.c.b16 %v2328, %v2327
        %v2442 = vpack.c.b16 %v2330, %v2329
        %v2443 = vpack.c.b16 %v2332, %v2331
        %v2444 = vpack.c.b16 %v2334, %v2333
        %v2445 = vpack.c.b16 %v2336, %v2335
        %v2446 = vpack.c.b16 %v2338, %v2337
        %v2447 = vpack.c.b16 %v2340, %v2339
        %v2448 = vpack.c.b16 %v2342, %v2341
        %v2449 = vpack.c.b16 %v2344, %v2343
        %v2450 = vpack.c.b16 %v2346, %v2345
        %v2451 = vpack.c.b16 %v2348, %v2347
        %v2452 = vpack.c.b16 %v2350, %v2349
        %v2453 = vpack.c.b16 %v2352, %v2351
        %v2454 = vpack.c.b16 %v2354, %v2353
        %v2455 = vpack.c.b16 %v2356, %v2355
        %v2456 = vpack.c.b16 %v2358, %v2357
        %v2457 = vpack.c.b16 %v2360, %v2359
        %v2458 = vpack.c.b16 %v2362, %v2361
        %v2459 = vpack.c.b16 %v2364, %v2363
        %v2460 = vpack.c.b16 %v2366, %v2365
        %v2461 = vpack.c.b16 %v2368, %v2367
        %v2462 = vpack.c.b16 %v2370, %v2369
        %v2463 = vpack.c.b16 %v2372, %v2371
        %v2464 = vpack.c.b16 %v2374, %v2373
        %v2465 = vpack.c.b16 %v2376, %v2375
        %v2466 = vpack.c.b16 %v2378, %v2377
        %v2467 = vpack.c.b16 %v2380, %v2379
        %v2468 = vpack.c.b16 %v2382, %v2381
        %v2469 = vpack.c.b16 %v2384, %v2383
        %v2470 = vpack.c.b16 %v2386, %v2385
        %v2471 = vpack.c.b16 %v2388, %v2387
        %v2472 = vpack.c.b16 %v2390, %v2389
        %v2473 = vpack.c.b16 %v2392, %v2391
        %v2474 = vpack.c.b16 %v2394, %v2393
        %v2475 = vpack.c.b16 %v2396, %v2395
        %v2476 = vpack.c.b16 %v2398, %v2397
        %v2477 = vpack.c.b16 %v2400, %v2399
        %v2478 = vpack.c.b16 %v2402, %v2401
        %v2479 = vpack.c.b16 %v2404, %v2403
        %v2480 = vpack.c.b16 %v2406, %v2405
        %v2481 = vpack.c.b16 %v2408, %v2407
        %v2482 = vpack.c.b16 %v2410, %v2409
        %2555 = vmatprep.subr.bf16.mxu0 0
        %2556 = vmatpush1.bf16.msra.mxu0 %v2411
        %2557 = vmatprep.subr.bf16.mxu0 0
        %2558 = vmatpush1.bf16.msra.mxu0 %v2412
        %2559 = vmatprep.subr.bf16.mxu0 0
        %2560 = vmatpush1.bf16.msra.mxu0 %v2413
        %2561 = vmatprep.subr.bf16.mxu0 0
        %2562 = vmatpush1.bf16.msra.mxu0 %v2414
        %2563 = vmatprep.subr.bf16.mxu0 0
        %2564 = vmatpush1.bf16.msra.mxu0 %v2415
        %2565 = vmatprep.subr.bf16.mxu0 0
        %2566 = vmatpush1.bf16.msra.mxu0 %v2416
        %2567 = vmatprep.subr.bf16.mxu0 0
        %2568 = vmatpush1.bf16.msra.mxu0 %v2417
        %2569 = vmatprep.subr.bf16.mxu0 0
        %2570 = vmatpush1.bf16.msra.mxu0 %v2418
        %2571 = vmatprep.subr.bf16.mxu0 0
        %2572 = vmatpush1.bf16.msra.mxu0 %v2419
        %2573 = vmatprep.subr.bf16.mxu0 0
        %2574 = vmatpush1.bf16.msra.mxu0 %v2420
        %2575 = vmatprep.subr.bf16.mxu0 0
        %2576 = vmatpush1.bf16.msra.mxu0 %v2421
        %2577 = vmatprep.subr.bf16.mxu0 0
        %2578 = vmatpush1.bf16.msra.mxu0 %v2422
        %2579 = vmatprep.subr.bf16.mxu0 0
        %2580 = vmatpush1.bf16.msra.mxu0 %v2423
        %2581 = vmatprep.subr.bf16.mxu0 0
        %2582 = vmatpush1.bf16.msra.mxu0 %v2424
        %2583 = vmatprep.subr.bf16.mxu0 0
        %2584 = vmatpush1.bf16.msra.mxu0 %v2425
        %2585 = vmatprep.subr.bf16.mxu0 0
        %2586 = vmatpush1.bf16.msra.mxu0 %v2426
        %2587 = vmatprep.mubr.bf16.mxu0 %v1971
        %2588 = vmatmul.mubr.bf16.gmra.mrb[0].mxu0 %v1970
        %v2589 = vpop.f32.mrb[0].mxu0
        %v2590 = vadd.f32 0.0, %v2589
        %v2591 = vpop.f32.mrb[0].mxu0
        %v2592 = vpop.f32.mrb[0].mxu0
        %v2593 = vpop.f32.mrb[0].mxu0
        %2594 = vdwg.mxu0
        %2595 = vmatprep.subr.bf16.mxu0 0
        %2596 = vmatpush1.bf16.msra.mxu0 %v2427
        %2597 = vmatprep.subr.bf16.mxu0 0
        %2598 = vmatpush1.bf16.msra.mxu0 %v2428
        %2599 = vmatprep.subr.bf16.mxu0 0
        %2600 = vmatpush1.bf16.msra.mxu0 %v2429
        %2601 = vmatprep.subr.bf16.mxu0 0
        %2602 = vmatpush1.bf16.msra.mxu0 %v2430
        %2603 = vmatprep.subr.bf16.mxu0 0
        %2604 = vmatpush1.bf16.msra.mxu0 %v2431
        %2605 = vmatprep.subr.bf16.mxu0 0
        %2606 = vmatpush1.bf16.msra.mxu0 %v2432
        %2607 = vmatprep.subr.bf16.mxu0 0
        %2608 = vmatpush1.bf16.msra.mxu0 %v2433
        %2609 = vmatprep.subr.bf16.mxu0 0
        %2610 = vmatpush1.bf16.msra.mxu0 %v2434
        %2611 = vmatprep.subr.bf16.mxu0 0
        %2612 = vmatpush1.bf16.msra.mxu0 %v2435
        %2613 = vmatprep.subr.bf16.mxu0 0
        %2614 = vmatpush1.bf16.msra.mxu0 %v2436
        %2615 = vmatprep.subr.bf16.mxu0 0
        %2616 = vmatpush1.bf16.msra.mxu0 %v2437
        %2617 = vmatprep.subr.bf16.mxu0 0
        %2618 = vmatpush1.bf16.msra.mxu0 %v2438
        %2619 = vmatprep.subr.bf16.mxu0 0
        %2620 = vmatpush1.bf16.msra.mxu0 %v2439
        %2621 = vmatprep.subr.bf16.mxu0 0
        %2622 = vmatpush1.bf16.msra.mxu0 %v2440
        %2623 = vmatprep.subr.bf16.mxu0 0
        %2624 = vmatpush1.bf16.msra.mxu0 %v2441
        %2625 = vmatprep.subr.bf16.mxu0 0
        %2626 = vmatpush1.bf16.msra.mxu0 %v2442
        %2627 = vmatprep.mubr.bf16.mxu0 %v1973
        %2628 = vmatmul.mubr.bf16.gmra.mrb[0].mxu0 %v1972
        %v2629 = vpop.f32.mrb[0].mxu0
        %v2630 = vadd.f32 %v2590, %v2629
        %v2631 = vpop.f32.mrb[0].mxu0
        %v2632 = vpop.f32.mrb[0].mxu0
        %v2633 = vpop.f32.mrb[0].mxu0
        %2634 = vdwg.mxu0
        %2635 = vmatprep.subr.bf16.mxu0 0
        %2636 = vmatpush1.bf16.msra.mxu0 %v2443
        %2637 = vmatprep.subr.bf16.mxu0 0
        %2638 = vmatpush1.bf16.msra.mxu0 %v2444
        %2639 = vmatprep.subr.bf16.mxu0 0
        %2640 = vmatpush1.bf16.msra.mxu0 %v2445
        %2641 = vmatprep.subr.bf16.mxu0 0
        %2642 = vmatpush1.bf16.msra.mxu0 %v2446
        %2643 = vmatprep.subr.bf16.mxu0 0
        %2644 = vmatpush1.bf16.msra.mxu0 %v2447
        %2645 = vmatprep.subr.bf16.mxu0 0
        %2646 = vmatpush1.bf16.msra.mxu0 %v2448
        %2647 = vmatprep.subr.bf16.mxu0 0
        %2648 = vmatpush1.bf16.msra.mxu0 %v2449
        %2649 = vmatprep.subr.bf16.mxu0 0
        %2650 = vmatpush1.bf16.msra.mxu0 %v2450
        %2651 = vmatprep.subr.bf16.mxu0 0
        %2652 = vmatpush1.bf16.msra.mxu0 %v2451
        %2653 = vmatprep.subr.bf16.mxu0 0
        %2654 = vmatpush1.bf16.msra.mxu0 %v2452
        %2655 = vmatprep.subr.bf16.mxu0 0
        %2656 = vmatpush1.bf16.msra.mxu0 %v2453
        %2657 = vmatprep.subr.bf16.mxu0 0
        %2658 = vmatpush1.bf16.msra.mxu0 %v2454
        %2659 = vmatprep.subr.bf16.mxu0 0
        %2660 = vmatpush1.bf16.msra.mxu0 %v2455
        %2661 = vmatprep.subr.bf16.mxu0 0
        %2662 = vmatpush1.bf16.msra.mxu0 %v2456
        %2663 = vmatprep.subr.bf16.mxu0 0
        %2664 = vmatpush1.bf16.msra.mxu0 %v2457
        %2665 = vmatprep.subr.bf16.mxu0 0
        %2666 = vmatpush1.bf16.msra.mxu0 %v2458
        %2667 = vmatprep.mubr.bf16.mxu0 %v1975
        %2668 = vmatmul.mubr.bf16.gmra.mrb[0].mxu0 %v1974
        %v2669 = vpop.f32.mrb[0].mxu0
        %v2670 = vadd.f32 %v2630, %v2669
        %v2671 = vpop.f32.mrb[0].mxu0
        %v2672 = vpop.f32.mrb[0].mxu0
        %v2673 = vpop.f32.mrb[0].mxu0
        %2674 = vdwg.mxu0
        %2675 = vmatprep.subr.bf16.mxu0 0
        %2676 = vmatpush1.bf16.msra.mxu0 %v2459
        %2677 = vmatprep.subr.bf16.mxu0 0
        %2678 = vmatpush1.bf16.msra.mxu0 %v2460
        %2679 = vmatprep.subr.bf16.mxu0 0
        %2680 = vmatpush1.bf16.msra.mxu0 %v2461
        %2681 = vmatprep.subr.bf16.mxu0 0
        %2682 = vmatpush1.bf16.msra.mxu0 %v2462
        %2683 = vmatprep.subr.bf16.mxu0 0
        %2684 = vmatpush1.bf16.msra.mxu0 %v2463
        %2685 = vmatprep.subr.bf16.mxu0 0
        %2686 = vmatpush1.bf16.msra.mxu0 %v2464
        %2687 = vmatprep.subr.bf16.mxu0 0
        %2688 = vmatpush1.bf16.msra.mxu0 %v2465
        %2689 = vmatprep.subr.bf16.mxu0 0
        %2690 = vmatpush1.bf16.msra.mxu0 %v2466
        %2691 = vmatprep.subr.bf16.mxu0 0
        %2692 = vmatpush1.bf16.msra.mxu0 %v2467
        %2693 = vmatprep.subr.bf16.mxu0 0
        %2694 = vmatpush1.bf16.msra.mxu0 %v2468
        %2695 = vmatprep.subr.bf16.mxu0 0
        %2696 = vmatpush1.bf16.msra.mxu0 %v2469
        %2697 = vmatprep.subr.bf16.mxu0 0
        %2698 = vmatpush1.bf16.msra.mxu0 %v2470
        %2699 = vmatprep.subr.bf16.mxu0 0
        %2700 = vmatpush1.bf16.msra.mxu0 %v2471
        %2701 = vmatprep.subr.bf16.mxu0 0
        %2702 = vmatpush1.bf16.msra.mxu0 %v2472
        %2703 = vmatprep.subr.bf16.mxu0 0
        %2704 = vmatpush1.bf16.msra.mxu0 %v2473
        %2705 = vmatprep.subr.bf16.mxu0 0
        %2706 = vmatpush1.bf16.msra.mxu0 %v2474
        %2707 = vmatprep.mubr.bf16.mxu0 %v1977
        %2708 = vmatmul.mubr.bf16.gmra.mrb[0].mxu0 %v1976
        %v2709 = vpop.f32.mrb[0].mxu0
        %v2710 = vadd.f32 %v2670, %v2709
        %v2711 = vpop.f32.mrb[0].mxu0
        %v2712 = vpop.f32.mrb[0].mxu0
        %v2713 = vpop.f32.mrb[0].mxu0
        %2714 = vdwg.mxu0
        %2715 = vmatprep.subr.bf16.mxu0 0
        %2716 = vmatpush1.bf16.msra.mxu0 %v2475
        %2717 = vmatprep.subr.bf16.mxu0 0
        %2718 = vmatpush1.bf16.msra.mxu0 %v2476
        %2719 = vmatprep.subr.bf16.mxu0 0
        %2720 = vmatpush1.bf16.msra.mxu0 %v2477
        %2721 = vmatprep.subr.bf16.mxu0 0
        %2722 = vmatpush1.bf16.msra.mxu0 %v2478
        %2723 = vmatprep.subr.bf16.mxu0 0
        %2724 = vmatpush1.bf16.msra.mxu0 %v2479
        %2725 = vmatprep.subr.bf16.mxu0 0
        %2726 = vmatpush1.bf16.msra.mxu0 %v2480
        %2727 = vmatprep.subr.bf16.mxu0 0
        %2728 = vmatpush1.bf16.msra.mxu0 %v2481
        %2729 = vmatprep.subr.bf16.mxu0 0
        %2730 = vmatpush1.bf16.msra.mxu0 %v2482
        %2731 = vmatprep.subr.bf16.mxu0 0
        %2732 = vmatpush1.bf16.msra.mxu0 0
        %2733 = vmatprep.subr.bf16.mxu0 0
        %2734 = vmatpush1.bf16.msra.mxu0 0
        %2735 = vmatprep.subr.bf16.mxu0 0
        %2736 = vmatpush1.bf16.msra.mxu0 0
        %2737 = vmatprep.subr.bf16.mxu0 0
        %2738 = vmatpush1.bf16.msra.mxu0 0
        %2739 = vmatprep.subr.bf16.mxu0 0
        %2740 = vmatpush1.bf16.msra.mxu0 0
        %2741 = vmatprep.subr.bf16.mxu0 0
        %2742 = vmatpush1.bf16.msra.mxu0 0
        %2743 = vmatprep.subr.bf16.mxu0 0
        %2744 = vmatpush1.bf16.msra.mxu0 0
        %2745 = vmatprep.subr.bf16.mxu0 0
        %2746 = vmatpush1.bf16.msra.mxu0 0
        %2747 = vmatprep.mubr.bf16.mxu0 0
        %2748 = vmatmul.mubr.bf16.gmra.mrb[0].mxu0 %v1978
        %v2749 = vpop.f32.mrb[0].mxu0
        %v2750 = vadd.f32 %v2710, %v2749
        %v2751 = vpop.f32.mrb[0].mxu0
        %v2752 = vpop.f32.mrb[0].mxu0
        %v2753 = vpop.f32.mrb[0].mxu0
        %2754 = vdwg.mxu0
        %2755 = vst [vmem:[%s286] sm:$0xf] %v2750
        %v2756 = vlaneseq
        %vm2757 = vcmp.ge.s32.totalorder %v2756, 0
        %vm2758 = vcmp.lt.s32.totalorder %v2756, 128
        %vm2759 = vmand %vm2757, %vm2758
        %2760 = vst.msk [vmem:[#allocation5] sm:$0x1] %vm2759, %v1885
        %v2763 = vunpack.c.l.s4 1966171168
        %v2764 = vunpack.c.0.s8 %v2763
        %v2765 = vlaneseq
        %v2766 = vshrl.u32 %v2765, 7
        %v2767 = vsub.s32 %v2764, %v2766
        %v2768 = vrot.slane %v1885, %v2767
        %v2769 = vcombine.high %v2768, %v2768
        %v2771 = vunpack.c.l.s4 1966171168
        %v2772 = vunpack.c.0.s8 %v2771
        %v2773 = vlaneseq
        %v2774 = vshrl.u32 %v2773, 7
        %v2775 = vsub.s32 %v2772, %v2774
        %v2776 = vrot.slane %v2768, %v2775
        %v2778 = vunpack.c.l.s4 1966171168
        %v2779 = vunpack.c.0.s8 %v2778
        %v2780 = vlaneseq
        %v2781 = vshrl.u32 %v2780, 7
        %v2782 = vsub.s32 %v2779, %v2781
        %v2783 = vrot.slane %v2769, %v2782
        %2785 = vst.msk [vmem:[#allocation5 + $0x1] sm:$0x1] %vm2759, %v2783
        %v2786 = vcombine.high %v2776, %v2776
        %2788 = vst.msk [vmem:[#allocation5 + $0x2] sm:$0x1] %vm2759, %v2786
        %v2789 = vcombine.high %v2783, %v2783
        %2791 = vst.msk [vmem:[#allocation5 + $0x3] sm:$0x1] %vm2759, %v2789
        %v2792 = vld [vmem:[#allocation5] sm:$0xf]
        %v2794 = vlaneseq
        %v2795 = vshrl.u32 %v2794, 7
        %v2796 = vsub.s32 0, %v2795
        %v2797 = vrot.slane %v2792, %v2796
        %v2798 = vlaneseq
        %v2799 = vshrl.u32 %v2798, 7
        %v2800 = vsub.s32 1, %v2799
        %v2801 = vrot.slane %v2792, %v2800
        %v2802 = vlaneseq
        %v2803 = vshrl.u32 %v2802, 7
        %v2804 = vsub.s32 2, %v2803
        %v2805 = vrot.slane %v2792, %v2804
        %v2806 = vlaneseq
        %v2807 = vshrl.u32 %v2806, 7
        %v2808 = vsub.s32 3, %v2807
        %v2809 = vrot.slane %v2792, %v2808
        %v2814 = vpack.c.bf16 %v2797, %v2797
        %v2815 = vpack.c.bf16 %v2801, %v2801
        %v2816 = vpack.c.bf16 %v2805, %v2805
        %v2817 = vpack.c.bf16 %v2809, %v2809
        %v2818 = vld [vmem:[%s5] sm:$0xf]
        %v2819 = vld [vmem:[%s5 + $0x4] sm:$0xf]
        %v2820 = vld [vmem:[%s5 + $0x8] sm:$0xf]
        %v2821 = vld [vmem:[%s5 + $0xc] sm:$0xf]
        %v2822 = vld [vmem:[%s5 + $0x10] sm:$0xf]
        %v2823 = vld [vmem:[%s5 + $0x14] sm:$0xf]
        %v2824 = vld [vmem:[%s5 + $0x18] sm:$0xf]
        %v2825 = vld [vmem:[%s5 + $0x1c] sm:$0xf]
        %v2826 = vld [vmem:[%s5 + $0x20] sm:$0xf]
        %v2827 = vld [vmem:[%s5 + $0x24] sm:$0xf]
        %v2828 = vld [vmem:[%s5 + $0x28] sm:$0xf]
        %v2829 = vld [vmem:[%s5 + $0x2c] sm:$0xf]
        %v2830 = vld [vmem:[%s5 + $0x30] sm:$0xf]
        %v2831 = vld [vmem:[%s5 + $0x34] sm:$0xf]
        %v2832 = vld [vmem:[%s5 + $0x38] sm:$0xf]
        %v2833 = vld [vmem:[%s5 + $0x3c] sm:$0xf]
        %v2834 = vld [vmem:[%s5 + $0x40] sm:$0xf]
        %v2835 = vld [vmem:[%s5 + $0x44] sm:$0xf]
        %v2836 = vld [vmem:[%s5 + $0x48] sm:$0xf]
        %v2837 = vld [vmem:[%s5 + $0x4c] sm:$0xf]
        %v2838 = vld [vmem:[%s5 + $0x50] sm:$0xf]
        %v2839 = vld [vmem:[%s5 + $0x54] sm:$0xf]
        %v2840 = vld [vmem:[%s5 + $0x58] sm:$0xf]
        %v2841 = vld [vmem:[%s5 + $0x5c] sm:$0xf]
        %v2842 = vld [vmem:[%s5 + $0x60] sm:$0xf]
        %v2843 = vld [vmem:[%s5 + $0x64] sm:$0xf]
        %v2844 = vld [vmem:[%s5 + $0x68] sm:$0xf]
        %v2845 = vld [vmem:[%s5 + $0x6c] sm:$0xf]
        %v2846 = vld [vmem:[%s5 + $0x70] sm:$0xf]
        %v2847 = vld [vmem:[%s5 + $0x74] sm:$0xf]
        %v2848 = vld [vmem:[%s5 + $0x78] sm:$0xf]
        %v2849 = vld [vmem:[%s5 + $0x7c] sm:$0xf]
        %v2850 = vld [vmem:[%s5 + $0x80] sm:$0xf]
        %v2851 = vld [vmem:[%s5 + $0x84] sm:$0xf]
        %v2852 = vld [vmem:[%s5 + $0x88] sm:$0xf]
        %v2853 = vld [vmem:[%s5 + $0x8c] sm:$0xf]
        %v2854 = vld [vmem:[%s5 + $0x90] sm:$0xf]
        %v2855 = vld [vmem:[%s5 + $0x94] sm:$0xf]
        %v2856 = vld [vmem:[%s5 + $0x98] sm:$0xf]
        %v2857 = vld [vmem:[%s5 + $0x9c] sm:$0xf]
        %v2858 = vld [vmem:[%s5 + $0xa0] sm:$0xf]
        %v2859 = vld [vmem:[%s5 + $0xa4] sm:$0xf]
        %v2860 = vld [vmem:[%s5 + $0xa8] sm:$0xf]
        %v2861 = vld [vmem:[%s5 + $0xac] sm:$0xf]
        %v2862 = vld [vmem:[%s5 + $0xb0] sm:$0xf]
        %v2863 = vld [vmem:[%s5 + $0xb4] sm:$0xf]
        %v2864 = vld [vmem:[%s5 + $0xb8] sm:$0xf]
        %v2865 = vld [vmem:[%s5 + $0xbc] sm:$0xf]
        %v2866 = vld [vmem:[%s5 + $0xc0] sm:$0xf]
        %v2867 = vld [vmem:[%s5 + $0xc4] sm:$0xf]
        %v2868 = vld [vmem:[%s5 + $0xc8] sm:$0xf]
        %v2869 = vld [vmem:[%s5 + $0xcc] sm:$0xf]
        %v2870 = vld [vmem:[%s5 + $0xd0] sm:$0xf]
        %v2871 = vld [vmem:[%s5 + $0xd4] sm:$0xf]
        %v2872 = vld [vmem:[%s5 + $0xd8] sm:$0xf]
        %v2873 = vld [vmem:[%s5 + $0xdc] sm:$0xf]
        %v2874 = vld [vmem:[%s5 + $0xe0] sm:$0xf]
        %v2875 = vld [vmem:[%s5 + $0xe4] sm:$0xf]
        %v2876 = vld [vmem:[%s5 + $0xe8] sm:$0xf]
        %v2877 = vld [vmem:[%s5 + $0xec] sm:$0xf]
        %v2878 = vld [vmem:[%s5 + $0xf0] sm:$0xf]
        %v2879 = vld [vmem:[%s5 + $0xf4] sm:$0xf]
        %v2880 = vld [vmem:[%s5 + $0xf8] sm:$0xf]
        %v2881 = vld [vmem:[%s5 + $0xfc] sm:$0xf]
        %v2946 = vunpack.c.l.b16 %v2818
        %v2947 = vunpack.c.l.b16 %v2819
        %v2948 = vunpack.c.l.b16 %v2820
        %v2949 = vunpack.c.l.b16 %v2821
        %v2950 = vunpack.c.l.b16 %v2822
        %v2951 = vunpack.c.l.b16 %v2823
        %v2952 = vunpack.c.l.b16 %v2824
        %v2953 = vunpack.c.l.b16 %v2825
        %v2954 = vunpack.c.l.b16 %v2826
        %v2955 = vunpack.c.l.b16 %v2827
        %v2956 = vunpack.c.l.b16 %v2828
        %v2957 = vunpack.c.l.b16 %v2829
        %v2958 = vunpack.c.l.b16 %v2830
        %v2959 = vunpack.c.l.b16 %v2831
        %v2960 = vunpack.c.l.b16 %v2832
        %v2961 = vunpack.c.l.b16 %v2833
        %v2962 = vunpack.c.l.b16 %v2834
        %v2963 = vunpack.c.l.b16 %v2835
        %v2964 = vunpack.c.l.b16 %v2836
        %v2965 = vunpack.c.l.b16 %v2837
        %v2966 = vunpack.c.l.b16 %v2838
        %v2967 = vunpack.c.l.b16 %v2839
        %v2968 = vunpack.c.l.b16 %v2840
        %v2969 = vunpack.c.l.b16 %v2841
        %v2970 = vunpack.c.l.b16 %v2842
        %v2971 = vunpack.c.l.b16 %v2843
        %v2972 = vunpack.c.l.b16 %v2844
        %v2973 = vunpack.c.l.b16 %v2845
        %v2974 = vunpack.c.l.b16 %v2846
        %v2975 = vunpack.c.l.b16 %v2847
        %v2976 = vunpack.c.l.b16 %v2848
        %v2977 = vunpack.c.l.b16 %v2849
        %v2978 = vunpack.c.l.b16 %v2850
        %v2979 = vunpack.c.l.b16 %v2851
        %v2980 = vunpack.c.l.b16 %v2852
        %v2981 = vunpack.c.l.b16 %v2853
        %v2982 = vunpack.c.l.b16 %v2854
        %v2983 = vunpack.c.l.b16 %v2855
        %v2984 = vunpack.c.l.b16 %v2856
        %v2985 = vunpack.c.l.b16 %v2857
        %v2986 = vunpack.c.l.b16 %v2858
        %v2987 = vunpack.c.l.b16 %v2859
        %v2988 = vunpack.c.l.b16 %v2860
        %v2989 = vunpack.c.l.b16 %v2861
        %v2990 = vunpack.c.l.b16 %v2862
        %v2991 = vunpack.c.l.b16 %v2863
        %v2992 = vunpack.c.l.b16 %v2864
        %v2993 = vunpack.c.l.b16 %v2865
        %v2994 = vunpack.c.l.b16 %v2866
        %v2995 = vunpack.c.l.b16 %v2867
        %v2996 = vunpack.c.l.b16 %v2868
        %v2997 = vunpack.c.l.b16 %v2869
        %v2998 = vunpack.c.l.b16 %v2870
        %v2999 = vunpack.c.l.b16 %v2871
        %v3000 = vunpack.c.l.b16 %v2872
        %v3001 = vunpack.c.l.b16 %v2873
        %v3002 = vunpack.c.l.b16 %v2874
        %v3003 = vunpack.c.l.b16 %v2875
        %v3004 = vunpack.c.l.b16 %v2876
        %v3005 = vunpack.c.l.b16 %v2877
        %v3006 = vunpack.c.l.b16 %v2878
        %v3007 = vunpack.c.l.b16 %v2879
        %v3008 = vunpack.c.l.b16 %v2880
        %v3009 = vunpack.c.l.b16 %v2881
        %v3010 = vpack.c.b16 %v2947, %v2946
        %v3011 = vpack.c.b16 %v2949, %v2948
        %v3012 = vpack.c.b16 %v2951, %v2950
        %v3013 = vpack.c.b16 %v2953, %v2952
        %v3014 = vpack.c.b16 %v2955, %v2954
        %v3015 = vpack.c.b16 %v2957, %v2956
        %v3016 = vpack.c.b16 %v2959, %v2958
        %v3017 = vpack.c.b16 %v2961, %v2960
        %v3018 = vpack.c.b16 %v2963, %v2962
        %v3019 = vpack.c.b16 %v2965, %v2964
        %v3020 = vpack.c.b16 %v2967, %v2966
        %v3021 = vpack.c.b16 %v2969, %v2968
        %v3022 = vpack.c.b16 %v2971, %v2970
        %v3023 = vpack.c.b16 %v2973, %v2972
        %v3024 = vpack.c.b16 %v2975, %v2974
        %v3025 = vpack.c.b16 %v2977, %v2976
        %v3026 = vpack.c.b16 %v2979, %v2978
        %v3027 = vpack.c.b16 %v2981, %v2980
        %v3028 = vpack.c.b16 %v2983, %v2982
        %v3029 = vpack.c.b16 %v2985, %v2984
        %v3030 = vpack.c.b16 %v2987, %v2986
        %v3031 = vpack.c.b16 %v2989, %v2988
        %v3032 = vpack.c.b16 %v2991, %v2990
        %v3033 = vpack.c.b16 %v2993, %v2992
        %v3034 = vpack.c.b16 %v2995, %v2994
        %v3035 = vpack.c.b16 %v2997, %v2996
        %v3036 = vpack.c.b16 %v2999, %v2998
        %v3037 = vpack.c.b16 %v3001, %v3000
        %v3038 = vpack.c.b16 %v3003, %v3002
        %v3039 = vpack.c.b16 %v3005, %v3004
        %v3040 = vpack.c.b16 %v3007, %v3006
        %v3041 = vpack.c.b16 %v3009, %v3008
        %3074 = vmatprep.subr.bf16.mxu0 0
        %3075 = vmatpush1.bf16.msra.mxu0 %v3010
        %3076 = vmatprep.subr.bf16.mxu0 0
        %3077 = vmatpush1.bf16.msra.mxu0 %v3011
        %3078 = vmatprep.subr.bf16.mxu0 0
        %3079 = vmatpush1.bf16.msra.mxu0 %v3012
        %3080 = vmatprep.subr.bf16.mxu0 0
        %3081 = vmatpush1.bf16.msra.mxu0 %v3013
        %3082 = vmatprep.subr.bf16.mxu0 0
        %3083 = vmatpush1.bf16.msra.mxu0 %v3014
        %3084 = vmatprep.subr.bf16.mxu0 0
        %3085 = vmatpush1.bf16.msra.mxu0 %v3015
        %3086 = vmatprep.subr.bf16.mxu0 0
        %3087 = vmatpush1.bf16.msra.mxu0 %v3016
        %3088 = vmatprep.subr.bf16.mxu0 0
        %3089 = vmatpush1.bf16.msra.mxu0 %v3017
        %3090 = vmatprep.subr.bf16.mxu0 0
        %3091 = vmatpush1.bf16.msra.mxu0 %v3018
        %3092 = vmatprep.subr.bf16.mxu0 0
        %3093 = vmatpush1.bf16.msra.mxu0 %v3019
        %3094 = vmatprep.subr.bf16.mxu0 0
        %3095 = vmatpush1.bf16.msra.mxu0 %v3020
        %3096 = vmatprep.subr.bf16.mxu0 0
        %3097 = vmatpush1.bf16.msra.mxu0 %v3021
        %3098 = vmatprep.subr.bf16.mxu0 0
        %3099 = vmatpush1.bf16.msra.mxu0 %v3022
        %3100 = vmatprep.subr.bf16.mxu0 0
        %3101 = vmatpush1.bf16.msra.mxu0 %v3023
        %3102 = vmatprep.subr.bf16.mxu0 0
        %3103 = vmatpush1.bf16.msra.mxu0 %v3024
        %3104 = vmatprep.subr.bf16.mxu0 0
        %3105 = vmatpush1.bf16.msra.mxu0 %v3025
        %3106 = vmatprep.mubr.bf16.mxu0 %v2815
        %3107 = vmatmul.mubr.bf16.gmra.mrb[0].mxu0 %v2814
        %v3108 = vpop.f32.mrb[0].mxu0
        %v3109 = vadd.f32 0.0, %v3108
        %v3110 = vpop.f32.mrb[0].mxu0
        %v3111 = vpop.f32.mrb[0].mxu0
        %v3112 = vpop.f32.mrb[0].mxu0
        %3113 = vdwg.mxu0
        %3114 = vmatprep.subr.bf16.mxu0 0
        %3115 = vmatpush1.bf16.msra.mxu0 %v3026
        %3116 = vmatprep.subr.bf16.mxu0 0
        %3117 = vmatpush1.bf16.msra.mxu0 %v3027
        %3118 = vmatprep.subr.bf16.mxu0 0
        %3119 = vmatpush1.bf16.msra.mxu0 %v3028
        %3120 = vmatprep.subr.bf16.mxu0 0
        %3121 = vmatpush1.bf16.msra.mxu0 %v3029
        %3122 = vmatprep.subr.bf16.mxu0 0
        %3123 = vmatpush1.bf16.msra.mxu0 %v3030
        %3124 = vmatprep.subr.bf16.mxu0 0
        %3125 = vmatpush1.bf16.msra.mxu0 %v3031
        %3126 = vmatprep.subr.bf16.mxu0 0
        %3127 = vmatpush1.bf16.msra.mxu0 %v3032
        %3128 = vmatprep.subr.bf16.mxu0 0
        %3129 = vmatpush1.bf16.msra.mxu0 %v3033
        %3130 = vmatprep.subr.bf16.mxu0 0
        %3131 = vmatpush1.bf16.msra.mxu0 %v3034
        %3132 = vmatprep.subr.bf16.mxu0 0
        %3133 = vmatpush1.bf16.msra.mxu0 %v3035
        %3134 = vmatprep.subr.bf16.mxu0 0
        %3135 = vmatpush1.bf16.msra.mxu0 %v3036
        %3136 = vmatprep.subr.bf16.mxu0 0
        %3137 = vmatpush1.bf16.msra.mxu0 %v3037
        %3138 = vmatprep.subr.bf16.mxu0 0
        %3139 = vmatpush1.bf16.msra.mxu0 %v3038
        %3140 = vmatprep.subr.bf16.mxu0 0
        %3141 = vmatpush1.bf16.msra.mxu0 %v3039
        %3142 = vmatprep.subr.bf16.mxu0 0
        %3143 = vmatpush1.bf16.msra.mxu0 %v3040
        %3144 = vmatprep.subr.bf16.mxu0 0
        %3145 = vmatpush1.bf16.msra.mxu0 %v3041
        %3146 = vmatprep.mubr.bf16.mxu0 %v2817
        %3147 = vmatmul.mubr.bf16.gmra.mrb[0].mxu0 %v2816
        %v3148 = vpop.f32.mrb[0].mxu0
        %v3149 = vadd.f32 %v3109, %v3148
        %v3150 = vpop.f32.mrb[0].mxu0
        %v3151 = vpop.f32.mrb[0].mxu0
        %v3152 = vpop.f32.mrb[0].mxu0
        %3153 = vdwg.mxu0
        %3154 = vst [vmem:[%s277] sm:$0x1] %v3149
        %p3155 = scmp.lt.s32.totalorder %s22, 1
        %s3156 = scalar_select %p3155, %s22, 1
        %s3157 = smul.addr %s3156, 4
        %s3158 = scalar_lea.vmem %s6, %s3157
        %s3159 = sand.u32 %s187, 1
        %s3160 = scalar_lea.sflag [#allocation7], %s3159
        %s3161 = sand.u32 %s187, 1
        %s3162 = scalar_lea.vmem [#allocation6], %s3161
        // Predicated region
        $region45: #{discriminator_forward.5} parent=43 // pred_check
          %p3163 = pneg %p171
        $region46: #{discriminator_forward.5} parent=43 // pred_check_branch
          %3165 = sbr.rel (%p3163) target = $region48
        $region47: #{discriminator_forward.5} parent=43 // pred_region
          _
        $region48: #{discriminator_forward.5} parent=43 // pred_fallthru
          _
        // Predicated region
        $region49: #{discriminator_forward.5} parent=43 // pred_check
          %p3166 = pneg %p197
        $region50: #{discriminator_forward.5} parent=43 // pred_check_branch
          %3168 = sbr.rel (%p3166) target = $region52
        $region51: #{discriminator_forward.5} parent=43 // pred_region
          %s3170 = ssub.s32 16, 16
          %3171 = vsyncadd %s3160, %s3170
          %s3172 = smul.addr %s22, 16
          %s3173 = scalar_lea.hbm %s7, %s3172
          %s3175 = sshll.u32 %s3162, 4
          %s3176 = int_to_ptr.vmem [resolvable:$true] %s3175
          %3178 = dma.vmem_to_hbm [thread:$0]  %s3176, 16, %s3173, %s3160
        $region52: #{discriminator_forward.5} parent=43 // pred_fallthru
          _
      $region44: #{discriminator_forward.5} parent=5 // pred_fallthru
        _
      %p3179 = scmp.le.s32.totalorder 2, %s17
      // Predicated region
      $region53: #{discriminator_forward.5} parent=5 // pred_check
        %p3180 = pneg %p3179
      $region54: #{discriminator_forward.5} parent=5 // pred_check_branch
        %3182 = sbr.rel (%p3180) target = $region56
      $region55: #{discriminator_forward.5} parent=5 // pred_region
        %s3183 = ssub.s32 %s17, 2
        // Predicated region
        $region57: #{discriminator_forward.5} parent=55 // pred_check
          %p3184 = pneg %p177
        $region58: #{discriminator_forward.5} parent=55 // pred_check_branch
          %3186 = sbr.rel (%p3184) target = $region60
        $region59: #{discriminator_forward.5} parent=55 // pred_region
          %p3187 = scmp.lt.s32.totalorder %s23, 1
          %s3188 = scalar_select %p3187, %s23, 1
          %s3189 = smul.addr %s3188, 4
          %s3190 = scalar_lea.vmem %s6, %s3189
        $region60: #{discriminator_forward.5} parent=55 // pred_fallthru
          _
        // Predicated region
        $region61: #{discriminator_forward.5} parent=55 // pred_check
          %p3191 = pneg %p203
        $region62: #{discriminator_forward.5} parent=55 // pred_check_branch
          %3193 = sbr.rel (%p3191) target = $region64
        $region63: #{discriminator_forward.5} parent=55 // pred_region
          %s3194 = sand.u32 %s188, 1
          %s3195 = scalar_lea.sflag [#allocation7], %s3194
          %s3196 = sand.u32 %s188, 1
          %s3197 = scalar_lea.vmem [#allocation6], %s3196
          %3198 = dma.done %s3195, 16
        $region64: #{discriminator_forward.5} parent=55 // pred_fallthru
          _
      $region56: #{discriminator_forward.5} parent=5 // pred_fallthru
        _
    $region6: #{discriminator_forward.5} parent=1 // loop_footer
      %s21 = sadd.s32 1, %s17
    $region7: #{discriminator_forward.5} parent=1 // loop_footer_branch
      %16 = sbr.rel target = $region3
    $region8: #{discriminator_forward.5} parent=1 // loop_exit
      _
    %3199 = vsyncpa [#allocation7], 1
    %s3200 = scalar_lea.sflag [#allocation7], 1
    %3201 = vsyncpa %s3200, 1

</llo_original>
